<compile_context>
chip_gen: v7x
topology: tpu7x:2x2x1
jax: 0.10.0
libtpu: 0.0.40
codegen_flags: <defaults>
</compile_context>

<pallas_src>
import jax
import jax.numpy as jnp
import numpy as np
from jax.experimental import pallas as pl
from jax.experimental.pallas import tpu as pltpu

NUM_CLASSES = 5
IN_FEATURES = 64 * 795          # 50880, fixed by the module architecture
TK = 12800                      # K tile for layer 1 (multiple of 128)
K_PADDED = 51200                # IN_FEATURES rounded up to a multiple of TK
N1, N2, N3 = 256, 128, 64
VMEM_LIMIT = 32 * 1024 * 1024   # safe on v5e/v6e (128 MiB) and v7x (64 MiB)


def _num_tensorcores():
    """Best-effort detection of TensorCores per chip (2 on v7x)."""
    try:
        kind = jax.devices()[0].device_kind.lower()
    except Exception:
        return 1
    if "v7" in kind or "7x" in kind:
        return 2
    return 1


def _cost_estimate(B, nc, include_head=True):
    flops = 2 * B * K_PADDED * N1
    bytes_accessed = (K_PADDED * N1 + B * K_PADDED) * 2 + (N1 + B * N1) * 4
    transcendentals = 0
    if include_head:
        flops += 2 * B * (N1 * N2 + N2 * N3 + N3 * nc)
        bytes_accessed += (N1 * N2 + N2 * N3 + N3 * nc + N2 + N3 + nc) * 4
        bytes_accessed += B * nc * 4
        transcendentals = B * nc
    return pl.CostEstimate(flops=flops, transcendentals=transcendentals,
                           bytes_accessed=bytes_accessed)


# ---------------------------------------------------------------------------
# Path A (1 TensorCore): fully fused kernel.
#   x @ W1 + b1, ReLU  (K-tiled bf16 accumulation into f32 scratch), then on
#   the last K step the tiny 256->128->64->5 head + LogSoftmax.
# ---------------------------------------------------------------------------
def fused_kernel(x_ref, w1_ref, b1_ref, w2_ref, b2_ref, w3_ref, b3_ref,
                 w4_ref, b4_ref, o_ref, acc_ref):
    k = pl.program_id(0)

    @pl.when(k == 0)
    def _():
        acc_ref[...] = jnp.zeros_like(acc_ref)

    off = pl.multiple_of(k * TK, 128)
    acc_ref[...] += jnp.dot(x_ref[:, pl.ds(off, TK)], w1_ref[...],
                            preferred_element_type=jnp.float32)

    @pl.when(k == pl.num_programs(0) - 1)
    def _():
        h = jnp.maximum(acc_ref[...] + b1_ref[...], 0.0)
        h = jnp.maximum(
            jnp.dot(h, w2_ref[...], preferred_element_type=jnp.float32)
            + b2_ref[...], 0.0)
        h = jnp.maximum(
            jnp.dot(h, w3_ref[...], preferred_element_type=jnp.float32)
            + b3_ref[...], 0.0)
        logits = (jnp.dot(h, w4_ref[...], preferred_element_type=jnp.float32)
                  + b4_ref[...])
        m = jnp.max(logits, axis=-1, keepdims=True)
        lse = m + jnp.log(jnp.sum(jnp.exp(logits - m), axis=-1, keepdims=True))
        o_ref[...] = (logits - lse).astype(o_ref.dtype)


def eeg_fused(x_p, prepped):
    """x_p: (B, K_PADDED) bf16.  prepped: pre-padded/cast params."""
    w1p, b1, w2, b2, w3, b3, w4, b4 = prepped
    B = x_p.shape[0]
    nc = w4.shape[1]

    def const(shape):
        # Constant block index over the K grid axis -> loaded once, no re-DMA.
        return pl.BlockSpec(shape, lambda k, _s=shape: tuple(0 for _ in _s))

    return pl.pallas_call(
        fused_kernel,
        out_shape=jax.ShapeDtypeStruct((B, nc), jnp.float32),
        grid_spec=pltpu.PrefetchScalarGridSpec(
            num_scalar_prefetch=0,
            grid=(K_PADDED // TK,),
            in_specs=[
                const((B, K_PADDED)),                       # x (bf16, resident)
                pl.BlockSpec((TK, N1), lambda k: (k, 0)),   # W1 tile (bf16)
                const((1, N1)),                             # b1
                const(w2.shape), const((1, w2.shape[1])),   # W2, b2
                const(w3.shape), const((1, w3.shape[1])),   # W3, b3
                const(w4.shape), const((1, w4.shape[1])),   # W4, b4
            ],
            out_specs=const((B, nc)),
            scratch_shapes=[pltpu.VMEM((B, N1), jnp.float32)],
        ),
        compiler_params=pltpu.CompilerParams(
            dimension_semantics=("arbitrary",),
            vmem_limit_bytes=VMEM_LIMIT,
        ),
        cost_estimate=_cost_estimate(B, nc, include_head=True),
    )(x_p, w1p, b1, w2, b2, w3, b3, w4, b4)


# ---------------------------------------------------------------------------
# Path B (2 TensorCores, v7x): layer 1 split into two 128-wide N halves over a
# leading "parallel" grid axis (each core streams half of W1), then a tiny
# separate head kernel.
# ---------------------------------------------------------------------------
def layer1_split_kernel(x_ref, w1_ref, b1_ref, h_ref, acc_ref):
    k = pl.program_id(1)

    @pl.when(k == 0)
    def _():
        acc_ref[...] = jnp.zeros_like(acc_ref)

    off = pl.multiple_of(k * TK, 128)
    acc_ref[...] += jnp.dot(x_ref[:, pl.ds(off, TK)], w1_ref[...],
                            preferred_element_type=jnp.float32)

    @pl.when(k == pl.num_programs(1) - 1)
    def _():
        h_ref[...] = jnp.maximum(acc_ref[...] + b1_ref[...], 0.0)


def eeg_layer1_split(x_p, w1p, b1):
    B = x_p.shape[0]
    half = N1 // 2
    return pl.pallas_call(
        layer1_split_kernel,
        out_shape=jax.ShapeDtypeStruct((B, N1), jnp.float32),
        grid_spec=pltpu.PrefetchScalarGridSpec(
            num_scalar_prefetch=0,
            grid=(2, K_PADDED // TK),
            in_specs=[
                pl.BlockSpec((B, K_PADDED), lambda n, k: (0, 0)),  # x resident
                pl.BlockSpec((TK, half), lambda n, k: (k, n)),     # W1 half-col
                pl.BlockSpec((1, half), lambda n, k: (0, n)),      # b1 half
            ],
            out_specs=pl.BlockSpec((B, half), lambda n, k: (0, n)),
            scratch_shapes=[pltpu.VMEM((B, half), jnp.float32)],
        ),
        compiler_params=pltpu.CompilerParams(
            dimension_semantics=("parallel", "arbitrary"),
            vmem_limit_bytes=VMEM_LIMIT,
        ),
        cost_estimate=_cost_estimate(B, NUM_CLASSES, include_head=False),
    )(x_p, w1p, b1)


def head_kernel(h_ref, w2_ref, b2_ref, w3_ref, b3_ref, w4_ref, b4_ref, o_ref):
    h = jnp.maximum(
        jnp.dot(h_ref[...], w2_ref[...], preferred_element_type=jnp.float32)
        + b2_ref[...], 0.0)
    h = jnp.maximum(
        jnp.dot(h, w3_ref[...], preferred_element_type=jnp.float32)
        + b3_ref[...], 0.0)
    logits = (jnp.dot(h, w4_ref[...], preferred_element_type=jnp.float32)
              + b4_ref[...])
    m = jnp.max(logits, axis=-1, keepdims=True)
    lse = m + jnp.log(jnp.sum(jnp.exp(logits - m), axis=-1, keepdims=True))
    o_ref[...] = (logits - lse).astype(o_ref.dtype)


def eeg_head(h1, w2, b2, w3, b3, w4, b4):
    B = h1.shape[0]
    nc = w4.shape[1]
    # Tiny (~165 KB of weights): single call, full arrays resident in VMEM.
    return pl.pallas_call(
        head_kernel,
        out_shape=jax.ShapeDtypeStruct((B, nc), jnp.float32),
    )(h1, w2, b2, w3, b3, w4, b4)


# ---------------------------------------------------------------------------
# Parameter init (deterministic, PyTorch-like uniform(-1/sqrt(fan_in), ...))
# ---------------------------------------------------------------------------
def init_params(key):
    dims = [(IN_FEATURES, N1), (N1, N2), (N2, N3), (N3, NUM_CLASSES)]
    params = []
    for fin, fout in dims:
        kw, kb, key = jax.random.split(key, 3)
        bound = 1.0 / np.sqrt(fin)
        w = jax.random.uniform(kw, (fin, fout), jnp.float32, -bound, bound)
        b = jax.random.uniform(kb, (fout,), jnp.float32, -bound, bound)
        params.append((w, b))
    return params


def prepare_params(params):
    """One-time (outside jit): pad W1 along K, cast to bf16, biases -> rows."""
    (w1, b1), (w2, b2), (w3, b3), (w4, b4) = params
    w1p = jnp.pad(w1, ((0, K_PADDED - IN_FEATURES), (0, 0))).astype(jnp.bfloat16)
    return (
        w1p, b1.reshape(1, -1),
        w2, b2.reshape(1, -1),
        w3, b3.reshape(1, -1),
        w4, b4.reshape(1, -1),
    )


def _flatten_pad_cast(x):
    B = x.shape[0]
    x_flat = x.reshape(B, -1)                                   # == x.view(B,-1)
    x_p = jnp.pad(x_flat, ((0, 0), (0, K_PADDED - IN_FEATURES)))
    return x_p.astype(jnp.bfloat16)                             # tiny (~200 KB)


@jax.jit
def forward_fused(x, prepped):
    return eeg_fused(_flatten_pad_cast(x), prepped)


@jax.jit
def forward_split(x, prepped):
    w1p, b1, w2, b2, w3, b3, w4, b4 = prepped
    h1 = eeg_layer1_split(_flatten_pad_cast(x), w1p, b1)
    return eeg_head(h1, w2, b2, w3, b3, w4, b4)


_TWO_CORE = _num_tensorcores() >= 2


def forward(x, prepped):
    """Chip-appropriate path: split layer 1 across TCs on v7x, fused otherwise."""
    return forward_split(x, prepped) if _TWO_CORE else forward_fused(x, prepped)


def forward_ref(x, params):
    """Plain-JAX f32 reference for verification (un-padded, un-cast params)."""
    (w1, b1), (w2, b2), (w3, b3), (w4, b4) = params
    h = x.reshape(x.shape[0], -1)
    h = jnp.maximum(h @ w1 + b1, 0.0)
    h = jnp.maximum(h @ w2 + b2, 0.0)
    h = jnp.maximum(h @ w3 + b3, 0.0)
    logits = h @ w4 + b4
    return jax.nn.log_softmax(logits, axis=1)


if __name__ == "__main__":
    key = jax.random.PRNGKey(0)
    kx, kp = jax.random.split(key)

    B = 2
    x = jax.random.normal(kx, (B, 64, 795), dtype=jnp.float32)
    params = init_params(kp)
    prepped = prepare_params(params)     # one-time, outside the jitted forward

    ref = forward_ref(x, params)

    # Exercise and verify BOTH paths (fused 1-core and N-split 2-core) so all
    # kernel code is tested regardless of which chip the sandbox runs.
    # bf16 weight/activation stream -> looser tolerance vs. the f32 reference.
    out_fused = jax.block_until_ready(forward_fused(x, prepped))
    out_split = jax.block_until_ready(forward_split(x, prepped))
    np.testing.assert_allclose(np.asarray(out_fused), np.asarray(ref),
                               atol=2e-2, rtol=2e-2)
    np.testing.assert_allclose(np.asarray(out_split), np.asarray(ref),
                               atol=2e-2, rtol=2e-2)

    out = jax.block_until_ready(forward(x, prepped))   # chip-appropriate path
    assert out.shape == (B, NUM_CLASSES)
    print("KERNEL_OK")
</pallas_src>

<mosaic_0001>
module attributes {stable_mosaic.version = 11 : i64} {
  func.func @fused_kernel(%arg0: i32, %arg1: memref<2x51200xbf16, #tpu.memory_space<vmem>>, %arg2: memref<12800x256xbf16, #tpu.memory_space<vmem>>, %arg3: memref<1x256xf32, #tpu.memory_space<vmem>>, %arg4: memref<256x128xf32, #tpu.memory_space<vmem>>, %arg5: memref<1x128xf32, #tpu.memory_space<vmem>>, %arg6: memref<128x64xf32, #tpu.memory_space<vmem>>, %arg7: memref<1x64xf32, #tpu.memory_space<vmem>>, %arg8: memref<64x5xf32, #tpu.memory_space<vmem>>, %arg9: memref<1x5xf32, #tpu.memory_space<vmem>>, %arg10: memref<2x5xf32, #tpu.memory_space<vmem>>, %arg11: memref<2x256xf32, #tpu.memory_space<vmem>>) attributes {dimension_semantics = [#tpu.dimension_semantics<arbitrary>], iteration_bounds = array<i64: 4>, scalar_prefetch = 0 : i64, scratch_operands = 1 : i64, tpu.core_type = #tpu.core_type<tc>, window_params = [{pipeline_mode = #tpu.pipeline_mode<synchronous>, transform_indices = @transform_0, window_bounds = array<i64: 2, 51200>}, {transform_indices = @transform_1, window_bounds = array<i64: 12800, 256>}, {pipeline_mode = #tpu.pipeline_mode<synchronous>, transform_indices = @transform_2, window_bounds = array<i64: 1, 256>}, {pipeline_mode = #tpu.pipeline_mode<synchronous>, transform_indices = @transform_3, window_bounds = array<i64: 256, 128>}, {pipeline_mode = #tpu.pipeline_mode<synchronous>, transform_indices = @transform_4, window_bounds = array<i64: 1, 128>}, {pipeline_mode = #tpu.pipeline_mode<synchronous>, transform_indices = @transform_5, window_bounds = array<i64: 128, 64>}, {pipeline_mode = #tpu.pipeline_mode<synchronous>, transform_indices = @transform_6, window_bounds = array<i64: 1, 64>}, {pipeline_mode = #tpu.pipeline_mode<synchronous>, transform_indices = @transform_7, window_bounds = array<i64: 64, 5>}, {pipeline_mode = #tpu.pipeline_mode<synchronous>, transform_indices = @transform_8, window_bounds = array<i64: 1, 5>}, {pipeline_mode = #tpu.pipeline_mode<synchronous>, transform_indices = @transform_9, window_bounds = array<i64: 2, 5>}]} {
    %c0_i32 = arith.constant 0 : i32
    %0 = arith.cmpi eq, %arg0, %c0_i32 : i32
    %1 = arith.extui %0 : i1 to i32
    %c0_i32_0 = arith.constant 0 : i32
    %2 = arith.cmpi ne, %1, %c0_i32_0 : i32
    scf.if %2 {
      %cst_8 = arith.constant 0.000000e+00 : f32
      %15 = vector.broadcast %cst_8 : f32 to vector<2x256xf32>
      %c0_9 = arith.constant 0 : index
      %c0_10 = arith.constant 0 : index
      %16 = vector.load %arg11[%c0_9, %c0_10] : memref<2x256xf32, #tpu.memory_space<vmem>>, vector<2x256xf32>
      tpu.vector_store %arg11[%c0_9, %c0_10], %15 {strides = array<i32>} : memref<2x256xf32, #tpu.memory_space<vmem>>, vector<2x256xf32>,
    } else {
    }
    %c12800_i32 = arith.constant 12800 : i32
    %3 = arith.muli %arg0, %c12800_i32 : i32
    %4 = tpu.assume_multiple %3, 128 : i32
    %c0 = arith.constant 0 : index
    %c0_1 = arith.constant 0 : index
    %5 = vector.load %arg11[%c0, %c0_1] : memref<2x256xf32, #tpu.memory_space<vmem>>, vector<2x256xf32>
    %c0_2 = arith.constant 0 : index
    %6 = arith.index_cast %4 : i32 to index
    %7 = vector.load %arg1[%c0_2, %6] : memref<2x51200xbf16, #tpu.memory_space<vmem>>, vector<2x12800xbf16>
    %c0_3 = arith.constant 0 : index
    %c0_4 = arith.constant 0 : index
    %8 = vector.load %arg2[%c0_3, %c0_4] : memref<12800x256xbf16, #tpu.memory_space<vmem>>, vector<12800x256xbf16>
    %cst = arith.constant dense<0.000000e+00> : vector<2x256xf32>
    %9 = tpu.matmul %7, %8, %cst {dimension_numbers = #tpu.dot_dimension_numbers<[1], [0], [0], [1], [0, 0, 1, 1], [], []>} : vector<2x12800xbf16>, vector<12800x256xbf16>, vector<2x256xf32> -> vector<2x256xf32>
    %10 = arith.addf %5, %9 : vector<2x256xf32>
    %c0_5 = arith.constant 0 : index
    %c0_6 = arith.constant 0 : index
    %11 = vector.load %arg11[%c0_5, %c0_6] : memref<2x256xf32, #tpu.memory_space<vmem>>, vector<2x256xf32>
    tpu.vector_store %arg11[%c0_5, %c0_6], %10 {strides = array<i32>} : memref<2x256xf32, #tpu.memory_space<vmem>>, vector<2x256xf32>,
    %c3_i32 = arith.constant 3 : i32
    %12 = arith.cmpi eq, %arg0, %c3_i32 : i32
    %13 = arith.extui %12 : i1 to i32
    %c0_i32_7 = arith.constant 0 : i32
    %14 = arith.cmpi ne, %13, %c0_i32_7 : i32
    scf.if %14 {
      %c0_8 = arith.constant 0 : index
      %c0_9 = arith.constant 0 : index
      %15 = vector.load %arg11[%c0_8, %c0_9] : memref<2x256xf32, #tpu.memory_space<vmem>>, vector<2x256xf32>
      %c0_10 = arith.constant 0 : index
      %c0_11 = arith.constant 0 : index
      %16 = vector.load %arg3[%c0_10, %c0_11] : memref<1x256xf32, #tpu.memory_space<vmem>>, vector<1x256xf32>
      %17 = vector.broadcast %16 : vector<1x256xf32> to vector<2x256xf32>
      %18 = arith.addf %15, %17 : vector<2x256xf32>
      %cst_12 = arith.constant 0.000000e+00 : f32
      %19 = vector.broadcast %cst_12 : f32 to vector<2x256xf32>
      %20 = arith.maximumf %18, %19 : vector<2x256xf32>
      %c0_13 = arith.constant 0 : index
      %c0_14 = arith.constant 0 : index
      %21 = vector.load %arg4[%c0_13, %c0_14] : memref<256x128xf32, #tpu.memory_space<vmem>>, vector<256x128xf32>
      %cst_15 = arith.constant dense<0.000000e+00> : vector<2x128xf32>
      %22 = tpu.matmul %20, %21, %cst_15 {dimension_numbers = #tpu.dot_dimension_numbers<[1], [0], [0], [1], [0, 0, 1, 1], [], []>} : vector<2x256xf32>, vector<256x128xf32>, vector<2x128xf32> -> vector<2x128xf32>
      %c0_16 = arith.constant 0 : index
      %c0_17 = arith.constant 0 : index
      %23 = vector.load %arg5[%c0_16, %c0_17] : memref<1x128xf32, #tpu.memory_space<vmem>>, vector<1x128xf32>
      %24 = vector.broadcast %23 : vector<1x128xf32> to vector<2x128xf32>
      %25 = arith.addf %22, %24 : vector<2x128xf32>
      %cst_18 = arith.constant 0.000000e+00 : f32
      %26 = vector.broadcast %cst_18 : f32 to vector<2x128xf32>
      %27 = arith.maximumf %25, %26 : vector<2x128xf32>
      %c0_19 = arith.constant 0 : index
      %c0_20 = arith.constant 0 : index
      %28 = vector.load %arg6[%c0_19, %c0_20] : memref<128x64xf32, #tpu.memory_space<vmem>>, vector<128x64xf32>
      %cst_21 = arith.constant dense<0.000000e+00> : vector<2x64xf32>
      %29 = tpu.matmul %27, %28, %cst_21 {dimension_numbers = #tpu.dot_dimension_numbers<[1], [0], [0], [1], [0, 0, 1, 1], [], []>} : vector<2x128xf32>, vector<128x64xf32>, vector<2x64xf32> -> vector<2x64xf32>
      %c0_22 = arith.constant 0 : index
      %c0_23 = arith.constant 0 : index
      %30 = vector.load %arg7[%c0_22, %c0_23] : memref<1x64xf32, #tpu.memory_space<vmem>>, vector<1x64xf32>
      %31 = vector.broadcast %30 : vector<1x64xf32> to vector<2x64xf32>
      %32 = arith.addf %29, %31 : vector<2x64xf32>
      %cst_24 = arith.constant 0.000000e+00 : f32
      %33 = vector.broadcast %cst_24 : f32 to vector<2x64xf32>
      %34 = arith.maximumf %32, %33 : vector<2x64xf32>
      %c0_25 = arith.constant 0 : index
      %c0_26 = arith.constant 0 : index
      %35 = vector.load %arg8[%c0_25, %c0_26] : memref<64x5xf32, #tpu.memory_space<vmem>>, vector<64x5xf32>
      %cst_27 = arith.constant dense<0.000000e+00> : vector<2x5xf32>
      %36 = tpu.matmul %34, %35, %cst_27 {dimension_numbers = #tpu.dot_dimension_numbers<[1], [0], [0], [1], [0, 0, 1, 1], [], []>} : vector<2x64xf32>, vector<64x5xf32>, vector<2x5xf32> -> vector<2x5xf32>
      %c0_28 = arith.constant 0 : index
      %c0_29 = arith.constant 0 : index
      %37 = vector.load %arg9[%c0_28, %c0_29] : memref<1x5xf32, #tpu.memory_space<vmem>>, vector<1x5xf32>
      %38 = vector.broadcast %37 : vector<1x5xf32> to vector<2x5xf32>
      %39 = arith.addf %36, %38 : vector<2x5xf32>
      %cst_30 = arith.constant dense<0xFF800000> : vector<2xf32>
      %40 = vector.multi_reduction <maximumf>, %39, %cst_30 [1] : vector<2x5xf32> to vector<2xf32>
      %41 = vector.shape_cast %40 : vector<2xf32> to vector<2x1xf32>
      %42 = vector.broadcast %41 : vector<2x1xf32> to vector<2x5xf32>
      %43 = arith.subf %39, %42 : vector<2x5xf32>
      %44 = math.exp %43 : vector<2x5xf32>
      %cst_31 = arith.constant dense<0.000000e+00> : vector<2xf32>
      %45 = vector.multi_reduction <add>, %44, %cst_31 [1] : vector<2x5xf32> to vector<2xf32>
      %46 = vector.shape_cast %45 : vector<2xf32> to vector<2x1xf32>
      %47 = math.log %46 : vector<2x1xf32>
      %48 = arith.addf %41, %47 : vector<2x1xf32>
      %49 = vector.broadcast %48 : vector<2x1xf32> to vector<2x5xf32>
      %50 = arith.subf %39, %49 : vector<2x5xf32>
      %c0_32 = arith.constant 0 : index
      %c0_33 = arith.constant 0 : index
      %51 = vector.load %arg10[%c0_32, %c0_33] : memref<2x5xf32, #tpu.memory_space<vmem>>, vector<2x5xf32>
      tpu.vector_store %arg10[%c0_32, %c0_33], %50 {strides = array<i32>} : memref<2x5xf32, #tpu.memory_space<vmem>>, vector<2x5xf32>,
    } else {
    }
    return
  }
  func.func @transform_0(%arg0: i32) -> (i32, i32) {
    %c0_i32 = arith.constant 0 : i32
    %c0_i32_0 = arith.constant 0 : i32
    %c0_i32_1 = arith.constant 0 : i32
    return %c0_i32, %c0_i32_0 : i32, i32
  }
  func.func @transform_1(%arg0: i32) -> (i32, i32) {
    %c0_i32 = arith.constant 0 : i32
    %c0_i32_0 = arith.constant 0 : i32
    return %arg0, %c0_i32 : i32, i32
  }
  func.func @transform_2(%arg0: i32) -> (i32, i32) {
    %c0_i32 = arith.constant 0 : i32
    %c0_i32_0 = arith.constant 0 : i32
    %c0_i32_1 = arith.constant 0 : i32
    return %c0_i32, %c0_i32_0 : i32, i32
  }
  func.func @transform_3(%arg0: i32) -> (i32, i32) {
    %c0_i32 = arith.constant 0 : i32
    %c0_i32_0 = arith.constant 0 : i32
    %c0_i32_1 = arith.constant 0 : i32
    return %c0_i32, %c0_i32_0 : i32, i32
  }
  func.func @transform_4(%arg0: i32) -> (i32, i32) {
    %c0_i32 = arith.constant 0 : i32
    %c0_i32_0 = arith.constant 0 : i32
    %c0_i32_1 = arith.constant 0 : i32
    return %c0_i32, %c0_i32_0 : i32, i32
  }
  func.func @transform_5(%arg0: i32) -> (i32, i32) {
    %c0_i32 = arith.constant 0 : i32
    %c0_i32_0 = arith.constant 0 : i32
    %c0_i32_1 = arith.constant 0 : i32
    return %c0_i32, %c0_i32_0 : i32, i32
  }
  func.func @transform_6(%arg0: i32) -> (i32, i32) {
    %c0_i32 = arith.constant 0 : i32
    %c0_i32_0 = arith.constant 0 : i32
    %c0_i32_1 = arith.constant 0 : i32
    return %c0_i32, %c0_i32_0 : i32, i32
  }
  func.func @transform_7(%arg0: i32) -> (i32, i32) {
    %c0_i32 = arith.constant 0 : i32
    %c0_i32_0 = arith.constant 0 : i32
    %c0_i32_1 = arith.constant 0 : i32
    return %c0_i32, %c0_i32_0 : i32, i32
  }
  func.func @transform_8(%arg0: i32) -> (i32, i32) {
    %c0_i32 = arith.constant 0 : i32
    %c0_i32_0 = arith.constant 0 : i32
    %c0_i32_1 = arith.constant 0 : i32
    return %c0_i32, %c0_i32_0 : i32, i32
  }
  func.func @transform_9(%arg0: i32) -> (i32, i32) {
    %c0_i32 = arith.constant 0 : i32
    %c0_i32_0 = arith.constant 0 : i32
    %c0_i32_1 = arith.constant 0 : i32
    return %c0_i32, %c0_i32_0 : i32, i32
  }
}

</mosaic_0001>

<llo_original>
// kernel: forward_fused.1
$region0: #{forward_fused.1}
  #allocation0 [shape = 'u32[]', space=smem, size = 0x4, offset = 0x4, fixed_abs, tag = 'smem constant byte address 0x4 - core index']
  #allocation1 [shape = 'u32[144,128]{1,0:T(1,128)}', space=vmem, size = 0x12000, scoped, tag = 'internal scratch']
  #allocation2 [shape = 'f32[2,256]{1,0:T(2,128)}', space=vmem, size = 0x800, scoped, tag = 'scratch operand']
  %s0 = inlined_call_operand.vmem [shape: bf16[2,51200], index: 0, kind: input, shape index: {}]
  %s1 = inlined_call_operand.hbm [shape: bf16[51200,256], index: 1, kind: input, shape index: {}]
  %s2 = inlined_call_operand.hbm [shape: f32[1,256], index: 2, kind: input, shape index: {}]
  %s3 = inlined_call_operand.hbm [shape: f32[256,128], index: 3, kind: input, shape index: {}]
  %s4 = inlined_call_operand.hbm [shape: f32[1,128], index: 4, kind: input, shape index: {}]
  %s5 = inlined_call_operand.vmem [shape: f32[128,64], index: 5, kind: input, shape index: {}]
  %s6 = inlined_call_operand.hbm [shape: f32[1,64], index: 6, kind: input, shape index: {}]
  %s7 = inlined_call_operand.vmem [shape: f32[64,5], index: 7, kind: input, shape index: {}]
  %s8 = inlined_call_operand.hbm [shape: f32[1,5], index: 8, kind: input, shape index: {}]
  %s9 = inlined_call_operand.hbm [shape: f32[2,5], index: 9, kind: output, shape index: {}]
  %s10 = sld [smem:[#allocation0]]
  $region101: #{forward_fused.1} parent=0
    _
  %s12 = ssub.s32 1, %s10
  %s13 = scalar_select 0, %s12, %s10
  $region1: #{forward_fused.1} parent=0
    #allocation3 [shape = 'u8[13107200]{0}', space=vmem, size = 0xc80000, scoped, tag = 'input window, operand 1']
    #allocation4 [shape = 's32[2]{0}', space=sflag, size = 0x8, scoped, tag = 'scoped memory for forward_fused.1']
    #allocation5 [shape = 's32[2]{0}', space=sflag, size = 0x8, scoped, tag = 'scoped memory for forward_fused.1']
    #allocation6 [shape = 'u8[1024]{0}', space=vmem, size = 0x400, scoped, tag = 'input window, operand 2, single buffered']
    #allocation7 [shape = 's32[1]{0}', space=sflag, size = 0x4, scoped, tag = 'scoped memory for forward_fused.1']
    #allocation8 [shape = 'u8[131072]{0}', space=vmem, size = 0x20000, scoped, tag = 'input window, operand 3, single buffered']
    #allocation9 [shape = 'u8[512]{0}', space=vmem, size = 0x400, scoped, tag = 'input window, operand 4, single buffered']
    #allocation10 [shape = 's32[1]{0}', space=sflag, size = 0x4, scoped, tag = 'scoped memory for forward_fused.1']
    #allocation11 [shape = 'u8[512]{0}', space=vmem, size = 0x400, scoped, tag = 'input window, operand 6, single buffered']
    #allocation12 [shape = 'u8[512]{0}', space=vmem, size = 0x400, scoped, tag = 'input window, operand 8, single buffered']
    #allocation13 [shape = 's32[1]{0}', space=sflag, size = 0x4, scoped, tag = 'scoped memory for forward_fused.1']
    #allocation14 [shape = 'u8[1024]{0}', space=vmem, size = 0x400, scoped, tag = 'output window, operand 0, single buffered']
    %14 = vsyncpa [#allocation4], 0
    %s15 = scalar_lea.sflag [#allocation4], 1
    %16 = vsyncpa %s15, 0
    %17 = vsyncpa [#allocation7], 0
    %18 = vsyncpa [#allocation10], 0
    %19 = vsyncpa [#allocation13], 0
    %20 = vsyncpa [#allocation5], 0
    loop: start=0, step=1, limit=6
    $region2: #{forward_fused.1} parent=1 // loop_pre_header
      _
    $region3: #{forward_fused.1} parent=1 // loop_header
      %s22 = sphi 0, %s26
      %p23 = scmp.ge.s32.totalorder %s22, 6
      %s30 = sphi 0, %s30
      %s32 = sphi 0, %s30
      %s33 = sphi 0, %s32
      %s47 = sphi 0, %s33
      %s53 = sphi 0, %s55
      %s56 = sphi 0, %s53
      %s57 = sphi 0, %s56
      %s73 = sphi 0, %s57
      %s77 = sphi 0, %s77
      %s79 = sphi 0, %s77
      %s80 = sphi 0, %s79
      %s94 = sphi 0, %s80
      %s98 = sphi 0, %s98
      %s100 = sphi 0, %s98
      %s101 = sphi 0, %s100
      %s115 = sphi 0, %s101
      %s119 = sphi 0, %s119
      %s121 = sphi 0, %s119
      %s122 = sphi 0, %s121
      %s136 = sphi 0, %s122
      %s140 = sphi 0, %s140
      %s142 = sphi 0, %s140
      %s143 = sphi 0, %s142
      %s157 = sphi 0, %s143
      %s161 = sphi 0, %s161
      %s163 = sphi 0, %s161
      %s164 = sphi 0, %s163
      %s178 = sphi 0, %s164
      %s182 = sphi 0, %s182
      %s184 = sphi 0, %s182
      %s185 = sphi 0, %s184
      %s199 = sphi 0, %s185
      %s203 = sphi 0, %s203
      %s205 = sphi 0, %s203
      %s206 = sphi 0, %s205
      %s220 = sphi 0, %s206
      %s224 = sphi 0, %s224
      %s226 = sphi 0, %s224
      %s227 = sphi 0, %s226
      %s241 = sphi 0, %s227
    $region4: #{forward_fused.1} parent=1 // loop_header_branch
      %25 = sbr.rel (%p23) target = $region8
    $region5: #{forward_fused.1} parent=1 // loop_body
      %s27 = ssub.s32 %s22, 1
      %s28 = ssub.s32 %s22, 2
      %s29 = sadd.s32 %s22, 1
      %s31 = sadd.s32 %s30, 1
      %p34 = scmp.eq.s32.totalorder %s22, 3
      %p35 = scmp.ne.s32.totalorder %s30, %s32
      %p36 = scmp.eq.s32.totalorder %s22, 0
      %p37 = por %p35, %p36
      %p38 = scmp.ne.s32.totalorder %s30, %s32
      %p39 = scmp.eq.s32.totalorder %s27, 3
      %p40 = por %p38, %p39
      %p41 = scmp.ne.s32.totalorder %s32, %s33
      %p42 = scmp.eq.s32.totalorder %s27, 0
      %p43 = por %p41, %p42
      %p44 = scmp.ne.s32.totalorder %s32, %s33
      %p45 = scmp.eq.s32.totalorder %s28, 3
      %p46 = por %p44, %p45
      %p48 = scmp.ne.s32.totalorder %s33, %s47
      %p49 = scmp.eq.s32.totalorder %s28, 0
      %p50 = por %p48, %p49
      %s51 = ssub.s32 %s22, %s29
      %p52 = scmp.eq.s32.totalorder %s51, 0
      %s54 = sadd.s32 %s53, 1
      %s55 = scalar_select %p52, %s53, %s54
      %p58 = pneg %p52
      %p59 = scmp.eq.s32.totalorder %s22, 3
      %p60 = por %p58, %p59
      %p61 = scmp.ne.s32.totalorder %s53, %s56
      %p62 = scmp.eq.s32.totalorder %s22, 0
      %p63 = por %p61, %p62
      %p64 = scmp.ne.s32.totalorder %s53, %s56
      %p65 = scmp.eq.s32.totalorder %s27, 3
      %p66 = por %p64, %p65
      %p67 = scmp.ne.s32.totalorder %s56, %s57
      %p68 = scmp.eq.s32.totalorder %s27, 0
      %p69 = por %p67, %p68
      %p70 = scmp.ne.s32.totalorder %s56, %s57
      %p71 = scmp.eq.s32.totalorder %s28, 3
      %p72 = por %p70, %p71
      %p74 = scmp.ne.s32.totalorder %s57, %s73
      %p75 = scmp.eq.s32.totalorder %s28, 0
      %p76 = por %p74, %p75
      %s78 = sadd.s32 %s77, 1
      %p81 = scmp.eq.s32.totalorder %s22, 3
      %p82 = scmp.ne.s32.totalorder %s77, %s79
      %p83 = scmp.eq.s32.totalorder %s22, 0
      %p84 = por %p82, %p83
      %p85 = scmp.ne.s32.totalorder %s77, %s79
      %p86 = scmp.eq.s32.totalorder %s27, 3
      %p87 = por %p85, %p86
      %p88 = scmp.ne.s32.totalorder %s79, %s80
      %p89 = scmp.eq.s32.totalorder %s27, 0
      %p90 = por %p88, %p89
      %p91 = scmp.ne.s32.totalorder %s79, %s80
      %p92 = scmp.eq.s32.totalorder %s28, 3
      %p93 = por %p91, %p92
      %p95 = scmp.ne.s32.totalorder %s80, %s94
      %p96 = scmp.eq.s32.totalorder %s28, 0
      %p97 = por %p95, %p96
      %s99 = sadd.s32 %s98, 1
      %p102 = scmp.eq.s32.totalorder %s22, 3
      %p103 = scmp.ne.s32.totalorder %s98, %s100
      %p104 = scmp.eq.s32.totalorder %s22, 0
      %p105 = por %p103, %p104
      %p106 = scmp.ne.s32.totalorder %s98, %s100
      %p107 = scmp.eq.s32.totalorder %s27, 3
      %p108 = por %p106, %p107
      %p109 = scmp.ne.s32.totalorder %s100, %s101
      %p110 = scmp.eq.s32.totalorder %s27, 0
      %p111 = por %p109, %p110
      %p112 = scmp.ne.s32.totalorder %s100, %s101
      %p113 = scmp.eq.s32.totalorder %s28, 3
      %p114 = por %p112, %p113
      %p116 = scmp.ne.s32.totalorder %s101, %s115
      %p117 = scmp.eq.s32.totalorder %s28, 0
      %p118 = por %p116, %p117
      %s120 = sadd.s32 %s119, 1
      %p123 = scmp.eq.s32.totalorder %s22, 3
      %p124 = scmp.ne.s32.totalorder %s119, %s121
      %p125 = scmp.eq.s32.totalorder %s22, 0
      %p126 = por %p124, %p125
      %p127 = scmp.ne.s32.totalorder %s119, %s121
      %p128 = scmp.eq.s32.totalorder %s27, 3
      %p129 = por %p127, %p128
      %p130 = scmp.ne.s32.totalorder %s121, %s122
      %p131 = scmp.eq.s32.totalorder %s27, 0
      %p132 = por %p130, %p131
      %p133 = scmp.ne.s32.totalorder %s121, %s122
      %p134 = scmp.eq.s32.totalorder %s28, 3
      %p135 = por %p133, %p134
      %p137 = scmp.ne.s32.totalorder %s122, %s136
      %p138 = scmp.eq.s32.totalorder %s28, 0
      %p139 = por %p137, %p138
      %s141 = sadd.s32 %s140, 1
      %p144 = scmp.eq.s32.totalorder %s22, 3
      %p145 = scmp.ne.s32.totalorder %s140, %s142
      %p146 = scmp.eq.s32.totalorder %s22, 0
      %p147 = por %p145, %p146
      %p148 = scmp.ne.s32.totalorder %s140, %s142
      %p149 = scmp.eq.s32.totalorder %s27, 3
      %p150 = por %p148, %p149
      %p151 = scmp.ne.s32.totalorder %s142, %s143
      %p152 = scmp.eq.s32.totalorder %s27, 0
      %p153 = por %p151, %p152
      %p154 = scmp.ne.s32.totalorder %s142, %s143
      %p155 = scmp.eq.s32.totalorder %s28, 3
      %p156 = por %p154, %p155
      %p158 = scmp.ne.s32.totalorder %s143, %s157
      %p159 = scmp.eq.s32.totalorder %s28, 0
      %p160 = por %p158, %p159
      %s162 = sadd.s32 %s161, 1
      %p165 = scmp.eq.s32.totalorder %s22, 3
      %p166 = scmp.ne.s32.totalorder %s161, %s163
      %p167 = scmp.eq.s32.totalorder %s22, 0
      %p168 = por %p166, %p167
      %p169 = scmp.ne.s32.totalorder %s161, %s163
      %p170 = scmp.eq.s32.totalorder %s27, 3
      %p171 = por %p169, %p170
      %p172 = scmp.ne.s32.totalorder %s163, %s164
      %p173 = scmp.eq.s32.totalorder %s27, 0
      %p174 = por %p172, %p173
      %p175 = scmp.ne.s32.totalorder %s163, %s164
      %p176 = scmp.eq.s32.totalorder %s28, 3
      %p177 = por %p175, %p176
      %p179 = scmp.ne.s32.totalorder %s164, %s178
      %p180 = scmp.eq.s32.totalorder %s28, 0
      %p181 = por %p179, %p180
      %s183 = sadd.s32 %s182, 1
      %p186 = scmp.eq.s32.totalorder %s22, 3
      %p187 = scmp.ne.s32.totalorder %s182, %s184
      %p188 = scmp.eq.s32.totalorder %s22, 0
      %p189 = por %p187, %p188
      %p190 = scmp.ne.s32.totalorder %s182, %s184
      %p191 = scmp.eq.s32.totalorder %s27, 3
      %p192 = por %p190, %p191
      %p193 = scmp.ne.s32.totalorder %s184, %s185
      %p194 = scmp.eq.s32.totalorder %s27, 0
      %p195 = por %p193, %p194
      %p196 = scmp.ne.s32.totalorder %s184, %s185
      %p197 = scmp.eq.s32.totalorder %s28, 3
      %p198 = por %p196, %p197
      %p200 = scmp.ne.s32.totalorder %s185, %s199
      %p201 = scmp.eq.s32.totalorder %s28, 0
      %p202 = por %p200, %p201
      %s204 = sadd.s32 %s203, 1
      %p207 = scmp.eq.s32.totalorder %s22, 3
      %p208 = scmp.ne.s32.totalorder %s203, %s205
      %p209 = scmp.eq.s32.totalorder %s22, 0
      %p210 = por %p208, %p209
      %p211 = scmp.ne.s32.totalorder %s203, %s205
      %p212 = scmp.eq.s32.totalorder %s27, 3
      %p213 = por %p211, %p212
      %p214 = scmp.ne.s32.totalorder %s205, %s206
      %p215 = scmp.eq.s32.totalorder %s27, 0
      %p216 = por %p214, %p215
      %p217 = scmp.ne.s32.totalorder %s205, %s206
      %p218 = scmp.eq.s32.totalorder %s28, 3
      %p219 = por %p217, %p218
      %p221 = scmp.ne.s32.totalorder %s206, %s220
      %p222 = scmp.eq.s32.totalorder %s28, 0
      %p223 = por %p221, %p222
      %s225 = sadd.s32 %s224, 1
      %p228 = scmp.eq.s32.totalorder %s22, 3
      %p229 = scmp.ne.s32.totalorder %s224, %s226
      %p230 = scmp.eq.s32.totalorder %s22, 0
      %p231 = por %p229, %p230
      %p232 = scmp.ne.s32.totalorder %s224, %s226
      %p233 = scmp.eq.s32.totalorder %s27, 3
      %p234 = por %p232, %p233
      %p235 = scmp.ne.s32.totalorder %s226, %s227
      %p236 = scmp.eq.s32.totalorder %s27, 0
      %p237 = por %p235, %p236
      %p238 = scmp.ne.s32.totalorder %s226, %s227
      %p239 = scmp.eq.s32.totalorder %s28, 3
      %p240 = por %p238, %p239
      %p242 = scmp.ne.s32.totalorder %s227, %s241
      %p243 = scmp.eq.s32.totalorder %s28, 0
      %p244 = por %p242, %p243
      %p245 = scmp.le.s32.totalorder 1, %s22
      %p246 = scmp.lt.s32.totalorder %s22, 5
      %p247 = pnand %p245, %p246
      %p248 = pneg %p247
      // Predicated region
      $region9: #{forward_fused.1} parent=5 // pred_check
        _
      $region10: #{forward_fused.1} parent=5 // pred_check_branch
        %250 = sbr.rel (%p247) target = $region12
      $region11: #{forward_fused.1} parent=5 // pred_region
        %s251 = ssub.s32 %s22, 1
        // Predicated region
        $region13: #{forward_fused.1} parent=11 // pred_check
          %p252 = pneg %p43
        $region14: #{forward_fused.1} parent=11 // pred_check_branch
          %254 = sbr.rel (%p252) target = $region16
        $region15: #{forward_fused.1} parent=11 // pred_region
          _
        $region16: #{forward_fused.1} parent=11 // pred_fallthru
          _
        // Predicated region
        $region17: #{forward_fused.1} parent=11 // pred_check
          %p255 = pneg %p90
        $region18: #{forward_fused.1} parent=11 // pred_check_branch
          %257 = sbr.rel (%p255) target = $region20
        $region19: #{forward_fused.1} parent=11 // pred_region
          %s259 = ssub.s32 32, 32
          %260 = vsyncadd [#allocation7], %s259
          %s262 = sshll.u32 [#allocation6], 4
          %s263 = int_to_ptr.vmem [resolvable:$true] %s262
          %265 = dma.hbm_to_vmem [thread:$0]  %s2, 32, %s263, [#allocation7]
        $region20: #{forward_fused.1} parent=11 // pred_fallthru
          _
        // Predicated region
        $region21: #{forward_fused.1} parent=11 // pred_check
          %p266 = pneg %p111
        $region22: #{forward_fused.1} parent=11 // pred_check_branch
          %268 = sbr.rel (%p266) target = $region24
        $region23: #{forward_fused.1} parent=11 // pred_region
          %s270 = ssub.s32 4096, 4096
          %271 = vsyncadd [#allocation7], %s270
          %s272 = sshll.u32 [#allocation8], 4
          %s273 = int_to_ptr.vmem [resolvable:$true] %s272
          %278 = dma.hbm_to_vmem [thread:$0]  %s3, 4096, %s273, [#allocation7], 128, 128, 8
        $region24: #{forward_fused.1} parent=11 // pred_fallthru
          _
        // Predicated region
        $region25: #{forward_fused.1} parent=11 // pred_check
          %p279 = pneg %p132
        $region26: #{forward_fused.1} parent=11 // pred_check_branch
          %281 = sbr.rel (%p279) target = $region28
        $region27: #{forward_fused.1} parent=11 // pred_region
          %s283 = ssub.s32 16, 16
          %284 = vsyncadd [#allocation10], %s283
          %s286 = sshll.u32 [#allocation9], 4
          %s287 = int_to_ptr.vmem [resolvable:$true] %s286
          %289 = dma.hbm_to_vmem [thread:$0]  %s4, 16, %s287, [#allocation10]
        $region28: #{forward_fused.1} parent=11 // pred_fallthru
          _
        // Predicated region
        $region29: #{forward_fused.1} parent=11 // pred_check
          %p290 = pneg %p153
        $region30: #{forward_fused.1} parent=11 // pred_check_branch
          %292 = sbr.rel (%p290) target = $region32
        $region31: #{forward_fused.1} parent=11 // pred_region
          _
        $region32: #{forward_fused.1} parent=11 // pred_fallthru
          _
        // Predicated region
        $region33: #{forward_fused.1} parent=11 // pred_check
          %p293 = pneg %p174
        $region34: #{forward_fused.1} parent=11 // pred_check_branch
          %295 = sbr.rel (%p293) target = $region36
        $region35: #{forward_fused.1} parent=11 // pred_region
          %s297 = ssub.s32 16, 16
          %298 = vsyncadd [#allocation10], %s297
          %s300 = sshll.u32 [#allocation11], 4
          %s301 = int_to_ptr.vmem [resolvable:$true] %s300
          %303 = dma.hbm_to_vmem [thread:$0]  %s6, 16, %s301, [#allocation10]
        $region36: #{forward_fused.1} parent=11 // pred_fallthru
          _
        // Predicated region
        $region37: #{forward_fused.1} parent=11 // pred_check
          %p304 = pneg %p195
        $region38: #{forward_fused.1} parent=11 // pred_check_branch
          %306 = sbr.rel (%p304) target = $region40
        $region39: #{forward_fused.1} parent=11 // pred_region
          _
        $region40: #{forward_fused.1} parent=11 // pred_fallthru
          _
        // Predicated region
        $region41: #{forward_fused.1} parent=11 // pred_check
          %p307 = pneg %p216
        $region42: #{forward_fused.1} parent=11 // pred_check_branch
          %309 = sbr.rel (%p307) target = $region44
        $region43: #{forward_fused.1} parent=11 // pred_region
          %s311 = ssub.s32 16, 16
          %312 = vsyncadd [#allocation13], %s311
          %s314 = sshll.u32 [#allocation12], 4
          %s315 = int_to_ptr.vmem [resolvable:$true] %s314
          %317 = dma.hbm_to_vmem [thread:$0]  %s8, 16, %s315, [#allocation13]
        $region44: #{forward_fused.1} parent=11 // pred_fallthru
          _
      $region12: #{forward_fused.1} parent=5 // pred_fallthru
        _
      %p318 = scmp.lt.s32.totalorder %s22, 4
      // Predicated region
      $region45: #{forward_fused.1} parent=5 // pred_check
        %p319 = pneg %p318
      $region46: #{forward_fused.1} parent=5 // pred_check_branch
        %321 = sbr.rel (%p319) target = $region48
      $region47: #{forward_fused.1} parent=5 // pred_region
        // Predicated region
        $region49: #{forward_fused.1} parent=47 // pred_check
          %p322 = pneg %p63
        $region50: #{forward_fused.1} parent=47 // pred_check_branch
          %324 = sbr.rel (%p322) target = $region52
        $region51: #{forward_fused.1} parent=47 // pred_region
          %s325 = sand.u32 %s53, 1
          %s326 = scalar_lea.sflag [#allocation4], %s325
          %s327 = sand.u32 %s53, 1
          %s328 = smul.addr %s327, 12800
          %s329 = scalar_lea.vmem [#allocation3], %s328
          %s330 = smul.u32 1600, %s22
          %s332 = ssub.s32 204800, 204800
          %333 = vsyncadd %s326, %s332
          %s334 = smul.addr %s330, 2
          %s335 = smul.addr %s334, 64
          %s336 = scalar_lea.hbm %s1, %s335
          %s337 = sshll.u32 %s329, 4
          %s338 = int_to_ptr.vmem [resolvable:$true] %s337
          %343 = dma.hbm_to_vmem [thread:$0]  %s336, 204800, %s338, %s326, 128, 128, 8
        $region52: #{forward_fused.1} parent=47 // pred_fallthru
          _
      $region48: #{forward_fused.1} parent=5 // pred_fallthru
        _
      %p344 = scmp.le.s32.totalorder 1, %s22
      %p345 = scmp.lt.s32.totalorder %s22, 5
      %p346 = pnand %p344, %p345
      %p347 = pneg %p346
      // Predicated region
      $region53: #{forward_fused.1} parent=5 // pred_check
        _
      $region54: #{forward_fused.1} parent=5 // pred_check_branch
        %349 = sbr.rel (%p346) target = $region56
      $region55: #{forward_fused.1} parent=5 // pred_region
        %s350 = ssub.s32 %s22, 1
        %s351 = sand.u32 %s56, 1
        %s352 = scalar_lea.sflag [#allocation4], %s351
        %s353 = sand.u32 %s56, 1
        %s354 = smul.addr %s353, 12800
        %s355 = scalar_lea.vmem [#allocation3], %s354
        // Predicated region
        $region57: #{forward_fused.1} parent=55 // pred_check
          %p356 = pneg %p69
        $region58: #{forward_fused.1} parent=55 // pred_check_branch
          %358 = sbr.rel (%p356) target = $region60
        $region59: #{forward_fused.1} parent=55 // pred_region
          %359 = dma.done %s352, 204800
        $region60: #{forward_fused.1} parent=55 // pred_fallthru
          _
        // Predicated region
        $region61: #{forward_fused.1} parent=55 // pred_check
          %p360 = pneg %p90
        $region62: #{forward_fused.1} parent=55 // pred_check_branch
          %362 = sbr.rel (%p360) target = $region64
        $region63: #{forward_fused.1} parent=55 // pred_region
          %363 = dma.done [#allocation7], 32
        $region64: #{forward_fused.1} parent=55 // pred_fallthru
          _
        // Predicated region
        $region65: #{forward_fused.1} parent=55 // pred_check
          %p364 = pneg %p111
        $region66: #{forward_fused.1} parent=55 // pred_check_branch
          %366 = sbr.rel (%p364) target = $region68
        $region67: #{forward_fused.1} parent=55 // pred_region
          %367 = dma.done [#allocation7], 4096
        $region68: #{forward_fused.1} parent=55 // pred_fallthru
          _
        // Predicated region
        $region69: #{forward_fused.1} parent=55 // pred_check
          %p368 = pneg %p132
        $region70: #{forward_fused.1} parent=55 // pred_check_branch
          %370 = sbr.rel (%p368) target = $region72
        $region71: #{forward_fused.1} parent=55 // pred_region
          %371 = dma.done [#allocation10], 16
        $region72: #{forward_fused.1} parent=55 // pred_fallthru
          _
        // Predicated region
        $region73: #{forward_fused.1} parent=55 // pred_check
          %p372 = pneg %p174
        $region74: #{forward_fused.1} parent=55 // pred_check_branch
          %374 = sbr.rel (%p372) target = $region76
        $region75: #{forward_fused.1} parent=55 // pred_region
          %375 = dma.done [#allocation10], 16
        $region76: #{forward_fused.1} parent=55 // pred_fallthru
          _
        // Predicated region
        $region77: #{forward_fused.1} parent=55 // pred_check
          %p376 = pneg %p216
        $region78: #{forward_fused.1} parent=55 // pred_check_branch
          %378 = sbr.rel (%p376) target = $region80
        $region79: #{forward_fused.1} parent=55 // pred_region
          %379 = dma.done [#allocation13], 16
        $region80: #{forward_fused.1} parent=55 // pred_fallthru
          _
        %p380 = pneg %p43
        %p381 = pneg %p40
        %s382 = sand.u32 %s56, 1
        %s383 = scalar_lea.sflag [#allocation4], %s382
        %s384 = sand.u32 %s56, 1
        %s385 = smul.addr %s384, 12800
        %s386 = scalar_lea.vmem [#allocation3], %s385
        %p387 = pneg %p69
        %p388 = pneg %p66
        %p389 = pneg %p90
        %p390 = pneg %p87
        %p391 = pneg %p111
        %p392 = pneg %p108
        %p393 = pneg %p132
        %p394 = pneg %p129
        %p395 = pneg %p153
        %p396 = pneg %p150
        %p397 = pneg %p174
        %p398 = pneg %p171
        %p399 = pneg %p195
        %p400 = pneg %p192
        %p401 = pneg %p216
        %p402 = pneg %p213
        %p403 = pneg %p237
        %p404 = pneg %p234
        %s405 = smul.u32 1600, %s27
        %p406 = scmp.eq.s32.totalorder %s27, 0
        // Predicated region
        $region81: #{forward_fused.1} parent=55 // pred_check
          %p407 = pneg %p406
        $region82: #{forward_fused.1} parent=55 // pred_check_branch
          %409 = sbr.rel (%p407) target = $region84
        $region83: #{forward_fused.1} parent=55 // pred_region
          %410 = vst [vmem:[#allocation2] sm:$0xf] 0.0
        $region84: #{forward_fused.1} parent=55 // pred_fallthru
          _
        %s411 = smul.u32 %s27, 12800
        %v412 = vld [vmem:[#allocation2] sm:$0xf]
        %s413 = sshra.s32 %s411, 7
        %s414 = sand.u32 %s411, 127
        %s415 = scalar_lea.vmem %s0, %s413
        %v416 = vld [vmem:[%s415] sm:$0xff]
        %v417 = vld [vmem:[%s415 + $0x8] sm:$0xff]
        %v418 = vld [vmem:[%s415 + $0x10] sm:$0xff]
        %v419 = vld [vmem:[%s415 + $0x18] sm:$0xff]
        %v420 = vld [vmem:[%s415 + $0x20] sm:$0xff]
        %v421 = vld [vmem:[%s415 + $0x28] sm:$0xff]
        %v422 = vld [vmem:[%s415 + $0x30] sm:$0xff]
        %v423 = vld [vmem:[%s415 + $0x38] sm:$0xff]
        %v424 = vld [vmem:[%s415 + $0x40] sm:$0xff]
        %v425 = vld [vmem:[%s415 + $0x48] sm:$0xff]
        %v426 = vld [vmem:[%s415 + $0x50] sm:$0xff]
        %v427 = vld [vmem:[%s415 + $0x58] sm:$0xff]
        %v428 = vld [vmem:[%s415 + $0x60] sm:$0xf]
        %v429 = vld [vmem:[%s355] sm:$0xff]
        %v430 = vld [vmem:[%s355 + $0x8] sm:$0xff]
        %v431 = vld [vmem:[%s355 + $0x10] sm:$0xff]
        %v432 = vld [vmem:[%s355 + $0x18] sm:$0xff]
        %v433 = vld [vmem:[%s355 + $0x20] sm:$0xff]
        %v434 = vld [vmem:[%s355 + $0x28] sm:$0xff]
        %v435 = vld [vmem:[%s355 + $0x30] sm:$0xff]
        %v436 = vld [vmem:[%s355 + $0x38] sm:$0xff]
        %v437 = vld [vmem:[%s355 + $0x40] sm:$0xff]
        %v438 = vld [vmem:[%s355 + $0x48] sm:$0xff]
        %v439 = vld [vmem:[%s355 + $0x50] sm:$0xff]
        %v440 = vld [vmem:[%s355 + $0x58] sm:$0xff]
        %v441 = vld [vmem:[%s355 + $0x60] sm:$0xff]
        %v442 = vld [vmem:[%s355 + $0x68] sm:$0xff]
        %v443 = vld [vmem:[%s355 + $0x70] sm:$0xff]
        %v444 = vld [vmem:[%s355 + $0x78] sm:$0xff]
        %v445 = vld [vmem:[%s355 + $0x80] sm:$0xff]
        %v446 = vld [vmem:[%s355 + $0x88] sm:$0xff]
        %v447 = vld [vmem:[%s355 + $0x90] sm:$0xff]
        %v448 = vld [vmem:[%s355 + $0x98] sm:$0xff]
        %v449 = vld [vmem:[%s355 + $0xa0] sm:$0xff]
        %v450 = vld [vmem:[%s355 + $0xa8] sm:$0xff]
        %v451 = vld [vmem:[%s355 + $0xb0] sm:$0xff]
        %v452 = vld [vmem:[%s355 + $0xb8] sm:$0xff]
        %v453 = vld [vmem:[%s355 + $0xc0] sm:$0xff]
        %v454 = vld [vmem:[%s355 + $0xc8] sm:$0xff]
        %v455 = vld [vmem:[%s355 + $0xd0] sm:$0xff]
        %v456 = vld [vmem:[%s355 + $0xd8] sm:$0xff]
        %v457 = vld [vmem:[%s355 + $0xe0] sm:$0xff]
        %v458 = vld [vmem:[%s355 + $0xe8] sm:$0xff]
        %v459 = vld [vmem:[%s355 + $0xf0] sm:$0xff]
        %v460 = vld [vmem:[%s355 + $0xf8] sm:$0xff]
        %v461 = vld [vmem:[%s355 + $0x100] sm:$0xff]
        %v462 = vld [vmem:[%s355 + $0x108] sm:$0xff]
        %v463 = vld [vmem:[%s355 + $0x110] sm:$0xff]
        %v464 = vld [vmem:[%s355 + $0x118] sm:$0xff]
        %v465 = vld [vmem:[%s355 + $0x120] sm:$0xff]
        %v466 = vld [vmem:[%s355 + $0x128] sm:$0xff]
        %v467 = vld [vmem:[%s355 + $0x130] sm:$0xff]
        %v468 = vld [vmem:[%s355 + $0x138] sm:$0xff]
        %v469 = vld [vmem:[%s355 + $0x140] sm:$0xff]
        %v470 = vld [vmem:[%s355 + $0x148] sm:$0xff]
        %v471 = vld [vmem:[%s355 + $0x150] sm:$0xff]
        %v472 = vld [vmem:[%s355 + $0x158] sm:$0xff]
        %v473 = vld [vmem:[%s355 + $0x160] sm:$0xff]
        %v474 = vld [vmem:[%s355 + $0x168] sm:$0xff]
        %v475 = vld [vmem:[%s355 + $0x170] sm:$0xff]
        %v476 = vld [vmem:[%s355 + $0x178] sm:$0xff]
        %v477 = vld [vmem:[%s355 + $0x180] sm:$0xff]
        %v478 = vld [vmem:[%s355 + $0x188] sm:$0xff]
        %v479 = vld [vmem:[%s355 + $0x190] sm:$0xff]
        %v480 = vld [vmem:[%s355 + $0x198] sm:$0xff]
        %v481 = vld [vmem:[%s355 + $0x1a0] sm:$0xff]
        %v482 = vld [vmem:[%s355 + $0x1a8] sm:$0xff]
        %v483 = vld [vmem:[%s355 + $0x1b0] sm:$0xff]
        %v484 = vld [vmem:[%s355 + $0x1b8] sm:$0xff]
        %v485 = vld [vmem:[%s355 + $0x1c0] sm:$0xff]
        %v486 = vld [vmem:[%s355 + $0x1c8] sm:$0xff]
        %v487 = vld [vmem:[%s355 + $0x1d0] sm:$0xff]
        %v488 = vld [vmem:[%s355 + $0x1d8] sm:$0xff]
        %v489 = vld [vmem:[%s355 + $0x1e0] sm:$0xff]
        %v490 = vld [vmem:[%s355 + $0x1e8] sm:$0xff]
        %v491 = vld [vmem:[%s355 + $0x1f0] sm:$0xff]
        %v492 = vld [vmem:[%s355 + $0x1f8] sm:$0xff]
        %v493 = vld [vmem:[%s355 + $0x200] sm:$0xff]
        %v494 = vld [vmem:[%s355 + $0x208] sm:$0xff]
        %v495 = vld [vmem:[%s355 + $0x210] sm:$0xff]
        %v496 = vld [vmem:[%s355 + $0x218] sm:$0xff]
        %v497 = vld [vmem:[%s355 + $0x220] sm:$0xff]
        %v498 = vld [vmem:[%s355 + $0x228] sm:$0xff]
        %v499 = vld [vmem:[%s355 + $0x230] sm:$0xff]
        %v500 = vld [vmem:[%s355 + $0x238] sm:$0xff]
        %v501 = vld [vmem:[%s355 + $0x240] sm:$0xff]
        %v502 = vld [vmem:[%s355 + $0x248] sm:$0xff]
        %v503 = vld [vmem:[%s355 + $0x250] sm:$0xff]
        %v504 = vld [vmem:[%s355 + $0x258] sm:$0xff]
        %v505 = vld [vmem:[%s355 + $0x260] sm:$0xff]
        %v506 = vld [vmem:[%s355 + $0x268] sm:$0xff]
        %v507 = vld [vmem:[%s355 + $0x270] sm:$0xff]
        %v508 = vld [vmem:[%s355 + $0x278] sm:$0xff]
        %v509 = vld [vmem:[%s355 + $0x280] sm:$0xff]
        %v510 = vld [vmem:[%s355 + $0x288] sm:$0xff]
        %v511 = vld [vmem:[%s355 + $0x290] sm:$0xff]
        %v512 = vld [vmem:[%s355 + $0x298] sm:$0xff]
        %v513 = vld [vmem:[%s355 + $0x2a0] sm:$0xff]
        %v514 = vld [vmem:[%s355 + $0x2a8] sm:$0xff]
        %v515 = vld [vmem:[%s355 + $0x2b0] sm:$0xff]
        %v516 = vld [vmem:[%s355 + $0x2b8] sm:$0xff]
        %v517 = vld [vmem:[%s355 + $0x2c0] sm:$0xff]
        %v518 = vld [vmem:[%s355 + $0x2c8] sm:$0xff]
        %v519 = vld [vmem:[%s355 + $0x2d0] sm:$0xff]
        %v520 = vld [vmem:[%s355 + $0x2d8] sm:$0xff]
        %v521 = vld [vmem:[%s355 + $0x2e0] sm:$0xff]
        %v522 = vld [vmem:[%s355 + $0x2e8] sm:$0xff]
        %v523 = vld [vmem:[%s355 + $0x2f0] sm:$0xff]
        %v524 = vld [vmem:[%s355 + $0x2f8] sm:$0xff]
        %v525 = vld [vmem:[%s355 + $0x300] sm:$0xff]
        %v526 = vld [vmem:[%s355 + $0x308] sm:$0xff]
        %v527 = vld [vmem:[%s355 + $0x310] sm:$0xff]
        %v528 = vld [vmem:[%s355 + $0x318] sm:$0xff]
        %v529 = vld [vmem:[%s355 + $0x320] sm:$0xff]
        %v530 = vld [vmem:[%s355 + $0x328] sm:$0xff]
        %v531 = vld [vmem:[%s355 + $0x330] sm:$0xff]
        %v532 = vld [vmem:[%s355 + $0x338] sm:$0xff]
        %v533 = vld [vmem:[%s355 + $0x340] sm:$0xff]
        %v534 = vld [vmem:[%s355 + $0x348] sm:$0xff]
        %v535 = vld [vmem:[%s355 + $0x350] sm:$0xff]
        %v536 = vld [vmem:[%s355 + $0x358] sm:$0xff]
        %v537 = vld [vmem:[%s355 + $0x360] sm:$0xff]
        %v538 = vld [vmem:[%s355 + $0x368] sm:$0xff]
        %v539 = vld [vmem:[%s355 + $0x370] sm:$0xff]
        %v540 = vld [vmem:[%s355 + $0x378] sm:$0xff]
        %v541 = vld [vmem:[%s355 + $0x380] sm:$0xff]
        %v542 = vld [vmem:[%s355 + $0x388] sm:$0xff]
        %v543 = vld [vmem:[%s355 + $0x390] sm:$0xff]
        %v544 = vld [vmem:[%s355 + $0x398] sm:$0xff]
        %v545 = vld [vmem:[%s355 + $0x3a0] sm:$0xff]
        %v546 = vld [vmem:[%s355 + $0x3a8] sm:$0xff]
        %v547 = vld [vmem:[%s355 + $0x3b0] sm:$0xff]
        %v548 = vld [vmem:[%s355 + $0x3b8] sm:$0xff]
        %v549 = vld [vmem:[%s355 + $0x3c0] sm:$0xff]
        %v550 = vld [vmem:[%s355 + $0x3c8] sm:$0xff]
        %v551 = vld [vmem:[%s355 + $0x3d0] sm:$0xff]
        %v552 = vld [vmem:[%s355 + $0x3d8] sm:$0xff]
        %v553 = vld [vmem:[%s355 + $0x3e0] sm:$0xff]
        %v554 = vld [vmem:[%s355 + $0x3e8] sm:$0xff]
        %v555 = vld [vmem:[%s355 + $0x3f0] sm:$0xff]
        %v556 = vld [vmem:[%s355 + $0x3f8] sm:$0xff]
        %v557 = vld [vmem:[%s355 + $0x400] sm:$0xff]
        %v558 = vld [vmem:[%s355 + $0x408] sm:$0xff]
        %v559 = vld [vmem:[%s355 + $0x410] sm:$0xff]
        %v560 = vld [vmem:[%s355 + $0x418] sm:$0xff]
        %v561 = vld [vmem:[%s355 + $0x420] sm:$0xff]
        %v562 = vld [vmem:[%s355 + $0x428] sm:$0xff]
        %v563 = vld [vmem:[%s355 + $0x430] sm:$0xff]
        %v564 = vld [vmem:[%s355 + $0x438] sm:$0xff]
        %v565 = vld [vmem:[%s355 + $0x440] sm:$0xff]
        %v566 = vld [vmem:[%s355 + $0x448] sm:$0xff]
        %v567 = vld [vmem:[%s355 + $0x450] sm:$0xff]
        %v568 = vld [vmem:[%s355 + $0x458] sm:$0xff]
        %v569 = vld [vmem:[%s355 + $0x460] sm:$0xff]
        %v570 = vld [vmem:[%s355 + $0x468] sm:$0xff]
        %v571 = vld [vmem:[%s355 + $0x470] sm:$0xff]
        %v572 = vld [vmem:[%s355 + $0x478] sm:$0xff]
        %v573 = vld [vmem:[%s355 + $0x480] sm:$0xff]
        %v574 = vld [vmem:[%s355 + $0x488] sm:$0xff]
        %v575 = vld [vmem:[%s355 + $0x490] sm:$0xff]
        %v576 = vld [vmem:[%s355 + $0x498] sm:$0xff]
        %v577 = vld [vmem:[%s355 + $0x4a0] sm:$0xff]
        %v578 = vld [vmem:[%s355 + $0x4a8] sm:$0xff]
        %v579 = vld [vmem:[%s355 + $0x4b0] sm:$0xff]
        %v580 = vld [vmem:[%s355 + $0x4b8] sm:$0xff]
        %v581 = vld [vmem:[%s355 + $0x4c0] sm:$0xff]
        %v582 = vld [vmem:[%s355 + $0x4c8] sm:$0xff]
        %v583 = vld [vmem:[%s355 + $0x4d0] sm:$0xff]
        %v584 = vld [vmem:[%s355 + $0x4d8] sm:$0xff]
        %v585 = vld [vmem:[%s355 + $0x4e0] sm:$0xff]
        %v586 = vld [vmem:[%s355 + $0x4e8] sm:$0xff]
        %v587 = vld [vmem:[%s355 + $0x4f0] sm:$0xff]
        %v588 = vld [vmem:[%s355 + $0x4f8] sm:$0xff]
        %v589 = vld [vmem:[%s355 + $0x500] sm:$0xff]
        %v590 = vld [vmem:[%s355 + $0x508] sm:$0xff]
        %v591 = vld [vmem:[%s355 + $0x510] sm:$0xff]
        %v592 = vld [vmem:[%s355 + $0x518] sm:$0xff]
        %v593 = vld [vmem:[%s355 + $0x520] sm:$0xff]
        %v594 = vld [vmem:[%s355 + $0x528] sm:$0xff]
        %v595 = vld [vmem:[%s355 + $0x530] sm:$0xff]
        %v596 = vld [vmem:[%s355 + $0x538] sm:$0xff]
        %v597 = vld [vmem:[%s355 + $0x540] sm:$0xff]
        %v598 = vld [vmem:[%s355 + $0x548] sm:$0xff]
        %v599 = vld [vmem:[%s355 + $0x550] sm:$0xff]
        %v600 = vld [vmem:[%s355 + $0x558] sm:$0xff]
        %v601 = vld [vmem:[%s355 + $0x560] sm:$0xff]
        %v602 = vld [vmem:[%s355 + $0x568] sm:$0xff]
        %v603 = vld [vmem:[%s355 + $0x570] sm:$0xff]
        %v604 = vld [vmem:[%s355 + $0x578] sm:$0xff]
        %v605 = vld [vmem:[%s355 + $0x580] sm:$0xff]
        %v606 = vld [vmem:[%s355 + $0x588] sm:$0xff]
        %v607 = vld [vmem:[%s355 + $0x590] sm:$0xff]
        %v608 = vld [vmem:[%s355 + $0x598] sm:$0xff]
        %v609 = vld [vmem:[%s355 + $0x5a0] sm:$0xff]
        %v610 = vld [vmem:[%s355 + $0x5a8] sm:$0xff]
        %v611 = vld [vmem:[%s355 + $0x5b0] sm:$0xff]
        %v612 = vld [vmem:[%s355 + $0x5b8] sm:$0xff]
        %v613 = vld [vmem:[%s355 + $0x5c0] sm:$0xff]
        %v614 = vld [vmem:[%s355 + $0x5c8] sm:$0xff]
        %v615 = vld [vmem:[%s355 + $0x5d0] sm:$0xff]
        %v616 = vld [vmem:[%s355 + $0x5d8] sm:$0xff]
        %v617 = vld [vmem:[%s355 + $0x5e0] sm:$0xff]
        %v618 = vld [vmem:[%s355 + $0x5e8] sm:$0xff]
        %v619 = vld [vmem:[%s355 + $0x5f0] sm:$0xff]
        %v620 = vld [vmem:[%s355 + $0x5f8] sm:$0xff]
        %v621 = vld [vmem:[%s355 + $0x600] sm:$0xff]
        %v622 = vld [vmem:[%s355 + $0x608] sm:$0xff]
        %v623 = vld [vmem:[%s355 + $0x610] sm:$0xff]
        %v624 = vld [vmem:[%s355 + $0x618] sm:$0xff]
        %v625 = vld [vmem:[%s355 + $0x620] sm:$0xff]
        %v626 = vld [vmem:[%s355 + $0x628] sm:$0xff]
        %v627 = vld [vmem:[%s355 + $0x630] sm:$0xff]
        %v628 = vld [vmem:[%s355 + $0x638] sm:$0xff]
        %v629 = vld [vmem:[%s355 + $0x640] sm:$0xff]
        %v630 = vld [vmem:[%s355 + $0x648] sm:$0xff]
        %v631 = vld [vmem:[%s355 + $0x650] sm:$0xff]
        %v632 = vld [vmem:[%s355 + $0x658] sm:$0xff]
        %v633 = vld [vmem:[%s355 + $0x660] sm:$0xff]
        %v634 = vld [vmem:[%s355 + $0x668] sm:$0xff]
        %v635 = vld [vmem:[%s355 + $0x670] sm:$0xff]
        %v636 = vld [vmem:[%s355 + $0x678] sm:$0xff]
        %v637 = vld [vmem:[%s355 + $0x680] sm:$0xff]
        %v638 = vld [vmem:[%s355 + $0x688] sm:$0xff]
        %v639 = vld [vmem:[%s355 + $0x690] sm:$0xff]
        %v640 = vld [vmem:[%s355 + $0x698] sm:$0xff]
        %v641 = vld [vmem:[%s355 + $0x6a0] sm:$0xff]
        %v642 = vld [vmem:[%s355 + $0x6a8] sm:$0xff]
        %v643 = vld [vmem:[%s355 + $0x6b0] sm:$0xff]
        %v644 = vld [vmem:[%s355 + $0x6b8] sm:$0xff]
        %v645 = vld [vmem:[%s355 + $0x6c0] sm:$0xff]
        %v646 = vld [vmem:[%s355 + $0x6c8] sm:$0xff]
        %v647 = vld [vmem:[%s355 + $0x6d0] sm:$0xff]
        %v648 = vld [vmem:[%s355 + $0x6d8] sm:$0xff]
        %v649 = vld [vmem:[%s355 + $0x6e0] sm:$0xff]
        %v650 = vld [vmem:[%s355 + $0x6e8] sm:$0xff]
        %v651 = vld [vmem:[%s355 + $0x6f0] sm:$0xff]
        %v652 = vld [vmem:[%s355 + $0x6f8] sm:$0xff]
        %v653 = vld [vmem:[%s355 + $0x700] sm:$0xff]
        %v654 = vld [vmem:[%s355 + $0x708] sm:$0xff]
        %v655 = vld [vmem:[%s355 + $0x710] sm:$0xff]
        %v656 = vld [vmem:[%s355 + $0x718] sm:$0xff]
        %v657 = vld [vmem:[%s355 + $0x720] sm:$0xff]
        %v658 = vld [vmem:[%s355 + $0x728] sm:$0xff]
        %v659 = vld [vmem:[%s355 + $0x730] sm:$0xff]
        %v660 = vld [vmem:[%s355 + $0x738] sm:$0xff]
        %v661 = vld [vmem:[%s355 + $0x740] sm:$0xff]
        %v662 = vld [vmem:[%s355 + $0x748] sm:$0xff]
        %v663 = vld [vmem:[%s355 + $0x750] sm:$0xff]
        %v664 = vld [vmem:[%s355 + $0x758] sm:$0xff]
        %v665 = vld [vmem:[%s355 + $0x760] sm:$0xff]
        %v666 = vld [vmem:[%s355 + $0x768] sm:$0xff]
        %v667 = vld [vmem:[%s355 + $0x770] sm:$0xff]
        %v668 = vld [vmem:[%s355 + $0x778] sm:$0xff]
        %v669 = vld [vmem:[%s355 + $0x780] sm:$0xff]
        %v670 = vld [vmem:[%s355 + $0x788] sm:$0xff]
        %v671 = vld [vmem:[%s355 + $0x790] sm:$0xff]
        %v672 = vld [vmem:[%s355 + $0x798] sm:$0xff]
        %v673 = vld [vmem:[%s355 + $0x7a0] sm:$0xff]
        %v674 = vld [vmem:[%s355 + $0x7a8] sm:$0xff]
        %v675 = vld [vmem:[%s355 + $0x7b0] sm:$0xff]
        %v676 = vld [vmem:[%s355 + $0x7b8] sm:$0xff]
        %v677 = vld [vmem:[%s355 + $0x7c0] sm:$0xff]
        %v678 = vld [vmem:[%s355 + $0x7c8] sm:$0xff]
        %v679 = vld [vmem:[%s355 + $0x7d0] sm:$0xff]
        %v680 = vld [vmem:[%s355 + $0x7d8] sm:$0xff]
        %v681 = vld [vmem:[%s355 + $0x7e0] sm:$0xff]
        %v682 = vld [vmem:[%s355 + $0x7e8] sm:$0xff]
        %v683 = vld [vmem:[%s355 + $0x7f0] sm:$0xff]
        %v684 = vld [vmem:[%s355 + $0x7f8] sm:$0xff]
        %v685 = vld [vmem:[%s355 + $0x800] sm:$0xff]
        %v686 = vld [vmem:[%s355 + $0x808] sm:$0xff]
        %v687 = vld [vmem:[%s355 + $0x810] sm:$0xff]
        %v688 = vld [vmem:[%s355 + $0x818] sm:$0xff]
        %v689 = vld [vmem:[%s355 + $0x820] sm:$0xff]
        %v690 = vld [vmem:[%s355 + $0x828] sm:$0xff]
        %v691 = vld [vmem:[%s355 + $0x830] sm:$0xff]
        %v692 = vld [vmem:[%s355 + $0x838] sm:$0xff]
        %v693 = vld [vmem:[%s355 + $0x840] sm:$0xff]
        %v694 = vld [vmem:[%s355 + $0x848] sm:$0xff]
        %v695 = vld [vmem:[%s355 + $0x850] sm:$0xff]
        %v696 = vld [vmem:[%s355 + $0x858] sm:$0xff]
        %v697 = vld [vmem:[%s355 + $0x860] sm:$0xff]
        %v698 = vld [vmem:[%s355 + $0x868] sm:$0xff]
        %v699 = vld [vmem:[%s355 + $0x870] sm:$0xff]
        %v700 = vld [vmem:[%s355 + $0x878] sm:$0xff]
        %v701 = vld [vmem:[%s355 + $0x880] sm:$0xff]
        %v702 = vld [vmem:[%s355 + $0x888] sm:$0xff]
        %v703 = vld [vmem:[%s355 + $0x890] sm:$0xff]
        %v704 = vld [vmem:[%s355 + $0x898] sm:$0xff]
        %v705 = vld [vmem:[%s355 + $0x8a0] sm:$0xff]
        %v706 = vld [vmem:[%s355 + $0x8a8] sm:$0xff]
        %v707 = vld [vmem:[%s355 + $0x8b0] sm:$0xff]
        %v708 = vld [vmem:[%s355 + $0x8b8] sm:$0xff]
        %v709 = vld [vmem:[%s355 + $0x8c0] sm:$0xff]
        %v710 = vld [vmem:[%s355 + $0x8c8] sm:$0xff]
        %v711 = vld [vmem:[%s355 + $0x8d0] sm:$0xff]
        %v712 = vld [vmem:[%s355 + $0x8d8] sm:$0xff]
        %v713 = vld [vmem:[%s355 + $0x8e0] sm:$0xff]
        %v714 = vld [vmem:[%s355 + $0x8e8] sm:$0xff]
        %v715 = vld [vmem:[%s355 + $0x8f0] sm:$0xff]
        %v716 = vld [vmem:[%s355 + $0x8f8] sm:$0xff]
        %v717 = vld [vmem:[%s355 + $0x900] sm:$0xff]
        %v718 = vld [vmem:[%s355 + $0x908] sm:$0xff]
        %v719 = vld [vmem:[%s355 + $0x910] sm:$0xff]
        %v720 = vld [vmem:[%s355 + $0x918] sm:$0xff]
        %v721 = vld [vmem:[%s355 + $0x920] sm:$0xff]
        %v722 = vld [vmem:[%s355 + $0x928] sm:$0xff]
        %v723 = vld [vmem:[%s355 + $0x930] sm:$0xff]
        %v724 = vld [vmem:[%s355 + $0x938] sm:$0xff]
        %v725 = vld [vmem:[%s355 + $0x940] sm:$0xff]
        %v726 = vld [vmem:[%s355 + $0x948] sm:$0xff]
        %v727 = vld [vmem:[%s355 + $0x950] sm:$0xff]
        %v728 = vld [vmem:[%s355 + $0x958] sm:$0xff]
        %v729 = vld [vmem:[%s355 + $0x960] sm:$0xff]
        %v730 = vld [vmem:[%s355 + $0x968] sm:$0xff]
        %v731 = vld [vmem:[%s355 + $0x970] sm:$0xff]
        %v732 = vld [vmem:[%s355 + $0x978] sm:$0xff]
        %v733 = vld [vmem:[%s355 + $0x980] sm:$0xff]
        %v734 = vld [vmem:[%s355 + $0x988] sm:$0xff]
        %v735 = vld [vmem:[%s355 + $0x990] sm:$0xff]
        %v736 = vld [vmem:[%s355 + $0x998] sm:$0xff]
        %v737 = vld [vmem:[%s355 + $0x9a0] sm:$0xff]
        %v738 = vld [vmem:[%s355 + $0x9a8] sm:$0xff]
        %v739 = vld [vmem:[%s355 + $0x9b0] sm:$0xff]
        %v740 = vld [vmem:[%s355 + $0x9b8] sm:$0xff]
        %v741 = vld [vmem:[%s355 + $0x9c0] sm:$0xff]
        %v742 = vld [vmem:[%s355 + $0x9c8] sm:$0xff]
        %v743 = vld [vmem:[%s355 + $0x9d0] sm:$0xff]
        %v744 = vld [vmem:[%s355 + $0x9d8] sm:$0xff]
        %v745 = vld [vmem:[%s355 + $0x9e0] sm:$0xff]
        %v746 = vld [vmem:[%s355 + $0x9e8] sm:$0xff]
        %v747 = vld [vmem:[%s355 + $0x9f0] sm:$0xff]
        %v748 = vld [vmem:[%s355 + $0x9f8] sm:$0xff]
        %v749 = vld [vmem:[%s355 + $0xa00] sm:$0xff]
        %v750 = vld [vmem:[%s355 + $0xa08] sm:$0xff]
        %v751 = vld [vmem:[%s355 + $0xa10] sm:$0xff]
        %v752 = vld [vmem:[%s355 + $0xa18] sm:$0xff]
        %v753 = vld [vmem:[%s355 + $0xa20] sm:$0xff]
        %v754 = vld [vmem:[%s355 + $0xa28] sm:$0xff]
        %v755 = vld [vmem:[%s355 + $0xa30] sm:$0xff]
        %v756 = vld [vmem:[%s355 + $0xa38] sm:$0xff]
        %v757 = vld [vmem:[%s355 + $0xa40] sm:$0xff]
        %v758 = vld [vmem:[%s355 + $0xa48] sm:$0xff]
        %v759 = vld [vmem:[%s355 + $0xa50] sm:$0xff]
        %v760 = vld [vmem:[%s355 + $0xa58] sm:$0xff]
        %v761 = vld [vmem:[%s355 + $0xa60] sm:$0xff]
        %v762 = vld [vmem:[%s355 + $0xa68] sm:$0xff]
        %v763 = vld [vmem:[%s355 + $0xa70] sm:$0xff]
        %v764 = vld [vmem:[%s355 + $0xa78] sm:$0xff]
        %v765 = vld [vmem:[%s355 + $0xa80] sm:$0xff]
        %v766 = vld [vmem:[%s355 + $0xa88] sm:$0xff]
        %v767 = vld [vmem:[%s355 + $0xa90] sm:$0xff]
        %v768 = vld [vmem:[%s355 + $0xa98] sm:$0xff]
        %v769 = vld [vmem:[%s355 + $0xaa0] sm:$0xff]
        %v770 = vld [vmem:[%s355 + $0xaa8] sm:$0xff]
        %v771 = vld [vmem:[%s355 + $0xab0] sm:$0xff]
        %v772 = vld [vmem:[%s355 + $0xab8] sm:$0xff]
        %v773 = vld [vmem:[%s355 + $0xac0] sm:$0xff]
        %v774 = vld [vmem:[%s355 + $0xac8] sm:$0xff]
        %v775 = vld [vmem:[%s355 + $0xad0] sm:$0xff]
        %v776 = vld [vmem:[%s355 + $0xad8] sm:$0xff]
        %v777 = vld [vmem:[%s355 + $0xae0] sm:$0xff]
        %v778 = vld [vmem:[%s355 + $0xae8] sm:$0xff]
        %v779 = vld [vmem:[%s355 + $0xaf0] sm:$0xff]
        %v780 = vld [vmem:[%s355 + $0xaf8] sm:$0xff]
        %v781 = vld [vmem:[%s355 + $0xb00] sm:$0xff]
        %v782 = vld [vmem:[%s355 + $0xb08] sm:$0xff]
        %v783 = vld [vmem:[%s355 + $0xb10] sm:$0xff]
        %v784 = vld [vmem:[%s355 + $0xb18] sm:$0xff]
        %v785 = vld [vmem:[%s355 + $0xb20] sm:$0xff]
        %v786 = vld [vmem:[%s355 + $0xb28] sm:$0xff]
        %v787 = vld [vmem:[%s355 + $0xb30] sm:$0xff]
        %v788 = vld [vmem:[%s355 + $0xb38] sm:$0xff]
        %v789 = vld [vmem:[%s355 + $0xb40] sm:$0xff]
        %v790 = vld [vmem:[%s355 + $0xb48] sm:$0xff]
        %v791 = vld [vmem:[%s355 + $0xb50] sm:$0xff]
        %v792 = vld [vmem:[%s355 + $0xb58] sm:$0xff]
        %v793 = vld [vmem:[%s355 + $0xb60] sm:$0xff]
        %v794 = vld [vmem:[%s355 + $0xb68] sm:$0xff]
        %v795 = vld [vmem:[%s355 + $0xb70] sm:$0xff]
        %v796 = vld [vmem:[%s355 + $0xb78] sm:$0xff]
        %v797 = vld [vmem:[%s355 + $0xb80] sm:$0xff]
        %v798 = vld [vmem:[%s355 + $0xb88] sm:$0xff]
        %v799 = vld [vmem:[%s355 + $0xb90] sm:$0xff]
        %v800 = vld [vmem:[%s355 + $0xb98] sm:$0xff]
        %v801 = vld [vmem:[%s355 + $0xba0] sm:$0xff]
        %v802 = vld [vmem:[%s355 + $0xba8] sm:$0xff]
        %v803 = vld [vmem:[%s355 + $0xbb0] sm:$0xff]
        %v804 = vld [vmem:[%s355 + $0xbb8] sm:$0xff]
        %v805 = vld [vmem:[%s355 + $0xbc0] sm:$0xff]
        %v806 = vld [vmem:[%s355 + $0xbc8] sm:$0xff]
        %v807 = vld [vmem:[%s355 + $0xbd0] sm:$0xff]
        %v808 = vld [vmem:[%s355 + $0xbd8] sm:$0xff]
        %v809 = vld [vmem:[%s355 + $0xbe0] sm:$0xff]
        %v810 = vld [vmem:[%s355 + $0xbe8] sm:$0xff]
        %v811 = vld [vmem:[%s355 + $0xbf0] sm:$0xff]
        %v812 = vld [vmem:[%s355 + $0xbf8] sm:$0xff]
        %v813 = vld [vmem:[%s355 + $0xc00] sm:$0xff]
        %v814 = vld [vmem:[%s355 + $0xc08] sm:$0xff]
        %v815 = vld [vmem:[%s355 + $0xc10] sm:$0xff]
        %v816 = vld [vmem:[%s355 + $0xc18] sm:$0xff]
        %v817 = vld [vmem:[%s355 + $0xc20] sm:$0xff]
        %v818 = vld [vmem:[%s355 + $0xc28] sm:$0xff]
        %v819 = vld [vmem:[%s355 + $0xc30] sm:$0xff]
        %v820 = vld [vmem:[%s355 + $0xc38] sm:$0xff]
        %v821 = vld [vmem:[%s355 + $0xc40] sm:$0xff]
        %v822 = vld [vmem:[%s355 + $0xc48] sm:$0xff]
        %v823 = vld [vmem:[%s355 + $0xc50] sm:$0xff]
        %v824 = vld [vmem:[%s355 + $0xc58] sm:$0xff]
        %v825 = vld [vmem:[%s355 + $0xc60] sm:$0xff]
        %v826 = vld [vmem:[%s355 + $0xc68] sm:$0xff]
        %v827 = vld [vmem:[%s355 + $0xc70] sm:$0xff]
        %v828 = vld [vmem:[%s355 + $0xc78] sm:$0xff]
        %v829 = vld [vmem:[%s355 + $0xc80] sm:$0xff]
        %v830 = vld [vmem:[%s355 + $0xc88] sm:$0xff]
        %v831 = vld [vmem:[%s355 + $0xc90] sm:$0xff]
        %v832 = vld [vmem:[%s355 + $0xc98] sm:$0xff]
        %v833 = vld [vmem:[%s355 + $0xca0] sm:$0xff]
        %v834 = vld [vmem:[%s355 + $0xca8] sm:$0xff]
        %v835 = vld [vmem:[%s355 + $0xcb0] sm:$0xff]
        %v836 = vld [vmem:[%s355 + $0xcb8] sm:$0xff]
        %v837 = vld [vmem:[%s355 + $0xcc0] sm:$0xff]
        %v838 = vld [vmem:[%s355 + $0xcc8] sm:$0xff]
        %v839 = vld [vmem:[%s355 + $0xcd0] sm:$0xff]
        %v840 = vld [vmem:[%s355 + $0xcd8] sm:$0xff]
        %v841 = vld [vmem:[%s355 + $0xce0] sm:$0xff]
        %v842 = vld [vmem:[%s355 + $0xce8] sm:$0xff]
        %v843 = vld [vmem:[%s355 + $0xcf0] sm:$0xff]
        %v844 = vld [vmem:[%s355 + $0xcf8] sm:$0xff]
        %v845 = vld [vmem:[%s355 + $0xd00] sm:$0xff]
        %v846 = vld [vmem:[%s355 + $0xd08] sm:$0xff]
        %v847 = vld [vmem:[%s355 + $0xd10] sm:$0xff]
        %v848 = vld [vmem:[%s355 + $0xd18] sm:$0xff]
        %v849 = vld [vmem:[%s355 + $0xd20] sm:$0xff]
        %v850 = vld [vmem:[%s355 + $0xd28] sm:$0xff]
        %v851 = vld [vmem:[%s355 + $0xd30] sm:$0xff]
        %v852 = vld [vmem:[%s355 + $0xd38] sm:$0xff]
        %v853 = vld [vmem:[%s355 + $0xd40] sm:$0xff]
        %v854 = vld [vmem:[%s355 + $0xd48] sm:$0xff]
        %v855 = vld [vmem:[%s355 + $0xd50] sm:$0xff]
        %v856 = vld [vmem:[%s355 + $0xd58] sm:$0xff]
        %v857 = vld [vmem:[%s355 + $0xd60] sm:$0xff]
        %v858 = vld [vmem:[%s355 + $0xd68] sm:$0xff]
        %v859 = vld [vmem:[%s355 + $0xd70] sm:$0xff]
        %v860 = vld [vmem:[%s355 + $0xd78] sm:$0xff]
        %v861 = vld [vmem:[%s355 + $0xd80] sm:$0xff]
        %v862 = vld [vmem:[%s355 + $0xd88] sm:$0xff]
        %v863 = vld [vmem:[%s355 + $0xd90] sm:$0xff]
        %v864 = vld [vmem:[%s355 + $0xd98] sm:$0xff]
        %v865 = vld [vmem:[%s355 + $0xda0] sm:$0xff]
        %v866 = vld [vmem:[%s355 + $0xda8] sm:$0xff]
        %v867 = vld [vmem:[%s355 + $0xdb0] sm:$0xff]
        %v868 = vld [vmem:[%s355 + $0xdb8] sm:$0xff]
        %v869 = vld [vmem:[%s355 + $0xdc0] sm:$0xff]
        %v870 = vld [vmem:[%s355 + $0xdc8] sm:$0xff]
        %v871 = vld [vmem:[%s355 + $0xdd0] sm:$0xff]
        %v872 = vld [vmem:[%s355 + $0xdd8] sm:$0xff]
        %v873 = vld [vmem:[%s355 + $0xde0] sm:$0xff]
        %v874 = vld [vmem:[%s355 + $0xde8] sm:$0xff]
        %v875 = vld [vmem:[%s355 + $0xdf0] sm:$0xff]
        %v876 = vld [vmem:[%s355 + $0xdf8] sm:$0xff]
        %v877 = vld [vmem:[%s355 + $0xe00] sm:$0xff]
        %v878 = vld [vmem:[%s355 + $0xe08] sm:$0xff]
        %v879 = vld [vmem:[%s355 + $0xe10] sm:$0xff]
        %v880 = vld [vmem:[%s355 + $0xe18] sm:$0xff]
        %v881 = vld [vmem:[%s355 + $0xe20] sm:$0xff]
        %v882 = vld [vmem:[%s355 + $0xe28] sm:$0xff]
        %v883 = vld [vmem:[%s355 + $0xe30] sm:$0xff]
        %v884 = vld [vmem:[%s355 + $0xe38] sm:$0xff]
        %v885 = vld [vmem:[%s355 + $0xe40] sm:$0xff]
        %v886 = vld [vmem:[%s355 + $0xe48] sm:$0xff]
        %v887 = vld [vmem:[%s355 + $0xe50] sm:$0xff]
        %v888 = vld [vmem:[%s355 + $0xe58] sm:$0xff]
        %v889 = vld [vmem:[%s355 + $0xe60] sm:$0xff]
        %v890 = vld [vmem:[%s355 + $0xe68] sm:$0xff]
        %v891 = vld [vmem:[%s355 + $0xe70] sm:$0xff]
        %v892 = vld [vmem:[%s355 + $0xe78] sm:$0xff]
        %v893 = vld [vmem:[%s355 + $0xe80] sm:$0xff]
        %v894 = vld [vmem:[%s355 + $0xe88] sm:$0xff]
        %v895 = vld [vmem:[%s355 + $0xe90] sm:$0xff]
        %v896 = vld [vmem:[%s355 + $0xe98] sm:$0xff]
        %v897 = vld [vmem:[%s355 + $0xea0] sm:$0xff]
        %v898 = vld [vmem:[%s355 + $0xea8] sm:$0xff]
        %v899 = vld [vmem:[%s355 + $0xeb0] sm:$0xff]
        %v900 = vld [vmem:[%s355 + $0xeb8] sm:$0xff]
        %v901 = vld [vmem:[%s355 + $0xec0] sm:$0xff]
        %v902 = vld [vmem:[%s355 + $0xec8] sm:$0xff]
        %v903 = vld [vmem:[%s355 + $0xed0] sm:$0xff]
        %v904 = vld [vmem:[%s355 + $0xed8] sm:$0xff]
        %v905 = vld [vmem:[%s355 + $0xee0] sm:$0xff]
        %v906 = vld [vmem:[%s355 + $0xee8] sm:$0xff]
        %v907 = vld [vmem:[%s355 + $0xef0] sm:$0xff]
        %v908 = vld [vmem:[%s355 + $0xef8] sm:$0xff]
        %v909 = vld [vmem:[%s355 + $0xf00] sm:$0xff]
        %v910 = vld [vmem:[%s355 + $0xf08] sm:$0xff]
        %v911 = vld [vmem:[%s355 + $0xf10] sm:$0xff]
        %v912 = vld [vmem:[%s355 + $0xf18] sm:$0xff]
        %v913 = vld [vmem:[%s355 + $0xf20] sm:$0xff]
        %v914 = vld [vmem:[%s355 + $0xf28] sm:$0xff]
        %v915 = vld [vmem:[%s355 + $0xf30] sm:$0xff]
        %v916 = vld [vmem:[%s355 + $0xf38] sm:$0xff]
        %v917 = vld [vmem:[%s355 + $0xf40] sm:$0xff]
        %v918 = vld [vmem:[%s355 + $0xf48] sm:$0xff]
        %v919 = vld [vmem:[%s355 + $0xf50] sm:$0xff]
        %v920 = vld [vmem:[%s355 + $0xf58] sm:$0xff]
        %v921 = vld [vmem:[%s355 + $0xf60] sm:$0xff]
        %v922 = vld [vmem:[%s355 + $0xf68] sm:$0xff]
        %v923 = vld [vmem:[%s355 + $0xf70] sm:$0xff]
        %v924 = vld [vmem:[%s355 + $0xf78] sm:$0xff]
        %v925 = vld [vmem:[%s355 + $0xf80] sm:$0xff]
        %v926 = vld [vmem:[%s355 + $0xf88] sm:$0xff]
        %v927 = vld [vmem:[%s355 + $0xf90] sm:$0xff]
        %v928 = vld [vmem:[%s355 + $0xf98] sm:$0xff]
        %v929 = vld [vmem:[%s355 + $0xfa0] sm:$0xff]
        %v930 = vld [vmem:[%s355 + $0xfa8] sm:$0xff]
        %v931 = vld [vmem:[%s355 + $0xfb0] sm:$0xff]
        %v932 = vld [vmem:[%s355 + $0xfb8] sm:$0xff]
        %v933 = vld [vmem:[%s355 + $0xfc0] sm:$0xff]
        %v934 = vld [vmem:[%s355 + $0xfc8] sm:$0xff]
        %v935 = vld [vmem:[%s355 + $0xfd0] sm:$0xff]
        %v936 = vld [vmem:[%s355 + $0xfd8] sm:$0xff]
        %v937 = vld [vmem:[%s355 + $0xfe0] sm:$0xff]
        %v938 = vld [vmem:[%s355 + $0xfe8] sm:$0xff]
        %v939 = vld [vmem:[%s355 + $0xff0] sm:$0xff]
        %v940 = vld [vmem:[%s355 + $0xff8] sm:$0xff]
        %v941 = vld [vmem:[%s355 + $0x1000] sm:$0xff]
        %v942 = vld [vmem:[%s355 + $0x1008] sm:$0xff]
        %v943 = vld [vmem:[%s355 + $0x1010] sm:$0xff]
        %v944 = vld [vmem:[%s355 + $0x1018] sm:$0xff]
        %v945 = vld [vmem:[%s355 + $0x1020] sm:$0xff]
        %v946 = vld [vmem:[%s355 + $0x1028] sm:$0xff]
        %v947 = vld [vmem:[%s355 + $0x1030] sm:$0xff]
        %v948 = vld [vmem:[%s355 + $0x1038] sm:$0xff]
        %v949 = vld [vmem:[%s355 + $0x1040] sm:$0xff]
        %v950 = vld [vmem:[%s355 + $0x1048] sm:$0xff]
        %v951 = vld [vmem:[%s355 + $0x1050] sm:$0xff]
        %v952 = vld [vmem:[%s355 + $0x1058] sm:$0xff]
        %v953 = vld [vmem:[%s355 + $0x1060] sm:$0xff]
        %v954 = vld [vmem:[%s355 + $0x1068] sm:$0xff]
        %v955 = vld [vmem:[%s355 + $0x1070] sm:$0xff]
        %v956 = vld [vmem:[%s355 + $0x1078] sm:$0xff]
        %v957 = vld [vmem:[%s355 + $0x1080] sm:$0xff]
        %v958 = vld [vmem:[%s355 + $0x1088] sm:$0xff]
        %v959 = vld [vmem:[%s355 + $0x1090] sm:$0xff]
        %v960 = vld [vmem:[%s355 + $0x1098] sm:$0xff]
        %v961 = vld [vmem:[%s355 + $0x10a0] sm:$0xff]
        %v962 = vld [vmem:[%s355 + $0x10a8] sm:$0xff]
        %v963 = vld [vmem:[%s355 + $0x10b0] sm:$0xff]
        %v964 = vld [vmem:[%s355 + $0x10b8] sm:$0xff]
        %v965 = vld [vmem:[%s355 + $0x10c0] sm:$0xff]
        %v966 = vld [vmem:[%s355 + $0x10c8] sm:$0xff]
        %v967 = vld [vmem:[%s355 + $0x10d0] sm:$0xff]
        %v968 = vld [vmem:[%s355 + $0x10d8] sm:$0xff]
        %v969 = vld [vmem:[%s355 + $0x10e0] sm:$0xff]
        %v970 = vld [vmem:[%s355 + $0x10e8] sm:$0xff]
        %v971 = vld [vmem:[%s355 + $0x10f0] sm:$0xff]
        %v972 = vld [vmem:[%s355 + $0x10f8] sm:$0xff]
        %v973 = vld [vmem:[%s355 + $0x1100] sm:$0xff]
        %v974 = vld [vmem:[%s355 + $0x1108] sm:$0xff]
        %v975 = vld [vmem:[%s355 + $0x1110] sm:$0xff]
        %v976 = vld [vmem:[%s355 + $0x1118] sm:$0xff]
        %v977 = vld [vmem:[%s355 + $0x1120] sm:$0xff]
        %v978 = vld [vmem:[%s355 + $0x1128] sm:$0xff]
        %v979 = vld [vmem:[%s355 + $0x1130] sm:$0xff]
        %v980 = vld [vmem:[%s355 + $0x1138] sm:$0xff]
        %v981 = vld [vmem:[%s355 + $0x1140] sm:$0xff]
        %v982 = vld [vmem:[%s355 + $0x1148] sm:$0xff]
        %v983 = vld [vmem:[%s355 + $0x1150] sm:$0xff]
        %v984 = vld [vmem:[%s355 + $0x1158] sm:$0xff]
        %v985 = vld [vmem:[%s355 + $0x1160] sm:$0xff]
        %v986 = vld [vmem:[%s355 + $0x1168] sm:$0xff]
        %v987 = vld [vmem:[%s355 + $0x1170] sm:$0xff]
        %v988 = vld [vmem:[%s355 + $0x1178] sm:$0xff]
        %v989 = vld [vmem:[%s355 + $0x1180] sm:$0xff]
        %v990 = vld [vmem:[%s355 + $0x1188] sm:$0xff]
        %v991 = vld [vmem:[%s355 + $0x1190] sm:$0xff]
        %v992 = vld [vmem:[%s355 + $0x1198] sm:$0xff]
        %v993 = vld [vmem:[%s355 + $0x11a0] sm:$0xff]
        %v994 = vld [vmem:[%s355 + $0x11a8] sm:$0xff]
        %v995 = vld [vmem:[%s355 + $0x11b0] sm:$0xff]
        %v996 = vld [vmem:[%s355 + $0x11b8] sm:$0xff]
        %v997 = vld [vmem:[%s355 + $0x11c0] sm:$0xff]
        %v998 = vld [vmem:[%s355 + $0x11c8] sm:$0xff]
        %v999 = vld [vmem:[%s355 + $0x11d0] sm:$0xff]
        %v1000 = vld [vmem:[%s355 + $0x11d8] sm:$0xff]
        %v1001 = vld [vmem:[%s355 + $0x11e0] sm:$0xff]
        %v1002 = vld [vmem:[%s355 + $0x11e8] sm:$0xff]
        %v1003 = vld [vmem:[%s355 + $0x11f0] sm:$0xff]
        %v1004 = vld [vmem:[%s355 + $0x11f8] sm:$0xff]
        %v1005 = vld [vmem:[%s355 + $0x1200] sm:$0xff]
        %v1006 = vld [vmem:[%s355 + $0x1208] sm:$0xff]
        %v1007 = vld [vmem:[%s355 + $0x1210] sm:$0xff]
        %v1008 = vld [vmem:[%s355 + $0x1218] sm:$0xff]
        %v1009 = vld [vmem:[%s355 + $0x1220] sm:$0xff]
        %v1010 = vld [vmem:[%s355 + $0x1228] sm:$0xff]
        %v1011 = vld [vmem:[%s355 + $0x1230] sm:$0xff]
        %v1012 = vld [vmem:[%s355 + $0x1238] sm:$0xff]
        %v1013 = vld [vmem:[%s355 + $0x1240] sm:$0xff]
        %v1014 = vld [vmem:[%s355 + $0x1248] sm:$0xff]
        %v1015 = vld [vmem:[%s355 + $0x1250] sm:$0xff]
        %v1016 = vld [vmem:[%s355 + $0x1258] sm:$0xff]
        %v1017 = vld [vmem:[%s355 + $0x1260] sm:$0xff]
        %v1018 = vld [vmem:[%s355 + $0x1268] sm:$0xff]
        %v1019 = vld [vmem:[%s355 + $0x1270] sm:$0xff]
        %v1020 = vld [vmem:[%s355 + $0x1278] sm:$0xff]
        %v1021 = vld [vmem:[%s355 + $0x1280] sm:$0xff]
        %v1022 = vld [vmem:[%s355 + $0x1288] sm:$0xff]
        %v1023 = vld [vmem:[%s355 + $0x1290] sm:$0xff]
        %v1024 = vld [vmem:[%s355 + $0x1298] sm:$0xff]
        %v1025 = vld [vmem:[%s355 + $0x12a0] sm:$0xff]
        %v1026 = vld [vmem:[%s355 + $0x12a8] sm:$0xff]
        %v1027 = vld [vmem:[%s355 + $0x12b0] sm:$0xff]
        %v1028 = vld [vmem:[%s355 + $0x12b8] sm:$0xff]
        %v1029 = vld [vmem:[%s355 + $0x12c0] sm:$0xff]
        %v1030 = vld [vmem:[%s355 + $0x12c8] sm:$0xff]
        %v1031 = vld [vmem:[%s355 + $0x12d0] sm:$0xff]
        %v1032 = vld [vmem:[%s355 + $0x12d8] sm:$0xff]
        %v1033 = vld [vmem:[%s355 + $0x12e0] sm:$0xff]
        %v1034 = vld [vmem:[%s355 + $0x12e8] sm:$0xff]
        %v1035 = vld [vmem:[%s355 + $0x12f0] sm:$0xff]
        %v1036 = vld [vmem:[%s355 + $0x12f8] sm:$0xff]
        %v1037 = vld [vmem:[%s355 + $0x1300] sm:$0xff]
        %v1038 = vld [vmem:[%s355 + $0x1308] sm:$0xff]
        %v1039 = vld [vmem:[%s355 + $0x1310] sm:$0xff]
        %v1040 = vld [vmem:[%s355 + $0x1318] sm:$0xff]
        %v1041 = vld [vmem:[%s355 + $0x1320] sm:$0xff]
        %v1042 = vld [vmem:[%s355 + $0x1328] sm:$0xff]
        %v1043 = vld [vmem:[%s355 + $0x1330] sm:$0xff]
        %v1044 = vld [vmem:[%s355 + $0x1338] sm:$0xff]
        %v1045 = vld [vmem:[%s355 + $0x1340] sm:$0xff]
        %v1046 = vld [vmem:[%s355 + $0x1348] sm:$0xff]
        %v1047 = vld [vmem:[%s355 + $0x1350] sm:$0xff]
        %v1048 = vld [vmem:[%s355 + $0x1358] sm:$0xff]
        %v1049 = vld [vmem:[%s355 + $0x1360] sm:$0xff]
        %v1050 = vld [vmem:[%s355 + $0x1368] sm:$0xff]
        %v1051 = vld [vmem:[%s355 + $0x1370] sm:$0xff]
        %v1052 = vld [vmem:[%s355 + $0x1378] sm:$0xff]
        %v1053 = vld [vmem:[%s355 + $0x1380] sm:$0xff]
        %v1054 = vld [vmem:[%s355 + $0x1388] sm:$0xff]
        %v1055 = vld [vmem:[%s355 + $0x1390] sm:$0xff]
        %v1056 = vld [vmem:[%s355 + $0x1398] sm:$0xff]
        %v1057 = vld [vmem:[%s355 + $0x13a0] sm:$0xff]
        %v1058 = vld [vmem:[%s355 + $0x13a8] sm:$0xff]
        %v1059 = vld [vmem:[%s355 + $0x13b0] sm:$0xff]
        %v1060 = vld [vmem:[%s355 + $0x13b8] sm:$0xff]
        %v1061 = vld [vmem:[%s355 + $0x13c0] sm:$0xff]
        %v1062 = vld [vmem:[%s355 + $0x13c8] sm:$0xff]
        %v1063 = vld [vmem:[%s355 + $0x13d0] sm:$0xff]
        %v1064 = vld [vmem:[%s355 + $0x13d8] sm:$0xff]
        %v1065 = vld [vmem:[%s355 + $0x13e0] sm:$0xff]
        %v1066 = vld [vmem:[%s355 + $0x13e8] sm:$0xff]
        %v1067 = vld [vmem:[%s355 + $0x13f0] sm:$0xff]
        %v1068 = vld [vmem:[%s355 + $0x13f8] sm:$0xff]
        %v1069 = vld [vmem:[%s355 + $0x1400] sm:$0xff]
        %v1070 = vld [vmem:[%s355 + $0x1408] sm:$0xff]
        %v1071 = vld [vmem:[%s355 + $0x1410] sm:$0xff]
        %v1072 = vld [vmem:[%s355 + $0x1418] sm:$0xff]
        %v1073 = vld [vmem:[%s355 + $0x1420] sm:$0xff]
        %v1074 = vld [vmem:[%s355 + $0x1428] sm:$0xff]
        %v1075 = vld [vmem:[%s355 + $0x1430] sm:$0xff]
        %v1076 = vld [vmem:[%s355 + $0x1438] sm:$0xff]
        %v1077 = vld [vmem:[%s355 + $0x1440] sm:$0xff]
        %v1078 = vld [vmem:[%s355 + $0x1448] sm:$0xff]
        %v1079 = vld [vmem:[%s355 + $0x1450] sm:$0xff]
        %v1080 = vld [vmem:[%s355 + $0x1458] sm:$0xff]
        %v1081 = vld [vmem:[%s355 + $0x1460] sm:$0xff]
        %v1082 = vld [vmem:[%s355 + $0x1468] sm:$0xff]
        %v1083 = vld [vmem:[%s355 + $0x1470] sm:$0xff]
        %v1084 = vld [vmem:[%s355 + $0x1478] sm:$0xff]
        %v1085 = vld [vmem:[%s355 + $0x1480] sm:$0xff]
        %v1086 = vld [vmem:[%s355 + $0x1488] sm:$0xff]
        %v1087 = vld [vmem:[%s355 + $0x1490] sm:$0xff]
        %v1088 = vld [vmem:[%s355 + $0x1498] sm:$0xff]
        %v1089 = vld [vmem:[%s355 + $0x14a0] sm:$0xff]
        %v1090 = vld [vmem:[%s355 + $0x14a8] sm:$0xff]
        %v1091 = vld [vmem:[%s355 + $0x14b0] sm:$0xff]
        %v1092 = vld [vmem:[%s355 + $0x14b8] sm:$0xff]
        %v1093 = vld [vmem:[%s355 + $0x14c0] sm:$0xff]
        %v1094 = vld [vmem:[%s355 + $0x14c8] sm:$0xff]
        %v1095 = vld [vmem:[%s355 + $0x14d0] sm:$0xff]
        %v1096 = vld [vmem:[%s355 + $0x14d8] sm:$0xff]
        %v1097 = vld [vmem:[%s355 + $0x14e0] sm:$0xff]
        %v1098 = vld [vmem:[%s355 + $0x14e8] sm:$0xff]
        %v1099 = vld [vmem:[%s355 + $0x14f0] sm:$0xff]
        %v1100 = vld [vmem:[%s355 + $0x14f8] sm:$0xff]
        %v1101 = vld [vmem:[%s355 + $0x1500] sm:$0xff]
        %v1102 = vld [vmem:[%s355 + $0x1508] sm:$0xff]
        %v1103 = vld [vmem:[%s355 + $0x1510] sm:$0xff]
        %v1104 = vld [vmem:[%s355 + $0x1518] sm:$0xff]
        %v1105 = vld [vmem:[%s355 + $0x1520] sm:$0xff]
        %v1106 = vld [vmem:[%s355 + $0x1528] sm:$0xff]
        %v1107 = vld [vmem:[%s355 + $0x1530] sm:$0xff]
        %v1108 = vld [vmem:[%s355 + $0x1538] sm:$0xff]
        %v1109 = vld [vmem:[%s355 + $0x1540] sm:$0xff]
        %v1110 = vld [vmem:[%s355 + $0x1548] sm:$0xff]
        %v1111 = vld [vmem:[%s355 + $0x1550] sm:$0xff]
        %v1112 = vld [vmem:[%s355 + $0x1558] sm:$0xff]
        %v1113 = vld [vmem:[%s355 + $0x1560] sm:$0xff]
        %v1114 = vld [vmem:[%s355 + $0x1568] sm:$0xff]
        %v1115 = vld [vmem:[%s355 + $0x1570] sm:$0xff]
        %v1116 = vld [vmem:[%s355 + $0x1578] sm:$0xff]
        %v1117 = vld [vmem:[%s355 + $0x1580] sm:$0xff]
        %v1118 = vld [vmem:[%s355 + $0x1588] sm:$0xff]
        %v1119 = vld [vmem:[%s355 + $0x1590] sm:$0xff]
        %v1120 = vld [vmem:[%s355 + $0x1598] sm:$0xff]
        %v1121 = vld [vmem:[%s355 + $0x15a0] sm:$0xff]
        %v1122 = vld [vmem:[%s355 + $0x15a8] sm:$0xff]
        %v1123 = vld [vmem:[%s355 + $0x15b0] sm:$0xff]
        %v1124 = vld [vmem:[%s355 + $0x15b8] sm:$0xff]
        %v1125 = vld [vmem:[%s355 + $0x15c0] sm:$0xff]
        %v1126 = vld [vmem:[%s355 + $0x15c8] sm:$0xff]
        %v1127 = vld [vmem:[%s355 + $0x15d0] sm:$0xff]
        %v1128 = vld [vmem:[%s355 + $0x15d8] sm:$0xff]
        %v1129 = vld [vmem:[%s355 + $0x15e0] sm:$0xff]
        %v1130 = vld [vmem:[%s355 + $0x15e8] sm:$0xff]
        %v1131 = vld [vmem:[%s355 + $0x15f0] sm:$0xff]
        %v1132 = vld [vmem:[%s355 + $0x15f8] sm:$0xff]
        %v1133 = vld [vmem:[%s355 + $0x1600] sm:$0xff]
        %v1134 = vld [vmem:[%s355 + $0x1608] sm:$0xff]
        %v1135 = vld [vmem:[%s355 + $0x1610] sm:$0xff]
        %v1136 = vld [vmem:[%s355 + $0x1618] sm:$0xff]
        %v1137 = vld [vmem:[%s355 + $0x1620] sm:$0xff]
        %v1138 = vld [vmem:[%s355 + $0x1628] sm:$0xff]
        %v1139 = vld [vmem:[%s355 + $0x1630] sm:$0xff]
        %v1140 = vld [vmem:[%s355 + $0x1638] sm:$0xff]
        %v1141 = vld [vmem:[%s355 + $0x1640] sm:$0xff]
        %v1142 = vld [vmem:[%s355 + $0x1648] sm:$0xff]
        %v1143 = vld [vmem:[%s355 + $0x1650] sm:$0xff]
        %v1144 = vld [vmem:[%s355 + $0x1658] sm:$0xff]
        %v1145 = vld [vmem:[%s355 + $0x1660] sm:$0xff]
        %v1146 = vld [vmem:[%s355 + $0x1668] sm:$0xff]
        %v1147 = vld [vmem:[%s355 + $0x1670] sm:$0xff]
        %v1148 = vld [vmem:[%s355 + $0x1678] sm:$0xff]
        %v1149 = vld [vmem:[%s355 + $0x1680] sm:$0xff]
        %v1150 = vld [vmem:[%s355 + $0x1688] sm:$0xff]
        %v1151 = vld [vmem:[%s355 + $0x1690] sm:$0xff]
        %v1152 = vld [vmem:[%s355 + $0x1698] sm:$0xff]
        %v1153 = vld [vmem:[%s355 + $0x16a0] sm:$0xff]
        %v1154 = vld [vmem:[%s355 + $0x16a8] sm:$0xff]
        %v1155 = vld [vmem:[%s355 + $0x16b0] sm:$0xff]
        %v1156 = vld [vmem:[%s355 + $0x16b8] sm:$0xff]
        %v1157 = vld [vmem:[%s355 + $0x16c0] sm:$0xff]
        %v1158 = vld [vmem:[%s355 + $0x16c8] sm:$0xff]
        %v1159 = vld [vmem:[%s355 + $0x16d0] sm:$0xff]
        %v1160 = vld [vmem:[%s355 + $0x16d8] sm:$0xff]
        %v1161 = vld [vmem:[%s355 + $0x16e0] sm:$0xff]
        %v1162 = vld [vmem:[%s355 + $0x16e8] sm:$0xff]
        %v1163 = vld [vmem:[%s355 + $0x16f0] sm:$0xff]
        %v1164 = vld [vmem:[%s355 + $0x16f8] sm:$0xff]
        %v1165 = vld [vmem:[%s355 + $0x1700] sm:$0xff]
        %v1166 = vld [vmem:[%s355 + $0x1708] sm:$0xff]
        %v1167 = vld [vmem:[%s355 + $0x1710] sm:$0xff]
        %v1168 = vld [vmem:[%s355 + $0x1718] sm:$0xff]
        %v1169 = vld [vmem:[%s355 + $0x1720] sm:$0xff]
        %v1170 = vld [vmem:[%s355 + $0x1728] sm:$0xff]
        %v1171 = vld [vmem:[%s355 + $0x1730] sm:$0xff]
        %v1172 = vld [vmem:[%s355 + $0x1738] sm:$0xff]
        %v1173 = vld [vmem:[%s355 + $0x1740] sm:$0xff]
        %v1174 = vld [vmem:[%s355 + $0x1748] sm:$0xff]
        %v1175 = vld [vmem:[%s355 + $0x1750] sm:$0xff]
        %v1176 = vld [vmem:[%s355 + $0x1758] sm:$0xff]
        %v1177 = vld [vmem:[%s355 + $0x1760] sm:$0xff]
        %v1178 = vld [vmem:[%s355 + $0x1768] sm:$0xff]
        %v1179 = vld [vmem:[%s355 + $0x1770] sm:$0xff]
        %v1180 = vld [vmem:[%s355 + $0x1778] sm:$0xff]
        %v1181 = vld [vmem:[%s355 + $0x1780] sm:$0xff]
        %v1182 = vld [vmem:[%s355 + $0x1788] sm:$0xff]
        %v1183 = vld [vmem:[%s355 + $0x1790] sm:$0xff]
        %v1184 = vld [vmem:[%s355 + $0x1798] sm:$0xff]
        %v1185 = vld [vmem:[%s355 + $0x17a0] sm:$0xff]
        %v1186 = vld [vmem:[%s355 + $0x17a8] sm:$0xff]
        %v1187 = vld [vmem:[%s355 + $0x17b0] sm:$0xff]
        %v1188 = vld [vmem:[%s355 + $0x17b8] sm:$0xff]
        %v1189 = vld [vmem:[%s355 + $0x17c0] sm:$0xff]
        %v1190 = vld [vmem:[%s355 + $0x17c8] sm:$0xff]
        %v1191 = vld [vmem:[%s355 + $0x17d0] sm:$0xff]
        %v1192 = vld [vmem:[%s355 + $0x17d8] sm:$0xff]
        %v1193 = vld [vmem:[%s355 + $0x17e0] sm:$0xff]
        %v1194 = vld [vmem:[%s355 + $0x17e8] sm:$0xff]
        %v1195 = vld [vmem:[%s355 + $0x17f0] sm:$0xff]
        %v1196 = vld [vmem:[%s355 + $0x17f8] sm:$0xff]
        %v1197 = vld [vmem:[%s355 + $0x1800] sm:$0xff]
        %v1198 = vld [vmem:[%s355 + $0x1808] sm:$0xff]
        %v1199 = vld [vmem:[%s355 + $0x1810] sm:$0xff]
        %v1200 = vld [vmem:[%s355 + $0x1818] sm:$0xff]
        %v1201 = vld [vmem:[%s355 + $0x1820] sm:$0xff]
        %v1202 = vld [vmem:[%s355 + $0x1828] sm:$0xff]
        %v1203 = vld [vmem:[%s355 + $0x1830] sm:$0xff]
        %v1204 = vld [vmem:[%s355 + $0x1838] sm:$0xff]
        %v1205 = vld [vmem:[%s355 + $0x1840] sm:$0xff]
        %v1206 = vld [vmem:[%s355 + $0x1848] sm:$0xff]
        %v1207 = vld [vmem:[%s355 + $0x1850] sm:$0xff]
        %v1208 = vld [vmem:[%s355 + $0x1858] sm:$0xff]
        %v1209 = vld [vmem:[%s355 + $0x1860] sm:$0xff]
        %v1210 = vld [vmem:[%s355 + $0x1868] sm:$0xff]
        %v1211 = vld [vmem:[%s355 + $0x1870] sm:$0xff]
        %v1212 = vld [vmem:[%s355 + $0x1878] sm:$0xff]
        %v1213 = vld [vmem:[%s355 + $0x1880] sm:$0xff]
        %v1214 = vld [vmem:[%s355 + $0x1888] sm:$0xff]
        %v1215 = vld [vmem:[%s355 + $0x1890] sm:$0xff]
        %v1216 = vld [vmem:[%s355 + $0x1898] sm:$0xff]
        %v1217 = vld [vmem:[%s355 + $0x18a0] sm:$0xff]
        %v1218 = vld [vmem:[%s355 + $0x18a8] sm:$0xff]
        %v1219 = vld [vmem:[%s355 + $0x18b0] sm:$0xff]
        %v1220 = vld [vmem:[%s355 + $0x18b8] sm:$0xff]
        %v1221 = vld [vmem:[%s355 + $0x18c0] sm:$0xff]
        %v1222 = vld [vmem:[%s355 + $0x18c8] sm:$0xff]
        %v1223 = vld [vmem:[%s355 + $0x18d0] sm:$0xff]
        %v1224 = vld [vmem:[%s355 + $0x18d8] sm:$0xff]
        %v1225 = vld [vmem:[%s355 + $0x18e0] sm:$0xff]
        %v1226 = vld [vmem:[%s355 + $0x18e8] sm:$0xff]
        %v1227 = vld [vmem:[%s355 + $0x18f0] sm:$0xff]
        %v1228 = vld [vmem:[%s355 + $0x18f8] sm:$0xff]
        %v1229 = vld [vmem:[%s355 + $0x1900] sm:$0xff]
        %v1230 = vld [vmem:[%s355 + $0x1908] sm:$0xff]
        %v1231 = vld [vmem:[%s355 + $0x1910] sm:$0xff]
        %v1232 = vld [vmem:[%s355 + $0x1918] sm:$0xff]
        %v1233 = vld [vmem:[%s355 + $0x1920] sm:$0xff]
        %v1234 = vld [vmem:[%s355 + $0x1928] sm:$0xff]
        %v1235 = vld [vmem:[%s355 + $0x1930] sm:$0xff]
        %v1236 = vld [vmem:[%s355 + $0x1938] sm:$0xff]
        %v1237 = vld [vmem:[%s355 + $0x1940] sm:$0xff]
        %v1238 = vld [vmem:[%s355 + $0x1948] sm:$0xff]
        %v1239 = vld [vmem:[%s355 + $0x1950] sm:$0xff]
        %v1240 = vld [vmem:[%s355 + $0x1958] sm:$0xff]
        %v1241 = vld [vmem:[%s355 + $0x1960] sm:$0xff]
        %v1242 = vld [vmem:[%s355 + $0x1968] sm:$0xff]
        %v1243 = vld [vmem:[%s355 + $0x1970] sm:$0xff]
        %v1244 = vld [vmem:[%s355 + $0x1978] sm:$0xff]
        %v1245 = vld [vmem:[%s355 + $0x1980] sm:$0xff]
        %v1246 = vld [vmem:[%s355 + $0x1988] sm:$0xff]
        %v1247 = vld [vmem:[%s355 + $0x1990] sm:$0xff]
        %v1248 = vld [vmem:[%s355 + $0x1998] sm:$0xff]
        %v1249 = vld [vmem:[%s355 + $0x19a0] sm:$0xff]
        %v1250 = vld [vmem:[%s355 + $0x19a8] sm:$0xff]
        %v1251 = vld [vmem:[%s355 + $0x19b0] sm:$0xff]
        %v1252 = vld [vmem:[%s355 + $0x19b8] sm:$0xff]
        %v1253 = vld [vmem:[%s355 + $0x19c0] sm:$0xff]
        %v1254 = vld [vmem:[%s355 + $0x19c8] sm:$0xff]
        %v1255 = vld [vmem:[%s355 + $0x19d0] sm:$0xff]
        %v1256 = vld [vmem:[%s355 + $0x19d8] sm:$0xff]
        %v1257 = vld [vmem:[%s355 + $0x19e0] sm:$0xff]
        %v1258 = vld [vmem:[%s355 + $0x19e8] sm:$0xff]
        %v1259 = vld [vmem:[%s355 + $0x19f0] sm:$0xff]
        %v1260 = vld [vmem:[%s355 + $0x19f8] sm:$0xff]
        %v1261 = vld [vmem:[%s355 + $0x1a00] sm:$0xff]
        %v1262 = vld [vmem:[%s355 + $0x1a08] sm:$0xff]
        %v1263 = vld [vmem:[%s355 + $0x1a10] sm:$0xff]
        %v1264 = vld [vmem:[%s355 + $0x1a18] sm:$0xff]
        %v1265 = vld [vmem:[%s355 + $0x1a20] sm:$0xff]
        %v1266 = vld [vmem:[%s355 + $0x1a28] sm:$0xff]
        %v1267 = vld [vmem:[%s355 + $0x1a30] sm:$0xff]
        %v1268 = vld [vmem:[%s355 + $0x1a38] sm:$0xff]
        %v1269 = vld [vmem:[%s355 + $0x1a40] sm:$0xff]
        %v1270 = vld [vmem:[%s355 + $0x1a48] sm:$0xff]
        %v1271 = vld [vmem:[%s355 + $0x1a50] sm:$0xff]
        %v1272 = vld [vmem:[%s355 + $0x1a58] sm:$0xff]
        %v1273 = vld [vmem:[%s355 + $0x1a60] sm:$0xff]
        %v1274 = vld [vmem:[%s355 + $0x1a68] sm:$0xff]
        %v1275 = vld [vmem:[%s355 + $0x1a70] sm:$0xff]
        %v1276 = vld [vmem:[%s355 + $0x1a78] sm:$0xff]
        %v1277 = vld [vmem:[%s355 + $0x1a80] sm:$0xff]
        %v1278 = vld [vmem:[%s355 + $0x1a88] sm:$0xff]
        %v1279 = vld [vmem:[%s355 + $0x1a90] sm:$0xff]
        %v1280 = vld [vmem:[%s355 + $0x1a98] sm:$0xff]
        %v1281 = vld [vmem:[%s355 + $0x1aa0] sm:$0xff]
        %v1282 = vld [vmem:[%s355 + $0x1aa8] sm:$0xff]
        %v1283 = vld [vmem:[%s355 + $0x1ab0] sm:$0xff]
        %v1284 = vld [vmem:[%s355 + $0x1ab8] sm:$0xff]
        %v1285 = vld [vmem:[%s355 + $0x1ac0] sm:$0xff]
        %v1286 = vld [vmem:[%s355 + $0x1ac8] sm:$0xff]
        %v1287 = vld [vmem:[%s355 + $0x1ad0] sm:$0xff]
        %v1288 = vld [vmem:[%s355 + $0x1ad8] sm:$0xff]
        %v1289 = vld [vmem:[%s355 + $0x1ae0] sm:$0xff]
        %v1290 = vld [vmem:[%s355 + $0x1ae8] sm:$0xff]
        %v1291 = vld [vmem:[%s355 + $0x1af0] sm:$0xff]
        %v1292 = vld [vmem:[%s355 + $0x1af8] sm:$0xff]
        %v1293 = vld [vmem:[%s355 + $0x1b00] sm:$0xff]
        %v1294 = vld [vmem:[%s355 + $0x1b08] sm:$0xff]
        %v1295 = vld [vmem:[%s355 + $0x1b10] sm:$0xff]
        %v1296 = vld [vmem:[%s355 + $0x1b18] sm:$0xff]
        %v1297 = vld [vmem:[%s355 + $0x1b20] sm:$0xff]
        %v1298 = vld [vmem:[%s355 + $0x1b28] sm:$0xff]
        %v1299 = vld [vmem:[%s355 + $0x1b30] sm:$0xff]
        %v1300 = vld [vmem:[%s355 + $0x1b38] sm:$0xff]
        %v1301 = vld [vmem:[%s355 + $0x1b40] sm:$0xff]
        %v1302 = vld [vmem:[%s355 + $0x1b48] sm:$0xff]
        %v1303 = vld [vmem:[%s355 + $0x1b50] sm:$0xff]
        %v1304 = vld [vmem:[%s355 + $0x1b58] sm:$0xff]
        %v1305 = vld [vmem:[%s355 + $0x1b60] sm:$0xff]
        %v1306 = vld [vmem:[%s355 + $0x1b68] sm:$0xff]
        %v1307 = vld [vmem:[%s355 + $0x1b70] sm:$0xff]
        %v1308 = vld [vmem:[%s355 + $0x1b78] sm:$0xff]
        %v1309 = vld [vmem:[%s355 + $0x1b80] sm:$0xff]
        %v1310 = vld [vmem:[%s355 + $0x1b88] sm:$0xff]
        %v1311 = vld [vmem:[%s355 + $0x1b90] sm:$0xff]
        %v1312 = vld [vmem:[%s355 + $0x1b98] sm:$0xff]
        %v1313 = vld [vmem:[%s355 + $0x1ba0] sm:$0xff]
        %v1314 = vld [vmem:[%s355 + $0x1ba8] sm:$0xff]
        %v1315 = vld [vmem:[%s355 + $0x1bb0] sm:$0xff]
        %v1316 = vld [vmem:[%s355 + $0x1bb8] sm:$0xff]
        %v1317 = vld [vmem:[%s355 + $0x1bc0] sm:$0xff]
        %v1318 = vld [vmem:[%s355 + $0x1bc8] sm:$0xff]
        %v1319 = vld [vmem:[%s355 + $0x1bd0] sm:$0xff]
        %v1320 = vld [vmem:[%s355 + $0x1bd8] sm:$0xff]
        %v1321 = vld [vmem:[%s355 + $0x1be0] sm:$0xff]
        %v1322 = vld [vmem:[%s355 + $0x1be8] sm:$0xff]
        %v1323 = vld [vmem:[%s355 + $0x1bf0] sm:$0xff]
        %v1324 = vld [vmem:[%s355 + $0x1bf8] sm:$0xff]
        %v1325 = vld [vmem:[%s355 + $0x1c00] sm:$0xff]
        %v1326 = vld [vmem:[%s355 + $0x1c08] sm:$0xff]
        %v1327 = vld [vmem:[%s355 + $0x1c10] sm:$0xff]
        %v1328 = vld [vmem:[%s355 + $0x1c18] sm:$0xff]
        %v1329 = vld [vmem:[%s355 + $0x1c20] sm:$0xff]
        %v1330 = vld [vmem:[%s355 + $0x1c28] sm:$0xff]
        %v1331 = vld [vmem:[%s355 + $0x1c30] sm:$0xff]
        %v1332 = vld [vmem:[%s355 + $0x1c38] sm:$0xff]
        %v1333 = vld [vmem:[%s355 + $0x1c40] sm:$0xff]
        %v1334 = vld [vmem:[%s355 + $0x1c48] sm:$0xff]
        %v1335 = vld [vmem:[%s355 + $0x1c50] sm:$0xff]
        %v1336 = vld [vmem:[%s355 + $0x1c58] sm:$0xff]
        %v1337 = vld [vmem:[%s355 + $0x1c60] sm:$0xff]
        %v1338 = vld [vmem:[%s355 + $0x1c68] sm:$0xff]
        %v1339 = vld [vmem:[%s355 + $0x1c70] sm:$0xff]
        %v1340 = vld [vmem:[%s355 + $0x1c78] sm:$0xff]
        %v1341 = vld [vmem:[%s355 + $0x1c80] sm:$0xff]
        %v1342 = vld [vmem:[%s355 + $0x1c88] sm:$0xff]
        %v1343 = vld [vmem:[%s355 + $0x1c90] sm:$0xff]
        %v1344 = vld [vmem:[%s355 + $0x1c98] sm:$0xff]
        %v1345 = vld [vmem:[%s355 + $0x1ca0] sm:$0xff]
        %v1346 = vld [vmem:[%s355 + $0x1ca8] sm:$0xff]
        %v1347 = vld [vmem:[%s355 + $0x1cb0] sm:$0xff]
        %v1348 = vld [vmem:[%s355 + $0x1cb8] sm:$0xff]
        %v1349 = vld [vmem:[%s355 + $0x1cc0] sm:$0xff]
        %v1350 = vld [vmem:[%s355 + $0x1cc8] sm:$0xff]
        %v1351 = vld [vmem:[%s355 + $0x1cd0] sm:$0xff]
        %v1352 = vld [vmem:[%s355 + $0x1cd8] sm:$0xff]
        %v1353 = vld [vmem:[%s355 + $0x1ce0] sm:$0xff]
        %v1354 = vld [vmem:[%s355 + $0x1ce8] sm:$0xff]
        %v1355 = vld [vmem:[%s355 + $0x1cf0] sm:$0xff]
        %v1356 = vld [vmem:[%s355 + $0x1cf8] sm:$0xff]
        %v1357 = vld [vmem:[%s355 + $0x1d00] sm:$0xff]
        %v1358 = vld [vmem:[%s355 + $0x1d08] sm:$0xff]
        %v1359 = vld [vmem:[%s355 + $0x1d10] sm:$0xff]
        %v1360 = vld [vmem:[%s355 + $0x1d18] sm:$0xff]
        %v1361 = vld [vmem:[%s355 + $0x1d20] sm:$0xff]
        %v1362 = vld [vmem:[%s355 + $0x1d28] sm:$0xff]
        %v1363 = vld [vmem:[%s355 + $0x1d30] sm:$0xff]
        %v1364 = vld [vmem:[%s355 + $0x1d38] sm:$0xff]
        %v1365 = vld [vmem:[%s355 + $0x1d40] sm:$0xff]
        %v1366 = vld [vmem:[%s355 + $0x1d48] sm:$0xff]
        %v1367 = vld [vmem:[%s355 + $0x1d50] sm:$0xff]
        %v1368 = vld [vmem:[%s355 + $0x1d58] sm:$0xff]
        %v1369 = vld [vmem:[%s355 + $0x1d60] sm:$0xff]
        %v1370 = vld [vmem:[%s355 + $0x1d68] sm:$0xff]
        %v1371 = vld [vmem:[%s355 + $0x1d70] sm:$0xff]
        %v1372 = vld [vmem:[%s355 + $0x1d78] sm:$0xff]
        %v1373 = vld [vmem:[%s355 + $0x1d80] sm:$0xff]
        %v1374 = vld [vmem:[%s355 + $0x1d88] sm:$0xff]
        %v1375 = vld [vmem:[%s355 + $0x1d90] sm:$0xff]
        %v1376 = vld [vmem:[%s355 + $0x1d98] sm:$0xff]
        %v1377 = vld [vmem:[%s355 + $0x1da0] sm:$0xff]
        %v1378 = vld [vmem:[%s355 + $0x1da8] sm:$0xff]
        %v1379 = vld [vmem:[%s355 + $0x1db0] sm:$0xff]
        %v1380 = vld [vmem:[%s355 + $0x1db8] sm:$0xff]
        %v1381 = vld [vmem:[%s355 + $0x1dc0] sm:$0xff]
        %v1382 = vld [vmem:[%s355 + $0x1dc8] sm:$0xff]
        %v1383 = vld [vmem:[%s355 + $0x1dd0] sm:$0xff]
        %v1384 = vld [vmem:[%s355 + $0x1dd8] sm:$0xff]
        %v1385 = vld [vmem:[%s355 + $0x1de0] sm:$0xff]
        %v1386 = vld [vmem:[%s355 + $0x1de8] sm:$0xff]
        %v1387 = vld [vmem:[%s355 + $0x1df0] sm:$0xff]
        %v1388 = vld [vmem:[%s355 + $0x1df8] sm:$0xff]
        %v1389 = vld [vmem:[%s355 + $0x1e00] sm:$0xff]
        %v1390 = vld [vmem:[%s355 + $0x1e08] sm:$0xff]
        %v1391 = vld [vmem:[%s355 + $0x1e10] sm:$0xff]
        %v1392 = vld [vmem:[%s355 + $0x1e18] sm:$0xff]
        %v1393 = vld [vmem:[%s355 + $0x1e20] sm:$0xff]
        %v1394 = vld [vmem:[%s355 + $0x1e28] sm:$0xff]
        %v1395 = vld [vmem:[%s355 + $0x1e30] sm:$0xff]
        %v1396 = vld [vmem:[%s355 + $0x1e38] sm:$0xff]
        %v1397 = vld [vmem:[%s355 + $0x1e40] sm:$0xff]
        %v1398 = vld [vmem:[%s355 + $0x1e48] sm:$0xff]
        %v1399 = vld [vmem:[%s355 + $0x1e50] sm:$0xff]
        %v1400 = vld [vmem:[%s355 + $0x1e58] sm:$0xff]
        %v1401 = vld [vmem:[%s355 + $0x1e60] sm:$0xff]
        %v1402 = vld [vmem:[%s355 + $0x1e68] sm:$0xff]
        %v1403 = vld [vmem:[%s355 + $0x1e70] sm:$0xff]
        %v1404 = vld [vmem:[%s355 + $0x1e78] sm:$0xff]
        %v1405 = vld [vmem:[%s355 + $0x1e80] sm:$0xff]
        %v1406 = vld [vmem:[%s355 + $0x1e88] sm:$0xff]
        %v1407 = vld [vmem:[%s355 + $0x1e90] sm:$0xff]
        %v1408 = vld [vmem:[%s355 + $0x1e98] sm:$0xff]
        %v1409 = vld [vmem:[%s355 + $0x1ea0] sm:$0xff]
        %v1410 = vld [vmem:[%s355 + $0x1ea8] sm:$0xff]
        %v1411 = vld [vmem:[%s355 + $0x1eb0] sm:$0xff]
        %v1412 = vld [vmem:[%s355 + $0x1eb8] sm:$0xff]
        %v1413 = vld [vmem:[%s355 + $0x1ec0] sm:$0xff]
        %v1414 = vld [vmem:[%s355 + $0x1ec8] sm:$0xff]
        %v1415 = vld [vmem:[%s355 + $0x1ed0] sm:$0xff]
        %v1416 = vld [vmem:[%s355 + $0x1ed8] sm:$0xff]
        %v1417 = vld [vmem:[%s355 + $0x1ee0] sm:$0xff]
        %v1418 = vld [vmem:[%s355 + $0x1ee8] sm:$0xff]
        %v1419 = vld [vmem:[%s355 + $0x1ef0] sm:$0xff]
        %v1420 = vld [vmem:[%s355 + $0x1ef8] sm:$0xff]
        %v1421 = vld [vmem:[%s355 + $0x1f00] sm:$0xff]
        %v1422 = vld [vmem:[%s355 + $0x1f08] sm:$0xff]
        %v1423 = vld [vmem:[%s355 + $0x1f10] sm:$0xff]
        %v1424 = vld [vmem:[%s355 + $0x1f18] sm:$0xff]
        %v1425 = vld [vmem:[%s355 + $0x1f20] sm:$0xff]
        %v1426 = vld [vmem:[%s355 + $0x1f28] sm:$0xff]
        %v1427 = vld [vmem:[%s355 + $0x1f30] sm:$0xff]
        %v1428 = vld [vmem:[%s355 + $0x1f38] sm:$0xff]
        %v1429 = vld [vmem:[%s355 + $0x1f40] sm:$0xff]
        %v1430 = vld [vmem:[%s355 + $0x1f48] sm:$0xff]
        %v1431 = vld [vmem:[%s355 + $0x1f50] sm:$0xff]
        %v1432 = vld [vmem:[%s355 + $0x1f58] sm:$0xff]
        %v1433 = vld [vmem:[%s355 + $0x1f60] sm:$0xff]
        %v1434 = vld [vmem:[%s355 + $0x1f68] sm:$0xff]
        %v1435 = vld [vmem:[%s355 + $0x1f70] sm:$0xff]
        %v1436 = vld [vmem:[%s355 + $0x1f78] sm:$0xff]
        %v1437 = vld [vmem:[%s355 + $0x1f80] sm:$0xff]
        %v1438 = vld [vmem:[%s355 + $0x1f88] sm:$0xff]
        %v1439 = vld [vmem:[%s355 + $0x1f90] sm:$0xff]
        %v1440 = vld [vmem:[%s355 + $0x1f98] sm:$0xff]
        %v1441 = vld [vmem:[%s355 + $0x1fa0] sm:$0xff]
        %v1442 = vld [vmem:[%s355 + $0x1fa8] sm:$0xff]
        %v1443 = vld [vmem:[%s355 + $0x1fb0] sm:$0xff]
        %v1444 = vld [vmem:[%s355 + $0x1fb8] sm:$0xff]
        %v1445 = vld [vmem:[%s355 + $0x1fc0] sm:$0xff]
        %v1446 = vld [vmem:[%s355 + $0x1fc8] sm:$0xff]
        %v1447 = vld [vmem:[%s355 + $0x1fd0] sm:$0xff]
        %v1448 = vld [vmem:[%s355 + $0x1fd8] sm:$0xff]
        %v1449 = vld [vmem:[%s355 + $0x1fe0] sm:$0xff]
        %v1450 = vld [vmem:[%s355 + $0x1fe8] sm:$0xff]
        %v1451 = vld [vmem:[%s355 + $0x1ff0] sm:$0xff]
        %v1452 = vld [vmem:[%s355 + $0x1ff8] sm:$0xff]
        %v1453 = vld [vmem:[%s355 + $0x2000] sm:$0xff]
        %v1454 = vld [vmem:[%s355 + $0x2008] sm:$0xff]
        %v1455 = vld [vmem:[%s355 + $0x2010] sm:$0xff]
        %v1456 = vld [vmem:[%s355 + $0x2018] sm:$0xff]
        %v1457 = vld [vmem:[%s355 + $0x2020] sm:$0xff]
        %v1458 = vld [vmem:[%s355 + $0x2028] sm:$0xff]
        %v1459 = vld [vmem:[%s355 + $0x2030] sm:$0xff]
        %v1460 = vld [vmem:[%s355 + $0x2038] sm:$0xff]
        %v1461 = vld [vmem:[%s355 + $0x2040] sm:$0xff]
        %v1462 = vld [vmem:[%s355 + $0x2048] sm:$0xff]
        %v1463 = vld [vmem:[%s355 + $0x2050] sm:$0xff]
        %v1464 = vld [vmem:[%s355 + $0x2058] sm:$0xff]
        %v1465 = vld [vmem:[%s355 + $0x2060] sm:$0xff]
        %v1466 = vld [vmem:[%s355 + $0x2068] sm:$0xff]
        %v1467 = vld [vmem:[%s355 + $0x2070] sm:$0xff]
        %v1468 = vld [vmem:[%s355 + $0x2078] sm:$0xff]
        %v1469 = vld [vmem:[%s355 + $0x2080] sm:$0xff]
        %v1470 = vld [vmem:[%s355 + $0x2088] sm:$0xff]
        %v1471 = vld [vmem:[%s355 + $0x2090] sm:$0xff]
        %v1472 = vld [vmem:[%s355 + $0x2098] sm:$0xff]
        %v1473 = vld [vmem:[%s355 + $0x20a0] sm:$0xff]
        %v1474 = vld [vmem:[%s355 + $0x20a8] sm:$0xff]
        %v1475 = vld [vmem:[%s355 + $0x20b0] sm:$0xff]
        %v1476 = vld [vmem:[%s355 + $0x20b8] sm:$0xff]
        %v1477 = vld [vmem:[%s355 + $0x20c0] sm:$0xff]
        %v1478 = vld [vmem:[%s355 + $0x20c8] sm:$0xff]
        %v1479 = vld [vmem:[%s355 + $0x20d0] sm:$0xff]
        %v1480 = vld [vmem:[%s355 + $0x20d8] sm:$0xff]
        %v1481 = vld [vmem:[%s355 + $0x20e0] sm:$0xff]
        %v1482 = vld [vmem:[%s355 + $0x20e8] sm:$0xff]
        %v1483 = vld [vmem:[%s355 + $0x20f0] sm:$0xff]
        %v1484 = vld [vmem:[%s355 + $0x20f8] sm:$0xff]
        %v1485 = vld [vmem:[%s355 + $0x2100] sm:$0xff]
        %v1486 = vld [vmem:[%s355 + $0x2108] sm:$0xff]
        %v1487 = vld [vmem:[%s355 + $0x2110] sm:$0xff]
        %v1488 = vld [vmem:[%s355 + $0x2118] sm:$0xff]
        %v1489 = vld [vmem:[%s355 + $0x2120] sm:$0xff]
        %v1490 = vld [vmem:[%s355 + $0x2128] sm:$0xff]
        %v1491 = vld [vmem:[%s355 + $0x2130] sm:$0xff]
        %v1492 = vld [vmem:[%s355 + $0x2138] sm:$0xff]
        %v1493 = vld [vmem:[%s355 + $0x2140] sm:$0xff]
        %v1494 = vld [vmem:[%s355 + $0x2148] sm:$0xff]
        %v1495 = vld [vmem:[%s355 + $0x2150] sm:$0xff]
        %v1496 = vld [vmem:[%s355 + $0x2158] sm:$0xff]
        %v1497 = vld [vmem:[%s355 + $0x2160] sm:$0xff]
        %v1498 = vld [vmem:[%s355 + $0x2168] sm:$0xff]
        %v1499 = vld [vmem:[%s355 + $0x2170] sm:$0xff]
        %v1500 = vld [vmem:[%s355 + $0x2178] sm:$0xff]
        %v1501 = vld [vmem:[%s355 + $0x2180] sm:$0xff]
        %v1502 = vld [vmem:[%s355 + $0x2188] sm:$0xff]
        %v1503 = vld [vmem:[%s355 + $0x2190] sm:$0xff]
        %v1504 = vld [vmem:[%s355 + $0x2198] sm:$0xff]
        %v1505 = vld [vmem:[%s355 + $0x21a0] sm:$0xff]
        %v1506 = vld [vmem:[%s355 + $0x21a8] sm:$0xff]
        %v1507 = vld [vmem:[%s355 + $0x21b0] sm:$0xff]
        %v1508 = vld [vmem:[%s355 + $0x21b8] sm:$0xff]
        %v1509 = vld [vmem:[%s355 + $0x21c0] sm:$0xff]
        %v1510 = vld [vmem:[%s355 + $0x21c8] sm:$0xff]
        %v1511 = vld [vmem:[%s355 + $0x21d0] sm:$0xff]
        %v1512 = vld [vmem:[%s355 + $0x21d8] sm:$0xff]
        %v1513 = vld [vmem:[%s355 + $0x21e0] sm:$0xff]
        %v1514 = vld [vmem:[%s355 + $0x21e8] sm:$0xff]
        %v1515 = vld [vmem:[%s355 + $0x21f0] sm:$0xff]
        %v1516 = vld [vmem:[%s355 + $0x21f8] sm:$0xff]
        %v1517 = vld [vmem:[%s355 + $0x2200] sm:$0xff]
        %v1518 = vld [vmem:[%s355 + $0x2208] sm:$0xff]
        %v1519 = vld [vmem:[%s355 + $0x2210] sm:$0xff]
        %v1520 = vld [vmem:[%s355 + $0x2218] sm:$0xff]
        %v1521 = vld [vmem:[%s355 + $0x2220] sm:$0xff]
        %v1522 = vld [vmem:[%s355 + $0x2228] sm:$0xff]
        %v1523 = vld [vmem:[%s355 + $0x2230] sm:$0xff]
        %v1524 = vld [vmem:[%s355 + $0x2238] sm:$0xff]
        %v1525 = vld [vmem:[%s355 + $0x2240] sm:$0xff]
        %v1526 = vld [vmem:[%s355 + $0x2248] sm:$0xff]
        %v1527 = vld [vmem:[%s355 + $0x2250] sm:$0xff]
        %v1528 = vld [vmem:[%s355 + $0x2258] sm:$0xff]
        %v1529 = vld [vmem:[%s355 + $0x2260] sm:$0xff]
        %v1530 = vld [vmem:[%s355 + $0x2268] sm:$0xff]
        %v1531 = vld [vmem:[%s355 + $0x2270] sm:$0xff]
        %v1532 = vld [vmem:[%s355 + $0x2278] sm:$0xff]
        %v1533 = vld [vmem:[%s355 + $0x2280] sm:$0xff]
        %v1534 = vld [vmem:[%s355 + $0x2288] sm:$0xff]
        %v1535 = vld [vmem:[%s355 + $0x2290] sm:$0xff]
        %v1536 = vld [vmem:[%s355 + $0x2298] sm:$0xff]
        %v1537 = vld [vmem:[%s355 + $0x22a0] sm:$0xff]
        %v1538 = vld [vmem:[%s355 + $0x22a8] sm:$0xff]
        %v1539 = vld [vmem:[%s355 + $0x22b0] sm:$0xff]
        %v1540 = vld [vmem:[%s355 + $0x22b8] sm:$0xff]
        %v1541 = vld [vmem:[%s355 + $0x22c0] sm:$0xff]
        %v1542 = vld [vmem:[%s355 + $0x22c8] sm:$0xff]
        %v1543 = vld [vmem:[%s355 + $0x22d0] sm:$0xff]
        %v1544 = vld [vmem:[%s355 + $0x22d8] sm:$0xff]
        %v1545 = vld [vmem:[%s355 + $0x22e0] sm:$0xff]
        %v1546 = vld [vmem:[%s355 + $0x22e8] sm:$0xff]
        %v1547 = vld [vmem:[%s355 + $0x22f0] sm:$0xff]
        %v1548 = vld [vmem:[%s355 + $0x22f8] sm:$0xff]
        %v1549 = vld [vmem:[%s355 + $0x2300] sm:$0xff]
        %v1550 = vld [vmem:[%s355 + $0x2308] sm:$0xff]
        %v1551 = vld [vmem:[%s355 + $0x2310] sm:$0xff]
        %v1552 = vld [vmem:[%s355 + $0x2318] sm:$0xff]
        %v1553 = vld [vmem:[%s355 + $0x2320] sm:$0xff]
        %v1554 = vld [vmem:[%s355 + $0x2328] sm:$0xff]
        %v1555 = vld [vmem:[%s355 + $0x2330] sm:$0xff]
        %v1556 = vld [vmem:[%s355 + $0x2338] sm:$0xff]
        %v1557 = vld [vmem:[%s355 + $0x2340] sm:$0xff]
        %v1558 = vld [vmem:[%s355 + $0x2348] sm:$0xff]
        %v1559 = vld [vmem:[%s355 + $0x2350] sm:$0xff]
        %v1560 = vld [vmem:[%s355 + $0x2358] sm:$0xff]
        %v1561 = vld [vmem:[%s355 + $0x2360] sm:$0xff]
        %v1562 = vld [vmem:[%s355 + $0x2368] sm:$0xff]
        %v1563 = vld [vmem:[%s355 + $0x2370] sm:$0xff]
        %v1564 = vld [vmem:[%s355 + $0x2378] sm:$0xff]
        %v1565 = vld [vmem:[%s355 + $0x2380] sm:$0xff]
        %v1566 = vld [vmem:[%s355 + $0x2388] sm:$0xff]
        %v1567 = vld [vmem:[%s355 + $0x2390] sm:$0xff]
        %v1568 = vld [vmem:[%s355 + $0x2398] sm:$0xff]
        %v1569 = vld [vmem:[%s355 + $0x23a0] sm:$0xff]
        %v1570 = vld [vmem:[%s355 + $0x23a8] sm:$0xff]
        %v1571 = vld [vmem:[%s355 + $0x23b0] sm:$0xff]
        %v1572 = vld [vmem:[%s355 + $0x23b8] sm:$0xff]
        %v1573 = vld [vmem:[%s355 + $0x23c0] sm:$0xff]
        %v1574 = vld [vmem:[%s355 + $0x23c8] sm:$0xff]
        %v1575 = vld [vmem:[%s355 + $0x23d0] sm:$0xff]
        %v1576 = vld [vmem:[%s355 + $0x23d8] sm:$0xff]
        %v1577 = vld [vmem:[%s355 + $0x23e0] sm:$0xff]
        %v1578 = vld [vmem:[%s355 + $0x23e8] sm:$0xff]
        %v1579 = vld [vmem:[%s355 + $0x23f0] sm:$0xff]
        %v1580 = vld [vmem:[%s355 + $0x23f8] sm:$0xff]
        %v1581 = vld [vmem:[%s355 + $0x2400] sm:$0xff]
        %v1582 = vld [vmem:[%s355 + $0x2408] sm:$0xff]
        %v1583 = vld [vmem:[%s355 + $0x2410] sm:$0xff]
        %v1584 = vld [vmem:[%s355 + $0x2418] sm:$0xff]
        %v1585 = vld [vmem:[%s355 + $0x2420] sm:$0xff]
        %v1586 = vld [vmem:[%s355 + $0x2428] sm:$0xff]
        %v1587 = vld [vmem:[%s355 + $0x2430] sm:$0xff]
        %v1588 = vld [vmem:[%s355 + $0x2438] sm:$0xff]
        %v1589 = vld [vmem:[%s355 + $0x2440] sm:$0xff]
        %v1590 = vld [vmem:[%s355 + $0x2448] sm:$0xff]
        %v1591 = vld [vmem:[%s355 + $0x2450] sm:$0xff]
        %v1592 = vld [vmem:[%s355 + $0x2458] sm:$0xff]
        %v1593 = vld [vmem:[%s355 + $0x2460] sm:$0xff]
        %v1594 = vld [vmem:[%s355 + $0x2468] sm:$0xff]
        %v1595 = vld [vmem:[%s355 + $0x2470] sm:$0xff]
        %v1596 = vld [vmem:[%s355 + $0x2478] sm:$0xff]
        %v1597 = vld [vmem:[%s355 + $0x2480] sm:$0xff]
        %v1598 = vld [vmem:[%s355 + $0x2488] sm:$0xff]
        %v1599 = vld [vmem:[%s355 + $0x2490] sm:$0xff]
        %v1600 = vld [vmem:[%s355 + $0x2498] sm:$0xff]
        %v1601 = vld [vmem:[%s355 + $0x24a0] sm:$0xff]
        %v1602 = vld [vmem:[%s355 + $0x24a8] sm:$0xff]
        %v1603 = vld [vmem:[%s355 + $0x24b0] sm:$0xff]
        %v1604 = vld [vmem:[%s355 + $0x24b8] sm:$0xff]
        %v1605 = vld [vmem:[%s355 + $0x24c0] sm:$0xff]
        %v1606 = vld [vmem:[%s355 + $0x24c8] sm:$0xff]
        %v1607 = vld [vmem:[%s355 + $0x24d0] sm:$0xff]
        %v1608 = vld [vmem:[%s355 + $0x24d8] sm:$0xff]
        %v1609 = vld [vmem:[%s355 + $0x24e0] sm:$0xff]
        %v1610 = vld [vmem:[%s355 + $0x24e8] sm:$0xff]
        %v1611 = vld [vmem:[%s355 + $0x24f0] sm:$0xff]
        %v1612 = vld [vmem:[%s355 + $0x24f8] sm:$0xff]
        %v1613 = vld [vmem:[%s355 + $0x2500] sm:$0xff]
        %v1614 = vld [vmem:[%s355 + $0x2508] sm:$0xff]
        %v1615 = vld [vmem:[%s355 + $0x2510] sm:$0xff]
        %v1616 = vld [vmem:[%s355 + $0x2518] sm:$0xff]
        %v1617 = vld [vmem:[%s355 + $0x2520] sm:$0xff]
        %v1618 = vld [vmem:[%s355 + $0x2528] sm:$0xff]
        %v1619 = vld [vmem:[%s355 + $0x2530] sm:$0xff]
        %v1620 = vld [vmem:[%s355 + $0x2538] sm:$0xff]
        %v1621 = vld [vmem:[%s355 + $0x2540] sm:$0xff]
        %v1622 = vld [vmem:[%s355 + $0x2548] sm:$0xff]
        %v1623 = vld [vmem:[%s355 + $0x2550] sm:$0xff]
        %v1624 = vld [vmem:[%s355 + $0x2558] sm:$0xff]
        %v1625 = vld [vmem:[%s355 + $0x2560] sm:$0xff]
        %v1626 = vld [vmem:[%s355 + $0x2568] sm:$0xff]
        %v1627 = vld [vmem:[%s355 + $0x2570] sm:$0xff]
        %v1628 = vld [vmem:[%s355 + $0x2578] sm:$0xff]
        %v1629 = vld [vmem:[%s355 + $0x2580] sm:$0xff]
        %v1630 = vld [vmem:[%s355 + $0x2588] sm:$0xff]
        %v1631 = vld [vmem:[%s355 + $0x2590] sm:$0xff]
        %v1632 = vld [vmem:[%s355 + $0x2598] sm:$0xff]
        %v1633 = vld [vmem:[%s355 + $0x25a0] sm:$0xff]
        %v1634 = vld [vmem:[%s355 + $0x25a8] sm:$0xff]
        %v1635 = vld [vmem:[%s355 + $0x25b0] sm:$0xff]
        %v1636 = vld [vmem:[%s355 + $0x25b8] sm:$0xff]
        %v1637 = vld [vmem:[%s355 + $0x25c0] sm:$0xff]
        %v1638 = vld [vmem:[%s355 + $0x25c8] sm:$0xff]
        %v1639 = vld [vmem:[%s355 + $0x25d0] sm:$0xff]
        %v1640 = vld [vmem:[%s355 + $0x25d8] sm:$0xff]
        %v1641 = vld [vmem:[%s355 + $0x25e0] sm:$0xff]
        %v1642 = vld [vmem:[%s355 + $0x25e8] sm:$0xff]
        %v1643 = vld [vmem:[%s355 + $0x25f0] sm:$0xff]
        %v1644 = vld [vmem:[%s355 + $0x25f8] sm:$0xff]
        %v1645 = vld [vmem:[%s355 + $0x2600] sm:$0xff]
        %v1646 = vld [vmem:[%s355 + $0x2608] sm:$0xff]
        %v1647 = vld [vmem:[%s355 + $0x2610] sm:$0xff]
        %v1648 = vld [vmem:[%s355 + $0x2618] sm:$0xff]
        %v1649 = vld [vmem:[%s355 + $0x2620] sm:$0xff]
        %v1650 = vld [vmem:[%s355 + $0x2628] sm:$0xff]
        %v1651 = vld [vmem:[%s355 + $0x2630] sm:$0xff]
        %v1652 = vld [vmem:[%s355 + $0x2638] sm:$0xff]
        %v1653 = vld [vmem:[%s355 + $0x2640] sm:$0xff]
        %v1654 = vld [vmem:[%s355 + $0x2648] sm:$0xff]
        %v1655 = vld [vmem:[%s355 + $0x2650] sm:$0xff]
        %v1656 = vld [vmem:[%s355 + $0x2658] sm:$0xff]
        %v1657 = vld [vmem:[%s355 + $0x2660] sm:$0xff]
        %v1658 = vld [vmem:[%s355 + $0x2668] sm:$0xff]
        %v1659 = vld [vmem:[%s355 + $0x2670] sm:$0xff]
        %v1660 = vld [vmem:[%s355 + $0x2678] sm:$0xff]
        %v1661 = vld [vmem:[%s355 + $0x2680] sm:$0xff]
        %v1662 = vld [vmem:[%s355 + $0x2688] sm:$0xff]
        %v1663 = vld [vmem:[%s355 + $0x2690] sm:$0xff]
        %v1664 = vld [vmem:[%s355 + $0x2698] sm:$0xff]
        %v1665 = vld [vmem:[%s355 + $0x26a0] sm:$0xff]
        %v1666 = vld [vmem:[%s355 + $0x26a8] sm:$0xff]
        %v1667 = vld [vmem:[%s355 + $0x26b0] sm:$0xff]
        %v1668 = vld [vmem:[%s355 + $0x26b8] sm:$0xff]
        %v1669 = vld [vmem:[%s355 + $0x26c0] sm:$0xff]
        %v1670 = vld [vmem:[%s355 + $0x26c8] sm:$0xff]
        %v1671 = vld [vmem:[%s355 + $0x26d0] sm:$0xff]
        %v1672 = vld [vmem:[%s355 + $0x26d8] sm:$0xff]
        %v1673 = vld [vmem:[%s355 + $0x26e0] sm:$0xff]
        %v1674 = vld [vmem:[%s355 + $0x26e8] sm:$0xff]
        %v1675 = vld [vmem:[%s355 + $0x26f0] sm:$0xff]
        %v1676 = vld [vmem:[%s355 + $0x26f8] sm:$0xff]
        %v1677 = vld [vmem:[%s355 + $0x2700] sm:$0xff]
        %v1678 = vld [vmem:[%s355 + $0x2708] sm:$0xff]
        %v1679 = vld [vmem:[%s355 + $0x2710] sm:$0xff]
        %v1680 = vld [vmem:[%s355 + $0x2718] sm:$0xff]
        %v1681 = vld [vmem:[%s355 + $0x2720] sm:$0xff]
        %v1682 = vld [vmem:[%s355 + $0x2728] sm:$0xff]
        %v1683 = vld [vmem:[%s355 + $0x2730] sm:$0xff]
        %v1684 = vld [vmem:[%s355 + $0x2738] sm:$0xff]
        %v1685 = vld [vmem:[%s355 + $0x2740] sm:$0xff]
        %v1686 = vld [vmem:[%s355 + $0x2748] sm:$0xff]
        %v1687 = vld [vmem:[%s355 + $0x2750] sm:$0xff]
        %v1688 = vld [vmem:[%s355 + $0x2758] sm:$0xff]
        %v1689 = vld [vmem:[%s355 + $0x2760] sm:$0xff]
        %v1690 = vld [vmem:[%s355 + $0x2768] sm:$0xff]
        %v1691 = vld [vmem:[%s355 + $0x2770] sm:$0xff]
        %v1692 = vld [vmem:[%s355 + $0x2778] sm:$0xff]
        %v1693 = vld [vmem:[%s355 + $0x2780] sm:$0xff]
        %v1694 = vld [vmem:[%s355 + $0x2788] sm:$0xff]
        %v1695 = vld [vmem:[%s355 + $0x2790] sm:$0xff]
        %v1696 = vld [vmem:[%s355 + $0x2798] sm:$0xff]
        %v1697 = vld [vmem:[%s355 + $0x27a0] sm:$0xff]
        %v1698 = vld [vmem:[%s355 + $0x27a8] sm:$0xff]
        %v1699 = vld [vmem:[%s355 + $0x27b0] sm:$0xff]
        %v1700 = vld [vmem:[%s355 + $0x27b8] sm:$0xff]
        %v1701 = vld [vmem:[%s355 + $0x27c0] sm:$0xff]
        %v1702 = vld [vmem:[%s355 + $0x27c8] sm:$0xff]
        %v1703 = vld [vmem:[%s355 + $0x27d0] sm:$0xff]
        %v1704 = vld [vmem:[%s355 + $0x27d8] sm:$0xff]
        %v1705 = vld [vmem:[%s355 + $0x27e0] sm:$0xff]
        %v1706 = vld [vmem:[%s355 + $0x27e8] sm:$0xff]
        %v1707 = vld [vmem:[%s355 + $0x27f0] sm:$0xff]
        %v1708 = vld [vmem:[%s355 + $0x27f8] sm:$0xff]
        %v1709 = vld [vmem:[%s355 + $0x2800] sm:$0xff]
        %v1710 = vld [vmem:[%s355 + $0x2808] sm:$0xff]
        %v1711 = vld [vmem:[%s355 + $0x2810] sm:$0xff]
        %v1712 = vld [vmem:[%s355 + $0x2818] sm:$0xff]
        %v1713 = vld [vmem:[%s355 + $0x2820] sm:$0xff]
        %v1714 = vld [vmem:[%s355 + $0x2828] sm:$0xff]
        %v1715 = vld [vmem:[%s355 + $0x2830] sm:$0xff]
        %v1716 = vld [vmem:[%s355 + $0x2838] sm:$0xff]
        %v1717 = vld [vmem:[%s355 + $0x2840] sm:$0xff]
        %v1718 = vld [vmem:[%s355 + $0x2848] sm:$0xff]
        %v1719 = vld [vmem:[%s355 + $0x2850] sm:$0xff]
        %v1720 = vld [vmem:[%s355 + $0x2858] sm:$0xff]
        %v1721 = vld [vmem:[%s355 + $0x2860] sm:$0xff]
        %v1722 = vld [vmem:[%s355 + $0x2868] sm:$0xff]
        %v1723 = vld [vmem:[%s355 + $0x2870] sm:$0xff]
        %v1724 = vld [vmem:[%s355 + $0x2878] sm:$0xff]
        %v1725 = vld [vmem:[%s355 + $0x2880] sm:$0xff]
        %v1726 = vld [vmem:[%s355 + $0x2888] sm:$0xff]
        %v1727 = vld [vmem:[%s355 + $0x2890] sm:$0xff]
        %v1728 = vld [vmem:[%s355 + $0x2898] sm:$0xff]
        %v1729 = vld [vmem:[%s355 + $0x28a0] sm:$0xff]
        %v1730 = vld [vmem:[%s355 + $0x28a8] sm:$0xff]
        %v1731 = vld [vmem:[%s355 + $0x28b0] sm:$0xff]
        %v1732 = vld [vmem:[%s355 + $0x28b8] sm:$0xff]
        %v1733 = vld [vmem:[%s355 + $0x28c0] sm:$0xff]
        %v1734 = vld [vmem:[%s355 + $0x28c8] sm:$0xff]
        %v1735 = vld [vmem:[%s355 + $0x28d0] sm:$0xff]
        %v1736 = vld [vmem:[%s355 + $0x28d8] sm:$0xff]
        %v1737 = vld [vmem:[%s355 + $0x28e0] sm:$0xff]
        %v1738 = vld [vmem:[%s355 + $0x28e8] sm:$0xff]
        %v1739 = vld [vmem:[%s355 + $0x28f0] sm:$0xff]
        %v1740 = vld [vmem:[%s355 + $0x28f8] sm:$0xff]
        %v1741 = vld [vmem:[%s355 + $0x2900] sm:$0xff]
        %v1742 = vld [vmem:[%s355 + $0x2908] sm:$0xff]
        %v1743 = vld [vmem:[%s355 + $0x2910] sm:$0xff]
        %v1744 = vld [vmem:[%s355 + $0x2918] sm:$0xff]
        %v1745 = vld [vmem:[%s355 + $0x2920] sm:$0xff]
        %v1746 = vld [vmem:[%s355 + $0x2928] sm:$0xff]
        %v1747 = vld [vmem:[%s355 + $0x2930] sm:$0xff]
        %v1748 = vld [vmem:[%s355 + $0x2938] sm:$0xff]
        %v1749 = vld [vmem:[%s355 + $0x2940] sm:$0xff]
        %v1750 = vld [vmem:[%s355 + $0x2948] sm:$0xff]
        %v1751 = vld [vmem:[%s355 + $0x2950] sm:$0xff]
        %v1752 = vld [vmem:[%s355 + $0x2958] sm:$0xff]
        %v1753 = vld [vmem:[%s355 + $0x2960] sm:$0xff]
        %v1754 = vld [vmem:[%s355 + $0x2968] sm:$0xff]
        %v1755 = vld [vmem:[%s355 + $0x2970] sm:$0xff]
        %v1756 = vld [vmem:[%s355 + $0x2978] sm:$0xff]
        %v1757 = vld [vmem:[%s355 + $0x2980] sm:$0xff]
        %v1758 = vld [vmem:[%s355 + $0x2988] sm:$0xff]
        %v1759 = vld [vmem:[%s355 + $0x2990] sm:$0xff]
        %v1760 = vld [vmem:[%s355 + $0x2998] sm:$0xff]
        %v1761 = vld [vmem:[%s355 + $0x29a0] sm:$0xff]
        %v1762 = vld [vmem:[%s355 + $0x29a8] sm:$0xff]
        %v1763 = vld [vmem:[%s355 + $0x29b0] sm:$0xff]
        %v1764 = vld [vmem:[%s355 + $0x29b8] sm:$0xff]
        %v1765 = vld [vmem:[%s355 + $0x29c0] sm:$0xff]
        %v1766 = vld [vmem:[%s355 + $0x29c8] sm:$0xff]
        %v1767 = vld [vmem:[%s355 + $0x29d0] sm:$0xff]
        %v1768 = vld [vmem:[%s355 + $0x29d8] sm:$0xff]
        %v1769 = vld [vmem:[%s355 + $0x29e0] sm:$0xff]
        %v1770 = vld [vmem:[%s355 + $0x29e8] sm:$0xff]
        %v1771 = vld [vmem:[%s355 + $0x29f0] sm:$0xff]
        %v1772 = vld [vmem:[%s355 + $0x29f8] sm:$0xff]
        %v1773 = vld [vmem:[%s355 + $0x2a00] sm:$0xff]
        %v1774 = vld [vmem:[%s355 + $0x2a08] sm:$0xff]
        %v1775 = vld [vmem:[%s355 + $0x2a10] sm:$0xff]
        %v1776 = vld [vmem:[%s355 + $0x2a18] sm:$0xff]
        %v1777 = vld [vmem:[%s355 + $0x2a20] sm:$0xff]
        %v1778 = vld [vmem:[%s355 + $0x2a28] sm:$0xff]
        %v1779 = vld [vmem:[%s355 + $0x2a30] sm:$0xff]
        %v1780 = vld [vmem:[%s355 + $0x2a38] sm:$0xff]
        %v1781 = vld [vmem:[%s355 + $0x2a40] sm:$0xff]
        %v1782 = vld [vmem:[%s355 + $0x2a48] sm:$0xff]
        %v1783 = vld [vmem:[%s355 + $0x2a50] sm:$0xff]
        %v1784 = vld [vmem:[%s355 + $0x2a58] sm:$0xff]
        %v1785 = vld [vmem:[%s355 + $0x2a60] sm:$0xff]
        %v1786 = vld [vmem:[%s355 + $0x2a68] sm:$0xff]
        %v1787 = vld [vmem:[%s355 + $0x2a70] sm:$0xff]
        %v1788 = vld [vmem:[%s355 + $0x2a78] sm:$0xff]
        %v1789 = vld [vmem:[%s355 + $0x2a80] sm:$0xff]
        %v1790 = vld [vmem:[%s355 + $0x2a88] sm:$0xff]
        %v1791 = vld [vmem:[%s355 + $0x2a90] sm:$0xff]
        %v1792 = vld [vmem:[%s355 + $0x2a98] sm:$0xff]
        %v1793 = vld [vmem:[%s355 + $0x2aa0] sm:$0xff]
        %v1794 = vld [vmem:[%s355 + $0x2aa8] sm:$0xff]
        %v1795 = vld [vmem:[%s355 + $0x2ab0] sm:$0xff]
        %v1796 = vld [vmem:[%s355 + $0x2ab8] sm:$0xff]
        %v1797 = vld [vmem:[%s355 + $0x2ac0] sm:$0xff]
        %v1798 = vld [vmem:[%s355 + $0x2ac8] sm:$0xff]
        %v1799 = vld [vmem:[%s355 + $0x2ad0] sm:$0xff]
        %v1800 = vld [vmem:[%s355 + $0x2ad8] sm:$0xff]
        %v1801 = vld [vmem:[%s355 + $0x2ae0] sm:$0xff]
        %v1802 = vld [vmem:[%s355 + $0x2ae8] sm:$0xff]
        %v1803 = vld [vmem:[%s355 + $0x2af0] sm:$0xff]
        %v1804 = vld [vmem:[%s355 + $0x2af8] sm:$0xff]
        %v1805 = vld [vmem:[%s355 + $0x2b00] sm:$0xff]
        %v1806 = vld [vmem:[%s355 + $0x2b08] sm:$0xff]
        %v1807 = vld [vmem:[%s355 + $0x2b10] sm:$0xff]
        %v1808 = vld [vmem:[%s355 + $0x2b18] sm:$0xff]
        %v1809 = vld [vmem:[%s355 + $0x2b20] sm:$0xff]
        %v1810 = vld [vmem:[%s355 + $0x2b28] sm:$0xff]
        %v1811 = vld [vmem:[%s355 + $0x2b30] sm:$0xff]
        %v1812 = vld [vmem:[%s355 + $0x2b38] sm:$0xff]
        %v1813 = vld [vmem:[%s355 + $0x2b40] sm:$0xff]
        %v1814 = vld [vmem:[%s355 + $0x2b48] sm:$0xff]
        %v1815 = vld [vmem:[%s355 + $0x2b50] sm:$0xff]
        %v1816 = vld [vmem:[%s355 + $0x2b58] sm:$0xff]
        %v1817 = vld [vmem:[%s355 + $0x2b60] sm:$0xff]
        %v1818 = vld [vmem:[%s355 + $0x2b68] sm:$0xff]
        %v1819 = vld [vmem:[%s355 + $0x2b70] sm:$0xff]
        %v1820 = vld [vmem:[%s355 + $0x2b78] sm:$0xff]
        %v1821 = vld [vmem:[%s355 + $0x2b80] sm:$0xff]
        %v1822 = vld [vmem:[%s355 + $0x2b88] sm:$0xff]
        %v1823 = vld [vmem:[%s355 + $0x2b90] sm:$0xff]
        %v1824 = vld [vmem:[%s355 + $0x2b98] sm:$0xff]
        %v1825 = vld [vmem:[%s355 + $0x2ba0] sm:$0xff]
        %v1826 = vld [vmem:[%s355 + $0x2ba8] sm:$0xff]
        %v1827 = vld [vmem:[%s355 + $0x2bb0] sm:$0xff]
        %v1828 = vld [vmem:[%s355 + $0x2bb8] sm:$0xff]
        %v1829 = vld [vmem:[%s355 + $0x2bc0] sm:$0xff]
        %v1830 = vld [vmem:[%s355 + $0x2bc8] sm:$0xff]
        %v1831 = vld [vmem:[%s355 + $0x2bd0] sm:$0xff]
        %v1832 = vld [vmem:[%s355 + $0x2bd8] sm:$0xff]
        %v1833 = vld [vmem:[%s355 + $0x2be0] sm:$0xff]
        %v1834 = vld [vmem:[%s355 + $0x2be8] sm:$0xff]
        %v1835 = vld [vmem:[%s355 + $0x2bf0] sm:$0xff]
        %v1836 = vld [vmem:[%s355 + $0x2bf8] sm:$0xff]
        %v1837 = vld [vmem:[%s355 + $0x2c00] sm:$0xff]
        %v1838 = vld [vmem:[%s355 + $0x2c08] sm:$0xff]
        %v1839 = vld [vmem:[%s355 + $0x2c10] sm:$0xff]
        %v1840 = vld [vmem:[%s355 + $0x2c18] sm:$0xff]
        %v1841 = vld [vmem:[%s355 + $0x2c20] sm:$0xff]
        %v1842 = vld [vmem:[%s355 + $0x2c28] sm:$0xff]
        %v1843 = vld [vmem:[%s355 + $0x2c30] sm:$0xff]
        %v1844 = vld [vmem:[%s355 + $0x2c38] sm:$0xff]
        %v1845 = vld [vmem:[%s355 + $0x2c40] sm:$0xff]
        %v1846 = vld [vmem:[%s355 + $0x2c48] sm:$0xff]
        %v1847 = vld [vmem:[%s355 + $0x2c50] sm:$0xff]
        %v1848 = vld [vmem:[%s355 + $0x2c58] sm:$0xff]
        %v1849 = vld [vmem:[%s355 + $0x2c60] sm:$0xff]
        %v1850 = vld [vmem:[%s355 + $0x2c68] sm:$0xff]
        %v1851 = vld [vmem:[%s355 + $0x2c70] sm:$0xff]
        %v1852 = vld [vmem:[%s355 + $0x2c78] sm:$0xff]
        %v1853 = vld [vmem:[%s355 + $0x2c80] sm:$0xff]
        %v1854 = vld [vmem:[%s355 + $0x2c88] sm:$0xff]
        %v1855 = vld [vmem:[%s355 + $0x2c90] sm:$0xff]
        %v1856 = vld [vmem:[%s355 + $0x2c98] sm:$0xff]
        %v1857 = vld [vmem:[%s355 + $0x2ca0] sm:$0xff]
        %v1858 = vld [vmem:[%s355 + $0x2ca8] sm:$0xff]
        %v1859 = vld [vmem:[%s355 + $0x2cb0] sm:$0xff]
        %v1860 = vld [vmem:[%s355 + $0x2cb8] sm:$0xff]
        %v1861 = vld [vmem:[%s355 + $0x2cc0] sm:$0xff]
        %v1862 = vld [vmem:[%s355 + $0x2cc8] sm:$0xff]
        %v1863 = vld [vmem:[%s355 + $0x2cd0] sm:$0xff]
        %v1864 = vld [vmem:[%s355 + $0x2cd8] sm:$0xff]
        %v1865 = vld [vmem:[%s355 + $0x2ce0] sm:$0xff]
        %v1866 = vld [vmem:[%s355 + $0x2ce8] sm:$0xff]
        %v1867 = vld [vmem:[%s355 + $0x2cf0] sm:$0xff]
        %v1868 = vld [vmem:[%s355 + $0x2cf8] sm:$0xff]
        %v1869 = vld [vmem:[%s355 + $0x2d00] sm:$0xff]
        %v1870 = vld [vmem:[%s355 + $0x2d08] sm:$0xff]
        %v1871 = vld [vmem:[%s355 + $0x2d10] sm:$0xff]
        %v1872 = vld [vmem:[%s355 + $0x2d18] sm:$0xff]
        %v1873 = vld [vmem:[%s355 + $0x2d20] sm:$0xff]
        %v1874 = vld [vmem:[%s355 + $0x2d28] sm:$0xff]
        %v1875 = vld [vmem:[%s355 + $0x2d30] sm:$0xff]
        %v1876 = vld [vmem:[%s355 + $0x2d38] sm:$0xff]
        %v1877 = vld [vmem:[%s355 + $0x2d40] sm:$0xff]
        %v1878 = vld [vmem:[%s355 + $0x2d48] sm:$0xff]
        %v1879 = vld [vmem:[%s355 + $0x2d50] sm:$0xff]
        %v1880 = vld [vmem:[%s355 + $0x2d58] sm:$0xff]
        %v1881 = vld [vmem:[%s355 + $0x2d60] sm:$0xff]
        %v1882 = vld [vmem:[%s355 + $0x2d68] sm:$0xff]
        %v1883 = vld [vmem:[%s355 + $0x2d70] sm:$0xff]
        %v1884 = vld [vmem:[%s355 + $0x2d78] sm:$0xff]
        %v1885 = vld [vmem:[%s355 + $0x2d80] sm:$0xff]
        %v1886 = vld [vmem:[%s355 + $0x2d88] sm:$0xff]
        %v1887 = vld [vmem:[%s355 + $0x2d90] sm:$0xff]
        %v1888 = vld [vmem:[%s355 + $0x2d98] sm:$0xff]
        %v1889 = vld [vmem:[%s355 + $0x2da0] sm:$0xff]
        %v1890 = vld [vmem:[%s355 + $0x2da8] sm:$0xff]
        %v1891 = vld [vmem:[%s355 + $0x2db0] sm:$0xff]
        %v1892 = vld [vmem:[%s355 + $0x2db8] sm:$0xff]
        %v1893 = vld [vmem:[%s355 + $0x2dc0] sm:$0xff]
        %v1894 = vld [vmem:[%s355 + $0x2dc8] sm:$0xff]
        %v1895 = vld [vmem:[%s355 + $0x2dd0] sm:$0xff]
        %v1896 = vld [vmem:[%s355 + $0x2dd8] sm:$0xff]
        %v1897 = vld [vmem:[%s355 + $0x2de0] sm:$0xff]
        %v1898 = vld [vmem:[%s355 + $0x2de8] sm:$0xff]
        %v1899 = vld [vmem:[%s355 + $0x2df0] sm:$0xff]
        %v1900 = vld [vmem:[%s355 + $0x2df8] sm:$0xff]
        %v1901 = vld [vmem:[%s355 + $0x2e00] sm:$0xff]
        %v1902 = vld [vmem:[%s355 + $0x2e08] sm:$0xff]
        %v1903 = vld [vmem:[%s355 + $0x2e10] sm:$0xff]
        %v1904 = vld [vmem:[%s355 + $0x2e18] sm:$0xff]
        %v1905 = vld [vmem:[%s355 + $0x2e20] sm:$0xff]
        %v1906 = vld [vmem:[%s355 + $0x2e28] sm:$0xff]
        %v1907 = vld [vmem:[%s355 + $0x2e30] sm:$0xff]
        %v1908 = vld [vmem:[%s355 + $0x2e38] sm:$0xff]
        %v1909 = vld [vmem:[%s355 + $0x2e40] sm:$0xff]
        %v1910 = vld [vmem:[%s355 + $0x2e48] sm:$0xff]
        %v1911 = vld [vmem:[%s355 + $0x2e50] sm:$0xff]
        %v1912 = vld [vmem:[%s355 + $0x2e58] sm:$0xff]
        %v1913 = vld [vmem:[%s355 + $0x2e60] sm:$0xff]
        %v1914 = vld [vmem:[%s355 + $0x2e68] sm:$0xff]
        %v1915 = vld [vmem:[%s355 + $0x2e70] sm:$0xff]
        %v1916 = vld [vmem:[%s355 + $0x2e78] sm:$0xff]
        %v1917 = vld [vmem:[%s355 + $0x2e80] sm:$0xff]
        %v1918 = vld [vmem:[%s355 + $0x2e88] sm:$0xff]
        %v1919 = vld [vmem:[%s355 + $0x2e90] sm:$0xff]
        %v1920 = vld [vmem:[%s355 + $0x2e98] sm:$0xff]
        %v1921 = vld [vmem:[%s355 + $0x2ea0] sm:$0xff]
        %v1922 = vld [vmem:[%s355 + $0x2ea8] sm:$0xff]
        %v1923 = vld [vmem:[%s355 + $0x2eb0] sm:$0xff]
        %v1924 = vld [vmem:[%s355 + $0x2eb8] sm:$0xff]
        %v1925 = vld [vmem:[%s355 + $0x2ec0] sm:$0xff]
        %v1926 = vld [vmem:[%s355 + $0x2ec8] sm:$0xff]
        %v1927 = vld [vmem:[%s355 + $0x2ed0] sm:$0xff]
        %v1928 = vld [vmem:[%s355 + $0x2ed8] sm:$0xff]
        %v1929 = vld [vmem:[%s355 + $0x2ee0] sm:$0xff]
        %v1930 = vld [vmem:[%s355 + $0x2ee8] sm:$0xff]
        %v1931 = vld [vmem:[%s355 + $0x2ef0] sm:$0xff]
        %v1932 = vld [vmem:[%s355 + $0x2ef8] sm:$0xff]
        %v1933 = vld [vmem:[%s355 + $0x2f00] sm:$0xff]
        %v1934 = vld [vmem:[%s355 + $0x2f08] sm:$0xff]
        %v1935 = vld [vmem:[%s355 + $0x2f10] sm:$0xff]
        %v1936 = vld [vmem:[%s355 + $0x2f18] sm:$0xff]
        %v1937 = vld [vmem:[%s355 + $0x2f20] sm:$0xff]
        %v1938 = vld [vmem:[%s355 + $0x2f28] sm:$0xff]
        %v1939 = vld [vmem:[%s355 + $0x2f30] sm:$0xff]
        %v1940 = vld [vmem:[%s355 + $0x2f38] sm:$0xff]
        %v1941 = vld [vmem:[%s355 + $0x2f40] sm:$0xff]
        %v1942 = vld [vmem:[%s355 + $0x2f48] sm:$0xff]
        %v1943 = vld [vmem:[%s355 + $0x2f50] sm:$0xff]
        %v1944 = vld [vmem:[%s355 + $0x2f58] sm:$0xff]
        %v1945 = vld [vmem:[%s355 + $0x2f60] sm:$0xff]
        %v1946 = vld [vmem:[%s355 + $0x2f68] sm:$0xff]
        %v1947 = vld [vmem:[%s355 + $0x2f70] sm:$0xff]
        %v1948 = vld [vmem:[%s355 + $0x2f78] sm:$0xff]
        %v1949 = vld [vmem:[%s355 + $0x2f80] sm:$0xff]
        %v1950 = vld [vmem:[%s355 + $0x2f88] sm:$0xff]
        %v1951 = vld [vmem:[%s355 + $0x2f90] sm:$0xff]
        %v1952 = vld [vmem:[%s355 + $0x2f98] sm:$0xff]
        %v1953 = vld [vmem:[%s355 + $0x2fa0] sm:$0xff]
        %v1954 = vld [vmem:[%s355 + $0x2fa8] sm:$0xff]
        %v1955 = vld [vmem:[%s355 + $0x2fb0] sm:$0xff]
        %v1956 = vld [vmem:[%s355 + $0x2fb8] sm:$0xff]
        %v1957 = vld [vmem:[%s355 + $0x2fc0] sm:$0xff]
        %v1958 = vld [vmem:[%s355 + $0x2fc8] sm:$0xff]
        %v1959 = vld [vmem:[%s355 + $0x2fd0] sm:$0xff]
        %v1960 = vld [vmem:[%s355 + $0x2fd8] sm:$0xff]
        %v1961 = vld [vmem:[%s355 + $0x2fe0] sm:$0xff]
        %v1962 = vld [vmem:[%s355 + $0x2fe8] sm:$0xff]
        %v1963 = vld [vmem:[%s355 + $0x2ff0] sm:$0xff]
        %v1964 = vld [vmem:[%s355 + $0x2ff8] sm:$0xff]
        %v1965 = vld [vmem:[%s355 + $0x3000] sm:$0xff]
        %v1966 = vld [vmem:[%s355 + $0x3008] sm:$0xff]
        %v1967 = vld [vmem:[%s355 + $0x3010] sm:$0xff]
        %v1968 = vld [vmem:[%s355 + $0x3018] sm:$0xff]
        %v1969 = vld [vmem:[%s355 + $0x3020] sm:$0xff]
        %v1970 = vld [vmem:[%s355 + $0x3028] sm:$0xff]
        %v1971 = vld [vmem:[%s355 + $0x3030] sm:$0xff]
        %v1972 = vld [vmem:[%s355 + $0x3038] sm:$0xff]
        %v1973 = vld [vmem:[%s355 + $0x3040] sm:$0xff]
        %v1974 = vld [vmem:[%s355 + $0x3048] sm:$0xff]
        %v1975 = vld [vmem:[%s355 + $0x3050] sm:$0xff]
        %v1976 = vld [vmem:[%s355 + $0x3058] sm:$0xff]
        %v1977 = vld [vmem:[%s355 + $0x3060] sm:$0xff]
        %v1978 = vld [vmem:[%s355 + $0x3068] sm:$0xff]
        %v1979 = vld [vmem:[%s355 + $0x3070] sm:$0xff]
        %v1980 = vld [vmem:[%s355 + $0x3078] sm:$0xff]
        %v1981 = vld [vmem:[%s355 + $0x3080] sm:$0xff]
        %v1982 = vld [vmem:[%s355 + $0x3088] sm:$0xff]
        %v1983 = vld [vmem:[%s355 + $0x3090] sm:$0xff]
        %v1984 = vld [vmem:[%s355 + $0x3098] sm:$0xff]
        %v1985 = vld [vmem:[%s355 + $0x30a0] sm:$0xff]
        %v1986 = vld [vmem:[%s355 + $0x30a8] sm:$0xff]
        %v1987 = vld [vmem:[%s355 + $0x30b0] sm:$0xff]
        %v1988 = vld [vmem:[%s355 + $0x30b8] sm:$0xff]
        %v1989 = vld [vmem:[%s355 + $0x30c0] sm:$0xff]
        %v1990 = vld [vmem:[%s355 + $0x30c8] sm:$0xff]
        %v1991 = vld [vmem:[%s355 + $0x30d0] sm:$0xff]
        %v1992 = vld [vmem:[%s355 + $0x30d8] sm:$0xff]
        %v1993 = vld [vmem:[%s355 + $0x30e0] sm:$0xff]
        %v1994 = vld [vmem:[%s355 + $0x30e8] sm:$0xff]
        %v1995 = vld [vmem:[%s355 + $0x30f0] sm:$0xff]
        %v1996 = vld [vmem:[%s355 + $0x30f8] sm:$0xff]
        %v1997 = vld [vmem:[%s355 + $0x3100] sm:$0xff]
        %v1998 = vld [vmem:[%s355 + $0x3108] sm:$0xff]
        %v1999 = vld [vmem:[%s355 + $0x3110] sm:$0xff]
        %v2000 = vld [vmem:[%s355 + $0x3118] sm:$0xff]
        %v2001 = vld [vmem:[%s355 + $0x3120] sm:$0xff]
        %v2002 = vld [vmem:[%s355 + $0x3128] sm:$0xff]
        %v2003 = vld [vmem:[%s355 + $0x3130] sm:$0xff]
        %v2004 = vld [vmem:[%s355 + $0x3138] sm:$0xff]
        %v2005 = vld [vmem:[%s355 + $0x3140] sm:$0xff]
        %v2006 = vld [vmem:[%s355 + $0x3148] sm:$0xff]
        %v2007 = vld [vmem:[%s355 + $0x3150] sm:$0xff]
        %v2008 = vld [vmem:[%s355 + $0x3158] sm:$0xff]
        %v2009 = vld [vmem:[%s355 + $0x3160] sm:$0xff]
        %v2010 = vld [vmem:[%s355 + $0x3168] sm:$0xff]
        %v2011 = vld [vmem:[%s355 + $0x3170] sm:$0xff]
        %v2012 = vld [vmem:[%s355 + $0x3178] sm:$0xff]
        %v2013 = vld [vmem:[%s355 + $0x3180] sm:$0xff]
        %v2014 = vld [vmem:[%s355 + $0x3188] sm:$0xff]
        %v2015 = vld [vmem:[%s355 + $0x3190] sm:$0xff]
        %v2016 = vld [vmem:[%s355 + $0x3198] sm:$0xff]
        %v2017 = vld [vmem:[%s355 + $0x31a0] sm:$0xff]
        %v2018 = vld [vmem:[%s355 + $0x31a8] sm:$0xff]
        %v2019 = vld [vmem:[%s355 + $0x31b0] sm:$0xff]
        %v2020 = vld [vmem:[%s355 + $0x31b8] sm:$0xff]
        %v2021 = vld [vmem:[%s355 + $0x31c0] sm:$0xff]
        %v2022 = vld [vmem:[%s355 + $0x31c8] sm:$0xff]
        %v2023 = vld [vmem:[%s355 + $0x31d0] sm:$0xff]
        %v2024 = vld [vmem:[%s355 + $0x31d8] sm:$0xff]
        %v2025 = vld [vmem:[%s355 + $0x31e0] sm:$0xff]
        %v2026 = vld [vmem:[%s355 + $0x31e8] sm:$0xff]
        %v2027 = vld [vmem:[%s355 + $0x31f0] sm:$0xff]
        %v2028 = vld [vmem:[%s355 + $0x31f8] sm:$0xff]
        %v2042 = vcombine.high %v416, %v416
        %v2044 = vunpack.c.l.s4 1966171168
        %v2045 = vunpack.c.0.s8 %v2044
        %v2046 = vlaneseq
        %v2047 = vshrl.u32 %v2046, 7
        %v2048 = vsub.s32 %v2045, %v2047
        %v2049 = vrot.slane %v416, %v2048
        %v2051 = vunpack.c.l.s4 1966171168
        %v2052 = vunpack.c.0.s8 %v2051
        %v2053 = vlaneseq
        %v2054 = vshrl.u32 %v2053, 7
        %v2055 = vsub.s32 %v2052, %v2054
        %v2056 = vrot.slane %v2042, %v2055
        %v2057 = vcombine.high %v2049, %v2049
        %v2058 = vcombine.high %v2056, %v2056
        %v2060 = vunpack.c.l.s4 1966171168
        %v2061 = vunpack.c.0.s8 %v2060
        %v2062 = vlaneseq
        %v2063 = vshrl.u32 %v2062, 7
        %v2064 = vsub.s32 %v2061, %v2063
        %v2065 = vrot.slane %v2049, %v2064
        %v2067 = vunpack.c.l.s4 1966171168
        %v2068 = vunpack.c.0.s8 %v2067
        %v2069 = vlaneseq
        %v2070 = vshrl.u32 %v2069, 7
        %v2071 = vsub.s32 %v2068, %v2070
        %v2072 = vrot.slane %v2056, %v2071
        %v2074 = vunpack.c.l.s4 1966171168
        %v2075 = vunpack.c.0.s8 %v2074
        %v2076 = vlaneseq
        %v2077 = vshrl.u32 %v2076, 7
        %v2078 = vsub.s32 %v2075, %v2077
        %v2079 = vrot.slane %v2057, %v2078
        %v2081 = vunpack.c.l.s4 1966171168
        %v2082 = vunpack.c.0.s8 %v2081
        %v2083 = vlaneseq
        %v2084 = vshrl.u32 %v2083, 7
        %v2085 = vsub.s32 %v2082, %v2084
        %v2086 = vrot.slane %v2058, %v2085
        %v2087 = vcombine.high %v2065, %v2065
        %v2088 = vcombine.high %v2072, %v2072
        %v2089 = vcombine.high %v2079, %v2079
        %v2090 = vcombine.high %v2086, %v2086
        %v2091 = vcombine.high %v417, %v417
        %v2093 = vunpack.c.l.s4 1966171168
        %v2094 = vunpack.c.0.s8 %v2093
        %v2095 = vlaneseq
        %v2096 = vshrl.u32 %v2095, 7
        %v2097 = vsub.s32 %v2094, %v2096
        %v2098 = vrot.slane %v417, %v2097
        %v2100 = vunpack.c.l.s4 1966171168
        %v2101 = vunpack.c.0.s8 %v2100
        %v2102 = vlaneseq
        %v2103 = vshrl.u32 %v2102, 7
        %v2104 = vsub.s32 %v2101, %v2103
        %v2105 = vrot.slane %v2091, %v2104
        %v2106 = vcombine.high %v2098, %v2098
        %v2107 = vcombine.high %v2105, %v2105
        %v2109 = vunpack.c.l.s4 1966171168
        %v2110 = vunpack.c.0.s8 %v2109
        %v2111 = vlaneseq
        %v2112 = vshrl.u32 %v2111, 7
        %v2113 = vsub.s32 %v2110, %v2112
        %v2114 = vrot.slane %v2098, %v2113
        %v2116 = vunpack.c.l.s4 1966171168
        %v2117 = vunpack.c.0.s8 %v2116
        %v2118 = vlaneseq
        %v2119 = vshrl.u32 %v2118, 7
        %v2120 = vsub.s32 %v2117, %v2119
        %v2121 = vrot.slane %v2105, %v2120
        %v2123 = vunpack.c.l.s4 1966171168
        %v2124 = vunpack.c.0.s8 %v2123
        %v2125 = vlaneseq
        %v2126 = vshrl.u32 %v2125, 7
        %v2127 = vsub.s32 %v2124, %v2126
        %v2128 = vrot.slane %v2106, %v2127
        %v2130 = vunpack.c.l.s4 1966171168
        %v2131 = vunpack.c.0.s8 %v2130
        %v2132 = vlaneseq
        %v2133 = vshrl.u32 %v2132, 7
        %v2134 = vsub.s32 %v2131, %v2133
        %v2135 = vrot.slane %v2107, %v2134
        %v2136 = vcombine.high %v2114, %v2114
        %v2137 = vcombine.high %v2121, %v2121
        %v2138 = vcombine.high %v2128, %v2128
        %v2139 = vcombine.high %v2135, %v2135
        %v2140 = vcombine.high %v418, %v418
        %v2142 = vunpack.c.l.s4 1966171168
        %v2143 = vunpack.c.0.s8 %v2142
        %v2144 = vlaneseq
        %v2145 = vshrl.u32 %v2144, 7
        %v2146 = vsub.s32 %v2143, %v2145
        %v2147 = vrot.slane %v418, %v2146
        %v2149 = vunpack.c.l.s4 1966171168
        %v2150 = vunpack.c.0.s8 %v2149
        %v2151 = vlaneseq
        %v2152 = vshrl.u32 %v2151, 7
        %v2153 = vsub.s32 %v2150, %v2152
        %v2154 = vrot.slane %v2140, %v2153
        %v2155 = vcombine.high %v2147, %v2147
        %v2156 = vcombine.high %v2154, %v2154
        %v2158 = vunpack.c.l.s4 1966171168
        %v2159 = vunpack.c.0.s8 %v2158
        %v2160 = vlaneseq
        %v2161 = vshrl.u32 %v2160, 7
        %v2162 = vsub.s32 %v2159, %v2161
        %v2163 = vrot.slane %v2147, %v2162
        %v2165 = vunpack.c.l.s4 1966171168
        %v2166 = vunpack.c.0.s8 %v2165
        %v2167 = vlaneseq
        %v2168 = vshrl.u32 %v2167, 7
        %v2169 = vsub.s32 %v2166, %v2168
        %v2170 = vrot.slane %v2154, %v2169
        %v2172 = vunpack.c.l.s4 1966171168
        %v2173 = vunpack.c.0.s8 %v2172
        %v2174 = vlaneseq
        %v2175 = vshrl.u32 %v2174, 7
        %v2176 = vsub.s32 %v2173, %v2175
        %v2177 = vrot.slane %v2155, %v2176
        %v2179 = vunpack.c.l.s4 1966171168
        %v2180 = vunpack.c.0.s8 %v2179
        %v2181 = vlaneseq
        %v2182 = vshrl.u32 %v2181, 7
        %v2183 = vsub.s32 %v2180, %v2182
        %v2184 = vrot.slane %v2156, %v2183
        %v2185 = vcombine.high %v2163, %v2163
        %v2186 = vcombine.high %v2170, %v2170
        %v2187 = vcombine.high %v2177, %v2177
        %v2188 = vcombine.high %v2184, %v2184
        %v2189 = vcombine.high %v419, %v419
        %v2191 = vunpack.c.l.s4 1966171168
        %v2192 = vunpack.c.0.s8 %v2191
        %v2193 = vlaneseq
        %v2194 = vshrl.u32 %v2193, 7
        %v2195 = vsub.s32 %v2192, %v2194
        %v2196 = vrot.slane %v419, %v2195
        %v2198 = vunpack.c.l.s4 1966171168
        %v2199 = vunpack.c.0.s8 %v2198
        %v2200 = vlaneseq
        %v2201 = vshrl.u32 %v2200, 7
        %v2202 = vsub.s32 %v2199, %v2201
        %v2203 = vrot.slane %v2189, %v2202
        %v2204 = vcombine.high %v2196, %v2196
        %v2205 = vcombine.high %v2203, %v2203
        %v2207 = vunpack.c.l.s4 1966171168
        %v2208 = vunpack.c.0.s8 %v2207
        %v2209 = vlaneseq
        %v2210 = vshrl.u32 %v2209, 7
        %v2211 = vsub.s32 %v2208, %v2210
        %v2212 = vrot.slane %v2196, %v2211
        %v2214 = vunpack.c.l.s4 1966171168
        %v2215 = vunpack.c.0.s8 %v2214
        %v2216 = vlaneseq
        %v2217 = vshrl.u32 %v2216, 7
        %v2218 = vsub.s32 %v2215, %v2217
        %v2219 = vrot.slane %v2203, %v2218
        %v2221 = vunpack.c.l.s4 1966171168
        %v2222 = vunpack.c.0.s8 %v2221
        %v2223 = vlaneseq
        %v2224 = vshrl.u32 %v2223, 7
        %v2225 = vsub.s32 %v2222, %v2224
        %v2226 = vrot.slane %v2204, %v2225
        %v2228 = vunpack.c.l.s4 1966171168
        %v2229 = vunpack.c.0.s8 %v2228
        %v2230 = vlaneseq
        %v2231 = vshrl.u32 %v2230, 7
        %v2232 = vsub.s32 %v2229, %v2231
        %v2233 = vrot.slane %v2205, %v2232
        %v2234 = vcombine.high %v2212, %v2212
        %v2235 = vcombine.high %v2219, %v2219
        %v2236 = vcombine.high %v2226, %v2226
        %v2237 = vcombine.high %v2233, %v2233
        %v2238 = vcombine.high %v420, %v420
        %v2240 = vunpack.c.l.s4 1966171168
        %v2241 = vunpack.c.0.s8 %v2240
        %v2242 = vlaneseq
        %v2243 = vshrl.u32 %v2242, 7
        %v2244 = vsub.s32 %v2241, %v2243
        %v2245 = vrot.slane %v420, %v2244
        %v2247 = vunpack.c.l.s4 1966171168
        %v2248 = vunpack.c.0.s8 %v2247
        %v2249 = vlaneseq
        %v2250 = vshrl.u32 %v2249, 7
        %v2251 = vsub.s32 %v2248, %v2250
        %v2252 = vrot.slane %v2238, %v2251
        %v2253 = vcombine.high %v2245, %v2245
        %v2254 = vcombine.high %v2252, %v2252
        %v2256 = vunpack.c.l.s4 1966171168
        %v2257 = vunpack.c.0.s8 %v2256
        %v2258 = vlaneseq
        %v2259 = vshrl.u32 %v2258, 7
        %v2260 = vsub.s32 %v2257, %v2259
        %v2261 = vrot.slane %v2245, %v2260
        %v2263 = vunpack.c.l.s4 1966171168
        %v2264 = vunpack.c.0.s8 %v2263
        %v2265 = vlaneseq
        %v2266 = vshrl.u32 %v2265, 7
        %v2267 = vsub.s32 %v2264, %v2266
        %v2268 = vrot.slane %v2252, %v2267
        %v2270 = vunpack.c.l.s4 1966171168
        %v2271 = vunpack.c.0.s8 %v2270
        %v2272 = vlaneseq
        %v2273 = vshrl.u32 %v2272, 7
        %v2274 = vsub.s32 %v2271, %v2273
        %v2275 = vrot.slane %v2253, %v2274
        %v2277 = vunpack.c.l.s4 1966171168
        %v2278 = vunpack.c.0.s8 %v2277
        %v2279 = vlaneseq
        %v2280 = vshrl.u32 %v2279, 7
        %v2281 = vsub.s32 %v2278, %v2280
        %v2282 = vrot.slane %v2254, %v2281
        %v2283 = vcombine.high %v2261, %v2261
        %v2284 = vcombine.high %v2268, %v2268
        %v2285 = vcombine.high %v2275, %v2275
        %v2286 = vcombine.high %v2282, %v2282
        %v2287 = vcombine.high %v421, %v421
        %v2289 = vunpack.c.l.s4 1966171168
        %v2290 = vunpack.c.0.s8 %v2289
        %v2291 = vlaneseq
        %v2292 = vshrl.u32 %v2291, 7
        %v2293 = vsub.s32 %v2290, %v2292
        %v2294 = vrot.slane %v421, %v2293
        %v2296 = vunpack.c.l.s4 1966171168
        %v2297 = vunpack.c.0.s8 %v2296
        %v2298 = vlaneseq
        %v2299 = vshrl.u32 %v2298, 7
        %v2300 = vsub.s32 %v2297, %v2299
        %v2301 = vrot.slane %v2287, %v2300
        %v2302 = vcombine.high %v2294, %v2294
        %v2303 = vcombine.high %v2301, %v2301
        %v2305 = vunpack.c.l.s4 1966171168
        %v2306 = vunpack.c.0.s8 %v2305
        %v2307 = vlaneseq
        %v2308 = vshrl.u32 %v2307, 7
        %v2309 = vsub.s32 %v2306, %v2308
        %v2310 = vrot.slane %v2294, %v2309
        %v2312 = vunpack.c.l.s4 1966171168
        %v2313 = vunpack.c.0.s8 %v2312
        %v2314 = vlaneseq
        %v2315 = vshrl.u32 %v2314, 7
        %v2316 = vsub.s32 %v2313, %v2315
        %v2317 = vrot.slane %v2301, %v2316
        %v2319 = vunpack.c.l.s4 1966171168
        %v2320 = vunpack.c.0.s8 %v2319
        %v2321 = vlaneseq
        %v2322 = vshrl.u32 %v2321, 7
        %v2323 = vsub.s32 %v2320, %v2322
        %v2324 = vrot.slane %v2302, %v2323
        %v2326 = vunpack.c.l.s4 1966171168
        %v2327 = vunpack.c.0.s8 %v2326
        %v2328 = vlaneseq
        %v2329 = vshrl.u32 %v2328, 7
        %v2330 = vsub.s32 %v2327, %v2329
        %v2331 = vrot.slane %v2303, %v2330
        %v2332 = vcombine.high %v2310, %v2310
        %v2333 = vcombine.high %v2317, %v2317
        %v2334 = vcombine.high %v2324, %v2324
        %v2335 = vcombine.high %v2331, %v2331
        %v2336 = vcombine.high %v422, %v422
        %v2338 = vunpack.c.l.s4 1966171168
        %v2339 = vunpack.c.0.s8 %v2338
        %v2340 = vlaneseq
        %v2341 = vshrl.u32 %v2340, 7
        %v2342 = vsub.s32 %v2339, %v2341
        %v2343 = vrot.slane %v422, %v2342
        %v2345 = vunpack.c.l.s4 1966171168
        %v2346 = vunpack.c.0.s8 %v2345
        %v2347 = vlaneseq
        %v2348 = vshrl.u32 %v2347, 7
        %v2349 = vsub.s32 %v2346, %v2348
        %v2350 = vrot.slane %v2336, %v2349
        %v2351 = vcombine.high %v2343, %v2343
        %v2352 = vcombine.high %v2350, %v2350
        %v2354 = vunpack.c.l.s4 1966171168
        %v2355 = vunpack.c.0.s8 %v2354
        %v2356 = vlaneseq
        %v2357 = vshrl.u32 %v2356, 7
        %v2358 = vsub.s32 %v2355, %v2357
        %v2359 = vrot.slane %v2343, %v2358
        %v2361 = vunpack.c.l.s4 1966171168
        %v2362 = vunpack.c.0.s8 %v2361
        %v2363 = vlaneseq
        %v2364 = vshrl.u32 %v2363, 7
        %v2365 = vsub.s32 %v2362, %v2364
        %v2366 = vrot.slane %v2350, %v2365
        %v2368 = vunpack.c.l.s4 1966171168
        %v2369 = vunpack.c.0.s8 %v2368
        %v2370 = vlaneseq
        %v2371 = vshrl.u32 %v2370, 7
        %v2372 = vsub.s32 %v2369, %v2371
        %v2373 = vrot.slane %v2351, %v2372
        %v2375 = vunpack.c.l.s4 1966171168
        %v2376 = vunpack.c.0.s8 %v2375
        %v2377 = vlaneseq
        %v2378 = vshrl.u32 %v2377, 7
        %v2379 = vsub.s32 %v2376, %v2378
        %v2380 = vrot.slane %v2352, %v2379
        %v2381 = vcombine.high %v2359, %v2359
        %v2382 = vcombine.high %v2366, %v2366
        %v2383 = vcombine.high %v2373, %v2373
        %v2384 = vcombine.high %v2380, %v2380
        %v2385 = vcombine.high %v423, %v423
        %v2387 = vunpack.c.l.s4 1966171168
        %v2388 = vunpack.c.0.s8 %v2387
        %v2389 = vlaneseq
        %v2390 = vshrl.u32 %v2389, 7
        %v2391 = vsub.s32 %v2388, %v2390
        %v2392 = vrot.slane %v423, %v2391
        %v2394 = vunpack.c.l.s4 1966171168
        %v2395 = vunpack.c.0.s8 %v2394
        %v2396 = vlaneseq
        %v2397 = vshrl.u32 %v2396, 7
        %v2398 = vsub.s32 %v2395, %v2397
        %v2399 = vrot.slane %v2385, %v2398
        %v2400 = vcombine.high %v2392, %v2392
        %v2401 = vcombine.high %v2399, %v2399
        %v2403 = vunpack.c.l.s4 1966171168
        %v2404 = vunpack.c.0.s8 %v2403
        %v2405 = vlaneseq
        %v2406 = vshrl.u32 %v2405, 7
        %v2407 = vsub.s32 %v2404, %v2406
        %v2408 = vrot.slane %v2392, %v2407
        %v2410 = vunpack.c.l.s4 1966171168
        %v2411 = vunpack.c.0.s8 %v2410
        %v2412 = vlaneseq
        %v2413 = vshrl.u32 %v2412, 7
        %v2414 = vsub.s32 %v2411, %v2413
        %v2415 = vrot.slane %v2399, %v2414
        %v2417 = vunpack.c.l.s4 1966171168
        %v2418 = vunpack.c.0.s8 %v2417
        %v2419 = vlaneseq
        %v2420 = vshrl.u32 %v2419, 7
        %v2421 = vsub.s32 %v2418, %v2420
        %v2422 = vrot.slane %v2400, %v2421
        %v2424 = vunpack.c.l.s4 1966171168
        %v2425 = vunpack.c.0.s8 %v2424
        %v2426 = vlaneseq
        %v2427 = vshrl.u32 %v2426, 7
        %v2428 = vsub.s32 %v2425, %v2427
        %v2429 = vrot.slane %v2401, %v2428
        %v2430 = vcombine.high %v2408, %v2408
        %v2431 = vcombine.high %v2415, %v2415
        %v2432 = vcombine.high %v2422, %v2422
        %v2433 = vcombine.high %v2429, %v2429
        %v2434 = vcombine.high %v424, %v424
        %v2436 = vunpack.c.l.s4 1966171168
        %v2437 = vunpack.c.0.s8 %v2436
        %v2438 = vlaneseq
        %v2439 = vshrl.u32 %v2438, 7
        %v2440 = vsub.s32 %v2437, %v2439
        %v2441 = vrot.slane %v424, %v2440
        %v2443 = vunpack.c.l.s4 1966171168
        %v2444 = vunpack.c.0.s8 %v2443
        %v2445 = vlaneseq
        %v2446 = vshrl.u32 %v2445, 7
        %v2447 = vsub.s32 %v2444, %v2446
        %v2448 = vrot.slane %v2434, %v2447
        %v2449 = vcombine.high %v2441, %v2441
        %v2450 = vcombine.high %v2448, %v2448
        %v2452 = vunpack.c.l.s4 1966171168
        %v2453 = vunpack.c.0.s8 %v2452
        %v2454 = vlaneseq
        %v2455 = vshrl.u32 %v2454, 7
        %v2456 = vsub.s32 %v2453, %v2455
        %v2457 = vrot.slane %v2441, %v2456
        %v2459 = vunpack.c.l.s4 1966171168
        %v2460 = vunpack.c.0.s8 %v2459
        %v2461 = vlaneseq
        %v2462 = vshrl.u32 %v2461, 7
        %v2463 = vsub.s32 %v2460, %v2462
        %v2464 = vrot.slane %v2448, %v2463
        %v2466 = vunpack.c.l.s4 1966171168
        %v2467 = vunpack.c.0.s8 %v2466
        %v2468 = vlaneseq
        %v2469 = vshrl.u32 %v2468, 7
        %v2470 = vsub.s32 %v2467, %v2469
        %v2471 = vrot.slane %v2449, %v2470
        %v2473 = vunpack.c.l.s4 1966171168
        %v2474 = vunpack.c.0.s8 %v2473
        %v2475 = vlaneseq
        %v2476 = vshrl.u32 %v2475, 7
        %v2477 = vsub.s32 %v2474, %v2476
        %v2478 = vrot.slane %v2450, %v2477
        %v2479 = vcombine.high %v2457, %v2457
        %v2480 = vcombine.high %v2464, %v2464
        %v2481 = vcombine.high %v2471, %v2471
        %v2482 = vcombine.high %v2478, %v2478
        %v2483 = vcombine.high %v425, %v425
        %v2485 = vunpack.c.l.s4 1966171168
        %v2486 = vunpack.c.0.s8 %v2485
        %v2487 = vlaneseq
        %v2488 = vshrl.u32 %v2487, 7
        %v2489 = vsub.s32 %v2486, %v2488
        %v2490 = vrot.slane %v425, %v2489
        %v2492 = vunpack.c.l.s4 1966171168
        %v2493 = vunpack.c.0.s8 %v2492
        %v2494 = vlaneseq
        %v2495 = vshrl.u32 %v2494, 7
        %v2496 = vsub.s32 %v2493, %v2495
        %v2497 = vrot.slane %v2483, %v2496
        %v2498 = vcombine.high %v2490, %v2490
        %v2499 = vcombine.high %v2497, %v2497
        %v2501 = vunpack.c.l.s4 1966171168
        %v2502 = vunpack.c.0.s8 %v2501
        %v2503 = vlaneseq
        %v2504 = vshrl.u32 %v2503, 7
        %v2505 = vsub.s32 %v2502, %v2504
        %v2506 = vrot.slane %v2490, %v2505
        %v2508 = vunpack.c.l.s4 1966171168
        %v2509 = vunpack.c.0.s8 %v2508
        %v2510 = vlaneseq
        %v2511 = vshrl.u32 %v2510, 7
        %v2512 = vsub.s32 %v2509, %v2511
        %v2513 = vrot.slane %v2497, %v2512
        %v2515 = vunpack.c.l.s4 1966171168
        %v2516 = vunpack.c.0.s8 %v2515
        %v2517 = vlaneseq
        %v2518 = vshrl.u32 %v2517, 7
        %v2519 = vsub.s32 %v2516, %v2518
        %v2520 = vrot.slane %v2498, %v2519
        %v2522 = vunpack.c.l.s4 1966171168
        %v2523 = vunpack.c.0.s8 %v2522
        %v2524 = vlaneseq
        %v2525 = vshrl.u32 %v2524, 7
        %v2526 = vsub.s32 %v2523, %v2525
        %v2527 = vrot.slane %v2499, %v2526
        %v2528 = vcombine.high %v2506, %v2506
        %v2529 = vcombine.high %v2513, %v2513
        %v2530 = vcombine.high %v2520, %v2520
        %v2531 = vcombine.high %v2527, %v2527
        %v2532 = vcombine.high %v426, %v426
        %v2534 = vunpack.c.l.s4 1966171168
        %v2535 = vunpack.c.0.s8 %v2534
        %v2536 = vlaneseq
        %v2537 = vshrl.u32 %v2536, 7
        %v2538 = vsub.s32 %v2535, %v2537
        %v2539 = vrot.slane %v426, %v2538
        %v2541 = vunpack.c.l.s4 1966171168
        %v2542 = vunpack.c.0.s8 %v2541
        %v2543 = vlaneseq
        %v2544 = vshrl.u32 %v2543, 7
        %v2545 = vsub.s32 %v2542, %v2544
        %v2546 = vrot.slane %v2532, %v2545
        %v2547 = vcombine.high %v2539, %v2539
        %v2548 = vcombine.high %v2546, %v2546
        %v2550 = vunpack.c.l.s4 1966171168
        %v2551 = vunpack.c.0.s8 %v2550
        %v2552 = vlaneseq
        %v2553 = vshrl.u32 %v2552, 7
        %v2554 = vsub.s32 %v2551, %v2553
        %v2555 = vrot.slane %v2539, %v2554
        %v2557 = vunpack.c.l.s4 1966171168
        %v2558 = vunpack.c.0.s8 %v2557
        %v2559 = vlaneseq
        %v2560 = vshrl.u32 %v2559, 7
        %v2561 = vsub.s32 %v2558, %v2560
        %v2562 = vrot.slane %v2546, %v2561
        %v2564 = vunpack.c.l.s4 1966171168
        %v2565 = vunpack.c.0.s8 %v2564
        %v2566 = vlaneseq
        %v2567 = vshrl.u32 %v2566, 7
        %v2568 = vsub.s32 %v2565, %v2567
        %v2569 = vrot.slane %v2547, %v2568
        %v2571 = vunpack.c.l.s4 1966171168
        %v2572 = vunpack.c.0.s8 %v2571
        %v2573 = vlaneseq
        %v2574 = vshrl.u32 %v2573, 7
        %v2575 = vsub.s32 %v2572, %v2574
        %v2576 = vrot.slane %v2548, %v2575
        %v2577 = vcombine.high %v2555, %v2555
        %v2578 = vcombine.high %v2562, %v2562
        %v2579 = vcombine.high %v2569, %v2569
        %v2580 = vcombine.high %v2576, %v2576
        %v2581 = vcombine.high %v427, %v427
        %v2583 = vunpack.c.l.s4 1966171168
        %v2584 = vunpack.c.0.s8 %v2583
        %v2585 = vlaneseq
        %v2586 = vshrl.u32 %v2585, 7
        %v2587 = vsub.s32 %v2584, %v2586
        %v2588 = vrot.slane %v427, %v2587
        %v2590 = vunpack.c.l.s4 1966171168
        %v2591 = vunpack.c.0.s8 %v2590
        %v2592 = vlaneseq
        %v2593 = vshrl.u32 %v2592, 7
        %v2594 = vsub.s32 %v2591, %v2593
        %v2595 = vrot.slane %v2581, %v2594
        %v2596 = vcombine.high %v2588, %v2588
        %v2597 = vcombine.high %v2595, %v2595
        %v2599 = vunpack.c.l.s4 1966171168
        %v2600 = vunpack.c.0.s8 %v2599
        %v2601 = vlaneseq
        %v2602 = vshrl.u32 %v2601, 7
        %v2603 = vsub.s32 %v2600, %v2602
        %v2604 = vrot.slane %v2588, %v2603
        %v2606 = vunpack.c.l.s4 1966171168
        %v2607 = vunpack.c.0.s8 %v2606
        %v2608 = vlaneseq
        %v2609 = vshrl.u32 %v2608, 7
        %v2610 = vsub.s32 %v2607, %v2609
        %v2611 = vrot.slane %v2595, %v2610
        %v2613 = vunpack.c.l.s4 1966171168
        %v2614 = vunpack.c.0.s8 %v2613
        %v2615 = vlaneseq
        %v2616 = vshrl.u32 %v2615, 7
        %v2617 = vsub.s32 %v2614, %v2616
        %v2618 = vrot.slane %v2596, %v2617
        %v2620 = vunpack.c.l.s4 1966171168
        %v2621 = vunpack.c.0.s8 %v2620
        %v2622 = vlaneseq
        %v2623 = vshrl.u32 %v2622, 7
        %v2624 = vsub.s32 %v2621, %v2623
        %v2625 = vrot.slane %v2597, %v2624
        %v2626 = vcombine.high %v2604, %v2604
        %v2627 = vcombine.high %v2611, %v2611
        %v2628 = vcombine.high %v2618, %v2618
        %v2629 = vcombine.high %v2625, %v2625
        %v2631 = vunpack.c.l.s4 1966171168
        %v2632 = vunpack.c.0.s8 %v2631
        %v2633 = vlaneseq
        %v2634 = vshrl.u32 %v2633, 7
        %v2635 = vsub.s32 %v2632, %v2634
        %v2636 = vrot.slane %v428, %v2635
        %v2637 = vcombine.high %v2636, %v2636
        %v2639 = vunpack.c.l.s4 1966171168
        %v2640 = vunpack.c.0.s8 %v2639
        %v2641 = vlaneseq
        %v2642 = vshrl.u32 %v2641, 7
        %v2643 = vsub.s32 %v2640, %v2642
        %v2644 = vrot.slane %v2636, %v2643
        %v2646 = vunpack.c.l.s4 1966171168
        %v2647 = vunpack.c.0.s8 %v2646
        %v2648 = vlaneseq
        %v2649 = vshrl.u32 %v2648, 7
        %v2650 = vsub.s32 %v2647, %v2649
        %v2651 = vrot.slane %v2637, %v2650
        %v2652 = vcombine.high %v2644, %v2644
        %v2653 = vcombine.high %v2651, %v2651
        %v4354 = vunpack.c.l.b16 %v429
        %v4355 = vunpack.c.h.b16 %v429
        %v4356 = vunpack.c.l.b16 %v430
        %v4357 = vunpack.c.h.b16 %v430
        %v4358 = vunpack.c.l.b16 %v431
        %v4359 = vunpack.c.h.b16 %v431
        %v4360 = vunpack.c.l.b16 %v432
        %v4361 = vunpack.c.h.b16 %v432
        %v4362 = vunpack.c.l.b16 %v433
        %v4363 = vunpack.c.h.b16 %v433
        %v4364 = vunpack.c.l.b16 %v434
        %v4365 = vunpack.c.h.b16 %v434
        %v4366 = vunpack.c.l.b16 %v435
        %v4367 = vunpack.c.h.b16 %v435
        %v4368 = vunpack.c.l.b16 %v436
        %v4369 = vunpack.c.h.b16 %v436
        %v4370 = vunpack.c.l.b16 %v437
        %v4371 = vunpack.c.h.b16 %v437
        %v4372 = vunpack.c.l.b16 %v438
        %v4373 = vunpack.c.h.b16 %v438
        %v4374 = vunpack.c.l.b16 %v439
        %v4375 = vunpack.c.h.b16 %v439
        %v4376 = vunpack.c.l.b16 %v440
        %v4377 = vunpack.c.h.b16 %v440
        %v4378 = vunpack.c.l.b16 %v441
        %v4379 = vunpack.c.h.b16 %v441
        %v4380 = vunpack.c.l.b16 %v442
        %v4381 = vunpack.c.h.b16 %v442
        %v4382 = vunpack.c.l.b16 %v443
        %v4383 = vunpack.c.h.b16 %v443
        %v4384 = vunpack.c.l.b16 %v444
        %v4385 = vunpack.c.h.b16 %v444
        %v4386 = vunpack.c.l.b16 %v445
        %v4387 = vunpack.c.h.b16 %v445
        %v4388 = vunpack.c.l.b16 %v446
        %v4389 = vunpack.c.h.b16 %v446
        %v4390 = vunpack.c.l.b16 %v447
        %v4391 = vunpack.c.h.b16 %v447
        %v4392 = vunpack.c.l.b16 %v448
        %v4393 = vunpack.c.h.b16 %v448
        %v4394 = vunpack.c.l.b16 %v449
        %v4395 = vunpack.c.h.b16 %v449
        %v4396 = vunpack.c.l.b16 %v450
        %v4397 = vunpack.c.h.b16 %v450
        %v4398 = vunpack.c.l.b16 %v451
        %v4399 = vunpack.c.h.b16 %v451
        %v4400 = vunpack.c.l.b16 %v452
        %v4401 = vunpack.c.h.b16 %v452
        %v4402 = vunpack.c.l.b16 %v453
        %v4403 = vunpack.c.h.b16 %v453
        %v4404 = vunpack.c.l.b16 %v454
        %v4405 = vunpack.c.h.b16 %v454
        %v4406 = vunpack.c.l.b16 %v455
        %v4407 = vunpack.c.h.b16 %v455
        %v4408 = vunpack.c.l.b16 %v456
        %v4409 = vunpack.c.h.b16 %v456
        %v4410 = vunpack.c.l.b16 %v457
        %v4411 = vunpack.c.h.b16 %v457
        %v4412 = vunpack.c.l.b16 %v458
        %v4413 = vunpack.c.h.b16 %v458
        %v4414 = vunpack.c.l.b16 %v459
        %v4415 = vunpack.c.h.b16 %v459
        %v4416 = vunpack.c.l.b16 %v460
        %v4417 = vunpack.c.h.b16 %v460
        %v4418 = vunpack.c.l.b16 %v461
        %v4419 = vunpack.c.h.b16 %v461
        %v4420 = vunpack.c.l.b16 %v462
        %v4421 = vunpack.c.h.b16 %v462
        %v4422 = vunpack.c.l.b16 %v463
        %v4423 = vunpack.c.h.b16 %v463
        %v4424 = vunpack.c.l.b16 %v464
        %v4425 = vunpack.c.h.b16 %v464
        %v4426 = vunpack.c.l.b16 %v465
        %v4427 = vunpack.c.h.b16 %v465
        %v4428 = vunpack.c.l.b16 %v466
        %v4429 = vunpack.c.h.b16 %v466
        %v4430 = vunpack.c.l.b16 %v467
        %v4431 = vunpack.c.h.b16 %v467
        %v4432 = vunpack.c.l.b16 %v468
        %v4433 = vunpack.c.h.b16 %v468
        %v4434 = vunpack.c.l.b16 %v469
        %v4435 = vunpack.c.h.b16 %v469
        %v4436 = vunpack.c.l.b16 %v470
        %v4437 = vunpack.c.h.b16 %v470
        %v4438 = vunpack.c.l.b16 %v471
        %v4439 = vunpack.c.h.b16 %v471
        %v4440 = vunpack.c.l.b16 %v472
        %v4441 = vunpack.c.h.b16 %v472
        %v4442 = vunpack.c.l.b16 %v473
        %v4443 = vunpack.c.h.b16 %v473
        %v4444 = vunpack.c.l.b16 %v474
        %v4445 = vunpack.c.h.b16 %v474
        %v4446 = vunpack.c.l.b16 %v475
        %v4447 = vunpack.c.h.b16 %v475
        %v4448 = vunpack.c.l.b16 %v476
        %v4449 = vunpack.c.h.b16 %v476
        %v4450 = vunpack.c.l.b16 %v477
        %v4451 = vunpack.c.h.b16 %v477
        %v4452 = vunpack.c.l.b16 %v478
        %v4453 = vunpack.c.h.b16 %v478
        %v4454 = vunpack.c.l.b16 %v479
        %v4455 = vunpack.c.h.b16 %v479
        %v4456 = vunpack.c.l.b16 %v480
        %v4457 = vunpack.c.h.b16 %v480
        %v4458 = vunpack.c.l.b16 %v481
        %v4459 = vunpack.c.h.b16 %v481
        %v4460 = vunpack.c.l.b16 %v482
        %v4461 = vunpack.c.h.b16 %v482
        %v4462 = vunpack.c.l.b16 %v483
        %v4463 = vunpack.c.h.b16 %v483
        %v4464 = vunpack.c.l.b16 %v484
        %v4465 = vunpack.c.h.b16 %v484
        %v4466 = vunpack.c.l.b16 %v485
        %v4467 = vunpack.c.h.b16 %v485
        %v4468 = vunpack.c.l.b16 %v486
        %v4469 = vunpack.c.h.b16 %v486
        %v4470 = vunpack.c.l.b16 %v487
        %v4471 = vunpack.c.h.b16 %v487
        %v4472 = vunpack.c.l.b16 %v488
        %v4473 = vunpack.c.h.b16 %v488
        %v4474 = vunpack.c.l.b16 %v489
        %v4475 = vunpack.c.h.b16 %v489
        %v4476 = vunpack.c.l.b16 %v490
        %v4477 = vunpack.c.h.b16 %v490
        %v4478 = vunpack.c.l.b16 %v491
        %v4479 = vunpack.c.h.b16 %v491
        %v4480 = vunpack.c.l.b16 %v492
        %v4481 = vunpack.c.h.b16 %v492
        %v4482 = vunpack.c.l.b16 %v493
        %v4483 = vunpack.c.h.b16 %v493
        %v4484 = vunpack.c.l.b16 %v494
        %v4485 = vunpack.c.h.b16 %v494
        %v4486 = vunpack.c.l.b16 %v495
        %v4487 = vunpack.c.h.b16 %v495
        %v4488 = vunpack.c.l.b16 %v496
        %v4489 = vunpack.c.h.b16 %v496
        %v4490 = vunpack.c.l.b16 %v497
        %v4491 = vunpack.c.h.b16 %v497
        %v4492 = vunpack.c.l.b16 %v498
        %v4493 = vunpack.c.h.b16 %v498
        %v4494 = vunpack.c.l.b16 %v499
        %v4495 = vunpack.c.h.b16 %v499
        %v4496 = vunpack.c.l.b16 %v500
        %v4497 = vunpack.c.h.b16 %v500
        %v4498 = vunpack.c.l.b16 %v501
        %v4499 = vunpack.c.h.b16 %v501
        %v4500 = vunpack.c.l.b16 %v502
        %v4501 = vunpack.c.h.b16 %v502
        %v4502 = vunpack.c.l.b16 %v503
        %v4503 = vunpack.c.h.b16 %v503
        %v4504 = vunpack.c.l.b16 %v504
        %v4505 = vunpack.c.h.b16 %v504
        %v4506 = vunpack.c.l.b16 %v505
        %v4507 = vunpack.c.h.b16 %v505
        %v4508 = vunpack.c.l.b16 %v506
        %v4509 = vunpack.c.h.b16 %v506
        %v4510 = vunpack.c.l.b16 %v507
        %v4511 = vunpack.c.h.b16 %v507
        %v4512 = vunpack.c.l.b16 %v508
        %v4513 = vunpack.c.h.b16 %v508
        %v4514 = vunpack.c.l.b16 %v509
        %v4515 = vunpack.c.h.b16 %v509
        %v4516 = vunpack.c.l.b16 %v510
        %v4517 = vunpack.c.h.b16 %v510
        %v4518 = vunpack.c.l.b16 %v511
        %v4519 = vunpack.c.h.b16 %v511
        %v4520 = vunpack.c.l.b16 %v512
        %v4521 = vunpack.c.h.b16 %v512
        %v4522 = vunpack.c.l.b16 %v513
        %v4523 = vunpack.c.h.b16 %v513
        %v4524 = vunpack.c.l.b16 %v514
        %v4525 = vunpack.c.h.b16 %v514
        %v4526 = vunpack.c.l.b16 %v515
        %v4527 = vunpack.c.h.b16 %v515
        %v4528 = vunpack.c.l.b16 %v516
        %v4529 = vunpack.c.h.b16 %v516
        %v4530 = vunpack.c.l.b16 %v517
        %v4531 = vunpack.c.h.b16 %v517
        %v4532 = vunpack.c.l.b16 %v518
        %v4533 = vunpack.c.h.b16 %v518
        %v4534 = vunpack.c.l.b16 %v519
        %v4535 = vunpack.c.h.b16 %v519
        %v4536 = vunpack.c.l.b16 %v520
        %v4537 = vunpack.c.h.b16 %v520
        %v4538 = vunpack.c.l.b16 %v521
        %v4539 = vunpack.c.h.b16 %v521
        %v4540 = vunpack.c.l.b16 %v522
        %v4541 = vunpack.c.h.b16 %v522
        %v4542 = vunpack.c.l.b16 %v523
        %v4543 = vunpack.c.h.b16 %v523
        %v4544 = vunpack.c.l.b16 %v524
        %v4545 = vunpack.c.h.b16 %v524
        %v4546 = vunpack.c.l.b16 %v525
        %v4547 = vunpack.c.h.b16 %v525
        %v4548 = vunpack.c.l.b16 %v526
        %v4549 = vunpack.c.h.b16 %v526
        %v4550 = vunpack.c.l.b16 %v527
        %v4551 = vunpack.c.h.b16 %v527
        %v4552 = vunpack.c.l.b16 %v528
        %v4553 = vunpack.c.h.b16 %v528
        %v4554 = vunpack.c.l.b16 %v529
        %v4555 = vunpack.c.h.b16 %v529
        %v4556 = vunpack.c.l.b16 %v530
        %v4557 = vunpack.c.h.b16 %v530
        %v4558 = vunpack.c.l.b16 %v531
        %v4559 = vunpack.c.h.b16 %v531
        %v4560 = vunpack.c.l.b16 %v532
        %v4561 = vunpack.c.h.b16 %v532
        %v4562 = vunpack.c.l.b16 %v533
        %v4563 = vunpack.c.h.b16 %v533
        %v4564 = vunpack.c.l.b16 %v534
        %v4565 = vunpack.c.h.b16 %v534
        %v4566 = vunpack.c.l.b16 %v535
        %v4567 = vunpack.c.h.b16 %v535
        %v4568 = vunpack.c.l.b16 %v536
        %v4569 = vunpack.c.h.b16 %v536
        %v4570 = vunpack.c.l.b16 %v537
        %v4571 = vunpack.c.h.b16 %v537
        %v4572 = vunpack.c.l.b16 %v538
        %v4573 = vunpack.c.h.b16 %v538
        %v4574 = vunpack.c.l.b16 %v539
        %v4575 = vunpack.c.h.b16 %v539
        %v4576 = vunpack.c.l.b16 %v540
        %v4577 = vunpack.c.h.b16 %v540
        %v4578 = vunpack.c.l.b16 %v541
        %v4579 = vunpack.c.h.b16 %v541
        %v4580 = vunpack.c.l.b16 %v542
        %v4581 = vunpack.c.h.b16 %v542
        %v4582 = vunpack.c.l.b16 %v543
        %v4583 = vunpack.c.h.b16 %v543
        %v4584 = vunpack.c.l.b16 %v544
        %v4585 = vunpack.c.h.b16 %v544
        %v4586 = vunpack.c.l.b16 %v545
        %v4587 = vunpack.c.h.b16 %v545
        %v4588 = vunpack.c.l.b16 %v546
        %v4589 = vunpack.c.h.b16 %v546
        %v4590 = vunpack.c.l.b16 %v547
        %v4591 = vunpack.c.h.b16 %v547
        %v4592 = vunpack.c.l.b16 %v548
        %v4593 = vunpack.c.h.b16 %v548
        %v4594 = vunpack.c.l.b16 %v549
        %v4595 = vunpack.c.h.b16 %v549
        %v4596 = vunpack.c.l.b16 %v550
        %v4597 = vunpack.c.h.b16 %v550
        %v4598 = vunpack.c.l.b16 %v551
        %v4599 = vunpack.c.h.b16 %v551
        %v4600 = vunpack.c.l.b16 %v552
        %v4601 = vunpack.c.h.b16 %v552
        %v4602 = vunpack.c.l.b16 %v553
        %v4603 = vunpack.c.h.b16 %v553
        %v4604 = vunpack.c.l.b16 %v554
        %v4605 = vunpack.c.h.b16 %v554
        %v4606 = vunpack.c.l.b16 %v555
        %v4607 = vunpack.c.h.b16 %v555
        %v4608 = vunpack.c.l.b16 %v556
        %v4609 = vunpack.c.h.b16 %v556
        %v4610 = vunpack.c.l.b16 %v557
        %v4611 = vunpack.c.h.b16 %v557
        %v4612 = vunpack.c.l.b16 %v558
        %v4613 = vunpack.c.h.b16 %v558
        %v4614 = vunpack.c.l.b16 %v559
        %v4615 = vunpack.c.h.b16 %v559
        %v4616 = vunpack.c.l.b16 %v560
        %v4617 = vunpack.c.h.b16 %v560
        %v4618 = vunpack.c.l.b16 %v561
        %v4619 = vunpack.c.h.b16 %v561
        %v4620 = vunpack.c.l.b16 %v562
        %v4621 = vunpack.c.h.b16 %v562
        %v4622 = vunpack.c.l.b16 %v563
        %v4623 = vunpack.c.h.b16 %v563
        %v4624 = vunpack.c.l.b16 %v564
        %v4625 = vunpack.c.h.b16 %v564
        %v4626 = vunpack.c.l.b16 %v565
        %v4627 = vunpack.c.h.b16 %v565
        %v4628 = vunpack.c.l.b16 %v566
        %v4629 = vunpack.c.h.b16 %v566
        %v4630 = vunpack.c.l.b16 %v567
        %v4631 = vunpack.c.h.b16 %v567
        %v4632 = vunpack.c.l.b16 %v568
        %v4633 = vunpack.c.h.b16 %v568
        %v4634 = vunpack.c.l.b16 %v569
        %v4635 = vunpack.c.h.b16 %v569
        %v4636 = vunpack.c.l.b16 %v570
        %v4637 = vunpack.c.h.b16 %v570
        %v4638 = vunpack.c.l.b16 %v571
        %v4639 = vunpack.c.h.b16 %v571
        %v4640 = vunpack.c.l.b16 %v572
        %v4641 = vunpack.c.h.b16 %v572
        %v4642 = vunpack.c.l.b16 %v573
        %v4643 = vunpack.c.h.b16 %v573
        %v4644 = vunpack.c.l.b16 %v574
        %v4645 = vunpack.c.h.b16 %v574
        %v4646 = vunpack.c.l.b16 %v575
        %v4647 = vunpack.c.h.b16 %v575
        %v4648 = vunpack.c.l.b16 %v576
        %v4649 = vunpack.c.h.b16 %v576
        %v4650 = vunpack.c.l.b16 %v577
        %v4651 = vunpack.c.h.b16 %v577
        %v4652 = vunpack.c.l.b16 %v578
        %v4653 = vunpack.c.h.b16 %v578
        %v4654 = vunpack.c.l.b16 %v579
        %v4655 = vunpack.c.h.b16 %v579
        %v4656 = vunpack.c.l.b16 %v580
        %v4657 = vunpack.c.h.b16 %v580
        %v4658 = vunpack.c.l.b16 %v581
        %v4659 = vunpack.c.h.b16 %v581
        %v4660 = vunpack.c.l.b16 %v582
        %v4661 = vunpack.c.h.b16 %v582
        %v4662 = vunpack.c.l.b16 %v583
        %v4663 = vunpack.c.h.b16 %v583
        %v4664 = vunpack.c.l.b16 %v584
        %v4665 = vunpack.c.h.b16 %v584
        %v4666 = vunpack.c.l.b16 %v585
        %v4667 = vunpack.c.h.b16 %v585
        %v4668 = vunpack.c.l.b16 %v586
        %v4669 = vunpack.c.h.b16 %v586
        %v4670 = vunpack.c.l.b16 %v587
        %v4671 = vunpack.c.h.b16 %v587
        %v4672 = vunpack.c.l.b16 %v588
        %v4673 = vunpack.c.h.b16 %v588
        %v4674 = vunpack.c.l.b16 %v589
        %v4675 = vunpack.c.h.b16 %v589
        %v4676 = vunpack.c.l.b16 %v590
        %v4677 = vunpack.c.h.b16 %v590
        %v4678 = vunpack.c.l.b16 %v591
        %v4679 = vunpack.c.h.b16 %v591
        %v4680 = vunpack.c.l.b16 %v592
        %v4681 = vunpack.c.h.b16 %v592
        %v4682 = vunpack.c.l.b16 %v593
        %v4683 = vunpack.c.h.b16 %v593
        %v4684 = vunpack.c.l.b16 %v594
        %v4685 = vunpack.c.h.b16 %v594
        %v4686 = vunpack.c.l.b16 %v595
        %v4687 = vunpack.c.h.b16 %v595
        %v4688 = vunpack.c.l.b16 %v596
        %v4689 = vunpack.c.h.b16 %v596
        %v4690 = vunpack.c.l.b16 %v597
        %v4691 = vunpack.c.h.b16 %v597
        %v4692 = vunpack.c.l.b16 %v598
        %v4693 = vunpack.c.h.b16 %v598
        %v4694 = vunpack.c.l.b16 %v599
        %v4695 = vunpack.c.h.b16 %v599
        %v4696 = vunpack.c.l.b16 %v600
        %v4697 = vunpack.c.h.b16 %v600
        %v4698 = vunpack.c.l.b16 %v601
        %v4699 = vunpack.c.h.b16 %v601
        %v4700 = vunpack.c.l.b16 %v602
        %v4701 = vunpack.c.h.b16 %v602
        %v4702 = vunpack.c.l.b16 %v603
        %v4703 = vunpack.c.h.b16 %v603
        %v4704 = vunpack.c.l.b16 %v604
        %v4705 = vunpack.c.h.b16 %v604
        %v4706 = vunpack.c.l.b16 %v605
        %v4707 = vunpack.c.h.b16 %v605
        %v4708 = vunpack.c.l.b16 %v606
        %v4709 = vunpack.c.h.b16 %v606
        %v4710 = vunpack.c.l.b16 %v607
        %v4711 = vunpack.c.h.b16 %v607
        %v4712 = vunpack.c.l.b16 %v608
        %v4713 = vunpack.c.h.b16 %v608
        %v4714 = vunpack.c.l.b16 %v609
        %v4715 = vunpack.c.h.b16 %v609
        %v4716 = vunpack.c.l.b16 %v610
        %v4717 = vunpack.c.h.b16 %v610
        %v4718 = vunpack.c.l.b16 %v611
        %v4719 = vunpack.c.h.b16 %v611
        %v4720 = vunpack.c.l.b16 %v612
        %v4721 = vunpack.c.h.b16 %v612
        %v4722 = vunpack.c.l.b16 %v613
        %v4723 = vunpack.c.h.b16 %v613
        %v4724 = vunpack.c.l.b16 %v614
        %v4725 = vunpack.c.h.b16 %v614
        %v4726 = vunpack.c.l.b16 %v615
        %v4727 = vunpack.c.h.b16 %v615
        %v4728 = vunpack.c.l.b16 %v616
        %v4729 = vunpack.c.h.b16 %v616
        %v4730 = vunpack.c.l.b16 %v617
        %v4731 = vunpack.c.h.b16 %v617
        %v4732 = vunpack.c.l.b16 %v618
        %v4733 = vunpack.c.h.b16 %v618
        %v4734 = vunpack.c.l.b16 %v619
        %v4735 = vunpack.c.h.b16 %v619
        %v4736 = vunpack.c.l.b16 %v620
        %v4737 = vunpack.c.h.b16 %v620
        %v4738 = vunpack.c.l.b16 %v621
        %v4739 = vunpack.c.h.b16 %v621
        %v4740 = vunpack.c.l.b16 %v622
        %v4741 = vunpack.c.h.b16 %v622
        %v4742 = vunpack.c.l.b16 %v623
        %v4743 = vunpack.c.h.b16 %v623
        %v4744 = vunpack.c.l.b16 %v624
        %v4745 = vunpack.c.h.b16 %v624
        %v4746 = vunpack.c.l.b16 %v625
        %v4747 = vunpack.c.h.b16 %v625
        %v4748 = vunpack.c.l.b16 %v626
        %v4749 = vunpack.c.h.b16 %v626
        %v4750 = vunpack.c.l.b16 %v627
        %v4751 = vunpack.c.h.b16 %v627
        %v4752 = vunpack.c.l.b16 %v628
        %v4753 = vunpack.c.h.b16 %v628
        %v4754 = vunpack.c.l.b16 %v629
        %v4755 = vunpack.c.h.b16 %v629
        %v4756 = vunpack.c.l.b16 %v630
        %v4757 = vunpack.c.h.b16 %v630
        %v4758 = vunpack.c.l.b16 %v631
        %v4759 = vunpack.c.h.b16 %v631
        %v4760 = vunpack.c.l.b16 %v632
        %v4761 = vunpack.c.h.b16 %v632
        %v4762 = vunpack.c.l.b16 %v633
        %v4763 = vunpack.c.h.b16 %v633
        %v4764 = vunpack.c.l.b16 %v634
        %v4765 = vunpack.c.h.b16 %v634
        %v4766 = vunpack.c.l.b16 %v635
        %v4767 = vunpack.c.h.b16 %v635
        %v4768 = vunpack.c.l.b16 %v636
        %v4769 = vunpack.c.h.b16 %v636
        %v4770 = vunpack.c.l.b16 %v637
        %v4771 = vunpack.c.h.b16 %v637
        %v4772 = vunpack.c.l.b16 %v638
        %v4773 = vunpack.c.h.b16 %v638
        %v4774 = vunpack.c.l.b16 %v639
        %v4775 = vunpack.c.h.b16 %v639
        %v4776 = vunpack.c.l.b16 %v640
        %v4777 = vunpack.c.h.b16 %v640
        %v4778 = vunpack.c.l.b16 %v641
        %v4779 = vunpack.c.h.b16 %v641
        %v4780 = vunpack.c.l.b16 %v642
        %v4781 = vunpack.c.h.b16 %v642
        %v4782 = vunpack.c.l.b16 %v643
        %v4783 = vunpack.c.h.b16 %v643
        %v4784 = vunpack.c.l.b16 %v644
        %v4785 = vunpack.c.h.b16 %v644
        %v4786 = vunpack.c.l.b16 %v645
        %v4787 = vunpack.c.h.b16 %v645
        %v4788 = vunpack.c.l.b16 %v646
        %v4789 = vunpack.c.h.b16 %v646
        %v4790 = vunpack.c.l.b16 %v647
        %v4791 = vunpack.c.h.b16 %v647
        %v4792 = vunpack.c.l.b16 %v648
        %v4793 = vunpack.c.h.b16 %v648
        %v4794 = vunpack.c.l.b16 %v649
        %v4795 = vunpack.c.h.b16 %v649
        %v4796 = vunpack.c.l.b16 %v650
        %v4797 = vunpack.c.h.b16 %v650
        %v4798 = vunpack.c.l.b16 %v651
        %v4799 = vunpack.c.h.b16 %v651
        %v4800 = vunpack.c.l.b16 %v652
        %v4801 = vunpack.c.h.b16 %v652
        %v4802 = vunpack.c.l.b16 %v653
        %v4803 = vunpack.c.h.b16 %v653
        %v4804 = vunpack.c.l.b16 %v654
        %v4805 = vunpack.c.h.b16 %v654
        %v4806 = vunpack.c.l.b16 %v655
        %v4807 = vunpack.c.h.b16 %v655
        %v4808 = vunpack.c.l.b16 %v656
        %v4809 = vunpack.c.h.b16 %v656
        %v4810 = vunpack.c.l.b16 %v657
        %v4811 = vunpack.c.h.b16 %v657
        %v4812 = vunpack.c.l.b16 %v658
        %v4813 = vunpack.c.h.b16 %v658
        %v4814 = vunpack.c.l.b16 %v659
        %v4815 = vunpack.c.h.b16 %v659
        %v4816 = vunpack.c.l.b16 %v660
        %v4817 = vunpack.c.h.b16 %v660
        %v4818 = vunpack.c.l.b16 %v661
        %v4819 = vunpack.c.h.b16 %v661
        %v4820 = vunpack.c.l.b16 %v662
        %v4821 = vunpack.c.h.b16 %v662
        %v4822 = vunpack.c.l.b16 %v663
        %v4823 = vunpack.c.h.b16 %v663
        %v4824 = vunpack.c.l.b16 %v664
        %v4825 = vunpack.c.h.b16 %v664
        %v4826 = vunpack.c.l.b16 %v665
        %v4827 = vunpack.c.h.b16 %v665
        %v4828 = vunpack.c.l.b16 %v666
        %v4829 = vunpack.c.h.b16 %v666
        %v4830 = vunpack.c.l.b16 %v667
        %v4831 = vunpack.c.h.b16 %v667
        %v4832 = vunpack.c.l.b16 %v668
        %v4833 = vunpack.c.h.b16 %v668
        %v4834 = vunpack.c.l.b16 %v669
        %v4835 = vunpack.c.h.b16 %v669
        %v4836 = vunpack.c.l.b16 %v670
        %v4837 = vunpack.c.h.b16 %v670
        %v4838 = vunpack.c.l.b16 %v671
        %v4839 = vunpack.c.h.b16 %v671
        %v4840 = vunpack.c.l.b16 %v672
        %v4841 = vunpack.c.h.b16 %v672
        %v4842 = vunpack.c.l.b16 %v673
        %v4843 = vunpack.c.h.b16 %v673
        %v4844 = vunpack.c.l.b16 %v674
        %v4845 = vunpack.c.h.b16 %v674
        %v4846 = vunpack.c.l.b16 %v675
        %v4847 = vunpack.c.h.b16 %v675
        %v4848 = vunpack.c.l.b16 %v676
        %v4849 = vunpack.c.h.b16 %v676
        %v4850 = vunpack.c.l.b16 %v677
        %v4851 = vunpack.c.h.b16 %v677
        %v4852 = vunpack.c.l.b16 %v678
        %v4853 = vunpack.c.h.b16 %v678
        %v4854 = vunpack.c.l.b16 %v679
        %v4855 = vunpack.c.h.b16 %v679
        %v4856 = vunpack.c.l.b16 %v680
        %v4857 = vunpack.c.h.b16 %v680
        %v4858 = vunpack.c.l.b16 %v681
        %v4859 = vunpack.c.h.b16 %v681
        %v4860 = vunpack.c.l.b16 %v682
        %v4861 = vunpack.c.h.b16 %v682
        %v4862 = vunpack.c.l.b16 %v683
        %v4863 = vunpack.c.h.b16 %v683
        %v4864 = vunpack.c.l.b16 %v684
        %v4865 = vunpack.c.h.b16 %v684
        %v4866 = vunpack.c.l.b16 %v685
        %v4867 = vunpack.c.h.b16 %v685
        %v4868 = vunpack.c.l.b16 %v686
        %v4869 = vunpack.c.h.b16 %v686
        %v4870 = vunpack.c.l.b16 %v687
        %v4871 = vunpack.c.h.b16 %v687
        %v4872 = vunpack.c.l.b16 %v688
        %v4873 = vunpack.c.h.b16 %v688
        %v4874 = vunpack.c.l.b16 %v689
        %v4875 = vunpack.c.h.b16 %v689
        %v4876 = vunpack.c.l.b16 %v690
        %v4877 = vunpack.c.h.b16 %v690
        %v4878 = vunpack.c.l.b16 %v691
        %v4879 = vunpack.c.h.b16 %v691
        %v4880 = vunpack.c.l.b16 %v692
        %v4881 = vunpack.c.h.b16 %v692
        %v4882 = vunpack.c.l.b16 %v693
        %v4883 = vunpack.c.h.b16 %v693
        %v4884 = vunpack.c.l.b16 %v694
        %v4885 = vunpack.c.h.b16 %v694
        %v4886 = vunpack.c.l.b16 %v695
        %v4887 = vunpack.c.h.b16 %v695
        %v4888 = vunpack.c.l.b16 %v696
        %v4889 = vunpack.c.h.b16 %v696
        %v4890 = vunpack.c.l.b16 %v697
        %v4891 = vunpack.c.h.b16 %v697
        %v4892 = vunpack.c.l.b16 %v698
        %v4893 = vunpack.c.h.b16 %v698
        %v4894 = vunpack.c.l.b16 %v699
        %v4895 = vunpack.c.h.b16 %v699
        %v4896 = vunpack.c.l.b16 %v700
        %v4897 = vunpack.c.h.b16 %v700
        %v4898 = vunpack.c.l.b16 %v701
        %v4899 = vunpack.c.h.b16 %v701
        %v4900 = vunpack.c.l.b16 %v702
        %v4901 = vunpack.c.h.b16 %v702
        %v4902 = vunpack.c.l.b16 %v703
        %v4903 = vunpack.c.h.b16 %v703
        %v4904 = vunpack.c.l.b16 %v704
        %v4905 = vunpack.c.h.b16 %v704
        %v4906 = vunpack.c.l.b16 %v705
        %v4907 = vunpack.c.h.b16 %v705
        %v4908 = vunpack.c.l.b16 %v706
        %v4909 = vunpack.c.h.b16 %v706
        %v4910 = vunpack.c.l.b16 %v707
        %v4911 = vunpack.c.h.b16 %v707
        %v4912 = vunpack.c.l.b16 %v708
        %v4913 = vunpack.c.h.b16 %v708
        %v4914 = vunpack.c.l.b16 %v709
        %v4915 = vunpack.c.h.b16 %v709
        %v4916 = vunpack.c.l.b16 %v710
        %v4917 = vunpack.c.h.b16 %v710
        %v4918 = vunpack.c.l.b16 %v711
        %v4919 = vunpack.c.h.b16 %v711
        %v4920 = vunpack.c.l.b16 %v712
        %v4921 = vunpack.c.h.b16 %v712
        %v4922 = vunpack.c.l.b16 %v713
        %v4923 = vunpack.c.h.b16 %v713
        %v4924 = vunpack.c.l.b16 %v714
        %v4925 = vunpack.c.h.b16 %v714
        %v4926 = vunpack.c.l.b16 %v715
        %v4927 = vunpack.c.h.b16 %v715
        %v4928 = vunpack.c.l.b16 %v716
        %v4929 = vunpack.c.h.b16 %v716
        %v4930 = vunpack.c.l.b16 %v717
        %v4931 = vunpack.c.h.b16 %v717
        %v4932 = vunpack.c.l.b16 %v718
        %v4933 = vunpack.c.h.b16 %v718
        %v4934 = vunpack.c.l.b16 %v719
        %v4935 = vunpack.c.h.b16 %v719
        %v4936 = vunpack.c.l.b16 %v720
        %v4937 = vunpack.c.h.b16 %v720
        %v4938 = vunpack.c.l.b16 %v721
        %v4939 = vunpack.c.h.b16 %v721
        %v4940 = vunpack.c.l.b16 %v722
        %v4941 = vunpack.c.h.b16 %v722
        %v4942 = vunpack.c.l.b16 %v723
        %v4943 = vunpack.c.h.b16 %v723
        %v4944 = vunpack.c.l.b16 %v724
        %v4945 = vunpack.c.h.b16 %v724
        %v4946 = vunpack.c.l.b16 %v725
        %v4947 = vunpack.c.h.b16 %v725
        %v4948 = vunpack.c.l.b16 %v726
        %v4949 = vunpack.c.h.b16 %v726
        %v4950 = vunpack.c.l.b16 %v727
        %v4951 = vunpack.c.h.b16 %v727
        %v4952 = vunpack.c.l.b16 %v728
        %v4953 = vunpack.c.h.b16 %v728
        %v4954 = vunpack.c.l.b16 %v729
        %v4955 = vunpack.c.h.b16 %v729
        %v4956 = vunpack.c.l.b16 %v730
        %v4957 = vunpack.c.h.b16 %v730
        %v4958 = vunpack.c.l.b16 %v731
        %v4959 = vunpack.c.h.b16 %v731
        %v4960 = vunpack.c.l.b16 %v732
        %v4961 = vunpack.c.h.b16 %v732
        %v4962 = vunpack.c.l.b16 %v733
        %v4963 = vunpack.c.h.b16 %v733
        %v4964 = vunpack.c.l.b16 %v734
        %v4965 = vunpack.c.h.b16 %v734
        %v4966 = vunpack.c.l.b16 %v735
        %v4967 = vunpack.c.h.b16 %v735
        %v4968 = vunpack.c.l.b16 %v736
        %v4969 = vunpack.c.h.b16 %v736
        %v4970 = vunpack.c.l.b16 %v737
        %v4971 = vunpack.c.h.b16 %v737
        %v4972 = vunpack.c.l.b16 %v738
        %v4973 = vunpack.c.h.b16 %v738
        %v4974 = vunpack.c.l.b16 %v739
        %v4975 = vunpack.c.h.b16 %v739
        %v4976 = vunpack.c.l.b16 %v740
        %v4977 = vunpack.c.h.b16 %v740
        %v4978 = vunpack.c.l.b16 %v741
        %v4979 = vunpack.c.h.b16 %v741
        %v4980 = vunpack.c.l.b16 %v742
        %v4981 = vunpack.c.h.b16 %v742
        %v4982 = vunpack.c.l.b16 %v743
        %v4983 = vunpack.c.h.b16 %v743
        %v4984 = vunpack.c.l.b16 %v744
        %v4985 = vunpack.c.h.b16 %v744
        %v4986 = vunpack.c.l.b16 %v745
        %v4987 = vunpack.c.h.b16 %v745
        %v4988 = vunpack.c.l.b16 %v746
        %v4989 = vunpack.c.h.b16 %v746
        %v4990 = vunpack.c.l.b16 %v747
        %v4991 = vunpack.c.h.b16 %v747
        %v4992 = vunpack.c.l.b16 %v748
        %v4993 = vunpack.c.h.b16 %v748
        %v4994 = vunpack.c.l.b16 %v749
        %v4995 = vunpack.c.h.b16 %v749
        %v4996 = vunpack.c.l.b16 %v750
        %v4997 = vunpack.c.h.b16 %v750
        %v4998 = vunpack.c.l.b16 %v751
        %v4999 = vunpack.c.h.b16 %v751
        %v5000 = vunpack.c.l.b16 %v752
        %v5001 = vunpack.c.h.b16 %v752
        %v5002 = vunpack.c.l.b16 %v753
        %v5003 = vunpack.c.h.b16 %v753
        %v5004 = vunpack.c.l.b16 %v754
        %v5005 = vunpack.c.h.b16 %v754
        %v5006 = vunpack.c.l.b16 %v755
        %v5007 = vunpack.c.h.b16 %v755
        %v5008 = vunpack.c.l.b16 %v756
        %v5009 = vunpack.c.h.b16 %v756
        %v5010 = vunpack.c.l.b16 %v757
        %v5011 = vunpack.c.h.b16 %v757
        %v5012 = vunpack.c.l.b16 %v758
        %v5013 = vunpack.c.h.b16 %v758
        %v5014 = vunpack.c.l.b16 %v759
        %v5015 = vunpack.c.h.b16 %v759
        %v5016 = vunpack.c.l.b16 %v760
        %v5017 = vunpack.c.h.b16 %v760
        %v5018 = vunpack.c.l.b16 %v761
        %v5019 = vunpack.c.h.b16 %v761
        %v5020 = vunpack.c.l.b16 %v762
        %v5021 = vunpack.c.h.b16 %v762
        %v5022 = vunpack.c.l.b16 %v763
        %v5023 = vunpack.c.h.b16 %v763
        %v5024 = vunpack.c.l.b16 %v764
        %v5025 = vunpack.c.h.b16 %v764
        %v5026 = vunpack.c.l.b16 %v765
        %v5027 = vunpack.c.h.b16 %v765
        %v5028 = vunpack.c.l.b16 %v766
        %v5029 = vunpack.c.h.b16 %v766
        %v5030 = vunpack.c.l.b16 %v767
        %v5031 = vunpack.c.h.b16 %v767
        %v5032 = vunpack.c.l.b16 %v768
        %v5033 = vunpack.c.h.b16 %v768
        %v5034 = vunpack.c.l.b16 %v769
        %v5035 = vunpack.c.h.b16 %v769
        %v5036 = vunpack.c.l.b16 %v770
        %v5037 = vunpack.c.h.b16 %v770
        %v5038 = vunpack.c.l.b16 %v771
        %v5039 = vunpack.c.h.b16 %v771
        %v5040 = vunpack.c.l.b16 %v772
        %v5041 = vunpack.c.h.b16 %v772
        %v5042 = vunpack.c.l.b16 %v773
        %v5043 = vunpack.c.h.b16 %v773
        %v5044 = vunpack.c.l.b16 %v774
        %v5045 = vunpack.c.h.b16 %v774
        %v5046 = vunpack.c.l.b16 %v775
        %v5047 = vunpack.c.h.b16 %v775
        %v5048 = vunpack.c.l.b16 %v776
        %v5049 = vunpack.c.h.b16 %v776
        %v5050 = vunpack.c.l.b16 %v777
        %v5051 = vunpack.c.h.b16 %v777
        %v5052 = vunpack.c.l.b16 %v778
        %v5053 = vunpack.c.h.b16 %v778
        %v5054 = vunpack.c.l.b16 %v779
        %v5055 = vunpack.c.h.b16 %v779
        %v5056 = vunpack.c.l.b16 %v780
        %v5057 = vunpack.c.h.b16 %v780
        %v5058 = vunpack.c.l.b16 %v781
        %v5059 = vunpack.c.h.b16 %v781
        %v5060 = vunpack.c.l.b16 %v782
        %v5061 = vunpack.c.h.b16 %v782
        %v5062 = vunpack.c.l.b16 %v783
        %v5063 = vunpack.c.h.b16 %v783
        %v5064 = vunpack.c.l.b16 %v784
        %v5065 = vunpack.c.h.b16 %v784
        %v5066 = vunpack.c.l.b16 %v785
        %v5067 = vunpack.c.h.b16 %v785
        %v5068 = vunpack.c.l.b16 %v786
        %v5069 = vunpack.c.h.b16 %v786
        %v5070 = vunpack.c.l.b16 %v787
        %v5071 = vunpack.c.h.b16 %v787
        %v5072 = vunpack.c.l.b16 %v788
        %v5073 = vunpack.c.h.b16 %v788
        %v5074 = vunpack.c.l.b16 %v789
        %v5075 = vunpack.c.h.b16 %v789
        %v5076 = vunpack.c.l.b16 %v790
        %v5077 = vunpack.c.h.b16 %v790
        %v5078 = vunpack.c.l.b16 %v791
        %v5079 = vunpack.c.h.b16 %v791
        %v5080 = vunpack.c.l.b16 %v792
        %v5081 = vunpack.c.h.b16 %v792
        %v5082 = vunpack.c.l.b16 %v793
        %v5083 = vunpack.c.h.b16 %v793
        %v5084 = vunpack.c.l.b16 %v794
        %v5085 = vunpack.c.h.b16 %v794
        %v5086 = vunpack.c.l.b16 %v795
        %v5087 = vunpack.c.h.b16 %v795
        %v5088 = vunpack.c.l.b16 %v796
        %v5089 = vunpack.c.h.b16 %v796
        %v5090 = vunpack.c.l.b16 %v797
        %v5091 = vunpack.c.h.b16 %v797
        %v5092 = vunpack.c.l.b16 %v798
        %v5093 = vunpack.c.h.b16 %v798
        %v5094 = vunpack.c.l.b16 %v799
        %v5095 = vunpack.c.h.b16 %v799
        %v5096 = vunpack.c.l.b16 %v800
        %v5097 = vunpack.c.h.b16 %v800
        %v5098 = vunpack.c.l.b16 %v801
        %v5099 = vunpack.c.h.b16 %v801
        %v5100 = vunpack.c.l.b16 %v802
        %v5101 = vunpack.c.h.b16 %v802
        %v5102 = vunpack.c.l.b16 %v803
        %v5103 = vunpack.c.h.b16 %v803
        %v5104 = vunpack.c.l.b16 %v804
        %v5105 = vunpack.c.h.b16 %v804
        %v5106 = vunpack.c.l.b16 %v805
        %v5107 = vunpack.c.h.b16 %v805
        %v5108 = vunpack.c.l.b16 %v806
        %v5109 = vunpack.c.h.b16 %v806
        %v5110 = vunpack.c.l.b16 %v807
        %v5111 = vunpack.c.h.b16 %v807
        %v5112 = vunpack.c.l.b16 %v808
        %v5113 = vunpack.c.h.b16 %v808
        %v5114 = vunpack.c.l.b16 %v809
        %v5115 = vunpack.c.h.b16 %v809
        %v5116 = vunpack.c.l.b16 %v810
        %v5117 = vunpack.c.h.b16 %v810
        %v5118 = vunpack.c.l.b16 %v811
        %v5119 = vunpack.c.h.b16 %v811
        %v5120 = vunpack.c.l.b16 %v812
        %v5121 = vunpack.c.h.b16 %v812
        %v5122 = vunpack.c.l.b16 %v813
        %v5123 = vunpack.c.h.b16 %v813
        %v5124 = vunpack.c.l.b16 %v814
        %v5125 = vunpack.c.h.b16 %v814
        %v5126 = vunpack.c.l.b16 %v815
        %v5127 = vunpack.c.h.b16 %v815
        %v5128 = vunpack.c.l.b16 %v816
        %v5129 = vunpack.c.h.b16 %v816
        %v5130 = vunpack.c.l.b16 %v817
        %v5131 = vunpack.c.h.b16 %v817
        %v5132 = vunpack.c.l.b16 %v818
        %v5133 = vunpack.c.h.b16 %v818
        %v5134 = vunpack.c.l.b16 %v819
        %v5135 = vunpack.c.h.b16 %v819
        %v5136 = vunpack.c.l.b16 %v820
        %v5137 = vunpack.c.h.b16 %v820
        %v5138 = vunpack.c.l.b16 %v821
        %v5139 = vunpack.c.h.b16 %v821
        %v5140 = vunpack.c.l.b16 %v822
        %v5141 = vunpack.c.h.b16 %v822
        %v5142 = vunpack.c.l.b16 %v823
        %v5143 = vunpack.c.h.b16 %v823
        %v5144 = vunpack.c.l.b16 %v824
        %v5145 = vunpack.c.h.b16 %v824
        %v5146 = vunpack.c.l.b16 %v825
        %v5147 = vunpack.c.h.b16 %v825
        %v5148 = vunpack.c.l.b16 %v826
        %v5149 = vunpack.c.h.b16 %v826
        %v5150 = vunpack.c.l.b16 %v827
        %v5151 = vunpack.c.h.b16 %v827
        %v5152 = vunpack.c.l.b16 %v828
        %v5153 = vunpack.c.h.b16 %v828
        %v5154 = vunpack.c.l.b16 %v829
        %v5155 = vunpack.c.h.b16 %v829
        %v5156 = vunpack.c.l.b16 %v830
        %v5157 = vunpack.c.h.b16 %v830
        %v5158 = vunpack.c.l.b16 %v831
        %v5159 = vunpack.c.h.b16 %v831
        %v5160 = vunpack.c.l.b16 %v832
        %v5161 = vunpack.c.h.b16 %v832
        %v5162 = vunpack.c.l.b16 %v833
        %v5163 = vunpack.c.h.b16 %v833
        %v5164 = vunpack.c.l.b16 %v834
        %v5165 = vunpack.c.h.b16 %v834
        %v5166 = vunpack.c.l.b16 %v835
        %v5167 = vunpack.c.h.b16 %v835
        %v5168 = vunpack.c.l.b16 %v836
        %v5169 = vunpack.c.h.b16 %v836
        %v5170 = vunpack.c.l.b16 %v837
        %v5171 = vunpack.c.h.b16 %v837
        %v5172 = vunpack.c.l.b16 %v838
        %v5173 = vunpack.c.h.b16 %v838
        %v5174 = vunpack.c.l.b16 %v839
        %v5175 = vunpack.c.h.b16 %v839
        %v5176 = vunpack.c.l.b16 %v840
        %v5177 = vunpack.c.h.b16 %v840
        %v5178 = vunpack.c.l.b16 %v841
        %v5179 = vunpack.c.h.b16 %v841
        %v5180 = vunpack.c.l.b16 %v842
        %v5181 = vunpack.c.h.b16 %v842
        %v5182 = vunpack.c.l.b16 %v843
        %v5183 = vunpack.c.h.b16 %v843
        %v5184 = vunpack.c.l.b16 %v844
        %v5185 = vunpack.c.h.b16 %v844
        %v5186 = vunpack.c.l.b16 %v845
        %v5187 = vunpack.c.h.b16 %v845
        %v5188 = vunpack.c.l.b16 %v846
        %v5189 = vunpack.c.h.b16 %v846
        %v5190 = vunpack.c.l.b16 %v847
        %v5191 = vunpack.c.h.b16 %v847
        %v5192 = vunpack.c.l.b16 %v848
        %v5193 = vunpack.c.h.b16 %v848
        %v5194 = vunpack.c.l.b16 %v849
        %v5195 = vunpack.c.h.b16 %v849
        %v5196 = vunpack.c.l.b16 %v850
        %v5197 = vunpack.c.h.b16 %v850
        %v5198 = vunpack.c.l.b16 %v851
        %v5199 = vunpack.c.h.b16 %v851
        %v5200 = vunpack.c.l.b16 %v852
        %v5201 = vunpack.c.h.b16 %v852
        %v5202 = vunpack.c.l.b16 %v853
        %v5203 = vunpack.c.h.b16 %v853
        %v5204 = vunpack.c.l.b16 %v854
        %v5205 = vunpack.c.h.b16 %v854
        %v5206 = vunpack.c.l.b16 %v855
        %v5207 = vunpack.c.h.b16 %v855
        %v5208 = vunpack.c.l.b16 %v856
        %v5209 = vunpack.c.h.b16 %v856
        %v5210 = vunpack.c.l.b16 %v857
        %v5211 = vunpack.c.h.b16 %v857
        %v5212 = vunpack.c.l.b16 %v858
        %v5213 = vunpack.c.h.b16 %v858
        %v5214 = vunpack.c.l.b16 %v859
        %v5215 = vunpack.c.h.b16 %v859
        %v5216 = vunpack.c.l.b16 %v860
        %v5217 = vunpack.c.h.b16 %v860
        %v5218 = vunpack.c.l.b16 %v861
        %v5219 = vunpack.c.h.b16 %v861
        %v5220 = vunpack.c.l.b16 %v862
        %v5221 = vunpack.c.h.b16 %v862
        %v5222 = vunpack.c.l.b16 %v863
        %v5223 = vunpack.c.h.b16 %v863
        %v5224 = vunpack.c.l.b16 %v864
        %v5225 = vunpack.c.h.b16 %v864
        %v5226 = vunpack.c.l.b16 %v865
        %v5227 = vunpack.c.h.b16 %v865
        %v5228 = vunpack.c.l.b16 %v866
        %v5229 = vunpack.c.h.b16 %v866
        %v5230 = vunpack.c.l.b16 %v867
        %v5231 = vunpack.c.h.b16 %v867
        %v5232 = vunpack.c.l.b16 %v868
        %v5233 = vunpack.c.h.b16 %v868
        %v5234 = vunpack.c.l.b16 %v869
        %v5235 = vunpack.c.h.b16 %v869
        %v5236 = vunpack.c.l.b16 %v870
        %v5237 = vunpack.c.h.b16 %v870
        %v5238 = vunpack.c.l.b16 %v871
        %v5239 = vunpack.c.h.b16 %v871
        %v5240 = vunpack.c.l.b16 %v872
        %v5241 = vunpack.c.h.b16 %v872
        %v5242 = vunpack.c.l.b16 %v873
        %v5243 = vunpack.c.h.b16 %v873
        %v5244 = vunpack.c.l.b16 %v874
        %v5245 = vunpack.c.h.b16 %v874
        %v5246 = vunpack.c.l.b16 %v875
        %v5247 = vunpack.c.h.b16 %v875
        %v5248 = vunpack.c.l.b16 %v876
        %v5249 = vunpack.c.h.b16 %v876
        %v5250 = vunpack.c.l.b16 %v877
        %v5251 = vunpack.c.h.b16 %v877
        %v5252 = vunpack.c.l.b16 %v878
        %v5253 = vunpack.c.h.b16 %v878
        %v5254 = vunpack.c.l.b16 %v879
        %v5255 = vunpack.c.h.b16 %v879
        %v5256 = vunpack.c.l.b16 %v880
        %v5257 = vunpack.c.h.b16 %v880
        %v5258 = vunpack.c.l.b16 %v881
        %v5259 = vunpack.c.h.b16 %v881
        %v5260 = vunpack.c.l.b16 %v882
        %v5261 = vunpack.c.h.b16 %v882
        %v5262 = vunpack.c.l.b16 %v883
        %v5263 = vunpack.c.h.b16 %v883
        %v5264 = vunpack.c.l.b16 %v884
        %v5265 = vunpack.c.h.b16 %v884
        %v5266 = vunpack.c.l.b16 %v885
        %v5267 = vunpack.c.h.b16 %v885
        %v5268 = vunpack.c.l.b16 %v886
        %v5269 = vunpack.c.h.b16 %v886
        %v5270 = vunpack.c.l.b16 %v887
        %v5271 = vunpack.c.h.b16 %v887
        %v5272 = vunpack.c.l.b16 %v888
        %v5273 = vunpack.c.h.b16 %v888
        %v5274 = vunpack.c.l.b16 %v889
        %v5275 = vunpack.c.h.b16 %v889
        %v5276 = vunpack.c.l.b16 %v890
        %v5277 = vunpack.c.h.b16 %v890
        %v5278 = vunpack.c.l.b16 %v891
        %v5279 = vunpack.c.h.b16 %v891
        %v5280 = vunpack.c.l.b16 %v892
        %v5281 = vunpack.c.h.b16 %v892
        %v5282 = vunpack.c.l.b16 %v893
        %v5283 = vunpack.c.h.b16 %v893
        %v5284 = vunpack.c.l.b16 %v894
        %v5285 = vunpack.c.h.b16 %v894
        %v5286 = vunpack.c.l.b16 %v895
        %v5287 = vunpack.c.h.b16 %v895
        %v5288 = vunpack.c.l.b16 %v896
        %v5289 = vunpack.c.h.b16 %v896
        %v5290 = vunpack.c.l.b16 %v897
        %v5291 = vunpack.c.h.b16 %v897
        %v5292 = vunpack.c.l.b16 %v898
        %v5293 = vunpack.c.h.b16 %v898
        %v5294 = vunpack.c.l.b16 %v899
        %v5295 = vunpack.c.h.b16 %v899
        %v5296 = vunpack.c.l.b16 %v900
        %v5297 = vunpack.c.h.b16 %v900
        %v5298 = vunpack.c.l.b16 %v901
        %v5299 = vunpack.c.h.b16 %v901
        %v5300 = vunpack.c.l.b16 %v902
        %v5301 = vunpack.c.h.b16 %v902
        %v5302 = vunpack.c.l.b16 %v903
        %v5303 = vunpack.c.h.b16 %v903
        %v5304 = vunpack.c.l.b16 %v904
        %v5305 = vunpack.c.h.b16 %v904
        %v5306 = vunpack.c.l.b16 %v905
        %v5307 = vunpack.c.h.b16 %v905
        %v5308 = vunpack.c.l.b16 %v906
        %v5309 = vunpack.c.h.b16 %v906
        %v5310 = vunpack.c.l.b16 %v907
        %v5311 = vunpack.c.h.b16 %v907
        %v5312 = vunpack.c.l.b16 %v908
        %v5313 = vunpack.c.h.b16 %v908
        %v5314 = vunpack.c.l.b16 %v909
        %v5315 = vunpack.c.h.b16 %v909
        %v5316 = vunpack.c.l.b16 %v910
        %v5317 = vunpack.c.h.b16 %v910
        %v5318 = vunpack.c.l.b16 %v911
        %v5319 = vunpack.c.h.b16 %v911
        %v5320 = vunpack.c.l.b16 %v912
        %v5321 = vunpack.c.h.b16 %v912
        %v5322 = vunpack.c.l.b16 %v913
        %v5323 = vunpack.c.h.b16 %v913
        %v5324 = vunpack.c.l.b16 %v914
        %v5325 = vunpack.c.h.b16 %v914
        %v5326 = vunpack.c.l.b16 %v915
        %v5327 = vunpack.c.h.b16 %v915
        %v5328 = vunpack.c.l.b16 %v916
        %v5329 = vunpack.c.h.b16 %v916
        %v5330 = vunpack.c.l.b16 %v917
        %v5331 = vunpack.c.h.b16 %v917
        %v5332 = vunpack.c.l.b16 %v918
        %v5333 = vunpack.c.h.b16 %v918
        %v5334 = vunpack.c.l.b16 %v919
        %v5335 = vunpack.c.h.b16 %v919
        %v5336 = vunpack.c.l.b16 %v920
        %v5337 = vunpack.c.h.b16 %v920
        %v5338 = vunpack.c.l.b16 %v921
        %v5339 = vunpack.c.h.b16 %v921
        %v5340 = vunpack.c.l.b16 %v922
        %v5341 = vunpack.c.h.b16 %v922
        %v5342 = vunpack.c.l.b16 %v923
        %v5343 = vunpack.c.h.b16 %v923
        %v5344 = vunpack.c.l.b16 %v924
        %v5345 = vunpack.c.h.b16 %v924
        %v5346 = vunpack.c.l.b16 %v925
        %v5347 = vunpack.c.h.b16 %v925
        %v5348 = vunpack.c.l.b16 %v926
        %v5349 = vunpack.c.h.b16 %v926
        %v5350 = vunpack.c.l.b16 %v927
        %v5351 = vunpack.c.h.b16 %v927
        %v5352 = vunpack.c.l.b16 %v928
        %v5353 = vunpack.c.h.b16 %v928
        %v5354 = vunpack.c.l.b16 %v929
        %v5355 = vunpack.c.h.b16 %v929
        %v5356 = vunpack.c.l.b16 %v930
        %v5357 = vunpack.c.h.b16 %v930
        %v5358 = vunpack.c.l.b16 %v931
        %v5359 = vunpack.c.h.b16 %v931
        %v5360 = vunpack.c.l.b16 %v932
        %v5361 = vunpack.c.h.b16 %v932
        %v5362 = vunpack.c.l.b16 %v933
        %v5363 = vunpack.c.h.b16 %v933
        %v5364 = vunpack.c.l.b16 %v934
        %v5365 = vunpack.c.h.b16 %v934
        %v5366 = vunpack.c.l.b16 %v935
        %v5367 = vunpack.c.h.b16 %v935
        %v5368 = vunpack.c.l.b16 %v936
        %v5369 = vunpack.c.h.b16 %v936
        %v5370 = vunpack.c.l.b16 %v937
        %v5371 = vunpack.c.h.b16 %v937
        %v5372 = vunpack.c.l.b16 %v938
        %v5373 = vunpack.c.h.b16 %v938
        %v5374 = vunpack.c.l.b16 %v939
        %v5375 = vunpack.c.h.b16 %v939
        %v5376 = vunpack.c.l.b16 %v940
        %v5377 = vunpack.c.h.b16 %v940
        %v5378 = vunpack.c.l.b16 %v941
        %v5379 = vunpack.c.h.b16 %v941
        %v5380 = vunpack.c.l.b16 %v942
        %v5381 = vunpack.c.h.b16 %v942
        %v5382 = vunpack.c.l.b16 %v943
        %v5383 = vunpack.c.h.b16 %v943
        %v5384 = vunpack.c.l.b16 %v944
        %v5385 = vunpack.c.h.b16 %v944
        %v5386 = vunpack.c.l.b16 %v945
        %v5387 = vunpack.c.h.b16 %v945
        %v5388 = vunpack.c.l.b16 %v946
        %v5389 = vunpack.c.h.b16 %v946
        %v5390 = vunpack.c.l.b16 %v947
        %v5391 = vunpack.c.h.b16 %v947
        %v5392 = vunpack.c.l.b16 %v948
        %v5393 = vunpack.c.h.b16 %v948
        %v5394 = vunpack.c.l.b16 %v949
        %v5395 = vunpack.c.h.b16 %v949
        %v5396 = vunpack.c.l.b16 %v950
        %v5397 = vunpack.c.h.b16 %v950
        %v5398 = vunpack.c.l.b16 %v951
        %v5399 = vunpack.c.h.b16 %v951
        %v5400 = vunpack.c.l.b16 %v952
        %v5401 = vunpack.c.h.b16 %v952
        %v5402 = vunpack.c.l.b16 %v953
        %v5403 = vunpack.c.h.b16 %v953
        %v5404 = vunpack.c.l.b16 %v954
        %v5405 = vunpack.c.h.b16 %v954
        %v5406 = vunpack.c.l.b16 %v955
        %v5407 = vunpack.c.h.b16 %v955
        %v5408 = vunpack.c.l.b16 %v956
        %v5409 = vunpack.c.h.b16 %v956
        %v5410 = vunpack.c.l.b16 %v957
        %v5411 = vunpack.c.h.b16 %v957
        %v5412 = vunpack.c.l.b16 %v958
        %v5413 = vunpack.c.h.b16 %v958
        %v5414 = vunpack.c.l.b16 %v959
        %v5415 = vunpack.c.h.b16 %v959
        %v5416 = vunpack.c.l.b16 %v960
        %v5417 = vunpack.c.h.b16 %v960
        %v5418 = vunpack.c.l.b16 %v961
        %v5419 = vunpack.c.h.b16 %v961
        %v5420 = vunpack.c.l.b16 %v962
        %v5421 = vunpack.c.h.b16 %v962
        %v5422 = vunpack.c.l.b16 %v963
        %v5423 = vunpack.c.h.b16 %v963
        %v5424 = vunpack.c.l.b16 %v964
        %v5425 = vunpack.c.h.b16 %v964
        %v5426 = vunpack.c.l.b16 %v965
        %v5427 = vunpack.c.h.b16 %v965
        %v5428 = vunpack.c.l.b16 %v966
        %v5429 = vunpack.c.h.b16 %v966
        %v5430 = vunpack.c.l.b16 %v967
        %v5431 = vunpack.c.h.b16 %v967
        %v5432 = vunpack.c.l.b16 %v968
        %v5433 = vunpack.c.h.b16 %v968
        %v5434 = vunpack.c.l.b16 %v969
        %v5435 = vunpack.c.h.b16 %v969
        %v5436 = vunpack.c.l.b16 %v970
        %v5437 = vunpack.c.h.b16 %v970
        %v5438 = vunpack.c.l.b16 %v971
        %v5439 = vunpack.c.h.b16 %v971
        %v5440 = vunpack.c.l.b16 %v972
        %v5441 = vunpack.c.h.b16 %v972
        %v5442 = vunpack.c.l.b16 %v973
        %v5443 = vunpack.c.h.b16 %v973
        %v5444 = vunpack.c.l.b16 %v974
        %v5445 = vunpack.c.h.b16 %v974
        %v5446 = vunpack.c.l.b16 %v975
        %v5447 = vunpack.c.h.b16 %v975
        %v5448 = vunpack.c.l.b16 %v976
        %v5449 = vunpack.c.h.b16 %v976
        %v5450 = vunpack.c.l.b16 %v977
        %v5451 = vunpack.c.h.b16 %v977
        %v5452 = vunpack.c.l.b16 %v978
        %v5453 = vunpack.c.h.b16 %v978
        %v5454 = vunpack.c.l.b16 %v979
        %v5455 = vunpack.c.h.b16 %v979
        %v5456 = vunpack.c.l.b16 %v980
        %v5457 = vunpack.c.h.b16 %v980
        %v5458 = vunpack.c.l.b16 %v981
        %v5459 = vunpack.c.h.b16 %v981
        %v5460 = vunpack.c.l.b16 %v982
        %v5461 = vunpack.c.h.b16 %v982
        %v5462 = vunpack.c.l.b16 %v983
        %v5463 = vunpack.c.h.b16 %v983
        %v5464 = vunpack.c.l.b16 %v984
        %v5465 = vunpack.c.h.b16 %v984
        %v5466 = vunpack.c.l.b16 %v985
        %v5467 = vunpack.c.h.b16 %v985
        %v5468 = vunpack.c.l.b16 %v986
        %v5469 = vunpack.c.h.b16 %v986
        %v5470 = vunpack.c.l.b16 %v987
        %v5471 = vunpack.c.h.b16 %v987
        %v5472 = vunpack.c.l.b16 %v988
        %v5473 = vunpack.c.h.b16 %v988
        %v5474 = vunpack.c.l.b16 %v989
        %v5475 = vunpack.c.h.b16 %v989
        %v5476 = vunpack.c.l.b16 %v990
        %v5477 = vunpack.c.h.b16 %v990
        %v5478 = vunpack.c.l.b16 %v991
        %v5479 = vunpack.c.h.b16 %v991
        %v5480 = vunpack.c.l.b16 %v992
        %v5481 = vunpack.c.h.b16 %v992
        %v5482 = vunpack.c.l.b16 %v993
        %v5483 = vunpack.c.h.b16 %v993
        %v5484 = vunpack.c.l.b16 %v994
        %v5485 = vunpack.c.h.b16 %v994
        %v5486 = vunpack.c.l.b16 %v995
        %v5487 = vunpack.c.h.b16 %v995
        %v5488 = vunpack.c.l.b16 %v996
        %v5489 = vunpack.c.h.b16 %v996
        %v5490 = vunpack.c.l.b16 %v997
        %v5491 = vunpack.c.h.b16 %v997
        %v5492 = vunpack.c.l.b16 %v998
        %v5493 = vunpack.c.h.b16 %v998
        %v5494 = vunpack.c.l.b16 %v999
        %v5495 = vunpack.c.h.b16 %v999
        %v5496 = vunpack.c.l.b16 %v1000
        %v5497 = vunpack.c.h.b16 %v1000
        %v5498 = vunpack.c.l.b16 %v1001
        %v5499 = vunpack.c.h.b16 %v1001
        %v5500 = vunpack.c.l.b16 %v1002
        %v5501 = vunpack.c.h.b16 %v1002
        %v5502 = vunpack.c.l.b16 %v1003
        %v5503 = vunpack.c.h.b16 %v1003
        %v5504 = vunpack.c.l.b16 %v1004
        %v5505 = vunpack.c.h.b16 %v1004
        %v5506 = vunpack.c.l.b16 %v1005
        %v5507 = vunpack.c.h.b16 %v1005
        %v5508 = vunpack.c.l.b16 %v1006
        %v5509 = vunpack.c.h.b16 %v1006
        %v5510 = vunpack.c.l.b16 %v1007
        %v5511 = vunpack.c.h.b16 %v1007
        %v5512 = vunpack.c.l.b16 %v1008
        %v5513 = vunpack.c.h.b16 %v1008
        %v5514 = vunpack.c.l.b16 %v1009
        %v5515 = vunpack.c.h.b16 %v1009
        %v5516 = vunpack.c.l.b16 %v1010
        %v5517 = vunpack.c.h.b16 %v1010
        %v5518 = vunpack.c.l.b16 %v1011
        %v5519 = vunpack.c.h.b16 %v1011
        %v5520 = vunpack.c.l.b16 %v1012
        %v5521 = vunpack.c.h.b16 %v1012
        %v5522 = vunpack.c.l.b16 %v1013
        %v5523 = vunpack.c.h.b16 %v1013
        %v5524 = vunpack.c.l.b16 %v1014
        %v5525 = vunpack.c.h.b16 %v1014
        %v5526 = vunpack.c.l.b16 %v1015
        %v5527 = vunpack.c.h.b16 %v1015
        %v5528 = vunpack.c.l.b16 %v1016
        %v5529 = vunpack.c.h.b16 %v1016
        %v5530 = vunpack.c.l.b16 %v1017
        %v5531 = vunpack.c.h.b16 %v1017
        %v5532 = vunpack.c.l.b16 %v1018
        %v5533 = vunpack.c.h.b16 %v1018
        %v5534 = vunpack.c.l.b16 %v1019
        %v5535 = vunpack.c.h.b16 %v1019
        %v5536 = vunpack.c.l.b16 %v1020
        %v5537 = vunpack.c.h.b16 %v1020
        %v5538 = vunpack.c.l.b16 %v1021
        %v5539 = vunpack.c.h.b16 %v1021
        %v5540 = vunpack.c.l.b16 %v1022
        %v5541 = vunpack.c.h.b16 %v1022
        %v5542 = vunpack.c.l.b16 %v1023
        %v5543 = vunpack.c.h.b16 %v1023
        %v5544 = vunpack.c.l.b16 %v1024
        %v5545 = vunpack.c.h.b16 %v1024
        %v5546 = vunpack.c.l.b16 %v1025
        %v5547 = vunpack.c.h.b16 %v1025
        %v5548 = vunpack.c.l.b16 %v1026
        %v5549 = vunpack.c.h.b16 %v1026
        %v5550 = vunpack.c.l.b16 %v1027
        %v5551 = vunpack.c.h.b16 %v1027
        %v5552 = vunpack.c.l.b16 %v1028
        %v5553 = vunpack.c.h.b16 %v1028
        %v5554 = vunpack.c.l.b16 %v1029
        %v5555 = vunpack.c.h.b16 %v1029
        %v5556 = vunpack.c.l.b16 %v1030
        %v5557 = vunpack.c.h.b16 %v1030
        %v5558 = vunpack.c.l.b16 %v1031
        %v5559 = vunpack.c.h.b16 %v1031
        %v5560 = vunpack.c.l.b16 %v1032
        %v5561 = vunpack.c.h.b16 %v1032
        %v5562 = vunpack.c.l.b16 %v1033
        %v5563 = vunpack.c.h.b16 %v1033
        %v5564 = vunpack.c.l.b16 %v1034
        %v5565 = vunpack.c.h.b16 %v1034
        %v5566 = vunpack.c.l.b16 %v1035
        %v5567 = vunpack.c.h.b16 %v1035
        %v5568 = vunpack.c.l.b16 %v1036
        %v5569 = vunpack.c.h.b16 %v1036
        %v5570 = vunpack.c.l.b16 %v1037
        %v5571 = vunpack.c.h.b16 %v1037
        %v5572 = vunpack.c.l.b16 %v1038
        %v5573 = vunpack.c.h.b16 %v1038
        %v5574 = vunpack.c.l.b16 %v1039
        %v5575 = vunpack.c.h.b16 %v1039
        %v5576 = vunpack.c.l.b16 %v1040
        %v5577 = vunpack.c.h.b16 %v1040
        %v5578 = vunpack.c.l.b16 %v1041
        %v5579 = vunpack.c.h.b16 %v1041
        %v5580 = vunpack.c.l.b16 %v1042
        %v5581 = vunpack.c.h.b16 %v1042
        %v5582 = vunpack.c.l.b16 %v1043
        %v5583 = vunpack.c.h.b16 %v1043
        %v5584 = vunpack.c.l.b16 %v1044
        %v5585 = vunpack.c.h.b16 %v1044
        %v5586 = vunpack.c.l.b16 %v1045
        %v5587 = vunpack.c.h.b16 %v1045
        %v5588 = vunpack.c.l.b16 %v1046
        %v5589 = vunpack.c.h.b16 %v1046
        %v5590 = vunpack.c.l.b16 %v1047
        %v5591 = vunpack.c.h.b16 %v1047
        %v5592 = vunpack.c.l.b16 %v1048
        %v5593 = vunpack.c.h.b16 %v1048
        %v5594 = vunpack.c.l.b16 %v1049
        %v5595 = vunpack.c.h.b16 %v1049
        %v5596 = vunpack.c.l.b16 %v1050
        %v5597 = vunpack.c.h.b16 %v1050
        %v5598 = vunpack.c.l.b16 %v1051
        %v5599 = vunpack.c.h.b16 %v1051
        %v5600 = vunpack.c.l.b16 %v1052
        %v5601 = vunpack.c.h.b16 %v1052
        %v5602 = vunpack.c.l.b16 %v1053
        %v5603 = vunpack.c.h.b16 %v1053
        %v5604 = vunpack.c.l.b16 %v1054
        %v5605 = vunpack.c.h.b16 %v1054
        %v5606 = vunpack.c.l.b16 %v1055
        %v5607 = vunpack.c.h.b16 %v1055
        %v5608 = vunpack.c.l.b16 %v1056
        %v5609 = vunpack.c.h.b16 %v1056
        %v5610 = vunpack.c.l.b16 %v1057
        %v5611 = vunpack.c.h.b16 %v1057
        %v5612 = vunpack.c.l.b16 %v1058
        %v5613 = vunpack.c.h.b16 %v1058
        %v5614 = vunpack.c.l.b16 %v1059
        %v5615 = vunpack.c.h.b16 %v1059
        %v5616 = vunpack.c.l.b16 %v1060
        %v5617 = vunpack.c.h.b16 %v1060
        %v5618 = vunpack.c.l.b16 %v1061
        %v5619 = vunpack.c.h.b16 %v1061
        %v5620 = vunpack.c.l.b16 %v1062
        %v5621 = vunpack.c.h.b16 %v1062
        %v5622 = vunpack.c.l.b16 %v1063
        %v5623 = vunpack.c.h.b16 %v1063
        %v5624 = vunpack.c.l.b16 %v1064
        %v5625 = vunpack.c.h.b16 %v1064
        %v5626 = vunpack.c.l.b16 %v1065
        %v5627 = vunpack.c.h.b16 %v1065
        %v5628 = vunpack.c.l.b16 %v1066
        %v5629 = vunpack.c.h.b16 %v1066
        %v5630 = vunpack.c.l.b16 %v1067
        %v5631 = vunpack.c.h.b16 %v1067
        %v5632 = vunpack.c.l.b16 %v1068
        %v5633 = vunpack.c.h.b16 %v1068
        %v5634 = vunpack.c.l.b16 %v1069
        %v5635 = vunpack.c.h.b16 %v1069
        %v5636 = vunpack.c.l.b16 %v1070
        %v5637 = vunpack.c.h.b16 %v1070
        %v5638 = vunpack.c.l.b16 %v1071
        %v5639 = vunpack.c.h.b16 %v1071
        %v5640 = vunpack.c.l.b16 %v1072
        %v5641 = vunpack.c.h.b16 %v1072
        %v5642 = vunpack.c.l.b16 %v1073
        %v5643 = vunpack.c.h.b16 %v1073
        %v5644 = vunpack.c.l.b16 %v1074
        %v5645 = vunpack.c.h.b16 %v1074
        %v5646 = vunpack.c.l.b16 %v1075
        %v5647 = vunpack.c.h.b16 %v1075
        %v5648 = vunpack.c.l.b16 %v1076
        %v5649 = vunpack.c.h.b16 %v1076
        %v5650 = vunpack.c.l.b16 %v1077
        %v5651 = vunpack.c.h.b16 %v1077
        %v5652 = vunpack.c.l.b16 %v1078
        %v5653 = vunpack.c.h.b16 %v1078
        %v5654 = vunpack.c.l.b16 %v1079
        %v5655 = vunpack.c.h.b16 %v1079
        %v5656 = vunpack.c.l.b16 %v1080
        %v5657 = vunpack.c.h.b16 %v1080
        %v5658 = vunpack.c.l.b16 %v1081
        %v5659 = vunpack.c.h.b16 %v1081
        %v5660 = vunpack.c.l.b16 %v1082
        %v5661 = vunpack.c.h.b16 %v1082
        %v5662 = vunpack.c.l.b16 %v1083
        %v5663 = vunpack.c.h.b16 %v1083
        %v5664 = vunpack.c.l.b16 %v1084
        %v5665 = vunpack.c.h.b16 %v1084
        %v5666 = vunpack.c.l.b16 %v1085
        %v5667 = vunpack.c.h.b16 %v1085
        %v5668 = vunpack.c.l.b16 %v1086
        %v5669 = vunpack.c.h.b16 %v1086
        %v5670 = vunpack.c.l.b16 %v1087
        %v5671 = vunpack.c.h.b16 %v1087
        %v5672 = vunpack.c.l.b16 %v1088
        %v5673 = vunpack.c.h.b16 %v1088
        %v5674 = vunpack.c.l.b16 %v1089
        %v5675 = vunpack.c.h.b16 %v1089
        %v5676 = vunpack.c.l.b16 %v1090
        %v5677 = vunpack.c.h.b16 %v1090
        %v5678 = vunpack.c.l.b16 %v1091
        %v5679 = vunpack.c.h.b16 %v1091
        %v5680 = vunpack.c.l.b16 %v1092
        %v5681 = vunpack.c.h.b16 %v1092
        %v5682 = vunpack.c.l.b16 %v1093
        %v5683 = vunpack.c.h.b16 %v1093
        %v5684 = vunpack.c.l.b16 %v1094
        %v5685 = vunpack.c.h.b16 %v1094
        %v5686 = vunpack.c.l.b16 %v1095
        %v5687 = vunpack.c.h.b16 %v1095
        %v5688 = vunpack.c.l.b16 %v1096
        %v5689 = vunpack.c.h.b16 %v1096
        %v5690 = vunpack.c.l.b16 %v1097
        %v5691 = vunpack.c.h.b16 %v1097
        %v5692 = vunpack.c.l.b16 %v1098
        %v5693 = vunpack.c.h.b16 %v1098
        %v5694 = vunpack.c.l.b16 %v1099
        %v5695 = vunpack.c.h.b16 %v1099
        %v5696 = vunpack.c.l.b16 %v1100
        %v5697 = vunpack.c.h.b16 %v1100
        %v5698 = vunpack.c.l.b16 %v1101
        %v5699 = vunpack.c.h.b16 %v1101
        %v5700 = vunpack.c.l.b16 %v1102
        %v5701 = vunpack.c.h.b16 %v1102
        %v5702 = vunpack.c.l.b16 %v1103
        %v5703 = vunpack.c.h.b16 %v1103
        %v5704 = vunpack.c.l.b16 %v1104
        %v5705 = vunpack.c.h.b16 %v1104
        %v5706 = vunpack.c.l.b16 %v1105
        %v5707 = vunpack.c.h.b16 %v1105
        %v5708 = vunpack.c.l.b16 %v1106
        %v5709 = vunpack.c.h.b16 %v1106
        %v5710 = vunpack.c.l.b16 %v1107
        %v5711 = vunpack.c.h.b16 %v1107
        %v5712 = vunpack.c.l.b16 %v1108
        %v5713 = vunpack.c.h.b16 %v1108
        %v5714 = vunpack.c.l.b16 %v1109
        %v5715 = vunpack.c.h.b16 %v1109
        %v5716 = vunpack.c.l.b16 %v1110
        %v5717 = vunpack.c.h.b16 %v1110
        %v5718 = vunpack.c.l.b16 %v1111
        %v5719 = vunpack.c.h.b16 %v1111
        %v5720 = vunpack.c.l.b16 %v1112
        %v5721 = vunpack.c.h.b16 %v1112
        %v5722 = vunpack.c.l.b16 %v1113
        %v5723 = vunpack.c.h.b16 %v1113
        %v5724 = vunpack.c.l.b16 %v1114
        %v5725 = vunpack.c.h.b16 %v1114
        %v5726 = vunpack.c.l.b16 %v1115
        %v5727 = vunpack.c.h.b16 %v1115
        %v5728 = vunpack.c.l.b16 %v1116
        %v5729 = vunpack.c.h.b16 %v1116
        %v5730 = vunpack.c.l.b16 %v1117
        %v5731 = vunpack.c.h.b16 %v1117
        %v5732 = vunpack.c.l.b16 %v1118
        %v5733 = vunpack.c.h.b16 %v1118
        %v5734 = vunpack.c.l.b16 %v1119
        %v5735 = vunpack.c.h.b16 %v1119
        %v5736 = vunpack.c.l.b16 %v1120
        %v5737 = vunpack.c.h.b16 %v1120
        %v5738 = vunpack.c.l.b16 %v1121
        %v5739 = vunpack.c.h.b16 %v1121
        %v5740 = vunpack.c.l.b16 %v1122
        %v5741 = vunpack.c.h.b16 %v1122
        %v5742 = vunpack.c.l.b16 %v1123
        %v5743 = vunpack.c.h.b16 %v1123
        %v5744 = vunpack.c.l.b16 %v1124
        %v5745 = vunpack.c.h.b16 %v1124
        %v5746 = vunpack.c.l.b16 %v1125
        %v5747 = vunpack.c.h.b16 %v1125
        %v5748 = vunpack.c.l.b16 %v1126
        %v5749 = vunpack.c.h.b16 %v1126
        %v5750 = vunpack.c.l.b16 %v1127
        %v5751 = vunpack.c.h.b16 %v1127
        %v5752 = vunpack.c.l.b16 %v1128
        %v5753 = vunpack.c.h.b16 %v1128
        %v5754 = vunpack.c.l.b16 %v1129
        %v5755 = vunpack.c.h.b16 %v1129
        %v5756 = vunpack.c.l.b16 %v1130
        %v5757 = vunpack.c.h.b16 %v1130
        %v5758 = vunpack.c.l.b16 %v1131
        %v5759 = vunpack.c.h.b16 %v1131
        %v5760 = vunpack.c.l.b16 %v1132
        %v5761 = vunpack.c.h.b16 %v1132
        %v5762 = vunpack.c.l.b16 %v1133
        %v5763 = vunpack.c.h.b16 %v1133
        %v5764 = vunpack.c.l.b16 %v1134
        %v5765 = vunpack.c.h.b16 %v1134
        %v5766 = vunpack.c.l.b16 %v1135
        %v5767 = vunpack.c.h.b16 %v1135
        %v5768 = vunpack.c.l.b16 %v1136
        %v5769 = vunpack.c.h.b16 %v1136
        %v5770 = vunpack.c.l.b16 %v1137
        %v5771 = vunpack.c.h.b16 %v1137
        %v5772 = vunpack.c.l.b16 %v1138
        %v5773 = vunpack.c.h.b16 %v1138
        %v5774 = vunpack.c.l.b16 %v1139
        %v5775 = vunpack.c.h.b16 %v1139
        %v5776 = vunpack.c.l.b16 %v1140
        %v5777 = vunpack.c.h.b16 %v1140
        %v5778 = vunpack.c.l.b16 %v1141
        %v5779 = vunpack.c.h.b16 %v1141
        %v5780 = vunpack.c.l.b16 %v1142
        %v5781 = vunpack.c.h.b16 %v1142
        %v5782 = vunpack.c.l.b16 %v1143
        %v5783 = vunpack.c.h.b16 %v1143
        %v5784 = vunpack.c.l.b16 %v1144
        %v5785 = vunpack.c.h.b16 %v1144
        %v5786 = vunpack.c.l.b16 %v1145
        %v5787 = vunpack.c.h.b16 %v1145
        %v5788 = vunpack.c.l.b16 %v1146
        %v5789 = vunpack.c.h.b16 %v1146
        %v5790 = vunpack.c.l.b16 %v1147
        %v5791 = vunpack.c.h.b16 %v1147
        %v5792 = vunpack.c.l.b16 %v1148
        %v5793 = vunpack.c.h.b16 %v1148
        %v5794 = vunpack.c.l.b16 %v1149
        %v5795 = vunpack.c.h.b16 %v1149
        %v5796 = vunpack.c.l.b16 %v1150
        %v5797 = vunpack.c.h.b16 %v1150
        %v5798 = vunpack.c.l.b16 %v1151
        %v5799 = vunpack.c.h.b16 %v1151
        %v5800 = vunpack.c.l.b16 %v1152
        %v5801 = vunpack.c.h.b16 %v1152
        %v5802 = vunpack.c.l.b16 %v1153
        %v5803 = vunpack.c.h.b16 %v1153
        %v5804 = vunpack.c.l.b16 %v1154
        %v5805 = vunpack.c.h.b16 %v1154
        %v5806 = vunpack.c.l.b16 %v1155
        %v5807 = vunpack.c.h.b16 %v1155
        %v5808 = vunpack.c.l.b16 %v1156
        %v5809 = vunpack.c.h.b16 %v1156
        %v5810 = vunpack.c.l.b16 %v1157
        %v5811 = vunpack.c.h.b16 %v1157
        %v5812 = vunpack.c.l.b16 %v1158
        %v5813 = vunpack.c.h.b16 %v1158
        %v5814 = vunpack.c.l.b16 %v1159
        %v5815 = vunpack.c.h.b16 %v1159
        %v5816 = vunpack.c.l.b16 %v1160
        %v5817 = vunpack.c.h.b16 %v1160
        %v5818 = vunpack.c.l.b16 %v1161
        %v5819 = vunpack.c.h.b16 %v1161
        %v5820 = vunpack.c.l.b16 %v1162
        %v5821 = vunpack.c.h.b16 %v1162
        %v5822 = vunpack.c.l.b16 %v1163
        %v5823 = vunpack.c.h.b16 %v1163
        %v5824 = vunpack.c.l.b16 %v1164
        %v5825 = vunpack.c.h.b16 %v1164
        %v5826 = vunpack.c.l.b16 %v1165
        %v5827 = vunpack.c.h.b16 %v1165
        %v5828 = vunpack.c.l.b16 %v1166
        %v5829 = vunpack.c.h.b16 %v1166
        %v5830 = vunpack.c.l.b16 %v1167
        %v5831 = vunpack.c.h.b16 %v1167
        %v5832 = vunpack.c.l.b16 %v1168
        %v5833 = vunpack.c.h.b16 %v1168
        %v5834 = vunpack.c.l.b16 %v1169
        %v5835 = vunpack.c.h.b16 %v1169
        %v5836 = vunpack.c.l.b16 %v1170
        %v5837 = vunpack.c.h.b16 %v1170
        %v5838 = vunpack.c.l.b16 %v1171
        %v5839 = vunpack.c.h.b16 %v1171
        %v5840 = vunpack.c.l.b16 %v1172
        %v5841 = vunpack.c.h.b16 %v1172
        %v5842 = vunpack.c.l.b16 %v1173
        %v5843 = vunpack.c.h.b16 %v1173
        %v5844 = vunpack.c.l.b16 %v1174
        %v5845 = vunpack.c.h.b16 %v1174
        %v5846 = vunpack.c.l.b16 %v1175
        %v5847 = vunpack.c.h.b16 %v1175
        %v5848 = vunpack.c.l.b16 %v1176
        %v5849 = vunpack.c.h.b16 %v1176
        %v5850 = vunpack.c.l.b16 %v1177
        %v5851 = vunpack.c.h.b16 %v1177
        %v5852 = vunpack.c.l.b16 %v1178
        %v5853 = vunpack.c.h.b16 %v1178
        %v5854 = vunpack.c.l.b16 %v1179
        %v5855 = vunpack.c.h.b16 %v1179
        %v5856 = vunpack.c.l.b16 %v1180
        %v5857 = vunpack.c.h.b16 %v1180
        %v5858 = vunpack.c.l.b16 %v1181
        %v5859 = vunpack.c.h.b16 %v1181
        %v5860 = vunpack.c.l.b16 %v1182
        %v5861 = vunpack.c.h.b16 %v1182
        %v5862 = vunpack.c.l.b16 %v1183
        %v5863 = vunpack.c.h.b16 %v1183
        %v5864 = vunpack.c.l.b16 %v1184
        %v5865 = vunpack.c.h.b16 %v1184
        %v5866 = vunpack.c.l.b16 %v1185
        %v5867 = vunpack.c.h.b16 %v1185
        %v5868 = vunpack.c.l.b16 %v1186
        %v5869 = vunpack.c.h.b16 %v1186
        %v5870 = vunpack.c.l.b16 %v1187
        %v5871 = vunpack.c.h.b16 %v1187
        %v5872 = vunpack.c.l.b16 %v1188
        %v5873 = vunpack.c.h.b16 %v1188
        %v5874 = vunpack.c.l.b16 %v1189
        %v5875 = vunpack.c.h.b16 %v1189
        %v5876 = vunpack.c.l.b16 %v1190
        %v5877 = vunpack.c.h.b16 %v1190
        %v5878 = vunpack.c.l.b16 %v1191
        %v5879 = vunpack.c.h.b16 %v1191
        %v5880 = vunpack.c.l.b16 %v1192
        %v5881 = vunpack.c.h.b16 %v1192
        %v5882 = vunpack.c.l.b16 %v1193
        %v5883 = vunpack.c.h.b16 %v1193
        %v5884 = vunpack.c.l.b16 %v1194
        %v5885 = vunpack.c.h.b16 %v1194
        %v5886 = vunpack.c.l.b16 %v1195
        %v5887 = vunpack.c.h.b16 %v1195
        %v5888 = vunpack.c.l.b16 %v1196
        %v5889 = vunpack.c.h.b16 %v1196
        %v5890 = vunpack.c.l.b16 %v1197
        %v5891 = vunpack.c.h.b16 %v1197
        %v5892 = vunpack.c.l.b16 %v1198
        %v5893 = vunpack.c.h.b16 %v1198
        %v5894 = vunpack.c.l.b16 %v1199
        %v5895 = vunpack.c.h.b16 %v1199
        %v5896 = vunpack.c.l.b16 %v1200
        %v5897 = vunpack.c.h.b16 %v1200
        %v5898 = vunpack.c.l.b16 %v1201
        %v5899 = vunpack.c.h.b16 %v1201
        %v5900 = vunpack.c.l.b16 %v1202
        %v5901 = vunpack.c.h.b16 %v1202
        %v5902 = vunpack.c.l.b16 %v1203
        %v5903 = vunpack.c.h.b16 %v1203
        %v5904 = vunpack.c.l.b16 %v1204
        %v5905 = vunpack.c.h.b16 %v1204
        %v5906 = vunpack.c.l.b16 %v1205
        %v5907 = vunpack.c.h.b16 %v1205
        %v5908 = vunpack.c.l.b16 %v1206
        %v5909 = vunpack.c.h.b16 %v1206
        %v5910 = vunpack.c.l.b16 %v1207
        %v5911 = vunpack.c.h.b16 %v1207
        %v5912 = vunpack.c.l.b16 %v1208
        %v5913 = vunpack.c.h.b16 %v1208
        %v5914 = vunpack.c.l.b16 %v1209
        %v5915 = vunpack.c.h.b16 %v1209
        %v5916 = vunpack.c.l.b16 %v1210
        %v5917 = vunpack.c.h.b16 %v1210
        %v5918 = vunpack.c.l.b16 %v1211
        %v5919 = vunpack.c.h.b16 %v1211
        %v5920 = vunpack.c.l.b16 %v1212
        %v5921 = vunpack.c.h.b16 %v1212
        %v5922 = vunpack.c.l.b16 %v1213
        %v5923 = vunpack.c.h.b16 %v1213
        %v5924 = vunpack.c.l.b16 %v1214
        %v5925 = vunpack.c.h.b16 %v1214
        %v5926 = vunpack.c.l.b16 %v1215
        %v5927 = vunpack.c.h.b16 %v1215
        %v5928 = vunpack.c.l.b16 %v1216
        %v5929 = vunpack.c.h.b16 %v1216
        %v5930 = vunpack.c.l.b16 %v1217
        %v5931 = vunpack.c.h.b16 %v1217
        %v5932 = vunpack.c.l.b16 %v1218
        %v5933 = vunpack.c.h.b16 %v1218
        %v5934 = vunpack.c.l.b16 %v1219
        %v5935 = vunpack.c.h.b16 %v1219
        %v5936 = vunpack.c.l.b16 %v1220
        %v5937 = vunpack.c.h.b16 %v1220
        %v5938 = vunpack.c.l.b16 %v1221
        %v5939 = vunpack.c.h.b16 %v1221
        %v5940 = vunpack.c.l.b16 %v1222
        %v5941 = vunpack.c.h.b16 %v1222
        %v5942 = vunpack.c.l.b16 %v1223
        %v5943 = vunpack.c.h.b16 %v1223
        %v5944 = vunpack.c.l.b16 %v1224
        %v5945 = vunpack.c.h.b16 %v1224
        %v5946 = vunpack.c.l.b16 %v1225
        %v5947 = vunpack.c.h.b16 %v1225
        %v5948 = vunpack.c.l.b16 %v1226
        %v5949 = vunpack.c.h.b16 %v1226
        %v5950 = vunpack.c.l.b16 %v1227
        %v5951 = vunpack.c.h.b16 %v1227
        %v5952 = vunpack.c.l.b16 %v1228
        %v5953 = vunpack.c.h.b16 %v1228
        %v5954 = vunpack.c.l.b16 %v1229
        %v5955 = vunpack.c.h.b16 %v1229
        %v5956 = vunpack.c.l.b16 %v1230
        %v5957 = vunpack.c.h.b16 %v1230
        %v5958 = vunpack.c.l.b16 %v1231
        %v5959 = vunpack.c.h.b16 %v1231
        %v5960 = vunpack.c.l.b16 %v1232
        %v5961 = vunpack.c.h.b16 %v1232
        %v5962 = vunpack.c.l.b16 %v1233
        %v5963 = vunpack.c.h.b16 %v1233
        %v5964 = vunpack.c.l.b16 %v1234
        %v5965 = vunpack.c.h.b16 %v1234
        %v5966 = vunpack.c.l.b16 %v1235
        %v5967 = vunpack.c.h.b16 %v1235
        %v5968 = vunpack.c.l.b16 %v1236
        %v5969 = vunpack.c.h.b16 %v1236
        %v5970 = vunpack.c.l.b16 %v1237
        %v5971 = vunpack.c.h.b16 %v1237
        %v5972 = vunpack.c.l.b16 %v1238
        %v5973 = vunpack.c.h.b16 %v1238
        %v5974 = vunpack.c.l.b16 %v1239
        %v5975 = vunpack.c.h.b16 %v1239
        %v5976 = vunpack.c.l.b16 %v1240
        %v5977 = vunpack.c.h.b16 %v1240
        %v5978 = vunpack.c.l.b16 %v1241
        %v5979 = vunpack.c.h.b16 %v1241
        %v5980 = vunpack.c.l.b16 %v1242
        %v5981 = vunpack.c.h.b16 %v1242
        %v5982 = vunpack.c.l.b16 %v1243
        %v5983 = vunpack.c.h.b16 %v1243
        %v5984 = vunpack.c.l.b16 %v1244
        %v5985 = vunpack.c.h.b16 %v1244
        %v5986 = vunpack.c.l.b16 %v1245
        %v5987 = vunpack.c.h.b16 %v1245
        %v5988 = vunpack.c.l.b16 %v1246
        %v5989 = vunpack.c.h.b16 %v1246
        %v5990 = vunpack.c.l.b16 %v1247
        %v5991 = vunpack.c.h.b16 %v1247
        %v5992 = vunpack.c.l.b16 %v1248
        %v5993 = vunpack.c.h.b16 %v1248
        %v5994 = vunpack.c.l.b16 %v1249
        %v5995 = vunpack.c.h.b16 %v1249
        %v5996 = vunpack.c.l.b16 %v1250
        %v5997 = vunpack.c.h.b16 %v1250
        %v5998 = vunpack.c.l.b16 %v1251
        %v5999 = vunpack.c.h.b16 %v1251
        %v6000 = vunpack.c.l.b16 %v1252
        %v6001 = vunpack.c.h.b16 %v1252
        %v6002 = vunpack.c.l.b16 %v1253
        %v6003 = vunpack.c.h.b16 %v1253
        %v6004 = vunpack.c.l.b16 %v1254
        %v6005 = vunpack.c.h.b16 %v1254
        %v6006 = vunpack.c.l.b16 %v1255
        %v6007 = vunpack.c.h.b16 %v1255
        %v6008 = vunpack.c.l.b16 %v1256
        %v6009 = vunpack.c.h.b16 %v1256
        %v6010 = vunpack.c.l.b16 %v1257
        %v6011 = vunpack.c.h.b16 %v1257
        %v6012 = vunpack.c.l.b16 %v1258
        %v6013 = vunpack.c.h.b16 %v1258
        %v6014 = vunpack.c.l.b16 %v1259
        %v6015 = vunpack.c.h.b16 %v1259
        %v6016 = vunpack.c.l.b16 %v1260
        %v6017 = vunpack.c.h.b16 %v1260
        %v6018 = vunpack.c.l.b16 %v1261
        %v6019 = vunpack.c.h.b16 %v1261
        %v6020 = vunpack.c.l.b16 %v1262
        %v6021 = vunpack.c.h.b16 %v1262
        %v6022 = vunpack.c.l.b16 %v1263
        %v6023 = vunpack.c.h.b16 %v1263
        %v6024 = vunpack.c.l.b16 %v1264
        %v6025 = vunpack.c.h.b16 %v1264
        %v6026 = vunpack.c.l.b16 %v1265
        %v6027 = vunpack.c.h.b16 %v1265
        %v6028 = vunpack.c.l.b16 %v1266
        %v6029 = vunpack.c.h.b16 %v1266
        %v6030 = vunpack.c.l.b16 %v1267
        %v6031 = vunpack.c.h.b16 %v1267
        %v6032 = vunpack.c.l.b16 %v1268
        %v6033 = vunpack.c.h.b16 %v1268
        %v6034 = vunpack.c.l.b16 %v1269
        %v6035 = vunpack.c.h.b16 %v1269
        %v6036 = vunpack.c.l.b16 %v1270
        %v6037 = vunpack.c.h.b16 %v1270
        %v6038 = vunpack.c.l.b16 %v1271
        %v6039 = vunpack.c.h.b16 %v1271
        %v6040 = vunpack.c.l.b16 %v1272
        %v6041 = vunpack.c.h.b16 %v1272
        %v6042 = vunpack.c.l.b16 %v1273
        %v6043 = vunpack.c.h.b16 %v1273
        %v6044 = vunpack.c.l.b16 %v1274
        %v6045 = vunpack.c.h.b16 %v1274
        %v6046 = vunpack.c.l.b16 %v1275
        %v6047 = vunpack.c.h.b16 %v1275
        %v6048 = vunpack.c.l.b16 %v1276
        %v6049 = vunpack.c.h.b16 %v1276
        %v6050 = vunpack.c.l.b16 %v1277
        %v6051 = vunpack.c.h.b16 %v1277
        %v6052 = vunpack.c.l.b16 %v1278
        %v6053 = vunpack.c.h.b16 %v1278
        %v6054 = vunpack.c.l.b16 %v1279
        %v6055 = vunpack.c.h.b16 %v1279
        %v6056 = vunpack.c.l.b16 %v1280
        %v6057 = vunpack.c.h.b16 %v1280
        %v6058 = vunpack.c.l.b16 %v1281
        %v6059 = vunpack.c.h.b16 %v1281
        %v6060 = vunpack.c.l.b16 %v1282
        %v6061 = vunpack.c.h.b16 %v1282
        %v6062 = vunpack.c.l.b16 %v1283
        %v6063 = vunpack.c.h.b16 %v1283
        %v6064 = vunpack.c.l.b16 %v1284
        %v6065 = vunpack.c.h.b16 %v1284
        %v6066 = vunpack.c.l.b16 %v1285
        %v6067 = vunpack.c.h.b16 %v1285
        %v6068 = vunpack.c.l.b16 %v1286
        %v6069 = vunpack.c.h.b16 %v1286
        %v6070 = vunpack.c.l.b16 %v1287
        %v6071 = vunpack.c.h.b16 %v1287
        %v6072 = vunpack.c.l.b16 %v1288
        %v6073 = vunpack.c.h.b16 %v1288
        %v6074 = vunpack.c.l.b16 %v1289
        %v6075 = vunpack.c.h.b16 %v1289
        %v6076 = vunpack.c.l.b16 %v1290
        %v6077 = vunpack.c.h.b16 %v1290
        %v6078 = vunpack.c.l.b16 %v1291
        %v6079 = vunpack.c.h.b16 %v1291
        %v6080 = vunpack.c.l.b16 %v1292
        %v6081 = vunpack.c.h.b16 %v1292
        %v6082 = vunpack.c.l.b16 %v1293
        %v6083 = vunpack.c.h.b16 %v1293
        %v6084 = vunpack.c.l.b16 %v1294
        %v6085 = vunpack.c.h.b16 %v1294
        %v6086 = vunpack.c.l.b16 %v1295
        %v6087 = vunpack.c.h.b16 %v1295
        %v6088 = vunpack.c.l.b16 %v1296
        %v6089 = vunpack.c.h.b16 %v1296
        %v6090 = vunpack.c.l.b16 %v1297
        %v6091 = vunpack.c.h.b16 %v1297
        %v6092 = vunpack.c.l.b16 %v1298
        %v6093 = vunpack.c.h.b16 %v1298
        %v6094 = vunpack.c.l.b16 %v1299
        %v6095 = vunpack.c.h.b16 %v1299
        %v6096 = vunpack.c.l.b16 %v1300
        %v6097 = vunpack.c.h.b16 %v1300
        %v6098 = vunpack.c.l.b16 %v1301
        %v6099 = vunpack.c.h.b16 %v1301
        %v6100 = vunpack.c.l.b16 %v1302
        %v6101 = vunpack.c.h.b16 %v1302
        %v6102 = vunpack.c.l.b16 %v1303
        %v6103 = vunpack.c.h.b16 %v1303
        %v6104 = vunpack.c.l.b16 %v1304
        %v6105 = vunpack.c.h.b16 %v1304
        %v6106 = vunpack.c.l.b16 %v1305
        %v6107 = vunpack.c.h.b16 %v1305
        %v6108 = vunpack.c.l.b16 %v1306
        %v6109 = vunpack.c.h.b16 %v1306
        %v6110 = vunpack.c.l.b16 %v1307
        %v6111 = vunpack.c.h.b16 %v1307
        %v6112 = vunpack.c.l.b16 %v1308
        %v6113 = vunpack.c.h.b16 %v1308
        %v6114 = vunpack.c.l.b16 %v1309
        %v6115 = vunpack.c.h.b16 %v1309
        %v6116 = vunpack.c.l.b16 %v1310
        %v6117 = vunpack.c.h.b16 %v1310
        %v6118 = vunpack.c.l.b16 %v1311
        %v6119 = vunpack.c.h.b16 %v1311
        %v6120 = vunpack.c.l.b16 %v1312
        %v6121 = vunpack.c.h.b16 %v1312
        %v6122 = vunpack.c.l.b16 %v1313
        %v6123 = vunpack.c.h.b16 %v1313
        %v6124 = vunpack.c.l.b16 %v1314
        %v6125 = vunpack.c.h.b16 %v1314
        %v6126 = vunpack.c.l.b16 %v1315
        %v6127 = vunpack.c.h.b16 %v1315
        %v6128 = vunpack.c.l.b16 %v1316
        %v6129 = vunpack.c.h.b16 %v1316
        %v6130 = vunpack.c.l.b16 %v1317
        %v6131 = vunpack.c.h.b16 %v1317
        %v6132 = vunpack.c.l.b16 %v1318
        %v6133 = vunpack.c.h.b16 %v1318
        %v6134 = vunpack.c.l.b16 %v1319
        %v6135 = vunpack.c.h.b16 %v1319
        %v6136 = vunpack.c.l.b16 %v1320
        %v6137 = vunpack.c.h.b16 %v1320
        %v6138 = vunpack.c.l.b16 %v1321
        %v6139 = vunpack.c.h.b16 %v1321
        %v6140 = vunpack.c.l.b16 %v1322
        %v6141 = vunpack.c.h.b16 %v1322
        %v6142 = vunpack.c.l.b16 %v1323
        %v6143 = vunpack.c.h.b16 %v1323
        %v6144 = vunpack.c.l.b16 %v1324
        %v6145 = vunpack.c.h.b16 %v1324
        %v6146 = vunpack.c.l.b16 %v1325
        %v6147 = vunpack.c.h.b16 %v1325
        %v6148 = vunpack.c.l.b16 %v1326
        %v6149 = vunpack.c.h.b16 %v1326
        %v6150 = vunpack.c.l.b16 %v1327
        %v6151 = vunpack.c.h.b16 %v1327
        %v6152 = vunpack.c.l.b16 %v1328
        %v6153 = vunpack.c.h.b16 %v1328
        %v6154 = vunpack.c.l.b16 %v1329
        %v6155 = vunpack.c.h.b16 %v1329
        %v6156 = vunpack.c.l.b16 %v1330
        %v6157 = vunpack.c.h.b16 %v1330
        %v6158 = vunpack.c.l.b16 %v1331
        %v6159 = vunpack.c.h.b16 %v1331
        %v6160 = vunpack.c.l.b16 %v1332
        %v6161 = vunpack.c.h.b16 %v1332
        %v6162 = vunpack.c.l.b16 %v1333
        %v6163 = vunpack.c.h.b16 %v1333
        %v6164 = vunpack.c.l.b16 %v1334
        %v6165 = vunpack.c.h.b16 %v1334
        %v6166 = vunpack.c.l.b16 %v1335
        %v6167 = vunpack.c.h.b16 %v1335
        %v6168 = vunpack.c.l.b16 %v1336
        %v6169 = vunpack.c.h.b16 %v1336
        %v6170 = vunpack.c.l.b16 %v1337
        %v6171 = vunpack.c.h.b16 %v1337
        %v6172 = vunpack.c.l.b16 %v1338
        %v6173 = vunpack.c.h.b16 %v1338
        %v6174 = vunpack.c.l.b16 %v1339
        %v6175 = vunpack.c.h.b16 %v1339
        %v6176 = vunpack.c.l.b16 %v1340
        %v6177 = vunpack.c.h.b16 %v1340
        %v6178 = vunpack.c.l.b16 %v1341
        %v6179 = vunpack.c.h.b16 %v1341
        %v6180 = vunpack.c.l.b16 %v1342
        %v6181 = vunpack.c.h.b16 %v1342
        %v6182 = vunpack.c.l.b16 %v1343
        %v6183 = vunpack.c.h.b16 %v1343
        %v6184 = vunpack.c.l.b16 %v1344
        %v6185 = vunpack.c.h.b16 %v1344
        %v6186 = vunpack.c.l.b16 %v1345
        %v6187 = vunpack.c.h.b16 %v1345
        %v6188 = vunpack.c.l.b16 %v1346
        %v6189 = vunpack.c.h.b16 %v1346
        %v6190 = vunpack.c.l.b16 %v1347
        %v6191 = vunpack.c.h.b16 %v1347
        %v6192 = vunpack.c.l.b16 %v1348
        %v6193 = vunpack.c.h.b16 %v1348
        %v6194 = vunpack.c.l.b16 %v1349
        %v6195 = vunpack.c.h.b16 %v1349
        %v6196 = vunpack.c.l.b16 %v1350
        %v6197 = vunpack.c.h.b16 %v1350
        %v6198 = vunpack.c.l.b16 %v1351
        %v6199 = vunpack.c.h.b16 %v1351
        %v6200 = vunpack.c.l.b16 %v1352
        %v6201 = vunpack.c.h.b16 %v1352
        %v6202 = vunpack.c.l.b16 %v1353
        %v6203 = vunpack.c.h.b16 %v1353
        %v6204 = vunpack.c.l.b16 %v1354
        %v6205 = vunpack.c.h.b16 %v1354
        %v6206 = vunpack.c.l.b16 %v1355
        %v6207 = vunpack.c.h.b16 %v1355
        %v6208 = vunpack.c.l.b16 %v1356
        %v6209 = vunpack.c.h.b16 %v1356
        %v6210 = vunpack.c.l.b16 %v1357
        %v6211 = vunpack.c.h.b16 %v1357
        %v6212 = vunpack.c.l.b16 %v1358
        %v6213 = vunpack.c.h.b16 %v1358
        %v6214 = vunpack.c.l.b16 %v1359
        %v6215 = vunpack.c.h.b16 %v1359
        %v6216 = vunpack.c.l.b16 %v1360
        %v6217 = vunpack.c.h.b16 %v1360
        %v6218 = vunpack.c.l.b16 %v1361
        %v6219 = vunpack.c.h.b16 %v1361
        %v6220 = vunpack.c.l.b16 %v1362
        %v6221 = vunpack.c.h.b16 %v1362
        %v6222 = vunpack.c.l.b16 %v1363
        %v6223 = vunpack.c.h.b16 %v1363
        %v6224 = vunpack.c.l.b16 %v1364
        %v6225 = vunpack.c.h.b16 %v1364
        %v6226 = vunpack.c.l.b16 %v1365
        %v6227 = vunpack.c.h.b16 %v1365
        %v6228 = vunpack.c.l.b16 %v1366
        %v6229 = vunpack.c.h.b16 %v1366
        %v6230 = vunpack.c.l.b16 %v1367
        %v6231 = vunpack.c.h.b16 %v1367
        %v6232 = vunpack.c.l.b16 %v1368
        %v6233 = vunpack.c.h.b16 %v1368
        %v6234 = vunpack.c.l.b16 %v1369
        %v6235 = vunpack.c.h.b16 %v1369
        %v6236 = vunpack.c.l.b16 %v1370
        %v6237 = vunpack.c.h.b16 %v1370
        %v6238 = vunpack.c.l.b16 %v1371
        %v6239 = vunpack.c.h.b16 %v1371
        %v6240 = vunpack.c.l.b16 %v1372
        %v6241 = vunpack.c.h.b16 %v1372
        %v6242 = vunpack.c.l.b16 %v1373
        %v6243 = vunpack.c.h.b16 %v1373
        %v6244 = vunpack.c.l.b16 %v1374
        %v6245 = vunpack.c.h.b16 %v1374
        %v6246 = vunpack.c.l.b16 %v1375
        %v6247 = vunpack.c.h.b16 %v1375
        %v6248 = vunpack.c.l.b16 %v1376
        %v6249 = vunpack.c.h.b16 %v1376
        %v6250 = vunpack.c.l.b16 %v1377
        %v6251 = vunpack.c.h.b16 %v1377
        %v6252 = vunpack.c.l.b16 %v1378
        %v6253 = vunpack.c.h.b16 %v1378
        %v6254 = vunpack.c.l.b16 %v1379
        %v6255 = vunpack.c.h.b16 %v1379
        %v6256 = vunpack.c.l.b16 %v1380
        %v6257 = vunpack.c.h.b16 %v1380
        %v6258 = vunpack.c.l.b16 %v1381
        %v6259 = vunpack.c.h.b16 %v1381
        %v6260 = vunpack.c.l.b16 %v1382
        %v6261 = vunpack.c.h.b16 %v1382
        %v6262 = vunpack.c.l.b16 %v1383
        %v6263 = vunpack.c.h.b16 %v1383
        %v6264 = vunpack.c.l.b16 %v1384
        %v6265 = vunpack.c.h.b16 %v1384
        %v6266 = vunpack.c.l.b16 %v1385
        %v6267 = vunpack.c.h.b16 %v1385
        %v6268 = vunpack.c.l.b16 %v1386
        %v6269 = vunpack.c.h.b16 %v1386
        %v6270 = vunpack.c.l.b16 %v1387
        %v6271 = vunpack.c.h.b16 %v1387
        %v6272 = vunpack.c.l.b16 %v1388
        %v6273 = vunpack.c.h.b16 %v1388
        %v6274 = vunpack.c.l.b16 %v1389
        %v6275 = vunpack.c.h.b16 %v1389
        %v6276 = vunpack.c.l.b16 %v1390
        %v6277 = vunpack.c.h.b16 %v1390
        %v6278 = vunpack.c.l.b16 %v1391
        %v6279 = vunpack.c.h.b16 %v1391
        %v6280 = vunpack.c.l.b16 %v1392
        %v6281 = vunpack.c.h.b16 %v1392
        %v6282 = vunpack.c.l.b16 %v1393
        %v6283 = vunpack.c.h.b16 %v1393
        %v6284 = vunpack.c.l.b16 %v1394
        %v6285 = vunpack.c.h.b16 %v1394
        %v6286 = vunpack.c.l.b16 %v1395
        %v6287 = vunpack.c.h.b16 %v1395
        %v6288 = vunpack.c.l.b16 %v1396
        %v6289 = vunpack.c.h.b16 %v1396
        %v6290 = vunpack.c.l.b16 %v1397
        %v6291 = vunpack.c.h.b16 %v1397
        %v6292 = vunpack.c.l.b16 %v1398
        %v6293 = vunpack.c.h.b16 %v1398
        %v6294 = vunpack.c.l.b16 %v1399
        %v6295 = vunpack.c.h.b16 %v1399
        %v6296 = vunpack.c.l.b16 %v1400
        %v6297 = vunpack.c.h.b16 %v1400
        %v6298 = vunpack.c.l.b16 %v1401
        %v6299 = vunpack.c.h.b16 %v1401
        %v6300 = vunpack.c.l.b16 %v1402
        %v6301 = vunpack.c.h.b16 %v1402
        %v6302 = vunpack.c.l.b16 %v1403
        %v6303 = vunpack.c.h.b16 %v1403
        %v6304 = vunpack.c.l.b16 %v1404
        %v6305 = vunpack.c.h.b16 %v1404
        %v6306 = vunpack.c.l.b16 %v1405
        %v6307 = vunpack.c.h.b16 %v1405
        %v6308 = vunpack.c.l.b16 %v1406
        %v6309 = vunpack.c.h.b16 %v1406
        %v6310 = vunpack.c.l.b16 %v1407
        %v6311 = vunpack.c.h.b16 %v1407
        %v6312 = vunpack.c.l.b16 %v1408
        %v6313 = vunpack.c.h.b16 %v1408
        %v6314 = vunpack.c.l.b16 %v1409
        %v6315 = vunpack.c.h.b16 %v1409
        %v6316 = vunpack.c.l.b16 %v1410
        %v6317 = vunpack.c.h.b16 %v1410
        %v6318 = vunpack.c.l.b16 %v1411
        %v6319 = vunpack.c.h.b16 %v1411
        %v6320 = vunpack.c.l.b16 %v1412
        %v6321 = vunpack.c.h.b16 %v1412
        %v6322 = vunpack.c.l.b16 %v1413
        %v6323 = vunpack.c.h.b16 %v1413
        %v6324 = vunpack.c.l.b16 %v1414
        %v6325 = vunpack.c.h.b16 %v1414
        %v6326 = vunpack.c.l.b16 %v1415
        %v6327 = vunpack.c.h.b16 %v1415
        %v6328 = vunpack.c.l.b16 %v1416
        %v6329 = vunpack.c.h.b16 %v1416
        %v6330 = vunpack.c.l.b16 %v1417
        %v6331 = vunpack.c.h.b16 %v1417
        %v6332 = vunpack.c.l.b16 %v1418
        %v6333 = vunpack.c.h.b16 %v1418
        %v6334 = vunpack.c.l.b16 %v1419
        %v6335 = vunpack.c.h.b16 %v1419
        %v6336 = vunpack.c.l.b16 %v1420
        %v6337 = vunpack.c.h.b16 %v1420
        %v6338 = vunpack.c.l.b16 %v1421
        %v6339 = vunpack.c.h.b16 %v1421
        %v6340 = vunpack.c.l.b16 %v1422
        %v6341 = vunpack.c.h.b16 %v1422
        %v6342 = vunpack.c.l.b16 %v1423
        %v6343 = vunpack.c.h.b16 %v1423
        %v6344 = vunpack.c.l.b16 %v1424
        %v6345 = vunpack.c.h.b16 %v1424
        %v6346 = vunpack.c.l.b16 %v1425
        %v6347 = vunpack.c.h.b16 %v1425
        %v6348 = vunpack.c.l.b16 %v1426
        %v6349 = vunpack.c.h.b16 %v1426
        %v6350 = vunpack.c.l.b16 %v1427
        %v6351 = vunpack.c.h.b16 %v1427
        %v6352 = vunpack.c.l.b16 %v1428
        %v6353 = vunpack.c.h.b16 %v1428
        %v6354 = vunpack.c.l.b16 %v1429
        %v6355 = vunpack.c.h.b16 %v1429
        %v6356 = vunpack.c.l.b16 %v1430
        %v6357 = vunpack.c.h.b16 %v1430
        %v6358 = vunpack.c.l.b16 %v1431
        %v6359 = vunpack.c.h.b16 %v1431
        %v6360 = vunpack.c.l.b16 %v1432
        %v6361 = vunpack.c.h.b16 %v1432
        %v6362 = vunpack.c.l.b16 %v1433
        %v6363 = vunpack.c.h.b16 %v1433
        %v6364 = vunpack.c.l.b16 %v1434
        %v6365 = vunpack.c.h.b16 %v1434
        %v6366 = vunpack.c.l.b16 %v1435
        %v6367 = vunpack.c.h.b16 %v1435
        %v6368 = vunpack.c.l.b16 %v1436
        %v6369 = vunpack.c.h.b16 %v1436
        %v6370 = vunpack.c.l.b16 %v1437
        %v6371 = vunpack.c.h.b16 %v1437
        %v6372 = vunpack.c.l.b16 %v1438
        %v6373 = vunpack.c.h.b16 %v1438
        %v6374 = vunpack.c.l.b16 %v1439
        %v6375 = vunpack.c.h.b16 %v1439
        %v6376 = vunpack.c.l.b16 %v1440
        %v6377 = vunpack.c.h.b16 %v1440
        %v6378 = vunpack.c.l.b16 %v1441
        %v6379 = vunpack.c.h.b16 %v1441
        %v6380 = vunpack.c.l.b16 %v1442
        %v6381 = vunpack.c.h.b16 %v1442
        %v6382 = vunpack.c.l.b16 %v1443
        %v6383 = vunpack.c.h.b16 %v1443
        %v6384 = vunpack.c.l.b16 %v1444
        %v6385 = vunpack.c.h.b16 %v1444
        %v6386 = vunpack.c.l.b16 %v1445
        %v6387 = vunpack.c.h.b16 %v1445
        %v6388 = vunpack.c.l.b16 %v1446
        %v6389 = vunpack.c.h.b16 %v1446
        %v6390 = vunpack.c.l.b16 %v1447
        %v6391 = vunpack.c.h.b16 %v1447
        %v6392 = vunpack.c.l.b16 %v1448
        %v6393 = vunpack.c.h.b16 %v1448
        %v6394 = vunpack.c.l.b16 %v1449
        %v6395 = vunpack.c.h.b16 %v1449
        %v6396 = vunpack.c.l.b16 %v1450
        %v6397 = vunpack.c.h.b16 %v1450
        %v6398 = vunpack.c.l.b16 %v1451
        %v6399 = vunpack.c.h.b16 %v1451
        %v6400 = vunpack.c.l.b16 %v1452
        %v6401 = vunpack.c.h.b16 %v1452
        %v6402 = vunpack.c.l.b16 %v1453
        %v6403 = vunpack.c.h.b16 %v1453
        %v6404 = vunpack.c.l.b16 %v1454
        %v6405 = vunpack.c.h.b16 %v1454
        %v6406 = vunpack.c.l.b16 %v1455
        %v6407 = vunpack.c.h.b16 %v1455
        %v6408 = vunpack.c.l.b16 %v1456
        %v6409 = vunpack.c.h.b16 %v1456
        %v6410 = vunpack.c.l.b16 %v1457
        %v6411 = vunpack.c.h.b16 %v1457
        %v6412 = vunpack.c.l.b16 %v1458
        %v6413 = vunpack.c.h.b16 %v1458
        %v6414 = vunpack.c.l.b16 %v1459
        %v6415 = vunpack.c.h.b16 %v1459
        %v6416 = vunpack.c.l.b16 %v1460
        %v6417 = vunpack.c.h.b16 %v1460
        %v6418 = vunpack.c.l.b16 %v1461
        %v6419 = vunpack.c.h.b16 %v1461
        %v6420 = vunpack.c.l.b16 %v1462
        %v6421 = vunpack.c.h.b16 %v1462
        %v6422 = vunpack.c.l.b16 %v1463
        %v6423 = vunpack.c.h.b16 %v1463
        %v6424 = vunpack.c.l.b16 %v1464
        %v6425 = vunpack.c.h.b16 %v1464
        %v6426 = vunpack.c.l.b16 %v1465
        %v6427 = vunpack.c.h.b16 %v1465
        %v6428 = vunpack.c.l.b16 %v1466
        %v6429 = vunpack.c.h.b16 %v1466
        %v6430 = vunpack.c.l.b16 %v1467
        %v6431 = vunpack.c.h.b16 %v1467
        %v6432 = vunpack.c.l.b16 %v1468
        %v6433 = vunpack.c.h.b16 %v1468
        %v6434 = vunpack.c.l.b16 %v1469
        %v6435 = vunpack.c.h.b16 %v1469
        %v6436 = vunpack.c.l.b16 %v1470
        %v6437 = vunpack.c.h.b16 %v1470
        %v6438 = vunpack.c.l.b16 %v1471
        %v6439 = vunpack.c.h.b16 %v1471
        %v6440 = vunpack.c.l.b16 %v1472
        %v6441 = vunpack.c.h.b16 %v1472
        %v6442 = vunpack.c.l.b16 %v1473
        %v6443 = vunpack.c.h.b16 %v1473
        %v6444 = vunpack.c.l.b16 %v1474
        %v6445 = vunpack.c.h.b16 %v1474
        %v6446 = vunpack.c.l.b16 %v1475
        %v6447 = vunpack.c.h.b16 %v1475
        %v6448 = vunpack.c.l.b16 %v1476
        %v6449 = vunpack.c.h.b16 %v1476
        %v6450 = vunpack.c.l.b16 %v1477
        %v6451 = vunpack.c.h.b16 %v1477
        %v6452 = vunpack.c.l.b16 %v1478
        %v6453 = vunpack.c.h.b16 %v1478
        %v6454 = vunpack.c.l.b16 %v1479
        %v6455 = vunpack.c.h.b16 %v1479
        %v6456 = vunpack.c.l.b16 %v1480
        %v6457 = vunpack.c.h.b16 %v1480
        %v6458 = vunpack.c.l.b16 %v1481
        %v6459 = vunpack.c.h.b16 %v1481
        %v6460 = vunpack.c.l.b16 %v1482
        %v6461 = vunpack.c.h.b16 %v1482
        %v6462 = vunpack.c.l.b16 %v1483
        %v6463 = vunpack.c.h.b16 %v1483
        %v6464 = vunpack.c.l.b16 %v1484
        %v6465 = vunpack.c.h.b16 %v1484
        %v6466 = vunpack.c.l.b16 %v1485
        %v6467 = vunpack.c.h.b16 %v1485
        %v6468 = vunpack.c.l.b16 %v1486
        %v6469 = vunpack.c.h.b16 %v1486
        %v6470 = vunpack.c.l.b16 %v1487
        %v6471 = vunpack.c.h.b16 %v1487
        %v6472 = vunpack.c.l.b16 %v1488
        %v6473 = vunpack.c.h.b16 %v1488
        %v6474 = vunpack.c.l.b16 %v1489
        %v6475 = vunpack.c.h.b16 %v1489
        %v6476 = vunpack.c.l.b16 %v1490
        %v6477 = vunpack.c.h.b16 %v1490
        %v6478 = vunpack.c.l.b16 %v1491
        %v6479 = vunpack.c.h.b16 %v1491
        %v6480 = vunpack.c.l.b16 %v1492
        %v6481 = vunpack.c.h.b16 %v1492
        %v6482 = vunpack.c.l.b16 %v1493
        %v6483 = vunpack.c.h.b16 %v1493
        %v6484 = vunpack.c.l.b16 %v1494
        %v6485 = vunpack.c.h.b16 %v1494
        %v6486 = vunpack.c.l.b16 %v1495
        %v6487 = vunpack.c.h.b16 %v1495
        %v6488 = vunpack.c.l.b16 %v1496
        %v6489 = vunpack.c.h.b16 %v1496
        %v6490 = vunpack.c.l.b16 %v1497
        %v6491 = vunpack.c.h.b16 %v1497
        %v6492 = vunpack.c.l.b16 %v1498
        %v6493 = vunpack.c.h.b16 %v1498
        %v6494 = vunpack.c.l.b16 %v1499
        %v6495 = vunpack.c.h.b16 %v1499
        %v6496 = vunpack.c.l.b16 %v1500
        %v6497 = vunpack.c.h.b16 %v1500
        %v6498 = vunpack.c.l.b16 %v1501
        %v6499 = vunpack.c.h.b16 %v1501
        %v6500 = vunpack.c.l.b16 %v1502
        %v6501 = vunpack.c.h.b16 %v1502
        %v6502 = vunpack.c.l.b16 %v1503
        %v6503 = vunpack.c.h.b16 %v1503
        %v6504 = vunpack.c.l.b16 %v1504
        %v6505 = vunpack.c.h.b16 %v1504
        %v6506 = vunpack.c.l.b16 %v1505
        %v6507 = vunpack.c.h.b16 %v1505
        %v6508 = vunpack.c.l.b16 %v1506
        %v6509 = vunpack.c.h.b16 %v1506
        %v6510 = vunpack.c.l.b16 %v1507
        %v6511 = vunpack.c.h.b16 %v1507
        %v6512 = vunpack.c.l.b16 %v1508
        %v6513 = vunpack.c.h.b16 %v1508
        %v6514 = vunpack.c.l.b16 %v1509
        %v6515 = vunpack.c.h.b16 %v1509
        %v6516 = vunpack.c.l.b16 %v1510
        %v6517 = vunpack.c.h.b16 %v1510
        %v6518 = vunpack.c.l.b16 %v1511
        %v6519 = vunpack.c.h.b16 %v1511
        %v6520 = vunpack.c.l.b16 %v1512
        %v6521 = vunpack.c.h.b16 %v1512
        %v6522 = vunpack.c.l.b16 %v1513
        %v6523 = vunpack.c.h.b16 %v1513
        %v6524 = vunpack.c.l.b16 %v1514
        %v6525 = vunpack.c.h.b16 %v1514
        %v6526 = vunpack.c.l.b16 %v1515
        %v6527 = vunpack.c.h.b16 %v1515
        %v6528 = vunpack.c.l.b16 %v1516
        %v6529 = vunpack.c.h.b16 %v1516
        %v6530 = vunpack.c.l.b16 %v1517
        %v6531 = vunpack.c.h.b16 %v1517
        %v6532 = vunpack.c.l.b16 %v1518
        %v6533 = vunpack.c.h.b16 %v1518
        %v6534 = vunpack.c.l.b16 %v1519
        %v6535 = vunpack.c.h.b16 %v1519
        %v6536 = vunpack.c.l.b16 %v1520
        %v6537 = vunpack.c.h.b16 %v1520
        %v6538 = vunpack.c.l.b16 %v1521
        %v6539 = vunpack.c.h.b16 %v1521
        %v6540 = vunpack.c.l.b16 %v1522
        %v6541 = vunpack.c.h.b16 %v1522
        %v6542 = vunpack.c.l.b16 %v1523
        %v6543 = vunpack.c.h.b16 %v1523
        %v6544 = vunpack.c.l.b16 %v1524
        %v6545 = vunpack.c.h.b16 %v1524
        %v6546 = vunpack.c.l.b16 %v1525
        %v6547 = vunpack.c.h.b16 %v1525
        %v6548 = vunpack.c.l.b16 %v1526
        %v6549 = vunpack.c.h.b16 %v1526
        %v6550 = vunpack.c.l.b16 %v1527
        %v6551 = vunpack.c.h.b16 %v1527
        %v6552 = vunpack.c.l.b16 %v1528
        %v6553 = vunpack.c.h.b16 %v1528
        %v6554 = vunpack.c.l.b16 %v1529
        %v6555 = vunpack.c.h.b16 %v1529
        %v6556 = vunpack.c.l.b16 %v1530
        %v6557 = vunpack.c.h.b16 %v1530
        %v6558 = vunpack.c.l.b16 %v1531
        %v6559 = vunpack.c.h.b16 %v1531
        %v6560 = vunpack.c.l.b16 %v1532
        %v6561 = vunpack.c.h.b16 %v1532
        %v6562 = vunpack.c.l.b16 %v1533
        %v6563 = vunpack.c.h.b16 %v1533
        %v6564 = vunpack.c.l.b16 %v1534
        %v6565 = vunpack.c.h.b16 %v1534
        %v6566 = vunpack.c.l.b16 %v1535
        %v6567 = vunpack.c.h.b16 %v1535
        %v6568 = vunpack.c.l.b16 %v1536
        %v6569 = vunpack.c.h.b16 %v1536
        %v6570 = vunpack.c.l.b16 %v1537
        %v6571 = vunpack.c.h.b16 %v1537
        %v6572 = vunpack.c.l.b16 %v1538
        %v6573 = vunpack.c.h.b16 %v1538
        %v6574 = vunpack.c.l.b16 %v1539
        %v6575 = vunpack.c.h.b16 %v1539
        %v6576 = vunpack.c.l.b16 %v1540
        %v6577 = vunpack.c.h.b16 %v1540
        %v6578 = vunpack.c.l.b16 %v1541
        %v6579 = vunpack.c.h.b16 %v1541
        %v6580 = vunpack.c.l.b16 %v1542
        %v6581 = vunpack.c.h.b16 %v1542
        %v6582 = vunpack.c.l.b16 %v1543
        %v6583 = vunpack.c.h.b16 %v1543
        %v6584 = vunpack.c.l.b16 %v1544
        %v6585 = vunpack.c.h.b16 %v1544
        %v6586 = vunpack.c.l.b16 %v1545
        %v6587 = vunpack.c.h.b16 %v1545
        %v6588 = vunpack.c.l.b16 %v1546
        %v6589 = vunpack.c.h.b16 %v1546
        %v6590 = vunpack.c.l.b16 %v1547
        %v6591 = vunpack.c.h.b16 %v1547
        %v6592 = vunpack.c.l.b16 %v1548
        %v6593 = vunpack.c.h.b16 %v1548
        %v6594 = vunpack.c.l.b16 %v1549
        %v6595 = vunpack.c.h.b16 %v1549
        %v6596 = vunpack.c.l.b16 %v1550
        %v6597 = vunpack.c.h.b16 %v1550
        %v6598 = vunpack.c.l.b16 %v1551
        %v6599 = vunpack.c.h.b16 %v1551
        %v6600 = vunpack.c.l.b16 %v1552
        %v6601 = vunpack.c.h.b16 %v1552
        %v6602 = vunpack.c.l.b16 %v1553
        %v6603 = vunpack.c.h.b16 %v1553
        %v6604 = vunpack.c.l.b16 %v1554
        %v6605 = vunpack.c.h.b16 %v1554
        %v6606 = vunpack.c.l.b16 %v1555
        %v6607 = vunpack.c.h.b16 %v1555
        %v6608 = vunpack.c.l.b16 %v1556
        %v6609 = vunpack.c.h.b16 %v1556
        %v6610 = vunpack.c.l.b16 %v1557
        %v6611 = vunpack.c.h.b16 %v1557
        %v6612 = vunpack.c.l.b16 %v1558
        %v6613 = vunpack.c.h.b16 %v1558
        %v6614 = vunpack.c.l.b16 %v1559
        %v6615 = vunpack.c.h.b16 %v1559
        %v6616 = vunpack.c.l.b16 %v1560
        %v6617 = vunpack.c.h.b16 %v1560
        %v6618 = vunpack.c.l.b16 %v1561
        %v6619 = vunpack.c.h.b16 %v1561
        %v6620 = vunpack.c.l.b16 %v1562
        %v6621 = vunpack.c.h.b16 %v1562
        %v6622 = vunpack.c.l.b16 %v1563
        %v6623 = vunpack.c.h.b16 %v1563
        %v6624 = vunpack.c.l.b16 %v1564
        %v6625 = vunpack.c.h.b16 %v1564
        %v6626 = vunpack.c.l.b16 %v1565
        %v6627 = vunpack.c.h.b16 %v1565
        %v6628 = vunpack.c.l.b16 %v1566
        %v6629 = vunpack.c.h.b16 %v1566
        %v6630 = vunpack.c.l.b16 %v1567
        %v6631 = vunpack.c.h.b16 %v1567
        %v6632 = vunpack.c.l.b16 %v1568
        %v6633 = vunpack.c.h.b16 %v1568
        %v6634 = vunpack.c.l.b16 %v1569
        %v6635 = vunpack.c.h.b16 %v1569
        %v6636 = vunpack.c.l.b16 %v1570
        %v6637 = vunpack.c.h.b16 %v1570
        %v6638 = vunpack.c.l.b16 %v1571
        %v6639 = vunpack.c.h.b16 %v1571
        %v6640 = vunpack.c.l.b16 %v1572
        %v6641 = vunpack.c.h.b16 %v1572
        %v6642 = vunpack.c.l.b16 %v1573
        %v6643 = vunpack.c.h.b16 %v1573
        %v6644 = vunpack.c.l.b16 %v1574
        %v6645 = vunpack.c.h.b16 %v1574
        %v6646 = vunpack.c.l.b16 %v1575
        %v6647 = vunpack.c.h.b16 %v1575
        %v6648 = vunpack.c.l.b16 %v1576
        %v6649 = vunpack.c.h.b16 %v1576
        %v6650 = vunpack.c.l.b16 %v1577
        %v6651 = vunpack.c.h.b16 %v1577
        %v6652 = vunpack.c.l.b16 %v1578
        %v6653 = vunpack.c.h.b16 %v1578
        %v6654 = vunpack.c.l.b16 %v1579
        %v6655 = vunpack.c.h.b16 %v1579
        %v6656 = vunpack.c.l.b16 %v1580
        %v6657 = vunpack.c.h.b16 %v1580
        %v6658 = vunpack.c.l.b16 %v1581
        %v6659 = vunpack.c.h.b16 %v1581
        %v6660 = vunpack.c.l.b16 %v1582
        %v6661 = vunpack.c.h.b16 %v1582
        %v6662 = vunpack.c.l.b16 %v1583
        %v6663 = vunpack.c.h.b16 %v1583
        %v6664 = vunpack.c.l.b16 %v1584
        %v6665 = vunpack.c.h.b16 %v1584
        %v6666 = vunpack.c.l.b16 %v1585
        %v6667 = vunpack.c.h.b16 %v1585
        %v6668 = vunpack.c.l.b16 %v1586
        %v6669 = vunpack.c.h.b16 %v1586
        %v6670 = vunpack.c.l.b16 %v1587
        %v6671 = vunpack.c.h.b16 %v1587
        %v6672 = vunpack.c.l.b16 %v1588
        %v6673 = vunpack.c.h.b16 %v1588
        %v6674 = vunpack.c.l.b16 %v1589
        %v6675 = vunpack.c.h.b16 %v1589
        %v6676 = vunpack.c.l.b16 %v1590
        %v6677 = vunpack.c.h.b16 %v1590
        %v6678 = vunpack.c.l.b16 %v1591
        %v6679 = vunpack.c.h.b16 %v1591
        %v6680 = vunpack.c.l.b16 %v1592
        %v6681 = vunpack.c.h.b16 %v1592
        %v6682 = vunpack.c.l.b16 %v1593
        %v6683 = vunpack.c.h.b16 %v1593
        %v6684 = vunpack.c.l.b16 %v1594
        %v6685 = vunpack.c.h.b16 %v1594
        %v6686 = vunpack.c.l.b16 %v1595
        %v6687 = vunpack.c.h.b16 %v1595
        %v6688 = vunpack.c.l.b16 %v1596
        %v6689 = vunpack.c.h.b16 %v1596
        %v6690 = vunpack.c.l.b16 %v1597
        %v6691 = vunpack.c.h.b16 %v1597
        %v6692 = vunpack.c.l.b16 %v1598
        %v6693 = vunpack.c.h.b16 %v1598
        %v6694 = vunpack.c.l.b16 %v1599
        %v6695 = vunpack.c.h.b16 %v1599
        %v6696 = vunpack.c.l.b16 %v1600
        %v6697 = vunpack.c.h.b16 %v1600
        %v6698 = vunpack.c.l.b16 %v1601
        %v6699 = vunpack.c.h.b16 %v1601
        %v6700 = vunpack.c.l.b16 %v1602
        %v6701 = vunpack.c.h.b16 %v1602
        %v6702 = vunpack.c.l.b16 %v1603
        %v6703 = vunpack.c.h.b16 %v1603
        %v6704 = vunpack.c.l.b16 %v1604
        %v6705 = vunpack.c.h.b16 %v1604
        %v6706 = vunpack.c.l.b16 %v1605
        %v6707 = vunpack.c.h.b16 %v1605
        %v6708 = vunpack.c.l.b16 %v1606
        %v6709 = vunpack.c.h.b16 %v1606
        %v6710 = vunpack.c.l.b16 %v1607
        %v6711 = vunpack.c.h.b16 %v1607
        %v6712 = vunpack.c.l.b16 %v1608
        %v6713 = vunpack.c.h.b16 %v1608
        %v6714 = vunpack.c.l.b16 %v1609
        %v6715 = vunpack.c.h.b16 %v1609
        %v6716 = vunpack.c.l.b16 %v1610
        %v6717 = vunpack.c.h.b16 %v1610
        %v6718 = vunpack.c.l.b16 %v1611
        %v6719 = vunpack.c.h.b16 %v1611
        %v6720 = vunpack.c.l.b16 %v1612
        %v6721 = vunpack.c.h.b16 %v1612
        %v6722 = vunpack.c.l.b16 %v1613
        %v6723 = vunpack.c.h.b16 %v1613
        %v6724 = vunpack.c.l.b16 %v1614
        %v6725 = vunpack.c.h.b16 %v1614
        %v6726 = vunpack.c.l.b16 %v1615
        %v6727 = vunpack.c.h.b16 %v1615
        %v6728 = vunpack.c.l.b16 %v1616
        %v6729 = vunpack.c.h.b16 %v1616
        %v6730 = vunpack.c.l.b16 %v1617
        %v6731 = vunpack.c.h.b16 %v1617
        %v6732 = vunpack.c.l.b16 %v1618
        %v6733 = vunpack.c.h.b16 %v1618
        %v6734 = vunpack.c.l.b16 %v1619
        %v6735 = vunpack.c.h.b16 %v1619
        %v6736 = vunpack.c.l.b16 %v1620
        %v6737 = vunpack.c.h.b16 %v1620
        %v6738 = vunpack.c.l.b16 %v1621
        %v6739 = vunpack.c.h.b16 %v1621
        %v6740 = vunpack.c.l.b16 %v1622
        %v6741 = vunpack.c.h.b16 %v1622
        %v6742 = vunpack.c.l.b16 %v1623
        %v6743 = vunpack.c.h.b16 %v1623
        %v6744 = vunpack.c.l.b16 %v1624
        %v6745 = vunpack.c.h.b16 %v1624
        %v6746 = vunpack.c.l.b16 %v1625
        %v6747 = vunpack.c.h.b16 %v1625
        %v6748 = vunpack.c.l.b16 %v1626
        %v6749 = vunpack.c.h.b16 %v1626
        %v6750 = vunpack.c.l.b16 %v1627
        %v6751 = vunpack.c.h.b16 %v1627
        %v6752 = vunpack.c.l.b16 %v1628
        %v6753 = vunpack.c.h.b16 %v1628
        %v6754 = vunpack.c.l.b16 %v1629
        %v6755 = vunpack.c.h.b16 %v1629
        %v6756 = vunpack.c.l.b16 %v1630
        %v6757 = vunpack.c.h.b16 %v1630
        %v6758 = vunpack.c.l.b16 %v1631
        %v6759 = vunpack.c.h.b16 %v1631
        %v6760 = vunpack.c.l.b16 %v1632
        %v6761 = vunpack.c.h.b16 %v1632
        %v6762 = vunpack.c.l.b16 %v1633
        %v6763 = vunpack.c.h.b16 %v1633
        %v6764 = vunpack.c.l.b16 %v1634
        %v6765 = vunpack.c.h.b16 %v1634
        %v6766 = vunpack.c.l.b16 %v1635
        %v6767 = vunpack.c.h.b16 %v1635
        %v6768 = vunpack.c.l.b16 %v1636
        %v6769 = vunpack.c.h.b16 %v1636
        %v6770 = vunpack.c.l.b16 %v1637
        %v6771 = vunpack.c.h.b16 %v1637
        %v6772 = vunpack.c.l.b16 %v1638
        %v6773 = vunpack.c.h.b16 %v1638
        %v6774 = vunpack.c.l.b16 %v1639
        %v6775 = vunpack.c.h.b16 %v1639
        %v6776 = vunpack.c.l.b16 %v1640
        %v6777 = vunpack.c.h.b16 %v1640
        %v6778 = vunpack.c.l.b16 %v1641
        %v6779 = vunpack.c.h.b16 %v1641
        %v6780 = vunpack.c.l.b16 %v1642
        %v6781 = vunpack.c.h.b16 %v1642
        %v6782 = vunpack.c.l.b16 %v1643
        %v6783 = vunpack.c.h.b16 %v1643
        %v6784 = vunpack.c.l.b16 %v1644
        %v6785 = vunpack.c.h.b16 %v1644
        %v6786 = vunpack.c.l.b16 %v1645
        %v6787 = vunpack.c.h.b16 %v1645
        %v6788 = vunpack.c.l.b16 %v1646
        %v6789 = vunpack.c.h.b16 %v1646
        %v6790 = vunpack.c.l.b16 %v1647
        %v6791 = vunpack.c.h.b16 %v1647
        %v6792 = vunpack.c.l.b16 %v1648
        %v6793 = vunpack.c.h.b16 %v1648
        %v6794 = vunpack.c.l.b16 %v1649
        %v6795 = vunpack.c.h.b16 %v1649
        %v6796 = vunpack.c.l.b16 %v1650
        %v6797 = vunpack.c.h.b16 %v1650
        %v6798 = vunpack.c.l.b16 %v1651
        %v6799 = vunpack.c.h.b16 %v1651
        %v6800 = vunpack.c.l.b16 %v1652
        %v6801 = vunpack.c.h.b16 %v1652
        %v6802 = vunpack.c.l.b16 %v1653
        %v6803 = vunpack.c.h.b16 %v1653
        %v6804 = vunpack.c.l.b16 %v1654
        %v6805 = vunpack.c.h.b16 %v1654
        %v6806 = vunpack.c.l.b16 %v1655
        %v6807 = vunpack.c.h.b16 %v1655
        %v6808 = vunpack.c.l.b16 %v1656
        %v6809 = vunpack.c.h.b16 %v1656
        %v6810 = vunpack.c.l.b16 %v1657
        %v6811 = vunpack.c.h.b16 %v1657
        %v6812 = vunpack.c.l.b16 %v1658
        %v6813 = vunpack.c.h.b16 %v1658
        %v6814 = vunpack.c.l.b16 %v1659
        %v6815 = vunpack.c.h.b16 %v1659
        %v6816 = vunpack.c.l.b16 %v1660
        %v6817 = vunpack.c.h.b16 %v1660
        %v6818 = vunpack.c.l.b16 %v1661
        %v6819 = vunpack.c.h.b16 %v1661
        %v6820 = vunpack.c.l.b16 %v1662
        %v6821 = vunpack.c.h.b16 %v1662
        %v6822 = vunpack.c.l.b16 %v1663
        %v6823 = vunpack.c.h.b16 %v1663
        %v6824 = vunpack.c.l.b16 %v1664
        %v6825 = vunpack.c.h.b16 %v1664
        %v6826 = vunpack.c.l.b16 %v1665
        %v6827 = vunpack.c.h.b16 %v1665
        %v6828 = vunpack.c.l.b16 %v1666
        %v6829 = vunpack.c.h.b16 %v1666
        %v6830 = vunpack.c.l.b16 %v1667
        %v6831 = vunpack.c.h.b16 %v1667
        %v6832 = vunpack.c.l.b16 %v1668
        %v6833 = vunpack.c.h.b16 %v1668
        %v6834 = vunpack.c.l.b16 %v1669
        %v6835 = vunpack.c.h.b16 %v1669
        %v6836 = vunpack.c.l.b16 %v1670
        %v6837 = vunpack.c.h.b16 %v1670
        %v6838 = vunpack.c.l.b16 %v1671
        %v6839 = vunpack.c.h.b16 %v1671
        %v6840 = vunpack.c.l.b16 %v1672
        %v6841 = vunpack.c.h.b16 %v1672
        %v6842 = vunpack.c.l.b16 %v1673
        %v6843 = vunpack.c.h.b16 %v1673
        %v6844 = vunpack.c.l.b16 %v1674
        %v6845 = vunpack.c.h.b16 %v1674
        %v6846 = vunpack.c.l.b16 %v1675
        %v6847 = vunpack.c.h.b16 %v1675
        %v6848 = vunpack.c.l.b16 %v1676
        %v6849 = vunpack.c.h.b16 %v1676
        %v6850 = vunpack.c.l.b16 %v1677
        %v6851 = vunpack.c.h.b16 %v1677
        %v6852 = vunpack.c.l.b16 %v1678
        %v6853 = vunpack.c.h.b16 %v1678
        %v6854 = vunpack.c.l.b16 %v1679
        %v6855 = vunpack.c.h.b16 %v1679
        %v6856 = vunpack.c.l.b16 %v1680
        %v6857 = vunpack.c.h.b16 %v1680
        %v6858 = vunpack.c.l.b16 %v1681
        %v6859 = vunpack.c.h.b16 %v1681
        %v6860 = vunpack.c.l.b16 %v1682
        %v6861 = vunpack.c.h.b16 %v1682
        %v6862 = vunpack.c.l.b16 %v1683
        %v6863 = vunpack.c.h.b16 %v1683
        %v6864 = vunpack.c.l.b16 %v1684
        %v6865 = vunpack.c.h.b16 %v1684
        %v6866 = vunpack.c.l.b16 %v1685
        %v6867 = vunpack.c.h.b16 %v1685
        %v6868 = vunpack.c.l.b16 %v1686
        %v6869 = vunpack.c.h.b16 %v1686
        %v6870 = vunpack.c.l.b16 %v1687
        %v6871 = vunpack.c.h.b16 %v1687
        %v6872 = vunpack.c.l.b16 %v1688
        %v6873 = vunpack.c.h.b16 %v1688
        %v6874 = vunpack.c.l.b16 %v1689
        %v6875 = vunpack.c.h.b16 %v1689
        %v6876 = vunpack.c.l.b16 %v1690
        %v6877 = vunpack.c.h.b16 %v1690
        %v6878 = vunpack.c.l.b16 %v1691
        %v6879 = vunpack.c.h.b16 %v1691
        %v6880 = vunpack.c.l.b16 %v1692
        %v6881 = vunpack.c.h.b16 %v1692
        %v6882 = vunpack.c.l.b16 %v1693
        %v6883 = vunpack.c.h.b16 %v1693
        %v6884 = vunpack.c.l.b16 %v1694
        %v6885 = vunpack.c.h.b16 %v1694
        %v6886 = vunpack.c.l.b16 %v1695
        %v6887 = vunpack.c.h.b16 %v1695
        %v6888 = vunpack.c.l.b16 %v1696
        %v6889 = vunpack.c.h.b16 %v1696
        %v6890 = vunpack.c.l.b16 %v1697
        %v6891 = vunpack.c.h.b16 %v1697
        %v6892 = vunpack.c.l.b16 %v1698
        %v6893 = vunpack.c.h.b16 %v1698
        %v6894 = vunpack.c.l.b16 %v1699
        %v6895 = vunpack.c.h.b16 %v1699
        %v6896 = vunpack.c.l.b16 %v1700
        %v6897 = vunpack.c.h.b16 %v1700
        %v6898 = vunpack.c.l.b16 %v1701
        %v6899 = vunpack.c.h.b16 %v1701
        %v6900 = vunpack.c.l.b16 %v1702
        %v6901 = vunpack.c.h.b16 %v1702
        %v6902 = vunpack.c.l.b16 %v1703
        %v6903 = vunpack.c.h.b16 %v1703
        %v6904 = vunpack.c.l.b16 %v1704
        %v6905 = vunpack.c.h.b16 %v1704
        %v6906 = vunpack.c.l.b16 %v1705
        %v6907 = vunpack.c.h.b16 %v1705
        %v6908 = vunpack.c.l.b16 %v1706
        %v6909 = vunpack.c.h.b16 %v1706
        %v6910 = vunpack.c.l.b16 %v1707
        %v6911 = vunpack.c.h.b16 %v1707
        %v6912 = vunpack.c.l.b16 %v1708
        %v6913 = vunpack.c.h.b16 %v1708
        %v6914 = vunpack.c.l.b16 %v1709
        %v6915 = vunpack.c.h.b16 %v1709
        %v6916 = vunpack.c.l.b16 %v1710
        %v6917 = vunpack.c.h.b16 %v1710
        %v6918 = vunpack.c.l.b16 %v1711
        %v6919 = vunpack.c.h.b16 %v1711
        %v6920 = vunpack.c.l.b16 %v1712
        %v6921 = vunpack.c.h.b16 %v1712
        %v6922 = vunpack.c.l.b16 %v1713
        %v6923 = vunpack.c.h.b16 %v1713
        %v6924 = vunpack.c.l.b16 %v1714
        %v6925 = vunpack.c.h.b16 %v1714
        %v6926 = vunpack.c.l.b16 %v1715
        %v6927 = vunpack.c.h.b16 %v1715
        %v6928 = vunpack.c.l.b16 %v1716
        %v6929 = vunpack.c.h.b16 %v1716
        %v6930 = vunpack.c.l.b16 %v1717
        %v6931 = vunpack.c.h.b16 %v1717
        %v6932 = vunpack.c.l.b16 %v1718
        %v6933 = vunpack.c.h.b16 %v1718
        %v6934 = vunpack.c.l.b16 %v1719
        %v6935 = vunpack.c.h.b16 %v1719
        %v6936 = vunpack.c.l.b16 %v1720
        %v6937 = vunpack.c.h.b16 %v1720
        %v6938 = vunpack.c.l.b16 %v1721
        %v6939 = vunpack.c.h.b16 %v1721
        %v6940 = vunpack.c.l.b16 %v1722
        %v6941 = vunpack.c.h.b16 %v1722
        %v6942 = vunpack.c.l.b16 %v1723
        %v6943 = vunpack.c.h.b16 %v1723
        %v6944 = vunpack.c.l.b16 %v1724
        %v6945 = vunpack.c.h.b16 %v1724
        %v6946 = vunpack.c.l.b16 %v1725
        %v6947 = vunpack.c.h.b16 %v1725
        %v6948 = vunpack.c.l.b16 %v1726
        %v6949 = vunpack.c.h.b16 %v1726
        %v6950 = vunpack.c.l.b16 %v1727
        %v6951 = vunpack.c.h.b16 %v1727
        %v6952 = vunpack.c.l.b16 %v1728
        %v6953 = vunpack.c.h.b16 %v1728
        %v6954 = vunpack.c.l.b16 %v1729
        %v6955 = vunpack.c.h.b16 %v1729
        %v6956 = vunpack.c.l.b16 %v1730
        %v6957 = vunpack.c.h.b16 %v1730
        %v6958 = vunpack.c.l.b16 %v1731
        %v6959 = vunpack.c.h.b16 %v1731
        %v6960 = vunpack.c.l.b16 %v1732
        %v6961 = vunpack.c.h.b16 %v1732
        %v6962 = vunpack.c.l.b16 %v1733
        %v6963 = vunpack.c.h.b16 %v1733
        %v6964 = vunpack.c.l.b16 %v1734
        %v6965 = vunpack.c.h.b16 %v1734
        %v6966 = vunpack.c.l.b16 %v1735
        %v6967 = vunpack.c.h.b16 %v1735
        %v6968 = vunpack.c.l.b16 %v1736
        %v6969 = vunpack.c.h.b16 %v1736
        %v6970 = vunpack.c.l.b16 %v1737
        %v6971 = vunpack.c.h.b16 %v1737
        %v6972 = vunpack.c.l.b16 %v1738
        %v6973 = vunpack.c.h.b16 %v1738
        %v6974 = vunpack.c.l.b16 %v1739
        %v6975 = vunpack.c.h.b16 %v1739
        %v6976 = vunpack.c.l.b16 %v1740
        %v6977 = vunpack.c.h.b16 %v1740
        %v6978 = vunpack.c.l.b16 %v1741
        %v6979 = vunpack.c.h.b16 %v1741
        %v6980 = vunpack.c.l.b16 %v1742
        %v6981 = vunpack.c.h.b16 %v1742
        %v6982 = vunpack.c.l.b16 %v1743
        %v6983 = vunpack.c.h.b16 %v1743
        %v6984 = vunpack.c.l.b16 %v1744
        %v6985 = vunpack.c.h.b16 %v1744
        %v6986 = vunpack.c.l.b16 %v1745
        %v6987 = vunpack.c.h.b16 %v1745
        %v6988 = vunpack.c.l.b16 %v1746
        %v6989 = vunpack.c.h.b16 %v1746
        %v6990 = vunpack.c.l.b16 %v1747
        %v6991 = vunpack.c.h.b16 %v1747
        %v6992 = vunpack.c.l.b16 %v1748
        %v6993 = vunpack.c.h.b16 %v1748
        %v6994 = vunpack.c.l.b16 %v1749
        %v6995 = vunpack.c.h.b16 %v1749
        %v6996 = vunpack.c.l.b16 %v1750
        %v6997 = vunpack.c.h.b16 %v1750
        %v6998 = vunpack.c.l.b16 %v1751
        %v6999 = vunpack.c.h.b16 %v1751
        %v7000 = vunpack.c.l.b16 %v1752
        %v7001 = vunpack.c.h.b16 %v1752
        %v7002 = vunpack.c.l.b16 %v1753
        %v7003 = vunpack.c.h.b16 %v1753
        %v7004 = vunpack.c.l.b16 %v1754
        %v7005 = vunpack.c.h.b16 %v1754
        %v7006 = vunpack.c.l.b16 %v1755
        %v7007 = vunpack.c.h.b16 %v1755
        %v7008 = vunpack.c.l.b16 %v1756
        %v7009 = vunpack.c.h.b16 %v1756
        %v7010 = vunpack.c.l.b16 %v1757
        %v7011 = vunpack.c.h.b16 %v1757
        %v7012 = vunpack.c.l.b16 %v1758
        %v7013 = vunpack.c.h.b16 %v1758
        %v7014 = vunpack.c.l.b16 %v1759
        %v7015 = vunpack.c.h.b16 %v1759
        %v7016 = vunpack.c.l.b16 %v1760
        %v7017 = vunpack.c.h.b16 %v1760
        %v7018 = vunpack.c.l.b16 %v1761
        %v7019 = vunpack.c.h.b16 %v1761
        %v7020 = vunpack.c.l.b16 %v1762
        %v7021 = vunpack.c.h.b16 %v1762
        %v7022 = vunpack.c.l.b16 %v1763
        %v7023 = vunpack.c.h.b16 %v1763
        %v7024 = vunpack.c.l.b16 %v1764
        %v7025 = vunpack.c.h.b16 %v1764
        %v7026 = vunpack.c.l.b16 %v1765
        %v7027 = vunpack.c.h.b16 %v1765
        %v7028 = vunpack.c.l.b16 %v1766
        %v7029 = vunpack.c.h.b16 %v1766
        %v7030 = vunpack.c.l.b16 %v1767
        %v7031 = vunpack.c.h.b16 %v1767
        %v7032 = vunpack.c.l.b16 %v1768
        %v7033 = vunpack.c.h.b16 %v1768
        %v7034 = vunpack.c.l.b16 %v1769
        %v7035 = vunpack.c.h.b16 %v1769
        %v7036 = vunpack.c.l.b16 %v1770
        %v7037 = vunpack.c.h.b16 %v1770
        %v7038 = vunpack.c.l.b16 %v1771
        %v7039 = vunpack.c.h.b16 %v1771
        %v7040 = vunpack.c.l.b16 %v1772
        %v7041 = vunpack.c.h.b16 %v1772
        %v7042 = vunpack.c.l.b16 %v1773
        %v7043 = vunpack.c.h.b16 %v1773
        %v7044 = vunpack.c.l.b16 %v1774
        %v7045 = vunpack.c.h.b16 %v1774
        %v7046 = vunpack.c.l.b16 %v1775
        %v7047 = vunpack.c.h.b16 %v1775
        %v7048 = vunpack.c.l.b16 %v1776
        %v7049 = vunpack.c.h.b16 %v1776
        %v7050 = vunpack.c.l.b16 %v1777
        %v7051 = vunpack.c.h.b16 %v1777
        %v7052 = vunpack.c.l.b16 %v1778
        %v7053 = vunpack.c.h.b16 %v1778
        %v7054 = vunpack.c.l.b16 %v1779
        %v7055 = vunpack.c.h.b16 %v1779
        %v7056 = vunpack.c.l.b16 %v1780
        %v7057 = vunpack.c.h.b16 %v1780
        %v7058 = vunpack.c.l.b16 %v1781
        %v7059 = vunpack.c.h.b16 %v1781
        %v7060 = vunpack.c.l.b16 %v1782
        %v7061 = vunpack.c.h.b16 %v1782
        %v7062 = vunpack.c.l.b16 %v1783
        %v7063 = vunpack.c.h.b16 %v1783
        %v7064 = vunpack.c.l.b16 %v1784
        %v7065 = vunpack.c.h.b16 %v1784
        %v7066 = vunpack.c.l.b16 %v1785
        %v7067 = vunpack.c.h.b16 %v1785
        %v7068 = vunpack.c.l.b16 %v1786
        %v7069 = vunpack.c.h.b16 %v1786
        %v7070 = vunpack.c.l.b16 %v1787
        %v7071 = vunpack.c.h.b16 %v1787
        %v7072 = vunpack.c.l.b16 %v1788
        %v7073 = vunpack.c.h.b16 %v1788
        %v7074 = vunpack.c.l.b16 %v1789
        %v7075 = vunpack.c.h.b16 %v1789
        %v7076 = vunpack.c.l.b16 %v1790
        %v7077 = vunpack.c.h.b16 %v1790
        %v7078 = vunpack.c.l.b16 %v1791
        %v7079 = vunpack.c.h.b16 %v1791
        %v7080 = vunpack.c.l.b16 %v1792
        %v7081 = vunpack.c.h.b16 %v1792
        %v7082 = vunpack.c.l.b16 %v1793
        %v7083 = vunpack.c.h.b16 %v1793
        %v7084 = vunpack.c.l.b16 %v1794
        %v7085 = vunpack.c.h.b16 %v1794
        %v7086 = vunpack.c.l.b16 %v1795
        %v7087 = vunpack.c.h.b16 %v1795
        %v7088 = vunpack.c.l.b16 %v1796
        %v7089 = vunpack.c.h.b16 %v1796
        %v7090 = vunpack.c.l.b16 %v1797
        %v7091 = vunpack.c.h.b16 %v1797
        %v7092 = vunpack.c.l.b16 %v1798
        %v7093 = vunpack.c.h.b16 %v1798
        %v7094 = vunpack.c.l.b16 %v1799
        %v7095 = vunpack.c.h.b16 %v1799
        %v7096 = vunpack.c.l.b16 %v1800
        %v7097 = vunpack.c.h.b16 %v1800
        %v7098 = vunpack.c.l.b16 %v1801
        %v7099 = vunpack.c.h.b16 %v1801
        %v7100 = vunpack.c.l.b16 %v1802
        %v7101 = vunpack.c.h.b16 %v1802
        %v7102 = vunpack.c.l.b16 %v1803
        %v7103 = vunpack.c.h.b16 %v1803
        %v7104 = vunpack.c.l.b16 %v1804
        %v7105 = vunpack.c.h.b16 %v1804
        %v7106 = vunpack.c.l.b16 %v1805
        %v7107 = vunpack.c.h.b16 %v1805
        %v7108 = vunpack.c.l.b16 %v1806
        %v7109 = vunpack.c.h.b16 %v1806
        %v7110 = vunpack.c.l.b16 %v1807
        %v7111 = vunpack.c.h.b16 %v1807
        %v7112 = vunpack.c.l.b16 %v1808
        %v7113 = vunpack.c.h.b16 %v1808
        %v7114 = vunpack.c.l.b16 %v1809
        %v7115 = vunpack.c.h.b16 %v1809
        %v7116 = vunpack.c.l.b16 %v1810
        %v7117 = vunpack.c.h.b16 %v1810
        %v7118 = vunpack.c.l.b16 %v1811
        %v7119 = vunpack.c.h.b16 %v1811
        %v7120 = vunpack.c.l.b16 %v1812
        %v7121 = vunpack.c.h.b16 %v1812
        %v7122 = vunpack.c.l.b16 %v1813
        %v7123 = vunpack.c.h.b16 %v1813
        %v7124 = vunpack.c.l.b16 %v1814
        %v7125 = vunpack.c.h.b16 %v1814
        %v7126 = vunpack.c.l.b16 %v1815
        %v7127 = vunpack.c.h.b16 %v1815
        %v7128 = vunpack.c.l.b16 %v1816
        %v7129 = vunpack.c.h.b16 %v1816
        %v7130 = vunpack.c.l.b16 %v1817
        %v7131 = vunpack.c.h.b16 %v1817
        %v7132 = vunpack.c.l.b16 %v1818
        %v7133 = vunpack.c.h.b16 %v1818
        %v7134 = vunpack.c.l.b16 %v1819
        %v7135 = vunpack.c.h.b16 %v1819
        %v7136 = vunpack.c.l.b16 %v1820
        %v7137 = vunpack.c.h.b16 %v1820
        %v7138 = vunpack.c.l.b16 %v1821
        %v7139 = vunpack.c.h.b16 %v1821
        %v7140 = vunpack.c.l.b16 %v1822
        %v7141 = vunpack.c.h.b16 %v1822
        %v7142 = vunpack.c.l.b16 %v1823
        %v7143 = vunpack.c.h.b16 %v1823
        %v7144 = vunpack.c.l.b16 %v1824
        %v7145 = vunpack.c.h.b16 %v1824
        %v7146 = vunpack.c.l.b16 %v1825
        %v7147 = vunpack.c.h.b16 %v1825
        %v7148 = vunpack.c.l.b16 %v1826
        %v7149 = vunpack.c.h.b16 %v1826
        %v7150 = vunpack.c.l.b16 %v1827
        %v7151 = vunpack.c.h.b16 %v1827
        %v7152 = vunpack.c.l.b16 %v1828
        %v7153 = vunpack.c.h.b16 %v1828
        %v7154 = vunpack.c.l.b16 %v1829
        %v7155 = vunpack.c.h.b16 %v1829
        %v7156 = vunpack.c.l.b16 %v1830
        %v7157 = vunpack.c.h.b16 %v1830
        %v7158 = vunpack.c.l.b16 %v1831
        %v7159 = vunpack.c.h.b16 %v1831
        %v7160 = vunpack.c.l.b16 %v1832
        %v7161 = vunpack.c.h.b16 %v1832
        %v7162 = vunpack.c.l.b16 %v1833
        %v7163 = vunpack.c.h.b16 %v1833
        %v7164 = vunpack.c.l.b16 %v1834
        %v7165 = vunpack.c.h.b16 %v1834
        %v7166 = vunpack.c.l.b16 %v1835
        %v7167 = vunpack.c.h.b16 %v1835
        %v7168 = vunpack.c.l.b16 %v1836
        %v7169 = vunpack.c.h.b16 %v1836
        %v7170 = vunpack.c.l.b16 %v1837
        %v7171 = vunpack.c.h.b16 %v1837
        %v7172 = vunpack.c.l.b16 %v1838
        %v7173 = vunpack.c.h.b16 %v1838
        %v7174 = vunpack.c.l.b16 %v1839
        %v7175 = vunpack.c.h.b16 %v1839
        %v7176 = vunpack.c.l.b16 %v1840
        %v7177 = vunpack.c.h.b16 %v1840
        %v7178 = vunpack.c.l.b16 %v1841
        %v7179 = vunpack.c.h.b16 %v1841
        %v7180 = vunpack.c.l.b16 %v1842
        %v7181 = vunpack.c.h.b16 %v1842
        %v7182 = vunpack.c.l.b16 %v1843
        %v7183 = vunpack.c.h.b16 %v1843
        %v7184 = vunpack.c.l.b16 %v1844
        %v7185 = vunpack.c.h.b16 %v1844
        %v7186 = vunpack.c.l.b16 %v1845
        %v7187 = vunpack.c.h.b16 %v1845
        %v7188 = vunpack.c.l.b16 %v1846
        %v7189 = vunpack.c.h.b16 %v1846
        %v7190 = vunpack.c.l.b16 %v1847
        %v7191 = vunpack.c.h.b16 %v1847
        %v7192 = vunpack.c.l.b16 %v1848
        %v7193 = vunpack.c.h.b16 %v1848
        %v7194 = vunpack.c.l.b16 %v1849
        %v7195 = vunpack.c.h.b16 %v1849
        %v7196 = vunpack.c.l.b16 %v1850
        %v7197 = vunpack.c.h.b16 %v1850
        %v7198 = vunpack.c.l.b16 %v1851
        %v7199 = vunpack.c.h.b16 %v1851
        %v7200 = vunpack.c.l.b16 %v1852
        %v7201 = vunpack.c.h.b16 %v1852
        %v7202 = vunpack.c.l.b16 %v1853
        %v7203 = vunpack.c.h.b16 %v1853
        %v7204 = vunpack.c.l.b16 %v1854
        %v7205 = vunpack.c.h.b16 %v1854
        %v7206 = vunpack.c.l.b16 %v1855
        %v7207 = vunpack.c.h.b16 %v1855
        %v7208 = vunpack.c.l.b16 %v1856
        %v7209 = vunpack.c.h.b16 %v1856
        %v7210 = vunpack.c.l.b16 %v1857
        %v7211 = vunpack.c.h.b16 %v1857
        %v7212 = vunpack.c.l.b16 %v1858
        %v7213 = vunpack.c.h.b16 %v1858
        %v7214 = vunpack.c.l.b16 %v1859
        %v7215 = vunpack.c.h.b16 %v1859
        %v7216 = vunpack.c.l.b16 %v1860
        %v7217 = vunpack.c.h.b16 %v1860
        %v7218 = vunpack.c.l.b16 %v1861
        %v7219 = vunpack.c.h.b16 %v1861
        %v7220 = vunpack.c.l.b16 %v1862
        %v7221 = vunpack.c.h.b16 %v1862
        %v7222 = vunpack.c.l.b16 %v1863
        %v7223 = vunpack.c.h.b16 %v1863
        %v7224 = vunpack.c.l.b16 %v1864
        %v7225 = vunpack.c.h.b16 %v1864
        %v7226 = vunpack.c.l.b16 %v1865
        %v7227 = vunpack.c.h.b16 %v1865
        %v7228 = vunpack.c.l.b16 %v1866
        %v7229 = vunpack.c.h.b16 %v1866
        %v7230 = vunpack.c.l.b16 %v1867
        %v7231 = vunpack.c.h.b16 %v1867
        %v7232 = vunpack.c.l.b16 %v1868
        %v7233 = vunpack.c.h.b16 %v1868
        %v7234 = vunpack.c.l.b16 %v1869
        %v7235 = vunpack.c.h.b16 %v1869
        %v7236 = vunpack.c.l.b16 %v1870
        %v7237 = vunpack.c.h.b16 %v1870
        %v7238 = vunpack.c.l.b16 %v1871
        %v7239 = vunpack.c.h.b16 %v1871
        %v7240 = vunpack.c.l.b16 %v1872
        %v7241 = vunpack.c.h.b16 %v1872
        %v7242 = vunpack.c.l.b16 %v1873
        %v7243 = vunpack.c.h.b16 %v1873
        %v7244 = vunpack.c.l.b16 %v1874
        %v7245 = vunpack.c.h.b16 %v1874
        %v7246 = vunpack.c.l.b16 %v1875
        %v7247 = vunpack.c.h.b16 %v1875
        %v7248 = vunpack.c.l.b16 %v1876
        %v7249 = vunpack.c.h.b16 %v1876
        %v7250 = vunpack.c.l.b16 %v1877
        %v7251 = vunpack.c.h.b16 %v1877
        %v7252 = vunpack.c.l.b16 %v1878
        %v7253 = vunpack.c.h.b16 %v1878
        %v7254 = vunpack.c.l.b16 %v1879
        %v7255 = vunpack.c.h.b16 %v1879
        %v7256 = vunpack.c.l.b16 %v1880
        %v7257 = vunpack.c.h.b16 %v1880
        %v7258 = vunpack.c.l.b16 %v1881
        %v7259 = vunpack.c.h.b16 %v1881
        %v7260 = vunpack.c.l.b16 %v1882
        %v7261 = vunpack.c.h.b16 %v1882
        %v7262 = vunpack.c.l.b16 %v1883
        %v7263 = vunpack.c.h.b16 %v1883
        %v7264 = vunpack.c.l.b16 %v1884
        %v7265 = vunpack.c.h.b16 %v1884
        %v7266 = vunpack.c.l.b16 %v1885
        %v7267 = vunpack.c.h.b16 %v1885
        %v7268 = vunpack.c.l.b16 %v1886
        %v7269 = vunpack.c.h.b16 %v1886
        %v7270 = vunpack.c.l.b16 %v1887
        %v7271 = vunpack.c.h.b16 %v1887
        %v7272 = vunpack.c.l.b16 %v1888
        %v7273 = vunpack.c.h.b16 %v1888
        %v7274 = vunpack.c.l.b16 %v1889
        %v7275 = vunpack.c.h.b16 %v1889
        %v7276 = vunpack.c.l.b16 %v1890
        %v7277 = vunpack.c.h.b16 %v1890
        %v7278 = vunpack.c.l.b16 %v1891
        %v7279 = vunpack.c.h.b16 %v1891
        %v7280 = vunpack.c.l.b16 %v1892
        %v7281 = vunpack.c.h.b16 %v1892
        %v7282 = vunpack.c.l.b16 %v1893
        %v7283 = vunpack.c.h.b16 %v1893
        %v7284 = vunpack.c.l.b16 %v1894
        %v7285 = vunpack.c.h.b16 %v1894
        %v7286 = vunpack.c.l.b16 %v1895
        %v7287 = vunpack.c.h.b16 %v1895
        %v7288 = vunpack.c.l.b16 %v1896
        %v7289 = vunpack.c.h.b16 %v1896
        %v7290 = vunpack.c.l.b16 %v1897
        %v7291 = vunpack.c.h.b16 %v1897
        %v7292 = vunpack.c.l.b16 %v1898
        %v7293 = vunpack.c.h.b16 %v1898
        %v7294 = vunpack.c.l.b16 %v1899
        %v7295 = vunpack.c.h.b16 %v1899
        %v7296 = vunpack.c.l.b16 %v1900
        %v7297 = vunpack.c.h.b16 %v1900
        %v7298 = vunpack.c.l.b16 %v1901
        %v7299 = vunpack.c.h.b16 %v1901
        %v7300 = vunpack.c.l.b16 %v1902
        %v7301 = vunpack.c.h.b16 %v1902
        %v7302 = vunpack.c.l.b16 %v1903
        %v7303 = vunpack.c.h.b16 %v1903
        %v7304 = vunpack.c.l.b16 %v1904
        %v7305 = vunpack.c.h.b16 %v1904
        %v7306 = vunpack.c.l.b16 %v1905
        %v7307 = vunpack.c.h.b16 %v1905
        %v7308 = vunpack.c.l.b16 %v1906
        %v7309 = vunpack.c.h.b16 %v1906
        %v7310 = vunpack.c.l.b16 %v1907
        %v7311 = vunpack.c.h.b16 %v1907
        %v7312 = vunpack.c.l.b16 %v1908
        %v7313 = vunpack.c.h.b16 %v1908
        %v7314 = vunpack.c.l.b16 %v1909
        %v7315 = vunpack.c.h.b16 %v1909
        %v7316 = vunpack.c.l.b16 %v1910
        %v7317 = vunpack.c.h.b16 %v1910
        %v7318 = vunpack.c.l.b16 %v1911
        %v7319 = vunpack.c.h.b16 %v1911
        %v7320 = vunpack.c.l.b16 %v1912
        %v7321 = vunpack.c.h.b16 %v1912
        %v7322 = vunpack.c.l.b16 %v1913
        %v7323 = vunpack.c.h.b16 %v1913
        %v7324 = vunpack.c.l.b16 %v1914
        %v7325 = vunpack.c.h.b16 %v1914
        %v7326 = vunpack.c.l.b16 %v1915
        %v7327 = vunpack.c.h.b16 %v1915
        %v7328 = vunpack.c.l.b16 %v1916
        %v7329 = vunpack.c.h.b16 %v1916
        %v7330 = vunpack.c.l.b16 %v1917
        %v7331 = vunpack.c.h.b16 %v1917
        %v7332 = vunpack.c.l.b16 %v1918
        %v7333 = vunpack.c.h.b16 %v1918
        %v7334 = vunpack.c.l.b16 %v1919
        %v7335 = vunpack.c.h.b16 %v1919
        %v7336 = vunpack.c.l.b16 %v1920
        %v7337 = vunpack.c.h.b16 %v1920
        %v7338 = vunpack.c.l.b16 %v1921
        %v7339 = vunpack.c.h.b16 %v1921
        %v7340 = vunpack.c.l.b16 %v1922
        %v7341 = vunpack.c.h.b16 %v1922
        %v7342 = vunpack.c.l.b16 %v1923
        %v7343 = vunpack.c.h.b16 %v1923
        %v7344 = vunpack.c.l.b16 %v1924
        %v7345 = vunpack.c.h.b16 %v1924
        %v7346 = vunpack.c.l.b16 %v1925
        %v7347 = vunpack.c.h.b16 %v1925
        %v7348 = vunpack.c.l.b16 %v1926
        %v7349 = vunpack.c.h.b16 %v1926
        %v7350 = vunpack.c.l.b16 %v1927
        %v7351 = vunpack.c.h.b16 %v1927
        %v7352 = vunpack.c.l.b16 %v1928
        %v7353 = vunpack.c.h.b16 %v1928
        %v7354 = vunpack.c.l.b16 %v1929
        %v7355 = vunpack.c.h.b16 %v1929
        %v7356 = vunpack.c.l.b16 %v1930
        %v7357 = vunpack.c.h.b16 %v1930
        %v7358 = vunpack.c.l.b16 %v1931
        %v7359 = vunpack.c.h.b16 %v1931
        %v7360 = vunpack.c.l.b16 %v1932
        %v7361 = vunpack.c.h.b16 %v1932
        %v7362 = vunpack.c.l.b16 %v1933
        %v7363 = vunpack.c.h.b16 %v1933
        %v7364 = vunpack.c.l.b16 %v1934
        %v7365 = vunpack.c.h.b16 %v1934
        %v7366 = vunpack.c.l.b16 %v1935
        %v7367 = vunpack.c.h.b16 %v1935
        %v7368 = vunpack.c.l.b16 %v1936
        %v7369 = vunpack.c.h.b16 %v1936
        %v7370 = vunpack.c.l.b16 %v1937
        %v7371 = vunpack.c.h.b16 %v1937
        %v7372 = vunpack.c.l.b16 %v1938
        %v7373 = vunpack.c.h.b16 %v1938
        %v7374 = vunpack.c.l.b16 %v1939
        %v7375 = vunpack.c.h.b16 %v1939
        %v7376 = vunpack.c.l.b16 %v1940
        %v7377 = vunpack.c.h.b16 %v1940
        %v7378 = vunpack.c.l.b16 %v1941
        %v7379 = vunpack.c.h.b16 %v1941
        %v7380 = vunpack.c.l.b16 %v1942
        %v7381 = vunpack.c.h.b16 %v1942
        %v7382 = vunpack.c.l.b16 %v1943
        %v7383 = vunpack.c.h.b16 %v1943
        %v7384 = vunpack.c.l.b16 %v1944
        %v7385 = vunpack.c.h.b16 %v1944
        %v7386 = vunpack.c.l.b16 %v1945
        %v7387 = vunpack.c.h.b16 %v1945
        %v7388 = vunpack.c.l.b16 %v1946
        %v7389 = vunpack.c.h.b16 %v1946
        %v7390 = vunpack.c.l.b16 %v1947
        %v7391 = vunpack.c.h.b16 %v1947
        %v7392 = vunpack.c.l.b16 %v1948
        %v7393 = vunpack.c.h.b16 %v1948
        %v7394 = vunpack.c.l.b16 %v1949
        %v7395 = vunpack.c.h.b16 %v1949
        %v7396 = vunpack.c.l.b16 %v1950
        %v7397 = vunpack.c.h.b16 %v1950
        %v7398 = vunpack.c.l.b16 %v1951
        %v7399 = vunpack.c.h.b16 %v1951
        %v7400 = vunpack.c.l.b16 %v1952
        %v7401 = vunpack.c.h.b16 %v1952
        %v7402 = vunpack.c.l.b16 %v1953
        %v7403 = vunpack.c.h.b16 %v1953
        %v7404 = vunpack.c.l.b16 %v1954
        %v7405 = vunpack.c.h.b16 %v1954
        %v7406 = vunpack.c.l.b16 %v1955
        %v7407 = vunpack.c.h.b16 %v1955
        %v7408 = vunpack.c.l.b16 %v1956
        %v7409 = vunpack.c.h.b16 %v1956
        %v7410 = vunpack.c.l.b16 %v1957
        %v7411 = vunpack.c.h.b16 %v1957
        %v7412 = vunpack.c.l.b16 %v1958
        %v7413 = vunpack.c.h.b16 %v1958
        %v7414 = vunpack.c.l.b16 %v1959
        %v7415 = vunpack.c.h.b16 %v1959
        %v7416 = vunpack.c.l.b16 %v1960
        %v7417 = vunpack.c.h.b16 %v1960
        %v7418 = vunpack.c.l.b16 %v1961
        %v7419 = vunpack.c.h.b16 %v1961
        %v7420 = vunpack.c.l.b16 %v1962
        %v7421 = vunpack.c.h.b16 %v1962
        %v7422 = vunpack.c.l.b16 %v1963
        %v7423 = vunpack.c.h.b16 %v1963
        %v7424 = vunpack.c.l.b16 %v1964
        %v7425 = vunpack.c.h.b16 %v1964
        %v7426 = vunpack.c.l.b16 %v1965
        %v7427 = vunpack.c.h.b16 %v1965
        %v7428 = vunpack.c.l.b16 %v1966
        %v7429 = vunpack.c.h.b16 %v1966
        %v7430 = vunpack.c.l.b16 %v1967
        %v7431 = vunpack.c.h.b16 %v1967
        %v7432 = vunpack.c.l.b16 %v1968
        %v7433 = vunpack.c.h.b16 %v1968
        %v7434 = vunpack.c.l.b16 %v1969
        %v7435 = vunpack.c.h.b16 %v1969
        %v7436 = vunpack.c.l.b16 %v1970
        %v7437 = vunpack.c.h.b16 %v1970
        %v7438 = vunpack.c.l.b16 %v1971
        %v7439 = vunpack.c.h.b16 %v1971
        %v7440 = vunpack.c.l.b16 %v1972
        %v7441 = vunpack.c.h.b16 %v1972
        %v7442 = vunpack.c.l.b16 %v1973
        %v7443 = vunpack.c.h.b16 %v1973
        %v7444 = vunpack.c.l.b16 %v1974
        %v7445 = vunpack.c.h.b16 %v1974
        %v7446 = vunpack.c.l.b16 %v1975
        %v7447 = vunpack.c.h.b16 %v1975
        %v7448 = vunpack.c.l.b16 %v1976
        %v7449 = vunpack.c.h.b16 %v1976
        %v7450 = vunpack.c.l.b16 %v1977
        %v7451 = vunpack.c.h.b16 %v1977
        %v7452 = vunpack.c.l.b16 %v1978
        %v7453 = vunpack.c.h.b16 %v1978
        %v7454 = vunpack.c.l.b16 %v1979
        %v7455 = vunpack.c.h.b16 %v1979
        %v7456 = vunpack.c.l.b16 %v1980
        %v7457 = vunpack.c.h.b16 %v1980
        %v7458 = vunpack.c.l.b16 %v1981
        %v7459 = vunpack.c.h.b16 %v1981
        %v7460 = vunpack.c.l.b16 %v1982
        %v7461 = vunpack.c.h.b16 %v1982
        %v7462 = vunpack.c.l.b16 %v1983
        %v7463 = vunpack.c.h.b16 %v1983
        %v7464 = vunpack.c.l.b16 %v1984
        %v7465 = vunpack.c.h.b16 %v1984
        %v7466 = vunpack.c.l.b16 %v1985
        %v7467 = vunpack.c.h.b16 %v1985
        %v7468 = vunpack.c.l.b16 %v1986
        %v7469 = vunpack.c.h.b16 %v1986
        %v7470 = vunpack.c.l.b16 %v1987
        %v7471 = vunpack.c.h.b16 %v1987
        %v7472 = vunpack.c.l.b16 %v1988
        %v7473 = vunpack.c.h.b16 %v1988
        %v7474 = vunpack.c.l.b16 %v1989
        %v7475 = vunpack.c.h.b16 %v1989
        %v7476 = vunpack.c.l.b16 %v1990
        %v7477 = vunpack.c.h.b16 %v1990
        %v7478 = vunpack.c.l.b16 %v1991
        %v7479 = vunpack.c.h.b16 %v1991
        %v7480 = vunpack.c.l.b16 %v1992
        %v7481 = vunpack.c.h.b16 %v1992
        %v7482 = vunpack.c.l.b16 %v1993
        %v7483 = vunpack.c.h.b16 %v1993
        %v7484 = vunpack.c.l.b16 %v1994
        %v7485 = vunpack.c.h.b16 %v1994
        %v7486 = vunpack.c.l.b16 %v1995
        %v7487 = vunpack.c.h.b16 %v1995
        %v7488 = vunpack.c.l.b16 %v1996
        %v7489 = vunpack.c.h.b16 %v1996
        %v7490 = vunpack.c.l.b16 %v1997
        %v7491 = vunpack.c.h.b16 %v1997
        %v7492 = vunpack.c.l.b16 %v1998
        %v7493 = vunpack.c.h.b16 %v1998
        %v7494 = vunpack.c.l.b16 %v1999
        %v7495 = vunpack.c.h.b16 %v1999
        %v7496 = vunpack.c.l.b16 %v2000
        %v7497 = vunpack.c.h.b16 %v2000
        %v7498 = vunpack.c.l.b16 %v2001
        %v7499 = vunpack.c.h.b16 %v2001
        %v7500 = vunpack.c.l.b16 %v2002
        %v7501 = vunpack.c.h.b16 %v2002
        %v7502 = vunpack.c.l.b16 %v2003
        %v7503 = vunpack.c.h.b16 %v2003
        %v7504 = vunpack.c.l.b16 %v2004
        %v7505 = vunpack.c.h.b16 %v2004
        %v7506 = vunpack.c.l.b16 %v2005
        %v7507 = vunpack.c.h.b16 %v2005
        %v7508 = vunpack.c.l.b16 %v2006
        %v7509 = vunpack.c.h.b16 %v2006
        %v7510 = vunpack.c.l.b16 %v2007
        %v7511 = vunpack.c.h.b16 %v2007
        %v7512 = vunpack.c.l.b16 %v2008
        %v7513 = vunpack.c.h.b16 %v2008
        %v7514 = vunpack.c.l.b16 %v2009
        %v7515 = vunpack.c.h.b16 %v2009
        %v7516 = vunpack.c.l.b16 %v2010
        %v7517 = vunpack.c.h.b16 %v2010
        %v7518 = vunpack.c.l.b16 %v2011
        %v7519 = vunpack.c.h.b16 %v2011
        %v7520 = vunpack.c.l.b16 %v2012
        %v7521 = vunpack.c.h.b16 %v2012
        %v7522 = vunpack.c.l.b16 %v2013
        %v7523 = vunpack.c.h.b16 %v2013
        %v7524 = vunpack.c.l.b16 %v2014
        %v7525 = vunpack.c.h.b16 %v2014
        %v7526 = vunpack.c.l.b16 %v2015
        %v7527 = vunpack.c.h.b16 %v2015
        %v7528 = vunpack.c.l.b16 %v2016
        %v7529 = vunpack.c.h.b16 %v2016
        %v7530 = vunpack.c.l.b16 %v2017
        %v7531 = vunpack.c.h.b16 %v2017
        %v7532 = vunpack.c.l.b16 %v2018
        %v7533 = vunpack.c.h.b16 %v2018
        %v7534 = vunpack.c.l.b16 %v2019
        %v7535 = vunpack.c.h.b16 %v2019
        %v7536 = vunpack.c.l.b16 %v2020
        %v7537 = vunpack.c.h.b16 %v2020
        %v7538 = vunpack.c.l.b16 %v2021
        %v7539 = vunpack.c.h.b16 %v2021
        %v7540 = vunpack.c.l.b16 %v2022
        %v7541 = vunpack.c.h.b16 %v2022
        %v7542 = vunpack.c.l.b16 %v2023
        %v7543 = vunpack.c.h.b16 %v2023
        %v7544 = vunpack.c.l.b16 %v2024
        %v7545 = vunpack.c.h.b16 %v2024
        %v7546 = vunpack.c.l.b16 %v2025
        %v7547 = vunpack.c.h.b16 %v2025
        %v7548 = vunpack.c.l.b16 %v2026
        %v7549 = vunpack.c.h.b16 %v2026
        %v7550 = vunpack.c.l.b16 %v2027
        %v7551 = vunpack.c.h.b16 %v2027
        %v7552 = vunpack.c.l.b16 %v2028
        %v7553 = vunpack.c.h.b16 %v2028
        %v7554 = vpack.c.b16 %v4356, %v4354
        %v7555 = vpack.c.b16 %v4357, %v4355
        %v7556 = vpack.c.b16 %v4360, %v4358
        %v7557 = vpack.c.b16 %v4361, %v4359
        %v7558 = vpack.c.b16 %v4364, %v4362
        %v7559 = vpack.c.b16 %v4365, %v4363
        %v7560 = vpack.c.b16 %v4368, %v4366
        %v7561 = vpack.c.b16 %v4369, %v4367
        %v7562 = vpack.c.b16 %v4372, %v4370
        %v7563 = vpack.c.b16 %v4373, %v4371
        %v7564 = vpack.c.b16 %v4376, %v4374
        %v7565 = vpack.c.b16 %v4377, %v4375
        %v7566 = vpack.c.b16 %v4380, %v4378
        %v7567 = vpack.c.b16 %v4381, %v4379
        %v7568 = vpack.c.b16 %v4384, %v4382
        %v7569 = vpack.c.b16 %v4385, %v4383
        %v7570 = vpack.c.b16 %v4388, %v4386
        %v7571 = vpack.c.b16 %v4389, %v4387
        %v7572 = vpack.c.b16 %v4392, %v4390
        %v7573 = vpack.c.b16 %v4393, %v4391
        %v7574 = vpack.c.b16 %v4396, %v4394
        %v7575 = vpack.c.b16 %v4397, %v4395
        %v7576 = vpack.c.b16 %v4400, %v4398
        %v7577 = vpack.c.b16 %v4401, %v4399
        %v7578 = vpack.c.b16 %v4404, %v4402
        %v7579 = vpack.c.b16 %v4405, %v4403
        %v7580 = vpack.c.b16 %v4408, %v4406
        %v7581 = vpack.c.b16 %v4409, %v4407
        %v7582 = vpack.c.b16 %v4412, %v4410
        %v7583 = vpack.c.b16 %v4413, %v4411
        %v7584 = vpack.c.b16 %v4416, %v4414
        %v7585 = vpack.c.b16 %v4417, %v4415
        %v7586 = vpack.c.b16 %v4420, %v4418
        %v7587 = vpack.c.b16 %v4421, %v4419
        %v7588 = vpack.c.b16 %v4424, %v4422
        %v7589 = vpack.c.b16 %v4425, %v4423
        %v7590 = vpack.c.b16 %v4428, %v4426
        %v7591 = vpack.c.b16 %v4429, %v4427
        %v7592 = vpack.c.b16 %v4432, %v4430
        %v7593 = vpack.c.b16 %v4433, %v4431
        %v7594 = vpack.c.b16 %v4436, %v4434
        %v7595 = vpack.c.b16 %v4437, %v4435
        %v7596 = vpack.c.b16 %v4440, %v4438
        %v7597 = vpack.c.b16 %v4441, %v4439
        %v7598 = vpack.c.b16 %v4444, %v4442
        %v7599 = vpack.c.b16 %v4445, %v4443
        %v7600 = vpack.c.b16 %v4448, %v4446
        %v7601 = vpack.c.b16 %v4449, %v4447
        %v7602 = vpack.c.b16 %v4452, %v4450
        %v7603 = vpack.c.b16 %v4453, %v4451
        %v7604 = vpack.c.b16 %v4456, %v4454
        %v7605 = vpack.c.b16 %v4457, %v4455
        %v7606 = vpack.c.b16 %v4460, %v4458
        %v7607 = vpack.c.b16 %v4461, %v4459
        %v7608 = vpack.c.b16 %v4464, %v4462
        %v7609 = vpack.c.b16 %v4465, %v4463
        %v7610 = vpack.c.b16 %v4468, %v4466
        %v7611 = vpack.c.b16 %v4469, %v4467
        %v7612 = vpack.c.b16 %v4472, %v4470
        %v7613 = vpack.c.b16 %v4473, %v4471
        %v7614 = vpack.c.b16 %v4476, %v4474
        %v7615 = vpack.c.b16 %v4477, %v4475
        %v7616 = vpack.c.b16 %v4480, %v4478
        %v7617 = vpack.c.b16 %v4481, %v4479
        %v7618 = vpack.c.b16 %v4484, %v4482
        %v7619 = vpack.c.b16 %v4485, %v4483
        %v7620 = vpack.c.b16 %v4488, %v4486
        %v7621 = vpack.c.b16 %v4489, %v4487
        %v7622 = vpack.c.b16 %v4492, %v4490
        %v7623 = vpack.c.b16 %v4493, %v4491
        %v7624 = vpack.c.b16 %v4496, %v4494
        %v7625 = vpack.c.b16 %v4497, %v4495
        %v7626 = vpack.c.b16 %v4500, %v4498
        %v7627 = vpack.c.b16 %v4501, %v4499
        %v7628 = vpack.c.b16 %v4504, %v4502
        %v7629 = vpack.c.b16 %v4505, %v4503
        %v7630 = vpack.c.b16 %v4508, %v4506
        %v7631 = vpack.c.b16 %v4509, %v4507
        %v7632 = vpack.c.b16 %v4512, %v4510
        %v7633 = vpack.c.b16 %v4513, %v4511
        %v7634 = vpack.c.b16 %v4516, %v4514
        %v7635 = vpack.c.b16 %v4517, %v4515
        %v7636 = vpack.c.b16 %v4520, %v4518
        %v7637 = vpack.c.b16 %v4521, %v4519
        %v7638 = vpack.c.b16 %v4524, %v4522
        %v7639 = vpack.c.b16 %v4525, %v4523
        %v7640 = vpack.c.b16 %v4528, %v4526
        %v7641 = vpack.c.b16 %v4529, %v4527
        %v7642 = vpack.c.b16 %v4532, %v4530
        %v7643 = vpack.c.b16 %v4533, %v4531
        %v7644 = vpack.c.b16 %v4536, %v4534
        %v7645 = vpack.c.b16 %v4537, %v4535
        %v7646 = vpack.c.b16 %v4540, %v4538
        %v7647 = vpack.c.b16 %v4541, %v4539
        %v7648 = vpack.c.b16 %v4544, %v4542
        %v7649 = vpack.c.b16 %v4545, %v4543
        %v7650 = vpack.c.b16 %v4548, %v4546
        %v7651 = vpack.c.b16 %v4549, %v4547
        %v7652 = vpack.c.b16 %v4552, %v4550
        %v7653 = vpack.c.b16 %v4553, %v4551
        %v7654 = vpack.c.b16 %v4556, %v4554
        %v7655 = vpack.c.b16 %v4557, %v4555
        %v7656 = vpack.c.b16 %v4560, %v4558
        %v7657 = vpack.c.b16 %v4561, %v4559
        %v7658 = vpack.c.b16 %v4564, %v4562
        %v7659 = vpack.c.b16 %v4565, %v4563
        %v7660 = vpack.c.b16 %v4568, %v4566
        %v7661 = vpack.c.b16 %v4569, %v4567
        %v7662 = vpack.c.b16 %v4572, %v4570
        %v7663 = vpack.c.b16 %v4573, %v4571
        %v7664 = vpack.c.b16 %v4576, %v4574
        %v7665 = vpack.c.b16 %v4577, %v4575
        %v7666 = vpack.c.b16 %v4580, %v4578
        %v7667 = vpack.c.b16 %v4581, %v4579
        %v7668 = vpack.c.b16 %v4584, %v4582
        %v7669 = vpack.c.b16 %v4585, %v4583
        %v7670 = vpack.c.b16 %v4588, %v4586
        %v7671 = vpack.c.b16 %v4589, %v4587
        %v7672 = vpack.c.b16 %v4592, %v4590
        %v7673 = vpack.c.b16 %v4593, %v4591
        %v7674 = vpack.c.b16 %v4596, %v4594
        %v7675 = vpack.c.b16 %v4597, %v4595
        %v7676 = vpack.c.b16 %v4600, %v4598
        %v7677 = vpack.c.b16 %v4601, %v4599
        %v7678 = vpack.c.b16 %v4604, %v4602
        %v7679 = vpack.c.b16 %v4605, %v4603
        %v7680 = vpack.c.b16 %v4608, %v4606
        %v7681 = vpack.c.b16 %v4609, %v4607
        %v7682 = vpack.c.b16 %v4612, %v4610
        %v7683 = vpack.c.b16 %v4613, %v4611
        %v7684 = vpack.c.b16 %v4616, %v4614
        %v7685 = vpack.c.b16 %v4617, %v4615
        %v7686 = vpack.c.b16 %v4620, %v4618
        %v7687 = vpack.c.b16 %v4621, %v4619
        %v7688 = vpack.c.b16 %v4624, %v4622
        %v7689 = vpack.c.b16 %v4625, %v4623
        %v7690 = vpack.c.b16 %v4628, %v4626
        %v7691 = vpack.c.b16 %v4629, %v4627
        %v7692 = vpack.c.b16 %v4632, %v4630
        %v7693 = vpack.c.b16 %v4633, %v4631
        %v7694 = vpack.c.b16 %v4636, %v4634
        %v7695 = vpack.c.b16 %v4637, %v4635
        %v7696 = vpack.c.b16 %v4640, %v4638
        %v7697 = vpack.c.b16 %v4641, %v4639
        %v7698 = vpack.c.b16 %v4644, %v4642
        %v7699 = vpack.c.b16 %v4645, %v4643
        %v7700 = vpack.c.b16 %v4648, %v4646
        %v7701 = vpack.c.b16 %v4649, %v4647
        %v7702 = vpack.c.b16 %v4652, %v4650
        %v7703 = vpack.c.b16 %v4653, %v4651
        %v7704 = vpack.c.b16 %v4656, %v4654
        %v7705 = vpack.c.b16 %v4657, %v4655
        %v7706 = vpack.c.b16 %v4660, %v4658
        %v7707 = vpack.c.b16 %v4661, %v4659
        %v7708 = vpack.c.b16 %v4664, %v4662
        %v7709 = vpack.c.b16 %v4665, %v4663
        %v7710 = vpack.c.b16 %v4668, %v4666
        %v7711 = vpack.c.b16 %v4669, %v4667
        %v7712 = vpack.c.b16 %v4672, %v4670
        %v7713 = vpack.c.b16 %v4673, %v4671
        %v7714 = vpack.c.b16 %v4676, %v4674
        %v7715 = vpack.c.b16 %v4677, %v4675
        %v7716 = vpack.c.b16 %v4680, %v4678
        %v7717 = vpack.c.b16 %v4681, %v4679
        %v7718 = vpack.c.b16 %v4684, %v4682
        %v7719 = vpack.c.b16 %v4685, %v4683
        %v7720 = vpack.c.b16 %v4688, %v4686
        %v7721 = vpack.c.b16 %v4689, %v4687
        %v7722 = vpack.c.b16 %v4692, %v4690
        %v7723 = vpack.c.b16 %v4693, %v4691
        %v7724 = vpack.c.b16 %v4696, %v4694
        %v7725 = vpack.c.b16 %v4697, %v4695
        %v7726 = vpack.c.b16 %v4700, %v4698
        %v7727 = vpack.c.b16 %v4701, %v4699
        %v7728 = vpack.c.b16 %v4704, %v4702
        %v7729 = vpack.c.b16 %v4705, %v4703
        %v7730 = vpack.c.b16 %v4708, %v4706
        %v7731 = vpack.c.b16 %v4709, %v4707
        %v7732 = vpack.c.b16 %v4712, %v4710
        %v7733 = vpack.c.b16 %v4713, %v4711
        %v7734 = vpack.c.b16 %v4716, %v4714
        %v7735 = vpack.c.b16 %v4717, %v4715
        %v7736 = vpack.c.b16 %v4720, %v4718
        %v7737 = vpack.c.b16 %v4721, %v4719
        %v7738 = vpack.c.b16 %v4724, %v4722
        %v7739 = vpack.c.b16 %v4725, %v4723
        %v7740 = vpack.c.b16 %v4728, %v4726
        %v7741 = vpack.c.b16 %v4729, %v4727
        %v7742 = vpack.c.b16 %v4732, %v4730
        %v7743 = vpack.c.b16 %v4733, %v4731
        %v7744 = vpack.c.b16 %v4736, %v4734
        %v7745 = vpack.c.b16 %v4737, %v4735
        %v7746 = vpack.c.b16 %v4740, %v4738
        %v7747 = vpack.c.b16 %v4741, %v4739
        %v7748 = vpack.c.b16 %v4744, %v4742
        %v7749 = vpack.c.b16 %v4745, %v4743
        %v7750 = vpack.c.b16 %v4748, %v4746
        %v7751 = vpack.c.b16 %v4749, %v4747
        %v7752 = vpack.c.b16 %v4752, %v4750
        %v7753 = vpack.c.b16 %v4753, %v4751
        %v7754 = vpack.c.b16 %v4756, %v4754
        %v7755 = vpack.c.b16 %v4757, %v4755
        %v7756 = vpack.c.b16 %v4760, %v4758
        %v7757 = vpack.c.b16 %v4761, %v4759
        %v7758 = vpack.c.b16 %v4764, %v4762
        %v7759 = vpack.c.b16 %v4765, %v4763
        %v7760 = vpack.c.b16 %v4768, %v4766
        %v7761 = vpack.c.b16 %v4769, %v4767
        %v7762 = vpack.c.b16 %v4772, %v4770
        %v7763 = vpack.c.b16 %v4773, %v4771
        %v7764 = vpack.c.b16 %v4776, %v4774
        %v7765 = vpack.c.b16 %v4777, %v4775
        %v7766 = vpack.c.b16 %v4780, %v4778
        %v7767 = vpack.c.b16 %v4781, %v4779
        %v7768 = vpack.c.b16 %v4784, %v4782
        %v7769 = vpack.c.b16 %v4785, %v4783
        %v7770 = vpack.c.b16 %v4788, %v4786
        %v7771 = vpack.c.b16 %v4789, %v4787
        %v7772 = vpack.c.b16 %v4792, %v4790
        %v7773 = vpack.c.b16 %v4793, %v4791
        %v7774 = vpack.c.b16 %v4796, %v4794
        %v7775 = vpack.c.b16 %v4797, %v4795
        %v7776 = vpack.c.b16 %v4800, %v4798
        %v7777 = vpack.c.b16 %v4801, %v4799
        %v7778 = vpack.c.b16 %v4804, %v4802
        %v7779 = vpack.c.b16 %v4805, %v4803
        %v7780 = vpack.c.b16 %v4808, %v4806
        %v7781 = vpack.c.b16 %v4809, %v4807
        %v7782 = vpack.c.b16 %v4812, %v4810
        %v7783 = vpack.c.b16 %v4813, %v4811
        %v7784 = vpack.c.b16 %v4816, %v4814
        %v7785 = vpack.c.b16 %v4817, %v4815
        %v7786 = vpack.c.b16 %v4820, %v4818
        %v7787 = vpack.c.b16 %v4821, %v4819
        %v7788 = vpack.c.b16 %v4824, %v4822
        %v7789 = vpack.c.b16 %v4825, %v4823
        %v7790 = vpack.c.b16 %v4828, %v4826
        %v7791 = vpack.c.b16 %v4829, %v4827
        %v7792 = vpack.c.b16 %v4832, %v4830
        %v7793 = vpack.c.b16 %v4833, %v4831
        %v7794 = vpack.c.b16 %v4836, %v4834
        %v7795 = vpack.c.b16 %v4837, %v4835
        %v7796 = vpack.c.b16 %v4840, %v4838
        %v7797 = vpack.c.b16 %v4841, %v4839
        %v7798 = vpack.c.b16 %v4844, %v4842
        %v7799 = vpack.c.b16 %v4845, %v4843
        %v7800 = vpack.c.b16 %v4848, %v4846
        %v7801 = vpack.c.b16 %v4849, %v4847
        %v7802 = vpack.c.b16 %v4852, %v4850
        %v7803 = vpack.c.b16 %v4853, %v4851
        %v7804 = vpack.c.b16 %v4856, %v4854
        %v7805 = vpack.c.b16 %v4857, %v4855
        %v7806 = vpack.c.b16 %v4860, %v4858
        %v7807 = vpack.c.b16 %v4861, %v4859
        %v7808 = vpack.c.b16 %v4864, %v4862
        %v7809 = vpack.c.b16 %v4865, %v4863
        %v7810 = vpack.c.b16 %v4868, %v4866
        %v7811 = vpack.c.b16 %v4869, %v4867
        %v7812 = vpack.c.b16 %v4872, %v4870
        %v7813 = vpack.c.b16 %v4873, %v4871
        %v7814 = vpack.c.b16 %v4876, %v4874
        %v7815 = vpack.c.b16 %v4877, %v4875
        %v7816 = vpack.c.b16 %v4880, %v4878
        %v7817 = vpack.c.b16 %v4881, %v4879
        %v7818 = vpack.c.b16 %v4884, %v4882
        %v7819 = vpack.c.b16 %v4885, %v4883
        %v7820 = vpack.c.b16 %v4888, %v4886
        %v7821 = vpack.c.b16 %v4889, %v4887
        %v7822 = vpack.c.b16 %v4892, %v4890
        %v7823 = vpack.c.b16 %v4893, %v4891
        %v7824 = vpack.c.b16 %v4896, %v4894
        %v7825 = vpack.c.b16 %v4897, %v4895
        %v7826 = vpack.c.b16 %v4900, %v4898
        %v7827 = vpack.c.b16 %v4901, %v4899
        %v7828 = vpack.c.b16 %v4904, %v4902
        %v7829 = vpack.c.b16 %v4905, %v4903
        %v7830 = vpack.c.b16 %v4908, %v4906
        %v7831 = vpack.c.b16 %v4909, %v4907
        %v7832 = vpack.c.b16 %v4912, %v4910
        %v7833 = vpack.c.b16 %v4913, %v4911
        %v7834 = vpack.c.b16 %v4916, %v4914
        %v7835 = vpack.c.b16 %v4917, %v4915
        %v7836 = vpack.c.b16 %v4920, %v4918
        %v7837 = vpack.c.b16 %v4921, %v4919
        %v7838 = vpack.c.b16 %v4924, %v4922
        %v7839 = vpack.c.b16 %v4925, %v4923
        %v7840 = vpack.c.b16 %v4928, %v4926
        %v7841 = vpack.c.b16 %v4929, %v4927
        %v7842 = vpack.c.b16 %v4932, %v4930
        %v7843 = vpack.c.b16 %v4933, %v4931
        %v7844 = vpack.c.b16 %v4936, %v4934
        %v7845 = vpack.c.b16 %v4937, %v4935
        %v7846 = vpack.c.b16 %v4940, %v4938
        %v7847 = vpack.c.b16 %v4941, %v4939
        %v7848 = vpack.c.b16 %v4944, %v4942
        %v7849 = vpack.c.b16 %v4945, %v4943
        %v7850 = vpack.c.b16 %v4948, %v4946
        %v7851 = vpack.c.b16 %v4949, %v4947
        %v7852 = vpack.c.b16 %v4952, %v4950
        %v7853 = vpack.c.b16 %v4953, %v4951
        %v7854 = vpack.c.b16 %v4956, %v4954
        %v7855 = vpack.c.b16 %v4957, %v4955
        %v7856 = vpack.c.b16 %v4960, %v4958
        %v7857 = vpack.c.b16 %v4961, %v4959
        %v7858 = vpack.c.b16 %v4964, %v4962
        %v7859 = vpack.c.b16 %v4965, %v4963
        %v7860 = vpack.c.b16 %v4968, %v4966
        %v7861 = vpack.c.b16 %v4969, %v4967
        %v7862 = vpack.c.b16 %v4972, %v4970
        %v7863 = vpack.c.b16 %v4973, %v4971
        %v7864 = vpack.c.b16 %v4976, %v4974
        %v7865 = vpack.c.b16 %v4977, %v4975
        %v7866 = vpack.c.b16 %v4980, %v4978
        %v7867 = vpack.c.b16 %v4981, %v4979
        %v7868 = vpack.c.b16 %v4984, %v4982
        %v7869 = vpack.c.b16 %v4985, %v4983
        %v7870 = vpack.c.b16 %v4988, %v4986
        %v7871 = vpack.c.b16 %v4989, %v4987
        %v7872 = vpack.c.b16 %v4992, %v4990
        %v7873 = vpack.c.b16 %v4993, %v4991
        %v7874 = vpack.c.b16 %v4996, %v4994
        %v7875 = vpack.c.b16 %v4997, %v4995
        %v7876 = vpack.c.b16 %v5000, %v4998
        %v7877 = vpack.c.b16 %v5001, %v4999
        %v7878 = vpack.c.b16 %v5004, %v5002
        %v7879 = vpack.c.b16 %v5005, %v5003
        %v7880 = vpack.c.b16 %v5008, %v5006
        %v7881 = vpack.c.b16 %v5009, %v5007
        %v7882 = vpack.c.b16 %v5012, %v5010
        %v7883 = vpack.c.b16 %v5013, %v5011
        %v7884 = vpack.c.b16 %v5016, %v5014
        %v7885 = vpack.c.b16 %v5017, %v5015
        %v7886 = vpack.c.b16 %v5020, %v5018
        %v7887 = vpack.c.b16 %v5021, %v5019
        %v7888 = vpack.c.b16 %v5024, %v5022
        %v7889 = vpack.c.b16 %v5025, %v5023
        %v7890 = vpack.c.b16 %v5028, %v5026
        %v7891 = vpack.c.b16 %v5029, %v5027
        %v7892 = vpack.c.b16 %v5032, %v5030
        %v7893 = vpack.c.b16 %v5033, %v5031
        %v7894 = vpack.c.b16 %v5036, %v5034
        %v7895 = vpack.c.b16 %v5037, %v5035
        %v7896 = vpack.c.b16 %v5040, %v5038
        %v7897 = vpack.c.b16 %v5041, %v5039
        %v7898 = vpack.c.b16 %v5044, %v5042
        %v7899 = vpack.c.b16 %v5045, %v5043
        %v7900 = vpack.c.b16 %v5048, %v5046
        %v7901 = vpack.c.b16 %v5049, %v5047
        %v7902 = vpack.c.b16 %v5052, %v5050
        %v7903 = vpack.c.b16 %v5053, %v5051
        %v7904 = vpack.c.b16 %v5056, %v5054
        %v7905 = vpack.c.b16 %v5057, %v5055
        %v7906 = vpack.c.b16 %v5060, %v5058
        %v7907 = vpack.c.b16 %v5061, %v5059
        %v7908 = vpack.c.b16 %v5064, %v5062
        %v7909 = vpack.c.b16 %v5065, %v5063
        %v7910 = vpack.c.b16 %v5068, %v5066
        %v7911 = vpack.c.b16 %v5069, %v5067
        %v7912 = vpack.c.b16 %v5072, %v5070
        %v7913 = vpack.c.b16 %v5073, %v5071
        %v7914 = vpack.c.b16 %v5076, %v5074
        %v7915 = vpack.c.b16 %v5077, %v5075
        %v7916 = vpack.c.b16 %v5080, %v5078
        %v7917 = vpack.c.b16 %v5081, %v5079
        %v7918 = vpack.c.b16 %v5084, %v5082
        %v7919 = vpack.c.b16 %v5085, %v5083
        %v7920 = vpack.c.b16 %v5088, %v5086
        %v7921 = vpack.c.b16 %v5089, %v5087
        %v7922 = vpack.c.b16 %v5092, %v5090
        %v7923 = vpack.c.b16 %v5093, %v5091
        %v7924 = vpack.c.b16 %v5096, %v5094
        %v7925 = vpack.c.b16 %v5097, %v5095
        %v7926 = vpack.c.b16 %v5100, %v5098
        %v7927 = vpack.c.b16 %v5101, %v5099
        %v7928 = vpack.c.b16 %v5104, %v5102
        %v7929 = vpack.c.b16 %v5105, %v5103
        %v7930 = vpack.c.b16 %v5108, %v5106
        %v7931 = vpack.c.b16 %v5109, %v5107
        %v7932 = vpack.c.b16 %v5112, %v5110
        %v7933 = vpack.c.b16 %v5113, %v5111
        %v7934 = vpack.c.b16 %v5116, %v5114
        %v7935 = vpack.c.b16 %v5117, %v5115
        %v7936 = vpack.c.b16 %v5120, %v5118
        %v7937 = vpack.c.b16 %v5121, %v5119
        %v7938 = vpack.c.b16 %v5124, %v5122
        %v7939 = vpack.c.b16 %v5125, %v5123
        %v7940 = vpack.c.b16 %v5128, %v5126
        %v7941 = vpack.c.b16 %v5129, %v5127
        %v7942 = vpack.c.b16 %v5132, %v5130
        %v7943 = vpack.c.b16 %v5133, %v5131
        %v7944 = vpack.c.b16 %v5136, %v5134
        %v7945 = vpack.c.b16 %v5137, %v5135
        %v7946 = vpack.c.b16 %v5140, %v5138
        %v7947 = vpack.c.b16 %v5141, %v5139
        %v7948 = vpack.c.b16 %v5144, %v5142
        %v7949 = vpack.c.b16 %v5145, %v5143
        %v7950 = vpack.c.b16 %v5148, %v5146
        %v7951 = vpack.c.b16 %v5149, %v5147
        %v7952 = vpack.c.b16 %v5152, %v5150
        %v7953 = vpack.c.b16 %v5153, %v5151
        %v7954 = vpack.c.b16 %v5156, %v5154
        %v7955 = vpack.c.b16 %v5157, %v5155
        %v7956 = vpack.c.b16 %v5160, %v5158
        %v7957 = vpack.c.b16 %v5161, %v5159
        %v7958 = vpack.c.b16 %v5164, %v5162
        %v7959 = vpack.c.b16 %v5165, %v5163
        %v7960 = vpack.c.b16 %v5168, %v5166
        %v7961 = vpack.c.b16 %v5169, %v5167
        %v7962 = vpack.c.b16 %v5172, %v5170
        %v7963 = vpack.c.b16 %v5173, %v5171
        %v7964 = vpack.c.b16 %v5176, %v5174
        %v7965 = vpack.c.b16 %v5177, %v5175
        %v7966 = vpack.c.b16 %v5180, %v5178
        %v7967 = vpack.c.b16 %v5181, %v5179
        %v7968 = vpack.c.b16 %v5184, %v5182
        %v7969 = vpack.c.b16 %v5185, %v5183
        %v7970 = vpack.c.b16 %v5188, %v5186
        %v7971 = vpack.c.b16 %v5189, %v5187
        %v7972 = vpack.c.b16 %v5192, %v5190
        %v7973 = vpack.c.b16 %v5193, %v5191
        %v7974 = vpack.c.b16 %v5196, %v5194
        %v7975 = vpack.c.b16 %v5197, %v5195
        %v7976 = vpack.c.b16 %v5200, %v5198
        %v7977 = vpack.c.b16 %v5201, %v5199
        %v7978 = vpack.c.b16 %v5204, %v5202
        %v7979 = vpack.c.b16 %v5205, %v5203
        %v7980 = vpack.c.b16 %v5208, %v5206
        %v7981 = vpack.c.b16 %v5209, %v5207
        %v7982 = vpack.c.b16 %v5212, %v5210
        %v7983 = vpack.c.b16 %v5213, %v5211
        %v7984 = vpack.c.b16 %v5216, %v5214
        %v7985 = vpack.c.b16 %v5217, %v5215
        %v7986 = vpack.c.b16 %v5220, %v5218
        %v7987 = vpack.c.b16 %v5221, %v5219
        %v7988 = vpack.c.b16 %v5224, %v5222
        %v7989 = vpack.c.b16 %v5225, %v5223
        %v7990 = vpack.c.b16 %v5228, %v5226
        %v7991 = vpack.c.b16 %v5229, %v5227
        %v7992 = vpack.c.b16 %v5232, %v5230
        %v7993 = vpack.c.b16 %v5233, %v5231
        %v7994 = vpack.c.b16 %v5236, %v5234
        %v7995 = vpack.c.b16 %v5237, %v5235
        %v7996 = vpack.c.b16 %v5240, %v5238
        %v7997 = vpack.c.b16 %v5241, %v5239
        %v7998 = vpack.c.b16 %v5244, %v5242
        %v7999 = vpack.c.b16 %v5245, %v5243
        %v8000 = vpack.c.b16 %v5248, %v5246
        %v8001 = vpack.c.b16 %v5249, %v5247
        %v8002 = vpack.c.b16 %v5252, %v5250
        %v8003 = vpack.c.b16 %v5253, %v5251
        %v8004 = vpack.c.b16 %v5256, %v5254
        %v8005 = vpack.c.b16 %v5257, %v5255
        %v8006 = vpack.c.b16 %v5260, %v5258
        %v8007 = vpack.c.b16 %v5261, %v5259
        %v8008 = vpack.c.b16 %v5264, %v5262
        %v8009 = vpack.c.b16 %v5265, %v5263
        %v8010 = vpack.c.b16 %v5268, %v5266
        %v8011 = vpack.c.b16 %v5269, %v5267
        %v8012 = vpack.c.b16 %v5272, %v5270
        %v8013 = vpack.c.b16 %v5273, %v5271
        %v8014 = vpack.c.b16 %v5276, %v5274
        %v8015 = vpack.c.b16 %v5277, %v5275
        %v8016 = vpack.c.b16 %v5280, %v5278
        %v8017 = vpack.c.b16 %v5281, %v5279
        %v8018 = vpack.c.b16 %v5284, %v5282
        %v8019 = vpack.c.b16 %v5285, %v5283
        %v8020 = vpack.c.b16 %v5288, %v5286
        %v8021 = vpack.c.b16 %v5289, %v5287
        %v8022 = vpack.c.b16 %v5292, %v5290
        %v8023 = vpack.c.b16 %v5293, %v5291
        %v8024 = vpack.c.b16 %v5296, %v5294
        %v8025 = vpack.c.b16 %v5297, %v5295
        %v8026 = vpack.c.b16 %v5300, %v5298
        %v8027 = vpack.c.b16 %v5301, %v5299
        %v8028 = vpack.c.b16 %v5304, %v5302
        %v8029 = vpack.c.b16 %v5305, %v5303
        %v8030 = vpack.c.b16 %v5308, %v5306
        %v8031 = vpack.c.b16 %v5309, %v5307
        %v8032 = vpack.c.b16 %v5312, %v5310
        %v8033 = vpack.c.b16 %v5313, %v5311
        %v8034 = vpack.c.b16 %v5316, %v5314
        %v8035 = vpack.c.b16 %v5317, %v5315
        %v8036 = vpack.c.b16 %v5320, %v5318
        %v8037 = vpack.c.b16 %v5321, %v5319
        %v8038 = vpack.c.b16 %v5324, %v5322
        %v8039 = vpack.c.b16 %v5325, %v5323
        %v8040 = vpack.c.b16 %v5328, %v5326
        %v8041 = vpack.c.b16 %v5329, %v5327
        %v8042 = vpack.c.b16 %v5332, %v5330
        %v8043 = vpack.c.b16 %v5333, %v5331
        %v8044 = vpack.c.b16 %v5336, %v5334
        %v8045 = vpack.c.b16 %v5337, %v5335
        %v8046 = vpack.c.b16 %v5340, %v5338
        %v8047 = vpack.c.b16 %v5341, %v5339
        %v8048 = vpack.c.b16 %v5344, %v5342
        %v8049 = vpack.c.b16 %v5345, %v5343
        %v8050 = vpack.c.b16 %v5348, %v5346
        %v8051 = vpack.c.b16 %v5349, %v5347
        %v8052 = vpack.c.b16 %v5352, %v5350
        %v8053 = vpack.c.b16 %v5353, %v5351
        %v8054 = vpack.c.b16 %v5356, %v5354
        %v8055 = vpack.c.b16 %v5357, %v5355
        %v8056 = vpack.c.b16 %v5360, %v5358
        %v8057 = vpack.c.b16 %v5361, %v5359
        %v8058 = vpack.c.b16 %v5364, %v5362
        %v8059 = vpack.c.b16 %v5365, %v5363
        %v8060 = vpack.c.b16 %v5368, %v5366
        %v8061 = vpack.c.b16 %v5369, %v5367
        %v8062 = vpack.c.b16 %v5372, %v5370
        %v8063 = vpack.c.b16 %v5373, %v5371
        %v8064 = vpack.c.b16 %v5376, %v5374
        %v8065 = vpack.c.b16 %v5377, %v5375
        %v8066 = vpack.c.b16 %v5380, %v5378
        %v8067 = vpack.c.b16 %v5381, %v5379
        %v8068 = vpack.c.b16 %v5384, %v5382
        %v8069 = vpack.c.b16 %v5385, %v5383
        %v8070 = vpack.c.b16 %v5388, %v5386
        %v8071 = vpack.c.b16 %v5389, %v5387
        %v8072 = vpack.c.b16 %v5392, %v5390
        %v8073 = vpack.c.b16 %v5393, %v5391
        %v8074 = vpack.c.b16 %v5396, %v5394
        %v8075 = vpack.c.b16 %v5397, %v5395
        %v8076 = vpack.c.b16 %v5400, %v5398
        %v8077 = vpack.c.b16 %v5401, %v5399
        %v8078 = vpack.c.b16 %v5404, %v5402
        %v8079 = vpack.c.b16 %v5405, %v5403
        %v8080 = vpack.c.b16 %v5408, %v5406
        %v8081 = vpack.c.b16 %v5409, %v5407
        %v8082 = vpack.c.b16 %v5412, %v5410
        %v8083 = vpack.c.b16 %v5413, %v5411
        %v8084 = vpack.c.b16 %v5416, %v5414
        %v8085 = vpack.c.b16 %v5417, %v5415
        %v8086 = vpack.c.b16 %v5420, %v5418
        %v8087 = vpack.c.b16 %v5421, %v5419
        %v8088 = vpack.c.b16 %v5424, %v5422
        %v8089 = vpack.c.b16 %v5425, %v5423
        %v8090 = vpack.c.b16 %v5428, %v5426
        %v8091 = vpack.c.b16 %v5429, %v5427
        %v8092 = vpack.c.b16 %v5432, %v5430
        %v8093 = vpack.c.b16 %v5433, %v5431
        %v8094 = vpack.c.b16 %v5436, %v5434
        %v8095 = vpack.c.b16 %v5437, %v5435
        %v8096 = vpack.c.b16 %v5440, %v5438
        %v8097 = vpack.c.b16 %v5441, %v5439
        %v8098 = vpack.c.b16 %v5444, %v5442
        %v8099 = vpack.c.b16 %v5445, %v5443
        %v8100 = vpack.c.b16 %v5448, %v5446
        %v8101 = vpack.c.b16 %v5449, %v5447
        %v8102 = vpack.c.b16 %v5452, %v5450
        %v8103 = vpack.c.b16 %v5453, %v5451
        %v8104 = vpack.c.b16 %v5456, %v5454
        %v8105 = vpack.c.b16 %v5457, %v5455
        %v8106 = vpack.c.b16 %v5460, %v5458
        %v8107 = vpack.c.b16 %v5461, %v5459
        %v8108 = vpack.c.b16 %v5464, %v5462
        %v8109 = vpack.c.b16 %v5465, %v5463
        %v8110 = vpack.c.b16 %v5468, %v5466
        %v8111 = vpack.c.b16 %v5469, %v5467
        %v8112 = vpack.c.b16 %v5472, %v5470
        %v8113 = vpack.c.b16 %v5473, %v5471
        %v8114 = vpack.c.b16 %v5476, %v5474
        %v8115 = vpack.c.b16 %v5477, %v5475
        %v8116 = vpack.c.b16 %v5480, %v5478
        %v8117 = vpack.c.b16 %v5481, %v5479
        %v8118 = vpack.c.b16 %v5484, %v5482
        %v8119 = vpack.c.b16 %v5485, %v5483
        %v8120 = vpack.c.b16 %v5488, %v5486
        %v8121 = vpack.c.b16 %v5489, %v5487
        %v8122 = vpack.c.b16 %v5492, %v5490
        %v8123 = vpack.c.b16 %v5493, %v5491
        %v8124 = vpack.c.b16 %v5496, %v5494
        %v8125 = vpack.c.b16 %v5497, %v5495
        %v8126 = vpack.c.b16 %v5500, %v5498
        %v8127 = vpack.c.b16 %v5501, %v5499
        %v8128 = vpack.c.b16 %v5504, %v5502
        %v8129 = vpack.c.b16 %v5505, %v5503
        %v8130 = vpack.c.b16 %v5508, %v5506
        %v8131 = vpack.c.b16 %v5509, %v5507
        %v8132 = vpack.c.b16 %v5512, %v5510
        %v8133 = vpack.c.b16 %v5513, %v5511
        %v8134 = vpack.c.b16 %v5516, %v5514
        %v8135 = vpack.c.b16 %v5517, %v5515
        %v8136 = vpack.c.b16 %v5520, %v5518
        %v8137 = vpack.c.b16 %v5521, %v5519
        %v8138 = vpack.c.b16 %v5524, %v5522
        %v8139 = vpack.c.b16 %v5525, %v5523
        %v8140 = vpack.c.b16 %v5528, %v5526
        %v8141 = vpack.c.b16 %v5529, %v5527
        %v8142 = vpack.c.b16 %v5532, %v5530
        %v8143 = vpack.c.b16 %v5533, %v5531
        %v8144 = vpack.c.b16 %v5536, %v5534
        %v8145 = vpack.c.b16 %v5537, %v5535
        %v8146 = vpack.c.b16 %v5540, %v5538
        %v8147 = vpack.c.b16 %v5541, %v5539
        %v8148 = vpack.c.b16 %v5544, %v5542
        %v8149 = vpack.c.b16 %v5545, %v5543
        %v8150 = vpack.c.b16 %v5548, %v5546
        %v8151 = vpack.c.b16 %v5549, %v5547
        %v8152 = vpack.c.b16 %v5552, %v5550
        %v8153 = vpack.c.b16 %v5553, %v5551
        %v8154 = vpack.c.b16 %v5556, %v5554
        %v8155 = vpack.c.b16 %v5557, %v5555
        %v8156 = vpack.c.b16 %v5560, %v5558
        %v8157 = vpack.c.b16 %v5561, %v5559
        %v8158 = vpack.c.b16 %v5564, %v5562
        %v8159 = vpack.c.b16 %v5565, %v5563
        %v8160 = vpack.c.b16 %v5568, %v5566
        %v8161 = vpack.c.b16 %v5569, %v5567
        %v8162 = vpack.c.b16 %v5572, %v5570
        %v8163 = vpack.c.b16 %v5573, %v5571
        %v8164 = vpack.c.b16 %v5576, %v5574
        %v8165 = vpack.c.b16 %v5577, %v5575
        %v8166 = vpack.c.b16 %v5580, %v5578
        %v8167 = vpack.c.b16 %v5581, %v5579
        %v8168 = vpack.c.b16 %v5584, %v5582
        %v8169 = vpack.c.b16 %v5585, %v5583
        %v8170 = vpack.c.b16 %v5588, %v5586
        %v8171 = vpack.c.b16 %v5589, %v5587
        %v8172 = vpack.c.b16 %v5592, %v5590
        %v8173 = vpack.c.b16 %v5593, %v5591
        %v8174 = vpack.c.b16 %v5596, %v5594
        %v8175 = vpack.c.b16 %v5597, %v5595
        %v8176 = vpack.c.b16 %v5600, %v5598
        %v8177 = vpack.c.b16 %v5601, %v5599
        %v8178 = vpack.c.b16 %v5604, %v5602
        %v8179 = vpack.c.b16 %v5605, %v5603
        %v8180 = vpack.c.b16 %v5608, %v5606
        %v8181 = vpack.c.b16 %v5609, %v5607
        %v8182 = vpack.c.b16 %v5612, %v5610
        %v8183 = vpack.c.b16 %v5613, %v5611
        %v8184 = vpack.c.b16 %v5616, %v5614
        %v8185 = vpack.c.b16 %v5617, %v5615
        %v8186 = vpack.c.b16 %v5620, %v5618
        %v8187 = vpack.c.b16 %v5621, %v5619
        %v8188 = vpack.c.b16 %v5624, %v5622
        %v8189 = vpack.c.b16 %v5625, %v5623
        %v8190 = vpack.c.b16 %v5628, %v5626
        %v8191 = vpack.c.b16 %v5629, %v5627
        %v8192 = vpack.c.b16 %v5632, %v5630
        %v8193 = vpack.c.b16 %v5633, %v5631
        %v8194 = vpack.c.b16 %v5636, %v5634
        %v8195 = vpack.c.b16 %v5637, %v5635
        %v8196 = vpack.c.b16 %v5640, %v5638
        %v8197 = vpack.c.b16 %v5641, %v5639
        %v8198 = vpack.c.b16 %v5644, %v5642
        %v8199 = vpack.c.b16 %v5645, %v5643
        %v8200 = vpack.c.b16 %v5648, %v5646
        %v8201 = vpack.c.b16 %v5649, %v5647
        %v8202 = vpack.c.b16 %v5652, %v5650
        %v8203 = vpack.c.b16 %v5653, %v5651
        %v8204 = vpack.c.b16 %v5656, %v5654
        %v8205 = vpack.c.b16 %v5657, %v5655
        %v8206 = vpack.c.b16 %v5660, %v5658
        %v8207 = vpack.c.b16 %v5661, %v5659
        %v8208 = vpack.c.b16 %v5664, %v5662
        %v8209 = vpack.c.b16 %v5665, %v5663
        %v8210 = vpack.c.b16 %v5668, %v5666
        %v8211 = vpack.c.b16 %v5669, %v5667
        %v8212 = vpack.c.b16 %v5672, %v5670
        %v8213 = vpack.c.b16 %v5673, %v5671
        %v8214 = vpack.c.b16 %v5676, %v5674
        %v8215 = vpack.c.b16 %v5677, %v5675
        %v8216 = vpack.c.b16 %v5680, %v5678
        %v8217 = vpack.c.b16 %v5681, %v5679
        %v8218 = vpack.c.b16 %v5684, %v5682
        %v8219 = vpack.c.b16 %v5685, %v5683
        %v8220 = vpack.c.b16 %v5688, %v5686
        %v8221 = vpack.c.b16 %v5689, %v5687
        %v8222 = vpack.c.b16 %v5692, %v5690
        %v8223 = vpack.c.b16 %v5693, %v5691
        %v8224 = vpack.c.b16 %v5696, %v5694
        %v8225 = vpack.c.b16 %v5697, %v5695
        %v8226 = vpack.c.b16 %v5700, %v5698
        %v8227 = vpack.c.b16 %v5701, %v5699
        %v8228 = vpack.c.b16 %v5704, %v5702
        %v8229 = vpack.c.b16 %v5705, %v5703
        %v8230 = vpack.c.b16 %v5708, %v5706
        %v8231 = vpack.c.b16 %v5709, %v5707
        %v8232 = vpack.c.b16 %v5712, %v5710
        %v8233 = vpack.c.b16 %v5713, %v5711
        %v8234 = vpack.c.b16 %v5716, %v5714
        %v8235 = vpack.c.b16 %v5717, %v5715
        %v8236 = vpack.c.b16 %v5720, %v5718
        %v8237 = vpack.c.b16 %v5721, %v5719
        %v8238 = vpack.c.b16 %v5724, %v5722
        %v8239 = vpack.c.b16 %v5725, %v5723
        %v8240 = vpack.c.b16 %v5728, %v5726
        %v8241 = vpack.c.b16 %v5729, %v5727
        %v8242 = vpack.c.b16 %v5732, %v5730
        %v8243 = vpack.c.b16 %v5733, %v5731
        %v8244 = vpack.c.b16 %v5736, %v5734
        %v8245 = vpack.c.b16 %v5737, %v5735
        %v8246 = vpack.c.b16 %v5740, %v5738
        %v8247 = vpack.c.b16 %v5741, %v5739
        %v8248 = vpack.c.b16 %v5744, %v5742
        %v8249 = vpack.c.b16 %v5745, %v5743
        %v8250 = vpack.c.b16 %v5748, %v5746
        %v8251 = vpack.c.b16 %v5749, %v5747
        %v8252 = vpack.c.b16 %v5752, %v5750
        %v8253 = vpack.c.b16 %v5753, %v5751
        %v8254 = vpack.c.b16 %v5756, %v5754
        %v8255 = vpack.c.b16 %v5757, %v5755
        %v8256 = vpack.c.b16 %v5760, %v5758
        %v8257 = vpack.c.b16 %v5761, %v5759
        %v8258 = vpack.c.b16 %v5764, %v5762
        %v8259 = vpack.c.b16 %v5765, %v5763
        %v8260 = vpack.c.b16 %v5768, %v5766
        %v8261 = vpack.c.b16 %v5769, %v5767
        %v8262 = vpack.c.b16 %v5772, %v5770
        %v8263 = vpack.c.b16 %v5773, %v5771
        %v8264 = vpack.c.b16 %v5776, %v5774
        %v8265 = vpack.c.b16 %v5777, %v5775
        %v8266 = vpack.c.b16 %v5780, %v5778
        %v8267 = vpack.c.b16 %v5781, %v5779
        %v8268 = vpack.c.b16 %v5784, %v5782
        %v8269 = vpack.c.b16 %v5785, %v5783
        %v8270 = vpack.c.b16 %v5788, %v5786
        %v8271 = vpack.c.b16 %v5789, %v5787
        %v8272 = vpack.c.b16 %v5792, %v5790
        %v8273 = vpack.c.b16 %v5793, %v5791
        %v8274 = vpack.c.b16 %v5796, %v5794
        %v8275 = vpack.c.b16 %v5797, %v5795
        %v8276 = vpack.c.b16 %v5800, %v5798
        %v8277 = vpack.c.b16 %v5801, %v5799
        %v8278 = vpack.c.b16 %v5804, %v5802
        %v8279 = vpack.c.b16 %v5805, %v5803
        %v8280 = vpack.c.b16 %v5808, %v5806
        %v8281 = vpack.c.b16 %v5809, %v5807
        %v8282 = vpack.c.b16 %v5812, %v5810
        %v8283 = vpack.c.b16 %v5813, %v5811
        %v8284 = vpack.c.b16 %v5816, %v5814
        %v8285 = vpack.c.b16 %v5817, %v5815
        %v8286 = vpack.c.b16 %v5820, %v5818
        %v8287 = vpack.c.b16 %v5821, %v5819
        %v8288 = vpack.c.b16 %v5824, %v5822
        %v8289 = vpack.c.b16 %v5825, %v5823
        %v8290 = vpack.c.b16 %v5828, %v5826
        %v8291 = vpack.c.b16 %v5829, %v5827
        %v8292 = vpack.c.b16 %v5832, %v5830
        %v8293 = vpack.c.b16 %v5833, %v5831
        %v8294 = vpack.c.b16 %v5836, %v5834
        %v8295 = vpack.c.b16 %v5837, %v5835
        %v8296 = vpack.c.b16 %v5840, %v5838
        %v8297 = vpack.c.b16 %v5841, %v5839
        %v8298 = vpack.c.b16 %v5844, %v5842
        %v8299 = vpack.c.b16 %v5845, %v5843
        %v8300 = vpack.c.b16 %v5848, %v5846
        %v8301 = vpack.c.b16 %v5849, %v5847
        %v8302 = vpack.c.b16 %v5852, %v5850
        %v8303 = vpack.c.b16 %v5853, %v5851
        %v8304 = vpack.c.b16 %v5856, %v5854
        %v8305 = vpack.c.b16 %v5857, %v5855
        %v8306 = vpack.c.b16 %v5860, %v5858
        %v8307 = vpack.c.b16 %v5861, %v5859
        %v8308 = vpack.c.b16 %v5864, %v5862
        %v8309 = vpack.c.b16 %v5865, %v5863
        %v8310 = vpack.c.b16 %v5868, %v5866
        %v8311 = vpack.c.b16 %v5869, %v5867
        %v8312 = vpack.c.b16 %v5872, %v5870
        %v8313 = vpack.c.b16 %v5873, %v5871
        %v8314 = vpack.c.b16 %v5876, %v5874
        %v8315 = vpack.c.b16 %v5877, %v5875
        %v8316 = vpack.c.b16 %v5880, %v5878
        %v8317 = vpack.c.b16 %v5881, %v5879
        %v8318 = vpack.c.b16 %v5884, %v5882
        %v8319 = vpack.c.b16 %v5885, %v5883
        %v8320 = vpack.c.b16 %v5888, %v5886
        %v8321 = vpack.c.b16 %v5889, %v5887
        %v8322 = vpack.c.b16 %v5892, %v5890
        %v8323 = vpack.c.b16 %v5893, %v5891
        %v8324 = vpack.c.b16 %v5896, %v5894
        %v8325 = vpack.c.b16 %v5897, %v5895
        %v8326 = vpack.c.b16 %v5900, %v5898
        %v8327 = vpack.c.b16 %v5901, %v5899
        %v8328 = vpack.c.b16 %v5904, %v5902
        %v8329 = vpack.c.b16 %v5905, %v5903
        %v8330 = vpack.c.b16 %v5908, %v5906
        %v8331 = vpack.c.b16 %v5909, %v5907
        %v8332 = vpack.c.b16 %v5912, %v5910
        %v8333 = vpack.c.b16 %v5913, %v5911
        %v8334 = vpack.c.b16 %v5916, %v5914
        %v8335 = vpack.c.b16 %v5917, %v5915
        %v8336 = vpack.c.b16 %v5920, %v5918
        %v8337 = vpack.c.b16 %v5921, %v5919
        %v8338 = vpack.c.b16 %v5924, %v5922
        %v8339 = vpack.c.b16 %v5925, %v5923
        %v8340 = vpack.c.b16 %v5928, %v5926
        %v8341 = vpack.c.b16 %v5929, %v5927
        %v8342 = vpack.c.b16 %v5932, %v5930
        %v8343 = vpack.c.b16 %v5933, %v5931
        %v8344 = vpack.c.b16 %v5936, %v5934
        %v8345 = vpack.c.b16 %v5937, %v5935
        %v8346 = vpack.c.b16 %v5940, %v5938
        %v8347 = vpack.c.b16 %v5941, %v5939
        %v8348 = vpack.c.b16 %v5944, %v5942
        %v8349 = vpack.c.b16 %v5945, %v5943
        %v8350 = vpack.c.b16 %v5948, %v5946
        %v8351 = vpack.c.b16 %v5949, %v5947
        %v8352 = vpack.c.b16 %v5952, %v5950
        %v8353 = vpack.c.b16 %v5953, %v5951
        %v8354 = vpack.c.b16 %v5956, %v5954
        %v8355 = vpack.c.b16 %v5957, %v5955
        %v8356 = vpack.c.b16 %v5960, %v5958
        %v8357 = vpack.c.b16 %v5961, %v5959
        %v8358 = vpack.c.b16 %v5964, %v5962
        %v8359 = vpack.c.b16 %v5965, %v5963
        %v8360 = vpack.c.b16 %v5968, %v5966
        %v8361 = vpack.c.b16 %v5969, %v5967
        %v8362 = vpack.c.b16 %v5972, %v5970
        %v8363 = vpack.c.b16 %v5973, %v5971
        %v8364 = vpack.c.b16 %v5976, %v5974
        %v8365 = vpack.c.b16 %v5977, %v5975
        %v8366 = vpack.c.b16 %v5980, %v5978
        %v8367 = vpack.c.b16 %v5981, %v5979
        %v8368 = vpack.c.b16 %v5984, %v5982
        %v8369 = vpack.c.b16 %v5985, %v5983
        %v8370 = vpack.c.b16 %v5988, %v5986
        %v8371 = vpack.c.b16 %v5989, %v5987
        %v8372 = vpack.c.b16 %v5992, %v5990
        %v8373 = vpack.c.b16 %v5993, %v5991
        %v8374 = vpack.c.b16 %v5996, %v5994
        %v8375 = vpack.c.b16 %v5997, %v5995
        %v8376 = vpack.c.b16 %v6000, %v5998
        %v8377 = vpack.c.b16 %v6001, %v5999
        %v8378 = vpack.c.b16 %v6004, %v6002
        %v8379 = vpack.c.b16 %v6005, %v6003
        %v8380 = vpack.c.b16 %v6008, %v6006
        %v8381 = vpack.c.b16 %v6009, %v6007
        %v8382 = vpack.c.b16 %v6012, %v6010
        %v8383 = vpack.c.b16 %v6013, %v6011
        %v8384 = vpack.c.b16 %v6016, %v6014
        %v8385 = vpack.c.b16 %v6017, %v6015
        %v8386 = vpack.c.b16 %v6020, %v6018
        %v8387 = vpack.c.b16 %v6021, %v6019
        %v8388 = vpack.c.b16 %v6024, %v6022
        %v8389 = vpack.c.b16 %v6025, %v6023
        %v8390 = vpack.c.b16 %v6028, %v6026
        %v8391 = vpack.c.b16 %v6029, %v6027
        %v8392 = vpack.c.b16 %v6032, %v6030
        %v8393 = vpack.c.b16 %v6033, %v6031
        %v8394 = vpack.c.b16 %v6036, %v6034
        %v8395 = vpack.c.b16 %v6037, %v6035
        %v8396 = vpack.c.b16 %v6040, %v6038
        %v8397 = vpack.c.b16 %v6041, %v6039
        %v8398 = vpack.c.b16 %v6044, %v6042
        %v8399 = vpack.c.b16 %v6045, %v6043
        %v8400 = vpack.c.b16 %v6048, %v6046
        %v8401 = vpack.c.b16 %v6049, %v6047
        %v8402 = vpack.c.b16 %v6052, %v6050
        %v8403 = vpack.c.b16 %v6053, %v6051
        %v8404 = vpack.c.b16 %v6056, %v6054
        %v8405 = vpack.c.b16 %v6057, %v6055
        %v8406 = vpack.c.b16 %v6060, %v6058
        %v8407 = vpack.c.b16 %v6061, %v6059
        %v8408 = vpack.c.b16 %v6064, %v6062
        %v8409 = vpack.c.b16 %v6065, %v6063
        %v8410 = vpack.c.b16 %v6068, %v6066
        %v8411 = vpack.c.b16 %v6069, %v6067
        %v8412 = vpack.c.b16 %v6072, %v6070
        %v8413 = vpack.c.b16 %v6073, %v6071
        %v8414 = vpack.c.b16 %v6076, %v6074
        %v8415 = vpack.c.b16 %v6077, %v6075
        %v8416 = vpack.c.b16 %v6080, %v6078
        %v8417 = vpack.c.b16 %v6081, %v6079
        %v8418 = vpack.c.b16 %v6084, %v6082
        %v8419 = vpack.c.b16 %v6085, %v6083
        %v8420 = vpack.c.b16 %v6088, %v6086
        %v8421 = vpack.c.b16 %v6089, %v6087
        %v8422 = vpack.c.b16 %v6092, %v6090
        %v8423 = vpack.c.b16 %v6093, %v6091
        %v8424 = vpack.c.b16 %v6096, %v6094
        %v8425 = vpack.c.b16 %v6097, %v6095
        %v8426 = vpack.c.b16 %v6100, %v6098
        %v8427 = vpack.c.b16 %v6101, %v6099
        %v8428 = vpack.c.b16 %v6104, %v6102
        %v8429 = vpack.c.b16 %v6105, %v6103
        %v8430 = vpack.c.b16 %v6108, %v6106
        %v8431 = vpack.c.b16 %v6109, %v6107
        %v8432 = vpack.c.b16 %v6112, %v6110
        %v8433 = vpack.c.b16 %v6113, %v6111
        %v8434 = vpack.c.b16 %v6116, %v6114
        %v8435 = vpack.c.b16 %v6117, %v6115
        %v8436 = vpack.c.b16 %v6120, %v6118
        %v8437 = vpack.c.b16 %v6121, %v6119
        %v8438 = vpack.c.b16 %v6124, %v6122
        %v8439 = vpack.c.b16 %v6125, %v6123
        %v8440 = vpack.c.b16 %v6128, %v6126
        %v8441 = vpack.c.b16 %v6129, %v6127
        %v8442 = vpack.c.b16 %v6132, %v6130
        %v8443 = vpack.c.b16 %v6133, %v6131
        %v8444 = vpack.c.b16 %v6136, %v6134
        %v8445 = vpack.c.b16 %v6137, %v6135
        %v8446 = vpack.c.b16 %v6140, %v6138
        %v8447 = vpack.c.b16 %v6141, %v6139
        %v8448 = vpack.c.b16 %v6144, %v6142
        %v8449 = vpack.c.b16 %v6145, %v6143
        %v8450 = vpack.c.b16 %v6148, %v6146
        %v8451 = vpack.c.b16 %v6149, %v6147
        %v8452 = vpack.c.b16 %v6152, %v6150
        %v8453 = vpack.c.b16 %v6153, %v6151
        %v8454 = vpack.c.b16 %v6156, %v6154
        %v8455 = vpack.c.b16 %v6157, %v6155
        %v8456 = vpack.c.b16 %v6160, %v6158
        %v8457 = vpack.c.b16 %v6161, %v6159
        %v8458 = vpack.c.b16 %v6164, %v6162
        %v8459 = vpack.c.b16 %v6165, %v6163
        %v8460 = vpack.c.b16 %v6168, %v6166
        %v8461 = vpack.c.b16 %v6169, %v6167
        %v8462 = vpack.c.b16 %v6172, %v6170
        %v8463 = vpack.c.b16 %v6173, %v6171
        %v8464 = vpack.c.b16 %v6176, %v6174
        %v8465 = vpack.c.b16 %v6177, %v6175
        %v8466 = vpack.c.b16 %v6180, %v6178
        %v8467 = vpack.c.b16 %v6181, %v6179
        %v8468 = vpack.c.b16 %v6184, %v6182
        %v8469 = vpack.c.b16 %v6185, %v6183
        %v8470 = vpack.c.b16 %v6188, %v6186
        %v8471 = vpack.c.b16 %v6189, %v6187
        %v8472 = vpack.c.b16 %v6192, %v6190
        %v8473 = vpack.c.b16 %v6193, %v6191
        %v8474 = vpack.c.b16 %v6196, %v6194
        %v8475 = vpack.c.b16 %v6197, %v6195
        %v8476 = vpack.c.b16 %v6200, %v6198
        %v8477 = vpack.c.b16 %v6201, %v6199
        %v8478 = vpack.c.b16 %v6204, %v6202
        %v8479 = vpack.c.b16 %v6205, %v6203
        %v8480 = vpack.c.b16 %v6208, %v6206
        %v8481 = vpack.c.b16 %v6209, %v6207
        %v8482 = vpack.c.b16 %v6212, %v6210
        %v8483 = vpack.c.b16 %v6213, %v6211
        %v8484 = vpack.c.b16 %v6216, %v6214
        %v8485 = vpack.c.b16 %v6217, %v6215
        %v8486 = vpack.c.b16 %v6220, %v6218
        %v8487 = vpack.c.b16 %v6221, %v6219
        %v8488 = vpack.c.b16 %v6224, %v6222
        %v8489 = vpack.c.b16 %v6225, %v6223
        %v8490 = vpack.c.b16 %v6228, %v6226
        %v8491 = vpack.c.b16 %v6229, %v6227
        %v8492 = vpack.c.b16 %v6232, %v6230
        %v8493 = vpack.c.b16 %v6233, %v6231
        %v8494 = vpack.c.b16 %v6236, %v6234
        %v8495 = vpack.c.b16 %v6237, %v6235
        %v8496 = vpack.c.b16 %v6240, %v6238
        %v8497 = vpack.c.b16 %v6241, %v6239
        %v8498 = vpack.c.b16 %v6244, %v6242
        %v8499 = vpack.c.b16 %v6245, %v6243
        %v8500 = vpack.c.b16 %v6248, %v6246
        %v8501 = vpack.c.b16 %v6249, %v6247
        %v8502 = vpack.c.b16 %v6252, %v6250
        %v8503 = vpack.c.b16 %v6253, %v6251
        %v8504 = vpack.c.b16 %v6256, %v6254
        %v8505 = vpack.c.b16 %v6257, %v6255
        %v8506 = vpack.c.b16 %v6260, %v6258
        %v8507 = vpack.c.b16 %v6261, %v6259
        %v8508 = vpack.c.b16 %v6264, %v6262
        %v8509 = vpack.c.b16 %v6265, %v6263
        %v8510 = vpack.c.b16 %v6268, %v6266
        %v8511 = vpack.c.b16 %v6269, %v6267
        %v8512 = vpack.c.b16 %v6272, %v6270
        %v8513 = vpack.c.b16 %v6273, %v6271
        %v8514 = vpack.c.b16 %v6276, %v6274
        %v8515 = vpack.c.b16 %v6277, %v6275
        %v8516 = vpack.c.b16 %v6280, %v6278
        %v8517 = vpack.c.b16 %v6281, %v6279
        %v8518 = vpack.c.b16 %v6284, %v6282
        %v8519 = vpack.c.b16 %v6285, %v6283
        %v8520 = vpack.c.b16 %v6288, %v6286
        %v8521 = vpack.c.b16 %v6289, %v6287
        %v8522 = vpack.c.b16 %v6292, %v6290
        %v8523 = vpack.c.b16 %v6293, %v6291
        %v8524 = vpack.c.b16 %v6296, %v6294
        %v8525 = vpack.c.b16 %v6297, %v6295
        %v8526 = vpack.c.b16 %v6300, %v6298
        %v8527 = vpack.c.b16 %v6301, %v6299
        %v8528 = vpack.c.b16 %v6304, %v6302
        %v8529 = vpack.c.b16 %v6305, %v6303
        %v8530 = vpack.c.b16 %v6308, %v6306
        %v8531 = vpack.c.b16 %v6309, %v6307
        %v8532 = vpack.c.b16 %v6312, %v6310
        %v8533 = vpack.c.b16 %v6313, %v6311
        %v8534 = vpack.c.b16 %v6316, %v6314
        %v8535 = vpack.c.b16 %v6317, %v6315
        %v8536 = vpack.c.b16 %v6320, %v6318
        %v8537 = vpack.c.b16 %v6321, %v6319
        %v8538 = vpack.c.b16 %v6324, %v6322
        %v8539 = vpack.c.b16 %v6325, %v6323
        %v8540 = vpack.c.b16 %v6328, %v6326
        %v8541 = vpack.c.b16 %v6329, %v6327
        %v8542 = vpack.c.b16 %v6332, %v6330
        %v8543 = vpack.c.b16 %v6333, %v6331
        %v8544 = vpack.c.b16 %v6336, %v6334
        %v8545 = vpack.c.b16 %v6337, %v6335
        %v8546 = vpack.c.b16 %v6340, %v6338
        %v8547 = vpack.c.b16 %v6341, %v6339
        %v8548 = vpack.c.b16 %v6344, %v6342
        %v8549 = vpack.c.b16 %v6345, %v6343
        %v8550 = vpack.c.b16 %v6348, %v6346
        %v8551 = vpack.c.b16 %v6349, %v6347
        %v8552 = vpack.c.b16 %v6352, %v6350
        %v8553 = vpack.c.b16 %v6353, %v6351
        %v8554 = vpack.c.b16 %v6356, %v6354
        %v8555 = vpack.c.b16 %v6357, %v6355
        %v8556 = vpack.c.b16 %v6360, %v6358
        %v8557 = vpack.c.b16 %v6361, %v6359
        %v8558 = vpack.c.b16 %v6364, %v6362
        %v8559 = vpack.c.b16 %v6365, %v6363
        %v8560 = vpack.c.b16 %v6368, %v6366
        %v8561 = vpack.c.b16 %v6369, %v6367
        %v8562 = vpack.c.b16 %v6372, %v6370
        %v8563 = vpack.c.b16 %v6373, %v6371
        %v8564 = vpack.c.b16 %v6376, %v6374
        %v8565 = vpack.c.b16 %v6377, %v6375
        %v8566 = vpack.c.b16 %v6380, %v6378
        %v8567 = vpack.c.b16 %v6381, %v6379
        %v8568 = vpack.c.b16 %v6384, %v6382
        %v8569 = vpack.c.b16 %v6385, %v6383
        %v8570 = vpack.c.b16 %v6388, %v6386
        %v8571 = vpack.c.b16 %v6389, %v6387
        %v8572 = vpack.c.b16 %v6392, %v6390
        %v8573 = vpack.c.b16 %v6393, %v6391
        %v8574 = vpack.c.b16 %v6396, %v6394
        %v8575 = vpack.c.b16 %v6397, %v6395
        %v8576 = vpack.c.b16 %v6400, %v6398
        %v8577 = vpack.c.b16 %v6401, %v6399
        %v8578 = vpack.c.b16 %v6404, %v6402
        %v8579 = vpack.c.b16 %v6405, %v6403
        %v8580 = vpack.c.b16 %v6408, %v6406
        %v8581 = vpack.c.b16 %v6409, %v6407
        %v8582 = vpack.c.b16 %v6412, %v6410
        %v8583 = vpack.c.b16 %v6413, %v6411
        %v8584 = vpack.c.b16 %v6416, %v6414
        %v8585 = vpack.c.b16 %v6417, %v6415
        %v8586 = vpack.c.b16 %v6420, %v6418
        %v8587 = vpack.c.b16 %v6421, %v6419
        %v8588 = vpack.c.b16 %v6424, %v6422
        %v8589 = vpack.c.b16 %v6425, %v6423
        %v8590 = vpack.c.b16 %v6428, %v6426
        %v8591 = vpack.c.b16 %v6429, %v6427
        %v8592 = vpack.c.b16 %v6432, %v6430
        %v8593 = vpack.c.b16 %v6433, %v6431
        %v8594 = vpack.c.b16 %v6436, %v6434
        %v8595 = vpack.c.b16 %v6437, %v6435
        %v8596 = vpack.c.b16 %v6440, %v6438
        %v8597 = vpack.c.b16 %v6441, %v6439
        %v8598 = vpack.c.b16 %v6444, %v6442
        %v8599 = vpack.c.b16 %v6445, %v6443
        %v8600 = vpack.c.b16 %v6448, %v6446
        %v8601 = vpack.c.b16 %v6449, %v6447
        %v8602 = vpack.c.b16 %v6452, %v6450
        %v8603 = vpack.c.b16 %v6453, %v6451
        %v8604 = vpack.c.b16 %v6456, %v6454
        %v8605 = vpack.c.b16 %v6457, %v6455
        %v8606 = vpack.c.b16 %v6460, %v6458
        %v8607 = vpack.c.b16 %v6461, %v6459
        %v8608 = vpack.c.b16 %v6464, %v6462
        %v8609 = vpack.c.b16 %v6465, %v6463
        %v8610 = vpack.c.b16 %v6468, %v6466
        %v8611 = vpack.c.b16 %v6469, %v6467
        %v8612 = vpack.c.b16 %v6472, %v6470
        %v8613 = vpack.c.b16 %v6473, %v6471
        %v8614 = vpack.c.b16 %v6476, %v6474
        %v8615 = vpack.c.b16 %v6477, %v6475
        %v8616 = vpack.c.b16 %v6480, %v6478
        %v8617 = vpack.c.b16 %v6481, %v6479
        %v8618 = vpack.c.b16 %v6484, %v6482
        %v8619 = vpack.c.b16 %v6485, %v6483
        %v8620 = vpack.c.b16 %v6488, %v6486
        %v8621 = vpack.c.b16 %v6489, %v6487
        %v8622 = vpack.c.b16 %v6492, %v6490
        %v8623 = vpack.c.b16 %v6493, %v6491
        %v8624 = vpack.c.b16 %v6496, %v6494
        %v8625 = vpack.c.b16 %v6497, %v6495
        %v8626 = vpack.c.b16 %v6500, %v6498
        %v8627 = vpack.c.b16 %v6501, %v6499
        %v8628 = vpack.c.b16 %v6504, %v6502
        %v8629 = vpack.c.b16 %v6505, %v6503
        %v8630 = vpack.c.b16 %v6508, %v6506
        %v8631 = vpack.c.b16 %v6509, %v6507
        %v8632 = vpack.c.b16 %v6512, %v6510
        %v8633 = vpack.c.b16 %v6513, %v6511
        %v8634 = vpack.c.b16 %v6516, %v6514
        %v8635 = vpack.c.b16 %v6517, %v6515
        %v8636 = vpack.c.b16 %v6520, %v6518
        %v8637 = vpack.c.b16 %v6521, %v6519
        %v8638 = vpack.c.b16 %v6524, %v6522
        %v8639 = vpack.c.b16 %v6525, %v6523
        %v8640 = vpack.c.b16 %v6528, %v6526
        %v8641 = vpack.c.b16 %v6529, %v6527
        %v8642 = vpack.c.b16 %v6532, %v6530
        %v8643 = vpack.c.b16 %v6533, %v6531
        %v8644 = vpack.c.b16 %v6536, %v6534
        %v8645 = vpack.c.b16 %v6537, %v6535
        %v8646 = vpack.c.b16 %v6540, %v6538
        %v8647 = vpack.c.b16 %v6541, %v6539
        %v8648 = vpack.c.b16 %v6544, %v6542
        %v8649 = vpack.c.b16 %v6545, %v6543
        %v8650 = vpack.c.b16 %v6548, %v6546
        %v8651 = vpack.c.b16 %v6549, %v6547
        %v8652 = vpack.c.b16 %v6552, %v6550
        %v8653 = vpack.c.b16 %v6553, %v6551
        %v8654 = vpack.c.b16 %v6556, %v6554
        %v8655 = vpack.c.b16 %v6557, %v6555
        %v8656 = vpack.c.b16 %v6560, %v6558
        %v8657 = vpack.c.b16 %v6561, %v6559
        %v8658 = vpack.c.b16 %v6564, %v6562
        %v8659 = vpack.c.b16 %v6565, %v6563
        %v8660 = vpack.c.b16 %v6568, %v6566
        %v8661 = vpack.c.b16 %v6569, %v6567
        %v8662 = vpack.c.b16 %v6572, %v6570
        %v8663 = vpack.c.b16 %v6573, %v6571
        %v8664 = vpack.c.b16 %v6576, %v6574
        %v8665 = vpack.c.b16 %v6577, %v6575
        %v8666 = vpack.c.b16 %v6580, %v6578
        %v8667 = vpack.c.b16 %v6581, %v6579
        %v8668 = vpack.c.b16 %v6584, %v6582
        %v8669 = vpack.c.b16 %v6585, %v6583
        %v8670 = vpack.c.b16 %v6588, %v6586
        %v8671 = vpack.c.b16 %v6589, %v6587
        %v8672 = vpack.c.b16 %v6592, %v6590
        %v8673 = vpack.c.b16 %v6593, %v6591
        %v8674 = vpack.c.b16 %v6596, %v6594
        %v8675 = vpack.c.b16 %v6597, %v6595
        %v8676 = vpack.c.b16 %v6600, %v6598
        %v8677 = vpack.c.b16 %v6601, %v6599
        %v8678 = vpack.c.b16 %v6604, %v6602
        %v8679 = vpack.c.b16 %v6605, %v6603
        %v8680 = vpack.c.b16 %v6608, %v6606
        %v8681 = vpack.c.b16 %v6609, %v6607
        %v8682 = vpack.c.b16 %v6612, %v6610
        %v8683 = vpack.c.b16 %v6613, %v6611
        %v8684 = vpack.c.b16 %v6616, %v6614
        %v8685 = vpack.c.b16 %v6617, %v6615
        %v8686 = vpack.c.b16 %v6620, %v6618
        %v8687 = vpack.c.b16 %v6621, %v6619
        %v8688 = vpack.c.b16 %v6624, %v6622
        %v8689 = vpack.c.b16 %v6625, %v6623
        %v8690 = vpack.c.b16 %v6628, %v6626
        %v8691 = vpack.c.b16 %v6629, %v6627
        %v8692 = vpack.c.b16 %v6632, %v6630
        %v8693 = vpack.c.b16 %v6633, %v6631
        %v8694 = vpack.c.b16 %v6636, %v6634
        %v8695 = vpack.c.b16 %v6637, %v6635
        %v8696 = vpack.c.b16 %v6640, %v6638
        %v8697 = vpack.c.b16 %v6641, %v6639
        %v8698 = vpack.c.b16 %v6644, %v6642
        %v8699 = vpack.c.b16 %v6645, %v6643
        %v8700 = vpack.c.b16 %v6648, %v6646
        %v8701 = vpack.c.b16 %v6649, %v6647
        %v8702 = vpack.c.b16 %v6652, %v6650
        %v8703 = vpack.c.b16 %v6653, %v6651
        %v8704 = vpack.c.b16 %v6656, %v6654
        %v8705 = vpack.c.b16 %v6657, %v6655
        %v8706 = vpack.c.b16 %v6660, %v6658
        %v8707 = vpack.c.b16 %v6661, %v6659
        %v8708 = vpack.c.b16 %v6664, %v6662
        %v8709 = vpack.c.b16 %v6665, %v6663
        %v8710 = vpack.c.b16 %v6668, %v6666
        %v8711 = vpack.c.b16 %v6669, %v6667
        %v8712 = vpack.c.b16 %v6672, %v6670
        %v8713 = vpack.c.b16 %v6673, %v6671
        %v8714 = vpack.c.b16 %v6676, %v6674
        %v8715 = vpack.c.b16 %v6677, %v6675
        %v8716 = vpack.c.b16 %v6680, %v6678
        %v8717 = vpack.c.b16 %v6681, %v6679
        %v8718 = vpack.c.b16 %v6684, %v6682
        %v8719 = vpack.c.b16 %v6685, %v6683
        %v8720 = vpack.c.b16 %v6688, %v6686
        %v8721 = vpack.c.b16 %v6689, %v6687
        %v8722 = vpack.c.b16 %v6692, %v6690
        %v8723 = vpack.c.b16 %v6693, %v6691
        %v8724 = vpack.c.b16 %v6696, %v6694
        %v8725 = vpack.c.b16 %v6697, %v6695
        %v8726 = vpack.c.b16 %v6700, %v6698
        %v8727 = vpack.c.b16 %v6701, %v6699
        %v8728 = vpack.c.b16 %v6704, %v6702
        %v8729 = vpack.c.b16 %v6705, %v6703
        %v8730 = vpack.c.b16 %v6708, %v6706
        %v8731 = vpack.c.b16 %v6709, %v6707
        %v8732 = vpack.c.b16 %v6712, %v6710
        %v8733 = vpack.c.b16 %v6713, %v6711
        %v8734 = vpack.c.b16 %v6716, %v6714
        %v8735 = vpack.c.b16 %v6717, %v6715
        %v8736 = vpack.c.b16 %v6720, %v6718
        %v8737 = vpack.c.b16 %v6721, %v6719
        %v8738 = vpack.c.b16 %v6724, %v6722
        %v8739 = vpack.c.b16 %v6725, %v6723
        %v8740 = vpack.c.b16 %v6728, %v6726
        %v8741 = vpack.c.b16 %v6729, %v6727
        %v8742 = vpack.c.b16 %v6732, %v6730
        %v8743 = vpack.c.b16 %v6733, %v6731
        %v8744 = vpack.c.b16 %v6736, %v6734
        %v8745 = vpack.c.b16 %v6737, %v6735
        %v8746 = vpack.c.b16 %v6740, %v6738
        %v8747 = vpack.c.b16 %v6741, %v6739
        %v8748 = vpack.c.b16 %v6744, %v6742
        %v8749 = vpack.c.b16 %v6745, %v6743
        %v8750 = vpack.c.b16 %v6748, %v6746
        %v8751 = vpack.c.b16 %v6749, %v6747
        %v8752 = vpack.c.b16 %v6752, %v6750
        %v8753 = vpack.c.b16 %v6753, %v6751
        %v8754 = vpack.c.b16 %v6756, %v6754
        %v8755 = vpack.c.b16 %v6757, %v6755
        %v8756 = vpack.c.b16 %v6760, %v6758
        %v8757 = vpack.c.b16 %v6761, %v6759
        %v8758 = vpack.c.b16 %v6764, %v6762
        %v8759 = vpack.c.b16 %v6765, %v6763
        %v8760 = vpack.c.b16 %v6768, %v6766
        %v8761 = vpack.c.b16 %v6769, %v6767
        %v8762 = vpack.c.b16 %v6772, %v6770
        %v8763 = vpack.c.b16 %v6773, %v6771
        %v8764 = vpack.c.b16 %v6776, %v6774
        %v8765 = vpack.c.b16 %v6777, %v6775
        %v8766 = vpack.c.b16 %v6780, %v6778
        %v8767 = vpack.c.b16 %v6781, %v6779
        %v8768 = vpack.c.b16 %v6784, %v6782
        %v8769 = vpack.c.b16 %v6785, %v6783
        %v8770 = vpack.c.b16 %v6788, %v6786
        %v8771 = vpack.c.b16 %v6789, %v6787
        %v8772 = vpack.c.b16 %v6792, %v6790
        %v8773 = vpack.c.b16 %v6793, %v6791
        %v8774 = vpack.c.b16 %v6796, %v6794
        %v8775 = vpack.c.b16 %v6797, %v6795
        %v8776 = vpack.c.b16 %v6800, %v6798
        %v8777 = vpack.c.b16 %v6801, %v6799
        %v8778 = vpack.c.b16 %v6804, %v6802
        %v8779 = vpack.c.b16 %v6805, %v6803
        %v8780 = vpack.c.b16 %v6808, %v6806
        %v8781 = vpack.c.b16 %v6809, %v6807
        %v8782 = vpack.c.b16 %v6812, %v6810
        %v8783 = vpack.c.b16 %v6813, %v6811
        %v8784 = vpack.c.b16 %v6816, %v6814
        %v8785 = vpack.c.b16 %v6817, %v6815
        %v8786 = vpack.c.b16 %v6820, %v6818
        %v8787 = vpack.c.b16 %v6821, %v6819
        %v8788 = vpack.c.b16 %v6824, %v6822
        %v8789 = vpack.c.b16 %v6825, %v6823
        %v8790 = vpack.c.b16 %v6828, %v6826
        %v8791 = vpack.c.b16 %v6829, %v6827
        %v8792 = vpack.c.b16 %v6832, %v6830
        %v8793 = vpack.c.b16 %v6833, %v6831
        %v8794 = vpack.c.b16 %v6836, %v6834
        %v8795 = vpack.c.b16 %v6837, %v6835
        %v8796 = vpack.c.b16 %v6840, %v6838
        %v8797 = vpack.c.b16 %v6841, %v6839
        %v8798 = vpack.c.b16 %v6844, %v6842
        %v8799 = vpack.c.b16 %v6845, %v6843
        %v8800 = vpack.c.b16 %v6848, %v6846
        %v8801 = vpack.c.b16 %v6849, %v6847
        %v8802 = vpack.c.b16 %v6852, %v6850
        %v8803 = vpack.c.b16 %v6853, %v6851
        %v8804 = vpack.c.b16 %v6856, %v6854
        %v8805 = vpack.c.b16 %v6857, %v6855
        %v8806 = vpack.c.b16 %v6860, %v6858
        %v8807 = vpack.c.b16 %v6861, %v6859
        %v8808 = vpack.c.b16 %v6864, %v6862
        %v8809 = vpack.c.b16 %v6865, %v6863
        %v8810 = vpack.c.b16 %v6868, %v6866
        %v8811 = vpack.c.b16 %v6869, %v6867
        %v8812 = vpack.c.b16 %v6872, %v6870
        %v8813 = vpack.c.b16 %v6873, %v6871
        %v8814 = vpack.c.b16 %v6876, %v6874
        %v8815 = vpack.c.b16 %v6877, %v6875
        %v8816 = vpack.c.b16 %v6880, %v6878
        %v8817 = vpack.c.b16 %v6881, %v6879
        %v8818 = vpack.c.b16 %v6884, %v6882
        %v8819 = vpack.c.b16 %v6885, %v6883
        %v8820 = vpack.c.b16 %v6888, %v6886
        %v8821 = vpack.c.b16 %v6889, %v6887
        %v8822 = vpack.c.b16 %v6892, %v6890
        %v8823 = vpack.c.b16 %v6893, %v6891
        %v8824 = vpack.c.b16 %v6896, %v6894
        %v8825 = vpack.c.b16 %v6897, %v6895
        %v8826 = vpack.c.b16 %v6900, %v6898
        %v8827 = vpack.c.b16 %v6901, %v6899
        %v8828 = vpack.c.b16 %v6904, %v6902
        %v8829 = vpack.c.b16 %v6905, %v6903
        %v8830 = vpack.c.b16 %v6908, %v6906
        %v8831 = vpack.c.b16 %v6909, %v6907
        %v8832 = vpack.c.b16 %v6912, %v6910
        %v8833 = vpack.c.b16 %v6913, %v6911
        %v8834 = vpack.c.b16 %v6916, %v6914
        %v8835 = vpack.c.b16 %v6917, %v6915
        %v8836 = vpack.c.b16 %v6920, %v6918
        %v8837 = vpack.c.b16 %v6921, %v6919
        %v8838 = vpack.c.b16 %v6924, %v6922
        %v8839 = vpack.c.b16 %v6925, %v6923
        %v8840 = vpack.c.b16 %v6928, %v6926
        %v8841 = vpack.c.b16 %v6929, %v6927
        %v8842 = vpack.c.b16 %v6932, %v6930
        %v8843 = vpack.c.b16 %v6933, %v6931
        %v8844 = vpack.c.b16 %v6936, %v6934
        %v8845 = vpack.c.b16 %v6937, %v6935
        %v8846 = vpack.c.b16 %v6940, %v6938
        %v8847 = vpack.c.b16 %v6941, %v6939
        %v8848 = vpack.c.b16 %v6944, %v6942
        %v8849 = vpack.c.b16 %v6945, %v6943
        %v8850 = vpack.c.b16 %v6948, %v6946
        %v8851 = vpack.c.b16 %v6949, %v6947
        %v8852 = vpack.c.b16 %v6952, %v6950
        %v8853 = vpack.c.b16 %v6953, %v6951
        %v8854 = vpack.c.b16 %v6956, %v6954
        %v8855 = vpack.c.b16 %v6957, %v6955
        %v8856 = vpack.c.b16 %v6960, %v6958
        %v8857 = vpack.c.b16 %v6961, %v6959
        %v8858 = vpack.c.b16 %v6964, %v6962
        %v8859 = vpack.c.b16 %v6965, %v6963
        %v8860 = vpack.c.b16 %v6968, %v6966
        %v8861 = vpack.c.b16 %v6969, %v6967
        %v8862 = vpack.c.b16 %v6972, %v6970
        %v8863 = vpack.c.b16 %v6973, %v6971
        %v8864 = vpack.c.b16 %v6976, %v6974
        %v8865 = vpack.c.b16 %v6977, %v6975
        %v8866 = vpack.c.b16 %v6980, %v6978
        %v8867 = vpack.c.b16 %v6981, %v6979
        %v8868 = vpack.c.b16 %v6984, %v6982
        %v8869 = vpack.c.b16 %v6985, %v6983
        %v8870 = vpack.c.b16 %v6988, %v6986
        %v8871 = vpack.c.b16 %v6989, %v6987
        %v8872 = vpack.c.b16 %v6992, %v6990
        %v8873 = vpack.c.b16 %v6993, %v6991
        %v8874 = vpack.c.b16 %v6996, %v6994
        %v8875 = vpack.c.b16 %v6997, %v6995
        %v8876 = vpack.c.b16 %v7000, %v6998
        %v8877 = vpack.c.b16 %v7001, %v6999
        %v8878 = vpack.c.b16 %v7004, %v7002
        %v8879 = vpack.c.b16 %v7005, %v7003
        %v8880 = vpack.c.b16 %v7008, %v7006
        %v8881 = vpack.c.b16 %v7009, %v7007
        %v8882 = vpack.c.b16 %v7012, %v7010
        %v8883 = vpack.c.b16 %v7013, %v7011
        %v8884 = vpack.c.b16 %v7016, %v7014
        %v8885 = vpack.c.b16 %v7017, %v7015
        %v8886 = vpack.c.b16 %v7020, %v7018
        %v8887 = vpack.c.b16 %v7021, %v7019
        %v8888 = vpack.c.b16 %v7024, %v7022
        %v8889 = vpack.c.b16 %v7025, %v7023
        %v8890 = vpack.c.b16 %v7028, %v7026
        %v8891 = vpack.c.b16 %v7029, %v7027
        %v8892 = vpack.c.b16 %v7032, %v7030
        %v8893 = vpack.c.b16 %v7033, %v7031
        %v8894 = vpack.c.b16 %v7036, %v7034
        %v8895 = vpack.c.b16 %v7037, %v7035
        %v8896 = vpack.c.b16 %v7040, %v7038
        %v8897 = vpack.c.b16 %v7041, %v7039
        %v8898 = vpack.c.b16 %v7044, %v7042
        %v8899 = vpack.c.b16 %v7045, %v7043
        %v8900 = vpack.c.b16 %v7048, %v7046
        %v8901 = vpack.c.b16 %v7049, %v7047
        %v8902 = vpack.c.b16 %v7052, %v7050
        %v8903 = vpack.c.b16 %v7053, %v7051
        %v8904 = vpack.c.b16 %v7056, %v7054
        %v8905 = vpack.c.b16 %v7057, %v7055
        %v8906 = vpack.c.b16 %v7060, %v7058
        %v8907 = vpack.c.b16 %v7061, %v7059
        %v8908 = vpack.c.b16 %v7064, %v7062
        %v8909 = vpack.c.b16 %v7065, %v7063
        %v8910 = vpack.c.b16 %v7068, %v7066
        %v8911 = vpack.c.b16 %v7069, %v7067
        %v8912 = vpack.c.b16 %v7072, %v7070
        %v8913 = vpack.c.b16 %v7073, %v7071
        %v8914 = vpack.c.b16 %v7076, %v7074
        %v8915 = vpack.c.b16 %v7077, %v7075
        %v8916 = vpack.c.b16 %v7080, %v7078
        %v8917 = vpack.c.b16 %v7081, %v7079
        %v8918 = vpack.c.b16 %v7084, %v7082
        %v8919 = vpack.c.b16 %v7085, %v7083
        %v8920 = vpack.c.b16 %v7088, %v7086
        %v8921 = vpack.c.b16 %v7089, %v7087
        %v8922 = vpack.c.b16 %v7092, %v7090
        %v8923 = vpack.c.b16 %v7093, %v7091
        %v8924 = vpack.c.b16 %v7096, %v7094
        %v8925 = vpack.c.b16 %v7097, %v7095
        %v8926 = vpack.c.b16 %v7100, %v7098
        %v8927 = vpack.c.b16 %v7101, %v7099
        %v8928 = vpack.c.b16 %v7104, %v7102
        %v8929 = vpack.c.b16 %v7105, %v7103
        %v8930 = vpack.c.b16 %v7108, %v7106
        %v8931 = vpack.c.b16 %v7109, %v7107
        %v8932 = vpack.c.b16 %v7112, %v7110
        %v8933 = vpack.c.b16 %v7113, %v7111
        %v8934 = vpack.c.b16 %v7116, %v7114
        %v8935 = vpack.c.b16 %v7117, %v7115
        %v8936 = vpack.c.b16 %v7120, %v7118
        %v8937 = vpack.c.b16 %v7121, %v7119
        %v8938 = vpack.c.b16 %v7124, %v7122
        %v8939 = vpack.c.b16 %v7125, %v7123
        %v8940 = vpack.c.b16 %v7128, %v7126
        %v8941 = vpack.c.b16 %v7129, %v7127
        %v8942 = vpack.c.b16 %v7132, %v7130
        %v8943 = vpack.c.b16 %v7133, %v7131
        %v8944 = vpack.c.b16 %v7136, %v7134
        %v8945 = vpack.c.b16 %v7137, %v7135
        %v8946 = vpack.c.b16 %v7140, %v7138
        %v8947 = vpack.c.b16 %v7141, %v7139
        %v8948 = vpack.c.b16 %v7144, %v7142
        %v8949 = vpack.c.b16 %v7145, %v7143
        %v8950 = vpack.c.b16 %v7148, %v7146
        %v8951 = vpack.c.b16 %v7149, %v7147
        %v8952 = vpack.c.b16 %v7152, %v7150
        %v8953 = vpack.c.b16 %v7153, %v7151
        %v8954 = vpack.c.b16 %v7156, %v7154
        %v8955 = vpack.c.b16 %v7157, %v7155
        %v8956 = vpack.c.b16 %v7160, %v7158
        %v8957 = vpack.c.b16 %v7161, %v7159
        %v8958 = vpack.c.b16 %v7164, %v7162
        %v8959 = vpack.c.b16 %v7165, %v7163
        %v8960 = vpack.c.b16 %v7168, %v7166
        %v8961 = vpack.c.b16 %v7169, %v7167
        %v8962 = vpack.c.b16 %v7172, %v7170
        %v8963 = vpack.c.b16 %v7173, %v7171
        %v8964 = vpack.c.b16 %v7176, %v7174
        %v8965 = vpack.c.b16 %v7177, %v7175
        %v8966 = vpack.c.b16 %v7180, %v7178
        %v8967 = vpack.c.b16 %v7181, %v7179
        %v8968 = vpack.c.b16 %v7184, %v7182
        %v8969 = vpack.c.b16 %v7185, %v7183
        %v8970 = vpack.c.b16 %v7188, %v7186
        %v8971 = vpack.c.b16 %v7189, %v7187
        %v8972 = vpack.c.b16 %v7192, %v7190
        %v8973 = vpack.c.b16 %v7193, %v7191
        %v8974 = vpack.c.b16 %v7196, %v7194
        %v8975 = vpack.c.b16 %v7197, %v7195
        %v8976 = vpack.c.b16 %v7200, %v7198
        %v8977 = vpack.c.b16 %v7201, %v7199
        %v8978 = vpack.c.b16 %v7204, %v7202
        %v8979 = vpack.c.b16 %v7205, %v7203
        %v8980 = vpack.c.b16 %v7208, %v7206
        %v8981 = vpack.c.b16 %v7209, %v7207
        %v8982 = vpack.c.b16 %v7212, %v7210
        %v8983 = vpack.c.b16 %v7213, %v7211
        %v8984 = vpack.c.b16 %v7216, %v7214
        %v8985 = vpack.c.b16 %v7217, %v7215
        %v8986 = vpack.c.b16 %v7220, %v7218
        %v8987 = vpack.c.b16 %v7221, %v7219
        %v8988 = vpack.c.b16 %v7224, %v7222
        %v8989 = vpack.c.b16 %v7225, %v7223
        %v8990 = vpack.c.b16 %v7228, %v7226
        %v8991 = vpack.c.b16 %v7229, %v7227
        %v8992 = vpack.c.b16 %v7232, %v7230
        %v8993 = vpack.c.b16 %v7233, %v7231
        %v8994 = vpack.c.b16 %v7236, %v7234
        %v8995 = vpack.c.b16 %v7237, %v7235
        %v8996 = vpack.c.b16 %v7240, %v7238
        %v8997 = vpack.c.b16 %v7241, %v7239
        %v8998 = vpack.c.b16 %v7244, %v7242
        %v8999 = vpack.c.b16 %v7245, %v7243
        %v9000 = vpack.c.b16 %v7248, %v7246
        %v9001 = vpack.c.b16 %v7249, %v7247
        %v9002 = vpack.c.b16 %v7252, %v7250
        %v9003 = vpack.c.b16 %v7253, %v7251
        %v9004 = vpack.c.b16 %v7256, %v7254
        %v9005 = vpack.c.b16 %v7257, %v7255
        %v9006 = vpack.c.b16 %v7260, %v7258
        %v9007 = vpack.c.b16 %v7261, %v7259
        %v9008 = vpack.c.b16 %v7264, %v7262
        %v9009 = vpack.c.b16 %v7265, %v7263
        %v9010 = vpack.c.b16 %v7268, %v7266
        %v9011 = vpack.c.b16 %v7269, %v7267
        %v9012 = vpack.c.b16 %v7272, %v7270
        %v9013 = vpack.c.b16 %v7273, %v7271
        %v9014 = vpack.c.b16 %v7276, %v7274
        %v9015 = vpack.c.b16 %v7277, %v7275
        %v9016 = vpack.c.b16 %v7280, %v7278
        %v9017 = vpack.c.b16 %v7281, %v7279
        %v9018 = vpack.c.b16 %v7284, %v7282
        %v9019 = vpack.c.b16 %v7285, %v7283
        %v9020 = vpack.c.b16 %v7288, %v7286
        %v9021 = vpack.c.b16 %v7289, %v7287
        %v9022 = vpack.c.b16 %v7292, %v7290
        %v9023 = vpack.c.b16 %v7293, %v7291
        %v9024 = vpack.c.b16 %v7296, %v7294
        %v9025 = vpack.c.b16 %v7297, %v7295
        %v9026 = vpack.c.b16 %v7300, %v7298
        %v9027 = vpack.c.b16 %v7301, %v7299
        %v9028 = vpack.c.b16 %v7304, %v7302
        %v9029 = vpack.c.b16 %v7305, %v7303
        %v9030 = vpack.c.b16 %v7308, %v7306
        %v9031 = vpack.c.b16 %v7309, %v7307
        %v9032 = vpack.c.b16 %v7312, %v7310
        %v9033 = vpack.c.b16 %v7313, %v7311
        %v9034 = vpack.c.b16 %v7316, %v7314
        %v9035 = vpack.c.b16 %v7317, %v7315
        %v9036 = vpack.c.b16 %v7320, %v7318
        %v9037 = vpack.c.b16 %v7321, %v7319
        %v9038 = vpack.c.b16 %v7324, %v7322
        %v9039 = vpack.c.b16 %v7325, %v7323
        %v9040 = vpack.c.b16 %v7328, %v7326
        %v9041 = vpack.c.b16 %v7329, %v7327
        %v9042 = vpack.c.b16 %v7332, %v7330
        %v9043 = vpack.c.b16 %v7333, %v7331
        %v9044 = vpack.c.b16 %v7336, %v7334
        %v9045 = vpack.c.b16 %v7337, %v7335
        %v9046 = vpack.c.b16 %v7340, %v7338
        %v9047 = vpack.c.b16 %v7341, %v7339
        %v9048 = vpack.c.b16 %v7344, %v7342
        %v9049 = vpack.c.b16 %v7345, %v7343
        %v9050 = vpack.c.b16 %v7348, %v7346
        %v9051 = vpack.c.b16 %v7349, %v7347
        %v9052 = vpack.c.b16 %v7352, %v7350
        %v9053 = vpack.c.b16 %v7353, %v7351
        %v9054 = vpack.c.b16 %v7356, %v7354
        %v9055 = vpack.c.b16 %v7357, %v7355
        %v9056 = vpack.c.b16 %v7360, %v7358
        %v9057 = vpack.c.b16 %v7361, %v7359
        %v9058 = vpack.c.b16 %v7364, %v7362
        %v9059 = vpack.c.b16 %v7365, %v7363
        %v9060 = vpack.c.b16 %v7368, %v7366
        %v9061 = vpack.c.b16 %v7369, %v7367
        %v9062 = vpack.c.b16 %v7372, %v7370
        %v9063 = vpack.c.b16 %v7373, %v7371
        %v9064 = vpack.c.b16 %v7376, %v7374
        %v9065 = vpack.c.b16 %v7377, %v7375
        %v9066 = vpack.c.b16 %v7380, %v7378
        %v9067 = vpack.c.b16 %v7381, %v7379
        %v9068 = vpack.c.b16 %v7384, %v7382
        %v9069 = vpack.c.b16 %v7385, %v7383
        %v9070 = vpack.c.b16 %v7388, %v7386
        %v9071 = vpack.c.b16 %v7389, %v7387
        %v9072 = vpack.c.b16 %v7392, %v7390
        %v9073 = vpack.c.b16 %v7393, %v7391
        %v9074 = vpack.c.b16 %v7396, %v7394
        %v9075 = vpack.c.b16 %v7397, %v7395
        %v9076 = vpack.c.b16 %v7400, %v7398
        %v9077 = vpack.c.b16 %v7401, %v7399
        %v9078 = vpack.c.b16 %v7404, %v7402
        %v9079 = vpack.c.b16 %v7405, %v7403
        %v9080 = vpack.c.b16 %v7408, %v7406
        %v9081 = vpack.c.b16 %v7409, %v7407
        %v9082 = vpack.c.b16 %v7412, %v7410
        %v9083 = vpack.c.b16 %v7413, %v7411
        %v9084 = vpack.c.b16 %v7416, %v7414
        %v9085 = vpack.c.b16 %v7417, %v7415
        %v9086 = vpack.c.b16 %v7420, %v7418
        %v9087 = vpack.c.b16 %v7421, %v7419
        %v9088 = vpack.c.b16 %v7424, %v7422
        %v9089 = vpack.c.b16 %v7425, %v7423
        %v9090 = vpack.c.b16 %v7428, %v7426
        %v9091 = vpack.c.b16 %v7429, %v7427
        %v9092 = vpack.c.b16 %v7432, %v7430
        %v9093 = vpack.c.b16 %v7433, %v7431
        %v9094 = vpack.c.b16 %v7436, %v7434
        %v9095 = vpack.c.b16 %v7437, %v7435
        %v9096 = vpack.c.b16 %v7440, %v7438
        %v9097 = vpack.c.b16 %v7441, %v7439
        %v9098 = vpack.c.b16 %v7444, %v7442
        %v9099 = vpack.c.b16 %v7445, %v7443
        %v9100 = vpack.c.b16 %v7448, %v7446
        %v9101 = vpack.c.b16 %v7449, %v7447
        %v9102 = vpack.c.b16 %v7452, %v7450
        %v9103 = vpack.c.b16 %v7453, %v7451
        %v9104 = vpack.c.b16 %v7456, %v7454
        %v9105 = vpack.c.b16 %v7457, %v7455
        %v9106 = vpack.c.b16 %v7460, %v7458
        %v9107 = vpack.c.b16 %v7461, %v7459
        %v9108 = vpack.c.b16 %v7464, %v7462
        %v9109 = vpack.c.b16 %v7465, %v7463
        %v9110 = vpack.c.b16 %v7468, %v7466
        %v9111 = vpack.c.b16 %v7469, %v7467
        %v9112 = vpack.c.b16 %v7472, %v7470
        %v9113 = vpack.c.b16 %v7473, %v7471
        %v9114 = vpack.c.b16 %v7476, %v7474
        %v9115 = vpack.c.b16 %v7477, %v7475
        %v9116 = vpack.c.b16 %v7480, %v7478
        %v9117 = vpack.c.b16 %v7481, %v7479
        %v9118 = vpack.c.b16 %v7484, %v7482
        %v9119 = vpack.c.b16 %v7485, %v7483
        %v9120 = vpack.c.b16 %v7488, %v7486
        %v9121 = vpack.c.b16 %v7489, %v7487
        %v9122 = vpack.c.b16 %v7492, %v7490
        %v9123 = vpack.c.b16 %v7493, %v7491
        %v9124 = vpack.c.b16 %v7496, %v7494
        %v9125 = vpack.c.b16 %v7497, %v7495
        %v9126 = vpack.c.b16 %v7500, %v7498
        %v9127 = vpack.c.b16 %v7501, %v7499
        %v9128 = vpack.c.b16 %v7504, %v7502
        %v9129 = vpack.c.b16 %v7505, %v7503
        %v9130 = vpack.c.b16 %v7508, %v7506
        %v9131 = vpack.c.b16 %v7509, %v7507
        %v9132 = vpack.c.b16 %v7512, %v7510
        %v9133 = vpack.c.b16 %v7513, %v7511
        %v9134 = vpack.c.b16 %v7516, %v7514
        %v9135 = vpack.c.b16 %v7517, %v7515
        %v9136 = vpack.c.b16 %v7520, %v7518
        %v9137 = vpack.c.b16 %v7521, %v7519
        %v9138 = vpack.c.b16 %v7524, %v7522
        %v9139 = vpack.c.b16 %v7525, %v7523
        %v9140 = vpack.c.b16 %v7528, %v7526
        %v9141 = vpack.c.b16 %v7529, %v7527
        %v9142 = vpack.c.b16 %v7532, %v7530
        %v9143 = vpack.c.b16 %v7533, %v7531
        %v9144 = vpack.c.b16 %v7536, %v7534
        %v9145 = vpack.c.b16 %v7537, %v7535
        %v9146 = vpack.c.b16 %v7540, %v7538
        %v9147 = vpack.c.b16 %v7541, %v7539
        %v9148 = vpack.c.b16 %v7544, %v7542
        %v9149 = vpack.c.b16 %v7545, %v7543
        %v9150 = vpack.c.b16 %v7548, %v7546
        %v9151 = vpack.c.b16 %v7549, %v7547
        %v9152 = vpack.c.b16 %v7552, %v7550
        %v9153 = vpack.c.b16 %v7553, %v7551
        %10754 = vmatprep.subr.bf16.mxu0 %v7555
        %10755 = vmatpush1.bf16.msra.mxu0 %v7554
        %10756 = vmatprep.subr.bf16.mxu0 %v7557
        %10757 = vmatpush1.bf16.msra.mxu0 %v7556
        %10758 = vmatprep.subr.bf16.mxu0 %v7559
        %10759 = vmatpush1.bf16.msra.mxu0 %v7558
        %10760 = vmatprep.subr.bf16.mxu0 %v7561
        %10761 = vmatpush1.bf16.msra.mxu0 %v7560
        %10762 = vmatprep.subr.bf16.mxu0 %v7563
        %10763 = vmatpush1.bf16.msra.mxu0 %v7562
        %10764 = vmatprep.subr.bf16.mxu0 %v7565
        %10765 = vmatpush1.bf16.msra.mxu0 %v7564
        %10766 = vmatprep.subr.bf16.mxu0 %v7567
        %10767 = vmatpush1.bf16.msra.mxu0 %v7566
        %10768 = vmatprep.subr.bf16.mxu0 %v7569
        %10769 = vmatpush1.bf16.msra.mxu0 %v7568
        %10770 = vmatprep.subr.bf16.mxu0 %v7571
        %10771 = vmatpush1.bf16.msra.mxu0 %v7570
        %10772 = vmatprep.subr.bf16.mxu0 %v7573
        %10773 = vmatpush1.bf16.msra.mxu0 %v7572
        %10774 = vmatprep.subr.bf16.mxu0 %v7575
        %10775 = vmatpush1.bf16.msra.mxu0 %v7574
        %10776 = vmatprep.subr.bf16.mxu0 %v7577
        %10777 = vmatpush1.bf16.msra.mxu0 %v7576
        %10778 = vmatprep.subr.bf16.mxu0 %v7579
        %10779 = vmatpush1.bf16.msra.mxu0 %v7578
        %10780 = vmatprep.subr.bf16.mxu0 %v7581
        %10781 = vmatpush1.bf16.msra.mxu0 %v7580
        %10782 = vmatprep.subr.bf16.mxu0 %v7583
        %10783 = vmatpush1.bf16.msra.mxu0 %v7582
        %10784 = vmatprep.subr.bf16.mxu0 %v7585
        %10785 = vmatpush1.bf16.msra.mxu0 %v7584
        %10786 = vmatprep.mubr.bf16.mxu0 %v2079
        %10787 = vmatmul.mubr.bf16.gmra.mrb[0].mxu0 %v2065
        %v10788 = vpop.f32.mrb[0].mxu0
        %v10789 = vadd.f32 0.0, %v10788
        %v10790 = vpop.f32.mrb[0].mxu0
        %v10791 = vadd.f32 0.0, %v10790
        %v10792 = vpop.f32.mrb[0].mxu0
        %v10793 = vpop.f32.mrb[0].mxu0
        %10794 = vdwg.mxu0
        %10795 = vmatprep.subr.bf16.mxu0 %v7587
        %10796 = vmatpush1.bf16.msra.mxu0 %v7586
        %10797 = vmatprep.subr.bf16.mxu0 %v7589
        %10798 = vmatpush1.bf16.msra.mxu0 %v7588
        %10799 = vmatprep.subr.bf16.mxu0 %v7591
        %10800 = vmatpush1.bf16.msra.mxu0 %v7590
        %10801 = vmatprep.subr.bf16.mxu0 %v7593
        %10802 = vmatpush1.bf16.msra.mxu0 %v7592
        %10803 = vmatprep.subr.bf16.mxu0 %v7595
        %10804 = vmatpush1.bf16.msra.mxu0 %v7594
        %10805 = vmatprep.subr.bf16.mxu0 %v7597
        %10806 = vmatpush1.bf16.msra.mxu0 %v7596
        %10807 = vmatprep.subr.bf16.mxu0 %v7599
        %10808 = vmatpush1.bf16.msra.mxu0 %v7598
        %10809 = vmatprep.subr.bf16.mxu0 %v7601
        %10810 = vmatpush1.bf16.msra.mxu0 %v7600
        %10811 = vmatprep.subr.bf16.mxu0 %v7603
        %10812 = vmatpush1.bf16.msra.mxu0 %v7602
        %10813 = vmatprep.subr.bf16.mxu0 %v7605
        %10814 = vmatpush1.bf16.msra.mxu0 %v7604
        %10815 = vmatprep.subr.bf16.mxu0 %v7607
        %10816 = vmatpush1.bf16.msra.mxu0 %v7606
        %10817 = vmatprep.subr.bf16.mxu0 %v7609
        %10818 = vmatpush1.bf16.msra.mxu0 %v7608
        %10819 = vmatprep.subr.bf16.mxu0 %v7611
        %10820 = vmatpush1.bf16.msra.mxu0 %v7610
        %10821 = vmatprep.subr.bf16.mxu0 %v7613
        %10822 = vmatpush1.bf16.msra.mxu0 %v7612
        %10823 = vmatprep.subr.bf16.mxu0 %v7615
        %10824 = vmatpush1.bf16.msra.mxu0 %v7614
        %10825 = vmatprep.subr.bf16.mxu0 %v7617
        %10826 = vmatpush1.bf16.msra.mxu0 %v7616
        %10827 = vmatprep.mubr.bf16.mxu0 %v2089
        %10828 = vmatmul.mubr.bf16.gmra.mrb[0].mxu0 %v2087
        %v10829 = vpop.f32.mrb[0].mxu0
        %v10830 = vadd.f32 %v10789, %v10829
        %v10831 = vpop.f32.mrb[0].mxu0
        %v10832 = vadd.f32 %v10791, %v10831
        %v10833 = vpop.f32.mrb[0].mxu0
        %v10834 = vpop.f32.mrb[0].mxu0
        %10835 = vdwg.mxu0
        %10836 = vmatprep.subr.bf16.mxu0 %v7619
        %10837 = vmatpush1.bf16.msra.mxu0 %v7618
        %10838 = vmatprep.subr.bf16.mxu0 %v7621
        %10839 = vmatpush1.bf16.msra.mxu0 %v7620
        %10840 = vmatprep.subr.bf16.mxu0 %v7623
        %10841 = vmatpush1.bf16.msra.mxu0 %v7622
        %10842 = vmatprep.subr.bf16.mxu0 %v7625
        %10843 = vmatpush1.bf16.msra.mxu0 %v7624
        %10844 = vmatprep.subr.bf16.mxu0 %v7627
        %10845 = vmatpush1.bf16.msra.mxu0 %v7626
        %10846 = vmatprep.subr.bf16.mxu0 %v7629
        %10847 = vmatpush1.bf16.msra.mxu0 %v7628
        %10848 = vmatprep.subr.bf16.mxu0 %v7631
        %10849 = vmatpush1.bf16.msra.mxu0 %v7630
        %10850 = vmatprep.subr.bf16.mxu0 %v7633
        %10851 = vmatpush1.bf16.msra.mxu0 %v7632
        %10852 = vmatprep.subr.bf16.mxu0 %v7635
        %10853 = vmatpush1.bf16.msra.mxu0 %v7634
        %10854 = vmatprep.subr.bf16.mxu0 %v7637
        %10855 = vmatpush1.bf16.msra.mxu0 %v7636
        %10856 = vmatprep.subr.bf16.mxu0 %v7639
        %10857 = vmatpush1.bf16.msra.mxu0 %v7638
        %10858 = vmatprep.subr.bf16.mxu0 %v7641
        %10859 = vmatpush1.bf16.msra.mxu0 %v7640
        %10860 = vmatprep.subr.bf16.mxu0 %v7643
        %10861 = vmatpush1.bf16.msra.mxu0 %v7642
        %10862 = vmatprep.subr.bf16.mxu0 %v7645
        %10863 = vmatpush1.bf16.msra.mxu0 %v7644
        %10864 = vmatprep.subr.bf16.mxu0 %v7647
        %10865 = vmatpush1.bf16.msra.mxu0 %v7646
        %10866 = vmatprep.subr.bf16.mxu0 %v7649
        %10867 = vmatpush1.bf16.msra.mxu0 %v7648
        %10868 = vmatprep.mubr.bf16.mxu0 %v2086
        %10869 = vmatmul.mubr.bf16.gmra.mrb[0].mxu0 %v2072
        %v10870 = vpop.f32.mrb[0].mxu0
        %v10871 = vadd.f32 %v10830, %v10870
        %v10872 = vpop.f32.mrb[0].mxu0
        %v10873 = vadd.f32 %v10832, %v10872
        %v10874 = vpop.f32.mrb[0].mxu0
        %v10875 = vpop.f32.mrb[0].mxu0
        %10876 = vdwg.mxu0
        %10877 = vmatprep.subr.bf16.mxu0 %v7651
        %10878 = vmatpush1.bf16.msra.mxu0 %v7650
        %10879 = vmatprep.subr.bf16.mxu0 %v7653
        %10880 = vmatpush1.bf16.msra.mxu0 %v7652
        %10881 = vmatprep.subr.bf16.mxu0 %v7655
        %10882 = vmatpush1.bf16.msra.mxu0 %v7654
        %10883 = vmatprep.subr.bf16.mxu0 %v7657
        %10884 = vmatpush1.bf16.msra.mxu0 %v7656
        %10885 = vmatprep.subr.bf16.mxu0 %v7659
        %10886 = vmatpush1.bf16.msra.mxu0 %v7658
        %10887 = vmatprep.subr.bf16.mxu0 %v7661
        %10888 = vmatpush1.bf16.msra.mxu0 %v7660
        %10889 = vmatprep.subr.bf16.mxu0 %v7663
        %10890 = vmatpush1.bf16.msra.mxu0 %v7662
        %10891 = vmatprep.subr.bf16.mxu0 %v7665
        %10892 = vmatpush1.bf16.msra.mxu0 %v7664
        %10893 = vmatprep.subr.bf16.mxu0 %v7667
        %10894 = vmatpush1.bf16.msra.mxu0 %v7666
        %10895 = vmatprep.subr.bf16.mxu0 %v7669
        %10896 = vmatpush1.bf16.msra.mxu0 %v7668
        %10897 = vmatprep.subr.bf16.mxu0 %v7671
        %10898 = vmatpush1.bf16.msra.mxu0 %v7670
        %10899 = vmatprep.subr.bf16.mxu0 %v7673
        %10900 = vmatpush1.bf16.msra.mxu0 %v7672
        %10901 = vmatprep.subr.bf16.mxu0 %v7675
        %10902 = vmatpush1.bf16.msra.mxu0 %v7674
        %10903 = vmatprep.subr.bf16.mxu0 %v7677
        %10904 = vmatpush1.bf16.msra.mxu0 %v7676
        %10905 = vmatprep.subr.bf16.mxu0 %v7679
        %10906 = vmatpush1.bf16.msra.mxu0 %v7678
        %10907 = vmatprep.subr.bf16.mxu0 %v7681
        %10908 = vmatpush1.bf16.msra.mxu0 %v7680
        %10909 = vmatprep.mubr.bf16.mxu0 %v2090
        %10910 = vmatmul.mubr.bf16.gmra.mrb[0].mxu0 %v2088
        %v10911 = vpop.f32.mrb[0].mxu0
        %v10912 = vadd.f32 %v10871, %v10911
        %v10913 = vpop.f32.mrb[0].mxu0
        %v10914 = vadd.f32 %v10873, %v10913
        %v10915 = vpop.f32.mrb[0].mxu0
        %v10916 = vpop.f32.mrb[0].mxu0
        %10917 = vdwg.mxu0
        %10918 = vmatprep.subr.bf16.mxu0 %v7683
        %10919 = vmatpush1.bf16.msra.mxu0 %v7682
        %10920 = vmatprep.subr.bf16.mxu0 %v7685
        %10921 = vmatpush1.bf16.msra.mxu0 %v7684
        %10922 = vmatprep.subr.bf16.mxu0 %v7687
        %10923 = vmatpush1.bf16.msra.mxu0 %v7686
        %10924 = vmatprep.subr.bf16.mxu0 %v7689
        %10925 = vmatpush1.bf16.msra.mxu0 %v7688
        %10926 = vmatprep.subr.bf16.mxu0 %v7691
        %10927 = vmatpush1.bf16.msra.mxu0 %v7690
        %10928 = vmatprep.subr.bf16.mxu0 %v7693
        %10929 = vmatpush1.bf16.msra.mxu0 %v7692
        %10930 = vmatprep.subr.bf16.mxu0 %v7695
        %10931 = vmatpush1.bf16.msra.mxu0 %v7694
        %10932 = vmatprep.subr.bf16.mxu0 %v7697
        %10933 = vmatpush1.bf16.msra.mxu0 %v7696
        %10934 = vmatprep.subr.bf16.mxu0 %v7699
        %10935 = vmatpush1.bf16.msra.mxu0 %v7698
        %10936 = vmatprep.subr.bf16.mxu0 %v7701
        %10937 = vmatpush1.bf16.msra.mxu0 %v7700
        %10938 = vmatprep.subr.bf16.mxu0 %v7703
        %10939 = vmatpush1.bf16.msra.mxu0 %v7702
        %10940 = vmatprep.subr.bf16.mxu0 %v7705
        %10941 = vmatpush1.bf16.msra.mxu0 %v7704
        %10942 = vmatprep.subr.bf16.mxu0 %v7707
        %10943 = vmatpush1.bf16.msra.mxu0 %v7706
        %10944 = vmatprep.subr.bf16.mxu0 %v7709
        %10945 = vmatpush1.bf16.msra.mxu0 %v7708
        %10946 = vmatprep.subr.bf16.mxu0 %v7711
        %10947 = vmatpush1.bf16.msra.mxu0 %v7710
        %10948 = vmatprep.subr.bf16.mxu0 %v7713
        %10949 = vmatpush1.bf16.msra.mxu0 %v7712
        %10950 = vmatprep.mubr.bf16.mxu0 %v2128
        %10951 = vmatmul.mubr.bf16.gmra.mrb[0].mxu0 %v2114
        %v10952 = vpop.f32.mrb[0].mxu0
        %v10953 = vadd.f32 %v10912, %v10952
        %v10954 = vpop.f32.mrb[0].mxu0
        %v10955 = vadd.f32 %v10914, %v10954
        %v10956 = vpop.f32.mrb[0].mxu0
        %v10957 = vpop.f32.mrb[0].mxu0
        %10958 = vdwg.mxu0
        %10959 = vmatprep.subr.bf16.mxu0 %v7715
        %10960 = vmatpush1.bf16.msra.mxu0 %v7714
        %10961 = vmatprep.subr.bf16.mxu0 %v7717
        %10962 = vmatpush1.bf16.msra.mxu0 %v7716
        %10963 = vmatprep.subr.bf16.mxu0 %v7719
        %10964 = vmatpush1.bf16.msra.mxu0 %v7718
        %10965 = vmatprep.subr.bf16.mxu0 %v7721
        %10966 = vmatpush1.bf16.msra.mxu0 %v7720
        %10967 = vmatprep.subr.bf16.mxu0 %v7723
        %10968 = vmatpush1.bf16.msra.mxu0 %v7722
        %10969 = vmatprep.subr.bf16.mxu0 %v7725
        %10970 = vmatpush1.bf16.msra.mxu0 %v7724
        %10971 = vmatprep.subr.bf16.mxu0 %v7727
        %10972 = vmatpush1.bf16.msra.mxu0 %v7726
        %10973 = vmatprep.subr.bf16.mxu0 %v7729
        %10974 = vmatpush1.bf16.msra.mxu0 %v7728
        %10975 = vmatprep.subr.bf16.mxu0 %v7731
        %10976 = vmatpush1.bf16.msra.mxu0 %v7730
        %10977 = vmatprep.subr.bf16.mxu0 %v7733
        %10978 = vmatpush1.bf16.msra.mxu0 %v7732
        %10979 = vmatprep.subr.bf16.mxu0 %v7735
        %10980 = vmatpush1.bf16.msra.mxu0 %v7734
        %10981 = vmatprep.subr.bf16.mxu0 %v7737
        %10982 = vmatpush1.bf16.msra.mxu0 %v7736
        %10983 = vmatprep.subr.bf16.mxu0 %v7739
        %10984 = vmatpush1.bf16.msra.mxu0 %v7738
        %10985 = vmatprep.subr.bf16.mxu0 %v7741
        %10986 = vmatpush1.bf16.msra.mxu0 %v7740
        %10987 = vmatprep.subr.bf16.mxu0 %v7743
        %10988 = vmatpush1.bf16.msra.mxu0 %v7742
        %10989 = vmatprep.subr.bf16.mxu0 %v7745
        %10990 = vmatpush1.bf16.msra.mxu0 %v7744
        %10991 = vmatprep.mubr.bf16.mxu0 %v2138
        %10992 = vmatmul.mubr.bf16.gmra.mrb[0].mxu0 %v2136
        %v10993 = vpop.f32.mrb[0].mxu0
        %v10994 = vadd.f32 %v10953, %v10993
        %v10995 = vpop.f32.mrb[0].mxu0
        %v10996 = vadd.f32 %v10955, %v10995
        %v10997 = vpop.f32.mrb[0].mxu0
        %v10998 = vpop.f32.mrb[0].mxu0
        %10999 = vdwg.mxu0
        %11000 = vmatprep.subr.bf16.mxu0 %v7747
        %11001 = vmatpush1.bf16.msra.mxu0 %v7746
        %11002 = vmatprep.subr.bf16.mxu0 %v7749
        %11003 = vmatpush1.bf16.msra.mxu0 %v7748
        %11004 = vmatprep.subr.bf16.mxu0 %v7751
        %11005 = vmatpush1.bf16.msra.mxu0 %v7750
        %11006 = vmatprep.subr.bf16.mxu0 %v7753
        %11007 = vmatpush1.bf16.msra.mxu0 %v7752
        %11008 = vmatprep.subr.bf16.mxu0 %v7755
        %11009 = vmatpush1.bf16.msra.mxu0 %v7754
        %11010 = vmatprep.subr.bf16.mxu0 %v7757
        %11011 = vmatpush1.bf16.msra.mxu0 %v7756
        %11012 = vmatprep.subr.bf16.mxu0 %v7759
        %11013 = vmatpush1.bf16.msra.mxu0 %v7758
        %11014 = vmatprep.subr.bf16.mxu0 %v7761
        %11015 = vmatpush1.bf16.msra.mxu0 %v7760
        %11016 = vmatprep.subr.bf16.mxu0 %v7763
        %11017 = vmatpush1.bf16.msra.mxu0 %v7762
        %11018 = vmatprep.subr.bf16.mxu0 %v7765
        %11019 = vmatpush1.bf16.msra.mxu0 %v7764
        %11020 = vmatprep.subr.bf16.mxu0 %v7767
        %11021 = vmatpush1.bf16.msra.mxu0 %v7766
        %11022 = vmatprep.subr.bf16.mxu0 %v7769
        %11023 = vmatpush1.bf16.msra.mxu0 %v7768
        %11024 = vmatprep.subr.bf16.mxu0 %v7771
        %11025 = vmatpush1.bf16.msra.mxu0 %v7770
        %11026 = vmatprep.subr.bf16.mxu0 %v7773
        %11027 = vmatpush1.bf16.msra.mxu0 %v7772
        %11028 = vmatprep.subr.bf16.mxu0 %v7775
        %11029 = vmatpush1.bf16.msra.mxu0 %v7774
        %11030 = vmatprep.subr.bf16.mxu0 %v7777
        %11031 = vmatpush1.bf16.msra.mxu0 %v7776
        %11032 = vmatprep.mubr.bf16.mxu0 %v2135
        %11033 = vmatmul.mubr.bf16.gmra.mrb[0].mxu0 %v2121
        %v11034 = vpop.f32.mrb[0].mxu0
        %v11035 = vadd.f32 %v10994, %v11034
        %v11036 = vpop.f32.mrb[0].mxu0
        %v11037 = vadd.f32 %v10996, %v11036
        %v11038 = vpop.f32.mrb[0].mxu0
        %v11039 = vpop.f32.mrb[0].mxu0
        %11040 = vdwg.mxu0
        %11041 = vmatprep.subr.bf16.mxu0 %v7779
        %11042 = vmatpush1.bf16.msra.mxu0 %v7778
        %11043 = vmatprep.subr.bf16.mxu0 %v7781
        %11044 = vmatpush1.bf16.msra.mxu0 %v7780
        %11045 = vmatprep.subr.bf16.mxu0 %v7783
        %11046 = vmatpush1.bf16.msra.mxu0 %v7782
        %11047 = vmatprep.subr.bf16.mxu0 %v7785
        %11048 = vmatpush1.bf16.msra.mxu0 %v7784
        %11049 = vmatprep.subr.bf16.mxu0 %v7787
        %11050 = vmatpush1.bf16.msra.mxu0 %v7786
        %11051 = vmatprep.subr.bf16.mxu0 %v7789
        %11052 = vmatpush1.bf16.msra.mxu0 %v7788
        %11053 = vmatprep.subr.bf16.mxu0 %v7791
        %11054 = vmatpush1.bf16.msra.mxu0 %v7790
        %11055 = vmatprep.subr.bf16.mxu0 %v7793
        %11056 = vmatpush1.bf16.msra.mxu0 %v7792
        %11057 = vmatprep.subr.bf16.mxu0 %v7795
        %11058 = vmatpush1.bf16.msra.mxu0 %v7794
        %11059 = vmatprep.subr.bf16.mxu0 %v7797
        %11060 = vmatpush1.bf16.msra.mxu0 %v7796
        %11061 = vmatprep.subr.bf16.mxu0 %v7799
        %11062 = vmatpush1.bf16.msra.mxu0 %v7798
        %11063 = vmatprep.subr.bf16.mxu0 %v7801
        %11064 = vmatpush1.bf16.msra.mxu0 %v7800
        %11065 = vmatprep.subr.bf16.mxu0 %v7803
        %11066 = vmatpush1.bf16.msra.mxu0 %v7802
        %11067 = vmatprep.subr.bf16.mxu0 %v7805
        %11068 = vmatpush1.bf16.msra.mxu0 %v7804
        %11069 = vmatprep.subr.bf16.mxu0 %v7807
        %11070 = vmatpush1.bf16.msra.mxu0 %v7806
        %11071 = vmatprep.subr.bf16.mxu0 %v7809
        %11072 = vmatpush1.bf16.msra.mxu0 %v7808
        %11073 = vmatprep.mubr.bf16.mxu0 %v2139
        %11074 = vmatmul.mubr.bf16.gmra.mrb[0].mxu0 %v2137
        %v11075 = vpop.f32.mrb[0].mxu0
        %v11076 = vadd.f32 %v11035, %v11075
        %v11077 = vpop.f32.mrb[0].mxu0
        %v11078 = vadd.f32 %v11037, %v11077
        %v11079 = vpop.f32.mrb[0].mxu0
        %v11080 = vpop.f32.mrb[0].mxu0
        %11081 = vdwg.mxu0
        %11082 = vmatprep.subr.bf16.mxu0 %v7811
        %11083 = vmatpush1.bf16.msra.mxu0 %v7810
        %11084 = vmatprep.subr.bf16.mxu0 %v7813
        %11085 = vmatpush1.bf16.msra.mxu0 %v7812
        %11086 = vmatprep.subr.bf16.mxu0 %v7815
        %11087 = vmatpush1.bf16.msra.mxu0 %v7814
        %11088 = vmatprep.subr.bf16.mxu0 %v7817
        %11089 = vmatpush1.bf16.msra.mxu0 %v7816
        %11090 = vmatprep.subr.bf16.mxu0 %v7819
        %11091 = vmatpush1.bf16.msra.mxu0 %v7818
        %11092 = vmatprep.subr.bf16.mxu0 %v7821
        %11093 = vmatpush1.bf16.msra.mxu0 %v7820
        %11094 = vmatprep.subr.bf16.mxu0 %v7823
        %11095 = vmatpush1.bf16.msra.mxu0 %v7822
        %11096 = vmatprep.subr.bf16.mxu0 %v7825
        %11097 = vmatpush1.bf16.msra.mxu0 %v7824
        %11098 = vmatprep.subr.bf16.mxu0 %v7827
        %11099 = vmatpush1.bf16.msra.mxu0 %v7826
        %11100 = vmatprep.subr.bf16.mxu0 %v7829
        %11101 = vmatpush1.bf16.msra.mxu0 %v7828
        %11102 = vmatprep.subr.bf16.mxu0 %v7831
        %11103 = vmatpush1.bf16.msra.mxu0 %v7830
        %11104 = vmatprep.subr.bf16.mxu0 %v7833
        %11105 = vmatpush1.bf16.msra.mxu0 %v7832
        %11106 = vmatprep.subr.bf16.mxu0 %v7835
        %11107 = vmatpush1.bf16.msra.mxu0 %v7834
        %11108 = vmatprep.subr.bf16.mxu0 %v7837
        %11109 = vmatpush1.bf16.msra.mxu0 %v7836
        %11110 = vmatprep.subr.bf16.mxu0 %v7839
        %11111 = vmatpush1.bf16.msra.mxu0 %v7838
        %11112 = vmatprep.subr.bf16.mxu0 %v7841
        %11113 = vmatpush1.bf16.msra.mxu0 %v7840
        %11114 = vmatprep.mubr.bf16.mxu0 %v2177
        %11115 = vmatmul.mubr.bf16.gmra.mrb[0].mxu0 %v2163
        %v11116 = vpop.f32.mrb[0].mxu0
        %v11117 = vadd.f32 %v11076, %v11116
        %v11118 = vpop.f32.mrb[0].mxu0
        %v11119 = vadd.f32 %v11078, %v11118
        %v11120 = vpop.f32.mrb[0].mxu0
        %v11121 = vpop.f32.mrb[0].mxu0
        %11122 = vdwg.mxu0
        %11123 = vmatprep.subr.bf16.mxu0 %v7843
        %11124 = vmatpush1.bf16.msra.mxu0 %v7842
        %11125 = vmatprep.subr.bf16.mxu0 %v7845
        %11126 = vmatpush1.bf16.msra.mxu0 %v7844
        %11127 = vmatprep.subr.bf16.mxu0 %v7847
        %11128 = vmatpush1.bf16.msra.mxu0 %v7846
        %11129 = vmatprep.subr.bf16.mxu0 %v7849
        %11130 = vmatpush1.bf16.msra.mxu0 %v7848
        %11131 = vmatprep.subr.bf16.mxu0 %v7851
        %11132 = vmatpush1.bf16.msra.mxu0 %v7850
        %11133 = vmatprep.subr.bf16.mxu0 %v7853
        %11134 = vmatpush1.bf16.msra.mxu0 %v7852
        %11135 = vmatprep.subr.bf16.mxu0 %v7855
        %11136 = vmatpush1.bf16.msra.mxu0 %v7854
        %11137 = vmatprep.subr.bf16.mxu0 %v7857
        %11138 = vmatpush1.bf16.msra.mxu0 %v7856
        %11139 = vmatprep.subr.bf16.mxu0 %v7859
        %11140 = vmatpush1.bf16.msra.mxu0 %v7858
        %11141 = vmatprep.subr.bf16.mxu0 %v7861
        %11142 = vmatpush1.bf16.msra.mxu0 %v7860
        %11143 = vmatprep.subr.bf16.mxu0 %v7863
        %11144 = vmatpush1.bf16.msra.mxu0 %v7862
        %11145 = vmatprep.subr.bf16.mxu0 %v7865
        %11146 = vmatpush1.bf16.msra.mxu0 %v7864
        %11147 = vmatprep.subr.bf16.mxu0 %v7867
        %11148 = vmatpush1.bf16.msra.mxu0 %v7866
        %11149 = vmatprep.subr.bf16.mxu0 %v7869
        %11150 = vmatpush1.bf16.msra.mxu0 %v7868
        %11151 = vmatprep.subr.bf16.mxu0 %v7871
        %11152 = vmatpush1.bf16.msra.mxu0 %v7870
        %11153 = vmatprep.subr.bf16.mxu0 %v7873
        %11154 = vmatpush1.bf16.msra.mxu0 %v7872
        %11155 = vmatprep.mubr.bf16.mxu0 %v2187
        %11156 = vmatmul.mubr.bf16.gmra.mrb[0].mxu0 %v2185
        %v11157 = vpop.f32.mrb[0].mxu0
        %v11158 = vadd.f32 %v11117, %v11157
        %v11159 = vpop.f32.mrb[0].mxu0
        %v11160 = vadd.f32 %v11119, %v11159
        %v11161 = vpop.f32.mrb[0].mxu0
        %v11162 = vpop.f32.mrb[0].mxu0
        %11163 = vdwg.mxu0
        %11164 = vmatprep.subr.bf16.mxu0 %v7875
        %11165 = vmatpush1.bf16.msra.mxu0 %v7874
        %11166 = vmatprep.subr.bf16.mxu0 %v7877
        %11167 = vmatpush1.bf16.msra.mxu0 %v7876
        %11168 = vmatprep.subr.bf16.mxu0 %v7879
        %11169 = vmatpush1.bf16.msra.mxu0 %v7878
        %11170 = vmatprep.subr.bf16.mxu0 %v7881
        %11171 = vmatpush1.bf16.msra.mxu0 %v7880
        %11172 = vmatprep.subr.bf16.mxu0 %v7883
        %11173 = vmatpush1.bf16.msra.mxu0 %v7882
        %11174 = vmatprep.subr.bf16.mxu0 %v7885
        %11175 = vmatpush1.bf16.msra.mxu0 %v7884
        %11176 = vmatprep.subr.bf16.mxu0 %v7887
        %11177 = vmatpush1.bf16.msra.mxu0 %v7886
        %11178 = vmatprep.subr.bf16.mxu0 %v7889
        %11179 = vmatpush1.bf16.msra.mxu0 %v7888
        %11180 = vmatprep.subr.bf16.mxu0 %v7891
        %11181 = vmatpush1.bf16.msra.mxu0 %v7890
        %11182 = vmatprep.subr.bf16.mxu0 %v7893
        %11183 = vmatpush1.bf16.msra.mxu0 %v7892
        %11184 = vmatprep.subr.bf16.mxu0 %v7895
        %11185 = vmatpush1.bf16.msra.mxu0 %v7894
        %11186 = vmatprep.subr.bf16.mxu0 %v7897
        %11187 = vmatpush1.bf16.msra.mxu0 %v7896
        %11188 = vmatprep.subr.bf16.mxu0 %v7899
        %11189 = vmatpush1.bf16.msra.mxu0 %v7898
        %11190 = vmatprep.subr.bf16.mxu0 %v7901
        %11191 = vmatpush1.bf16.msra.mxu0 %v7900
        %11192 = vmatprep.subr.bf16.mxu0 %v7903
        %11193 = vmatpush1.bf16.msra.mxu0 %v7902
        %11194 = vmatprep.subr.bf16.mxu0 %v7905
        %11195 = vmatpush1.bf16.msra.mxu0 %v7904
        %11196 = vmatprep.mubr.bf16.mxu0 %v2184
        %11197 = vmatmul.mubr.bf16.gmra.mrb[0].mxu0 %v2170
        %v11198 = vpop.f32.mrb[0].mxu0
        %v11199 = vadd.f32 %v11158, %v11198
        %v11200 = vpop.f32.mrb[0].mxu0
        %v11201 = vadd.f32 %v11160, %v11200
        %v11202 = vpop.f32.mrb[0].mxu0
        %v11203 = vpop.f32.mrb[0].mxu0
        %11204 = vdwg.mxu0
        %11205 = vmatprep.subr.bf16.mxu0 %v7907
        %11206 = vmatpush1.bf16.msra.mxu0 %v7906
        %11207 = vmatprep.subr.bf16.mxu0 %v7909
        %11208 = vmatpush1.bf16.msra.mxu0 %v7908
        %11209 = vmatprep.subr.bf16.mxu0 %v7911
        %11210 = vmatpush1.bf16.msra.mxu0 %v7910
        %11211 = vmatprep.subr.bf16.mxu0 %v7913
        %11212 = vmatpush1.bf16.msra.mxu0 %v7912
        %11213 = vmatprep.subr.bf16.mxu0 %v7915
        %11214 = vmatpush1.bf16.msra.mxu0 %v7914
        %11215 = vmatprep.subr.bf16.mxu0 %v7917
        %11216 = vmatpush1.bf16.msra.mxu0 %v7916
        %11217 = vmatprep.subr.bf16.mxu0 %v7919
        %11218 = vmatpush1.bf16.msra.mxu0 %v7918
        %11219 = vmatprep.subr.bf16.mxu0 %v7921
        %11220 = vmatpush1.bf16.msra.mxu0 %v7920
        %11221 = vmatprep.subr.bf16.mxu0 %v7923
        %11222 = vmatpush1.bf16.msra.mxu0 %v7922
        %11223 = vmatprep.subr.bf16.mxu0 %v7925
        %11224 = vmatpush1.bf16.msra.mxu0 %v7924
        %11225 = vmatprep.subr.bf16.mxu0 %v7927
        %11226 = vmatpush1.bf16.msra.mxu0 %v7926
        %11227 = vmatprep.subr.bf16.mxu0 %v7929
        %11228 = vmatpush1.bf16.msra.mxu0 %v7928
        %11229 = vmatprep.subr.bf16.mxu0 %v7931
        %11230 = vmatpush1.bf16.msra.mxu0 %v7930
        %11231 = vmatprep.subr.bf16.mxu0 %v7933
        %11232 = vmatpush1.bf16.msra.mxu0 %v7932
        %11233 = vmatprep.subr.bf16.mxu0 %v7935
        %11234 = vmatpush1.bf16.msra.mxu0 %v7934
        %11235 = vmatprep.subr.bf16.mxu0 %v7937
        %11236 = vmatpush1.bf16.msra.mxu0 %v7936
        %11237 = vmatprep.mubr.bf16.mxu0 %v2188
        %11238 = vmatmul.mubr.bf16.gmra.mrb[0].mxu0 %v2186
        %v11239 = vpop.f32.mrb[0].mxu0
        %v11240 = vadd.f32 %v11199, %v11239
        %v11241 = vpop.f32.mrb[0].mxu0
        %v11242 = vadd.f32 %v11201, %v11241
        %v11243 = vpop.f32.mrb[0].mxu0
        %v11244 = vpop.f32.mrb[0].mxu0
        %11245 = vdwg.mxu0
        %11246 = vmatprep.subr.bf16.mxu0 %v7939
        %11247 = vmatpush1.bf16.msra.mxu0 %v7938
        %11248 = vmatprep.subr.bf16.mxu0 %v7941
        %11249 = vmatpush1.bf16.msra.mxu0 %v7940
        %11250 = vmatprep.subr.bf16.mxu0 %v7943
        %11251 = vmatpush1.bf16.msra.mxu0 %v7942
        %11252 = vmatprep.subr.bf16.mxu0 %v7945
        %11253 = vmatpush1.bf16.msra.mxu0 %v7944
        %11254 = vmatprep.subr.bf16.mxu0 %v7947
        %11255 = vmatpush1.bf16.msra.mxu0 %v7946
        %11256 = vmatprep.subr.bf16.mxu0 %v7949
        %11257 = vmatpush1.bf16.msra.mxu0 %v7948
        %11258 = vmatprep.subr.bf16.mxu0 %v7951
        %11259 = vmatpush1.bf16.msra.mxu0 %v7950
        %11260 = vmatprep.subr.bf16.mxu0 %v7953
        %11261 = vmatpush1.bf16.msra.mxu0 %v7952
        %11262 = vmatprep.subr.bf16.mxu0 %v7955
        %11263 = vmatpush1.bf16.msra.mxu0 %v7954
        %11264 = vmatprep.subr.bf16.mxu0 %v7957
        %11265 = vmatpush1.bf16.msra.mxu0 %v7956
        %11266 = vmatprep.subr.bf16.mxu0 %v7959
        %11267 = vmatpush1.bf16.msra.mxu0 %v7958
        %11268 = vmatprep.subr.bf16.mxu0 %v7961
        %11269 = vmatpush1.bf16.msra.mxu0 %v7960
        %11270 = vmatprep.subr.bf16.mxu0 %v7963
        %11271 = vmatpush1.bf16.msra.mxu0 %v7962
        %11272 = vmatprep.subr.bf16.mxu0 %v7965
        %11273 = vmatpush1.bf16.msra.mxu0 %v7964
        %11274 = vmatprep.subr.bf16.mxu0 %v7967
        %11275 = vmatpush1.bf16.msra.mxu0 %v7966
        %11276 = vmatprep.subr.bf16.mxu0 %v7969
        %11277 = vmatpush1.bf16.msra.mxu0 %v7968
        %11278 = vmatprep.mubr.bf16.mxu0 %v2226
        %11279 = vmatmul.mubr.bf16.gmra.mrb[0].mxu0 %v2212
        %v11280 = vpop.f32.mrb[0].mxu0
        %v11281 = vadd.f32 %v11240, %v11280
        %v11282 = vpop.f32.mrb[0].mxu0
        %v11283 = vadd.f32 %v11242, %v11282
        %v11284 = vpop.f32.mrb[0].mxu0
        %v11285 = vpop.f32.mrb[0].mxu0
        %11286 = vdwg.mxu0
        %11287 = vmatprep.subr.bf16.mxu0 %v7971
        %11288 = vmatpush1.bf16.msra.mxu0 %v7970
        %11289 = vmatprep.subr.bf16.mxu0 %v7973
        %11290 = vmatpush1.bf16.msra.mxu0 %v7972
        %11291 = vmatprep.subr.bf16.mxu0 %v7975
        %11292 = vmatpush1.bf16.msra.mxu0 %v7974
        %11293 = vmatprep.subr.bf16.mxu0 %v7977
        %11294 = vmatpush1.bf16.msra.mxu0 %v7976
        %11295 = vmatprep.subr.bf16.mxu0 %v7979
        %11296 = vmatpush1.bf16.msra.mxu0 %v7978
        %11297 = vmatprep.subr.bf16.mxu0 %v7981
        %11298 = vmatpush1.bf16.msra.mxu0 %v7980
        %11299 = vmatprep.subr.bf16.mxu0 %v7983
        %11300 = vmatpush1.bf16.msra.mxu0 %v7982
        %11301 = vmatprep.subr.bf16.mxu0 %v7985
        %11302 = vmatpush1.bf16.msra.mxu0 %v7984
        %11303 = vmatprep.subr.bf16.mxu0 %v7987
        %11304 = vmatpush1.bf16.msra.mxu0 %v7986
        %11305 = vmatprep.subr.bf16.mxu0 %v7989
        %11306 = vmatpush1.bf16.msra.mxu0 %v7988
        %11307 = vmatprep.subr.bf16.mxu0 %v7991
        %11308 = vmatpush1.bf16.msra.mxu0 %v7990
        %11309 = vmatprep.subr.bf16.mxu0 %v7993
        %11310 = vmatpush1.bf16.msra.mxu0 %v7992
        %11311 = vmatprep.subr.bf16.mxu0 %v7995
        %11312 = vmatpush1.bf16.msra.mxu0 %v7994
        %11313 = vmatprep.subr.bf16.mxu0 %v7997
        %11314 = vmatpush1.bf16.msra.mxu0 %v7996
        %11315 = vmatprep.subr.bf16.mxu0 %v7999
        %11316 = vmatpush1.bf16.msra.mxu0 %v7998
        %11317 = vmatprep.subr.bf16.mxu0 %v8001
        %11318 = vmatpush1.bf16.msra.mxu0 %v8000
        %11319 = vmatprep.mubr.bf16.mxu0 %v2236
        %11320 = vmatmul.mubr.bf16.gmra.mrb[0].mxu0 %v2234
        %v11321 = vpop.f32.mrb[0].mxu0
        %v11322 = vadd.f32 %v11281, %v11321
        %v11323 = vpop.f32.mrb[0].mxu0
        %v11324 = vadd.f32 %v11283, %v11323
        %v11325 = vpop.f32.mrb[0].mxu0
        %v11326 = vpop.f32.mrb[0].mxu0
        %11327 = vdwg.mxu0
        %11328 = vmatprep.subr.bf16.mxu0 %v8003
        %11329 = vmatpush1.bf16.msra.mxu0 %v8002
        %11330 = vmatprep.subr.bf16.mxu0 %v8005
        %11331 = vmatpush1.bf16.msra.mxu0 %v8004
        %11332 = vmatprep.subr.bf16.mxu0 %v8007
        %11333 = vmatpush1.bf16.msra.mxu0 %v8006
        %11334 = vmatprep.subr.bf16.mxu0 %v8009
        %11335 = vmatpush1.bf16.msra.mxu0 %v8008
        %11336 = vmatprep.subr.bf16.mxu0 %v8011
        %11337 = vmatpush1.bf16.msra.mxu0 %v8010
        %11338 = vmatprep.subr.bf16.mxu0 %v8013
        %11339 = vmatpush1.bf16.msra.mxu0 %v8012
        %11340 = vmatprep.subr.bf16.mxu0 %v8015
        %11341 = vmatpush1.bf16.msra.mxu0 %v8014
        %11342 = vmatprep.subr.bf16.mxu0 %v8017
        %11343 = vmatpush1.bf16.msra.mxu0 %v8016
        %11344 = vmatprep.subr.bf16.mxu0 %v8019
        %11345 = vmatpush1.bf16.msra.mxu0 %v8018
        %11346 = vmatprep.subr.bf16.mxu0 %v8021
        %11347 = vmatpush1.bf16.msra.mxu0 %v8020
        %11348 = vmatprep.subr.bf16.mxu0 %v8023
        %11349 = vmatpush1.bf16.msra.mxu0 %v8022
        %11350 = vmatprep.subr.bf16.mxu0 %v8025
        %11351 = vmatpush1.bf16.msra.mxu0 %v8024
        %11352 = vmatprep.subr.bf16.mxu0 %v8027
        %11353 = vmatpush1.bf16.msra.mxu0 %v8026
        %11354 = vmatprep.subr.bf16.mxu0 %v8029
        %11355 = vmatpush1.bf16.msra.mxu0 %v8028
        %11356 = vmatprep.subr.bf16.mxu0 %v8031
        %11357 = vmatpush1.bf16.msra.mxu0 %v8030
        %11358 = vmatprep.subr.bf16.mxu0 %v8033
        %11359 = vmatpush1.bf16.msra.mxu0 %v8032
        %11360 = vmatprep.mubr.bf16.mxu0 %v2233
        %11361 = vmatmul.mubr.bf16.gmra.mrb[0].mxu0 %v2219
        %v11362 = vpop.f32.mrb[0].mxu0
        %v11363 = vadd.f32 %v11322, %v11362
        %v11364 = vpop.f32.mrb[0].mxu0
        %v11365 = vadd.f32 %v11324, %v11364
        %v11366 = vpop.f32.mrb[0].mxu0
        %v11367 = vpop.f32.mrb[0].mxu0
        %11368 = vdwg.mxu0
        %11369 = vmatprep.subr.bf16.mxu0 %v8035
        %11370 = vmatpush1.bf16.msra.mxu0 %v8034
        %11371 = vmatprep.subr.bf16.mxu0 %v8037
        %11372 = vmatpush1.bf16.msra.mxu0 %v8036
        %11373 = vmatprep.subr.bf16.mxu0 %v8039
        %11374 = vmatpush1.bf16.msra.mxu0 %v8038
        %11375 = vmatprep.subr.bf16.mxu0 %v8041
        %11376 = vmatpush1.bf16.msra.mxu0 %v8040
        %11377 = vmatprep.subr.bf16.mxu0 %v8043
        %11378 = vmatpush1.bf16.msra.mxu0 %v8042
        %11379 = vmatprep.subr.bf16.mxu0 %v8045
        %11380 = vmatpush1.bf16.msra.mxu0 %v8044
        %11381 = vmatprep.subr.bf16.mxu0 %v8047
        %11382 = vmatpush1.bf16.msra.mxu0 %v8046
        %11383 = vmatprep.subr.bf16.mxu0 %v8049
        %11384 = vmatpush1.bf16.msra.mxu0 %v8048
        %11385 = vmatprep.subr.bf16.mxu0 %v8051
        %11386 = vmatpush1.bf16.msra.mxu0 %v8050
        %11387 = vmatprep.subr.bf16.mxu0 %v8053
        %11388 = vmatpush1.bf16.msra.mxu0 %v8052
        %11389 = vmatprep.subr.bf16.mxu0 %v8055
        %11390 = vmatpush1.bf16.msra.mxu0 %v8054
        %11391 = vmatprep.subr.bf16.mxu0 %v8057
        %11392 = vmatpush1.bf16.msra.mxu0 %v8056
        %11393 = vmatprep.subr.bf16.mxu0 %v8059
        %11394 = vmatpush1.bf16.msra.mxu0 %v8058
        %11395 = vmatprep.subr.bf16.mxu0 %v8061
        %11396 = vmatpush1.bf16.msra.mxu0 %v8060
        %11397 = vmatprep.subr.bf16.mxu0 %v8063
        %11398 = vmatpush1.bf16.msra.mxu0 %v8062
        %11399 = vmatprep.subr.bf16.mxu0 %v8065
        %11400 = vmatpush1.bf16.msra.mxu0 %v8064
        %11401 = vmatprep.mubr.bf16.mxu0 %v2237
        %11402 = vmatmul.mubr.bf16.gmra.mrb[0].mxu0 %v2235
        %v11403 = vpop.f32.mrb[0].mxu0
        %v11404 = vadd.f32 %v11363, %v11403
        %v11405 = vpop.f32.mrb[0].mxu0
        %v11406 = vadd.f32 %v11365, %v11405
        %v11407 = vpop.f32.mrb[0].mxu0
        %v11408 = vpop.f32.mrb[0].mxu0
        %11409 = vdwg.mxu0
        %11410 = vmatprep.subr.bf16.mxu0 %v8067
        %11411 = vmatpush1.bf16.msra.mxu0 %v8066
        %11412 = vmatprep.subr.bf16.mxu0 %v8069
        %11413 = vmatpush1.bf16.msra.mxu0 %v8068
        %11414 = vmatprep.subr.bf16.mxu0 %v8071
        %11415 = vmatpush1.bf16.msra.mxu0 %v8070
        %11416 = vmatprep.subr.bf16.mxu0 %v8073
        %11417 = vmatpush1.bf16.msra.mxu0 %v8072
        %11418 = vmatprep.subr.bf16.mxu0 %v8075
        %11419 = vmatpush1.bf16.msra.mxu0 %v8074
        %11420 = vmatprep.subr.bf16.mxu0 %v8077
        %11421 = vmatpush1.bf16.msra.mxu0 %v8076
        %11422 = vmatprep.subr.bf16.mxu0 %v8079
        %11423 = vmatpush1.bf16.msra.mxu0 %v8078
        %11424 = vmatprep.subr.bf16.mxu0 %v8081
        %11425 = vmatpush1.bf16.msra.mxu0 %v8080
        %11426 = vmatprep.subr.bf16.mxu0 %v8083
        %11427 = vmatpush1.bf16.msra.mxu0 %v8082
        %11428 = vmatprep.subr.bf16.mxu0 %v8085
        %11429 = vmatpush1.bf16.msra.mxu0 %v8084
        %11430 = vmatprep.subr.bf16.mxu0 %v8087
        %11431 = vmatpush1.bf16.msra.mxu0 %v8086
        %11432 = vmatprep.subr.bf16.mxu0 %v8089
        %11433 = vmatpush1.bf16.msra.mxu0 %v8088
        %11434 = vmatprep.subr.bf16.mxu0 %v8091
        %11435 = vmatpush1.bf16.msra.mxu0 %v8090
        %11436 = vmatprep.subr.bf16.mxu0 %v8093
        %11437 = vmatpush1.bf16.msra.mxu0 %v8092
        %11438 = vmatprep.subr.bf16.mxu0 %v8095
        %11439 = vmatpush1.bf16.msra.mxu0 %v8094
        %11440 = vmatprep.subr.bf16.mxu0 %v8097
        %11441 = vmatpush1.bf16.msra.mxu0 %v8096
        %11442 = vmatprep.mubr.bf16.mxu0 %v2275
        %11443 = vmatmul.mubr.bf16.gmra.mrb[0].mxu0 %v2261
        %v11444 = vpop.f32.mrb[0].mxu0
        %v11445 = vadd.f32 %v11404, %v11444
        %v11446 = vpop.f32.mrb[0].mxu0
        %v11447 = vadd.f32 %v11406, %v11446
        %v11448 = vpop.f32.mrb[0].mxu0
        %v11449 = vpop.f32.mrb[0].mxu0
        %11450 = vdwg.mxu0
        %11451 = vmatprep.subr.bf16.mxu0 %v8099
        %11452 = vmatpush1.bf16.msra.mxu0 %v8098
        %11453 = vmatprep.subr.bf16.mxu0 %v8101
        %11454 = vmatpush1.bf16.msra.mxu0 %v8100
        %11455 = vmatprep.subr.bf16.mxu0 %v8103
        %11456 = vmatpush1.bf16.msra.mxu0 %v8102
        %11457 = vmatprep.subr.bf16.mxu0 %v8105
        %11458 = vmatpush1.bf16.msra.mxu0 %v8104
        %11459 = vmatprep.subr.bf16.mxu0 %v8107
        %11460 = vmatpush1.bf16.msra.mxu0 %v8106
        %11461 = vmatprep.subr.bf16.mxu0 %v8109
        %11462 = vmatpush1.bf16.msra.mxu0 %v8108
        %11463 = vmatprep.subr.bf16.mxu0 %v8111
        %11464 = vmatpush1.bf16.msra.mxu0 %v8110
        %11465 = vmatprep.subr.bf16.mxu0 %v8113
        %11466 = vmatpush1.bf16.msra.mxu0 %v8112
        %11467 = vmatprep.subr.bf16.mxu0 %v8115
        %11468 = vmatpush1.bf16.msra.mxu0 %v8114
        %11469 = vmatprep.subr.bf16.mxu0 %v8117
        %11470 = vmatpush1.bf16.msra.mxu0 %v8116
        %11471 = vmatprep.subr.bf16.mxu0 %v8119
        %11472 = vmatpush1.bf16.msra.mxu0 %v8118
        %11473 = vmatprep.subr.bf16.mxu0 %v8121
        %11474 = vmatpush1.bf16.msra.mxu0 %v8120
        %11475 = vmatprep.subr.bf16.mxu0 %v8123
        %11476 = vmatpush1.bf16.msra.mxu0 %v8122
        %11477 = vmatprep.subr.bf16.mxu0 %v8125
        %11478 = vmatpush1.bf16.msra.mxu0 %v8124
        %11479 = vmatprep.subr.bf16.mxu0 %v8127
        %11480 = vmatpush1.bf16.msra.mxu0 %v8126
        %11481 = vmatprep.subr.bf16.mxu0 %v8129
        %11482 = vmatpush1.bf16.msra.mxu0 %v8128
        %11483 = vmatprep.mubr.bf16.mxu0 %v2285
        %11484 = vmatmul.mubr.bf16.gmra.mrb[0].mxu0 %v2283
        %v11485 = vpop.f32.mrb[0].mxu0
        %v11486 = vadd.f32 %v11445, %v11485
        %v11487 = vpop.f32.mrb[0].mxu0
        %v11488 = vadd.f32 %v11447, %v11487
        %v11489 = vpop.f32.mrb[0].mxu0
        %v11490 = vpop.f32.mrb[0].mxu0
        %11491 = vdwg.mxu0
        %11492 = vmatprep.subr.bf16.mxu0 %v8131
        %11493 = vmatpush1.bf16.msra.mxu0 %v8130
        %11494 = vmatprep.subr.bf16.mxu0 %v8133
        %11495 = vmatpush1.bf16.msra.mxu0 %v8132
        %11496 = vmatprep.subr.bf16.mxu0 %v8135
        %11497 = vmatpush1.bf16.msra.mxu0 %v8134
        %11498 = vmatprep.subr.bf16.mxu0 %v8137
        %11499 = vmatpush1.bf16.msra.mxu0 %v8136
        %11500 = vmatprep.subr.bf16.mxu0 %v8139
        %11501 = vmatpush1.bf16.msra.mxu0 %v8138
        %11502 = vmatprep.subr.bf16.mxu0 %v8141
        %11503 = vmatpush1.bf16.msra.mxu0 %v8140
        %11504 = vmatprep.subr.bf16.mxu0 %v8143
        %11505 = vmatpush1.bf16.msra.mxu0 %v8142
        %11506 = vmatprep.subr.bf16.mxu0 %v8145
        %11507 = vmatpush1.bf16.msra.mxu0 %v8144
        %11508 = vmatprep.subr.bf16.mxu0 %v8147
        %11509 = vmatpush1.bf16.msra.mxu0 %v8146
        %11510 = vmatprep.subr.bf16.mxu0 %v8149
        %11511 = vmatpush1.bf16.msra.mxu0 %v8148
        %11512 = vmatprep.subr.bf16.mxu0 %v8151
        %11513 = vmatpush1.bf16.msra.mxu0 %v8150
        %11514 = vmatprep.subr.bf16.mxu0 %v8153
        %11515 = vmatpush1.bf16.msra.mxu0 %v8152
        %11516 = vmatprep.subr.bf16.mxu0 %v8155
        %11517 = vmatpush1.bf16.msra.mxu0 %v8154
        %11518 = vmatprep.subr.bf16.mxu0 %v8157
        %11519 = vmatpush1.bf16.msra.mxu0 %v8156
        %11520 = vmatprep.subr.bf16.mxu0 %v8159
        %11521 = vmatpush1.bf16.msra.mxu0 %v8158
        %11522 = vmatprep.subr.bf16.mxu0 %v8161
        %11523 = vmatpush1.bf16.msra.mxu0 %v8160
        %11524 = vmatprep.mubr.bf16.mxu0 %v2282
        %11525 = vmatmul.mubr.bf16.gmra.mrb[0].mxu0 %v2268
        %v11526 = vpop.f32.mrb[0].mxu0
        %v11527 = vadd.f32 %v11486, %v11526
        %v11528 = vpop.f32.mrb[0].mxu0
        %v11529 = vadd.f32 %v11488, %v11528
        %v11530 = vpop.f32.mrb[0].mxu0
        %v11531 = vpop.f32.mrb[0].mxu0
        %11532 = vdwg.mxu0
        %11533 = vmatprep.subr.bf16.mxu0 %v8163
        %11534 = vmatpush1.bf16.msra.mxu0 %v8162
        %11535 = vmatprep.subr.bf16.mxu0 %v8165
        %11536 = vmatpush1.bf16.msra.mxu0 %v8164
        %11537 = vmatprep.subr.bf16.mxu0 %v8167
        %11538 = vmatpush1.bf16.msra.mxu0 %v8166
        %11539 = vmatprep.subr.bf16.mxu0 %v8169
        %11540 = vmatpush1.bf16.msra.mxu0 %v8168
        %11541 = vmatprep.subr.bf16.mxu0 %v8171
        %11542 = vmatpush1.bf16.msra.mxu0 %v8170
        %11543 = vmatprep.subr.bf16.mxu0 %v8173
        %11544 = vmatpush1.bf16.msra.mxu0 %v8172
        %11545 = vmatprep.subr.bf16.mxu0 %v8175
        %11546 = vmatpush1.bf16.msra.mxu0 %v8174
        %11547 = vmatprep.subr.bf16.mxu0 %v8177
        %11548 = vmatpush1.bf16.msra.mxu0 %v8176
        %11549 = vmatprep.subr.bf16.mxu0 %v8179
        %11550 = vmatpush1.bf16.msra.mxu0 %v8178
        %11551 = vmatprep.subr.bf16.mxu0 %v8181
        %11552 = vmatpush1.bf16.msra.mxu0 %v8180
        %11553 = vmatprep.subr.bf16.mxu0 %v8183
        %11554 = vmatpush1.bf16.msra.mxu0 %v8182
        %11555 = vmatprep.subr.bf16.mxu0 %v8185
        %11556 = vmatpush1.bf16.msra.mxu0 %v8184
        %11557 = vmatprep.subr.bf16.mxu0 %v8187
        %11558 = vmatpush1.bf16.msra.mxu0 %v8186
        %11559 = vmatprep.subr.bf16.mxu0 %v8189
        %11560 = vmatpush1.bf16.msra.mxu0 %v8188
        %11561 = vmatprep.subr.bf16.mxu0 %v8191
        %11562 = vmatpush1.bf16.msra.mxu0 %v8190
        %11563 = vmatprep.subr.bf16.mxu0 %v8193
        %11564 = vmatpush1.bf16.msra.mxu0 %v8192
        %11565 = vmatprep.mubr.bf16.mxu0 %v2286
        %11566 = vmatmul.mubr.bf16.gmra.mrb[0].mxu0 %v2284
        %v11567 = vpop.f32.mrb[0].mxu0
        %v11568 = vadd.f32 %v11527, %v11567
        %v11569 = vpop.f32.mrb[0].mxu0
        %v11570 = vadd.f32 %v11529, %v11569
        %v11571 = vpop.f32.mrb[0].mxu0
        %v11572 = vpop.f32.mrb[0].mxu0
        %11573 = vdwg.mxu0
        %11574 = vmatprep.subr.bf16.mxu0 %v8195
        %11575 = vmatpush1.bf16.msra.mxu0 %v8194
        %11576 = vmatprep.subr.bf16.mxu0 %v8197
        %11577 = vmatpush1.bf16.msra.mxu0 %v8196
        %11578 = vmatprep.subr.bf16.mxu0 %v8199
        %11579 = vmatpush1.bf16.msra.mxu0 %v8198
        %11580 = vmatprep.subr.bf16.mxu0 %v8201
        %11581 = vmatpush1.bf16.msra.mxu0 %v8200
        %11582 = vmatprep.subr.bf16.mxu0 %v8203
        %11583 = vmatpush1.bf16.msra.mxu0 %v8202
        %11584 = vmatprep.subr.bf16.mxu0 %v8205
        %11585 = vmatpush1.bf16.msra.mxu0 %v8204
        %11586 = vmatprep.subr.bf16.mxu0 %v8207
        %11587 = vmatpush1.bf16.msra.mxu0 %v8206
        %11588 = vmatprep.subr.bf16.mxu0 %v8209
        %11589 = vmatpush1.bf16.msra.mxu0 %v8208
        %11590 = vmatprep.subr.bf16.mxu0 %v8211
        %11591 = vmatpush1.bf16.msra.mxu0 %v8210
        %11592 = vmatprep.subr.bf16.mxu0 %v8213
        %11593 = vmatpush1.bf16.msra.mxu0 %v8212
        %11594 = vmatprep.subr.bf16.mxu0 %v8215
        %11595 = vmatpush1.bf16.msra.mxu0 %v8214
        %11596 = vmatprep.subr.bf16.mxu0 %v8217
        %11597 = vmatpush1.bf16.msra.mxu0 %v8216
        %11598 = vmatprep.subr.bf16.mxu0 %v8219
        %11599 = vmatpush1.bf16.msra.mxu0 %v8218
        %11600 = vmatprep.subr.bf16.mxu0 %v8221
        %11601 = vmatpush1.bf16.msra.mxu0 %v8220
        %11602 = vmatprep.subr.bf16.mxu0 %v8223
        %11603 = vmatpush1.bf16.msra.mxu0 %v8222
        %11604 = vmatprep.subr.bf16.mxu0 %v8225
        %11605 = vmatpush1.bf16.msra.mxu0 %v8224
        %11606 = vmatprep.mubr.bf16.mxu0 %v2324
        %11607 = vmatmul.mubr.bf16.gmra.mrb[0].mxu0 %v2310
        %v11608 = vpop.f32.mrb[0].mxu0
        %v11609 = vadd.f32 %v11568, %v11608
        %v11610 = vpop.f32.mrb[0].mxu0
        %v11611 = vadd.f32 %v11570, %v11610
        %v11612 = vpop.f32.mrb[0].mxu0
        %v11613 = vpop.f32.mrb[0].mxu0
        %11614 = vdwg.mxu0
        %11615 = vmatprep.subr.bf16.mxu0 %v8227
        %11616 = vmatpush1.bf16.msra.mxu0 %v8226
        %11617 = vmatprep.subr.bf16.mxu0 %v8229
        %11618 = vmatpush1.bf16.msra.mxu0 %v8228
        %11619 = vmatprep.subr.bf16.mxu0 %v8231
        %11620 = vmatpush1.bf16.msra.mxu0 %v8230
        %11621 = vmatprep.subr.bf16.mxu0 %v8233
        %11622 = vmatpush1.bf16.msra.mxu0 %v8232
        %11623 = vmatprep.subr.bf16.mxu0 %v8235
        %11624 = vmatpush1.bf16.msra.mxu0 %v8234
        %11625 = vmatprep.subr.bf16.mxu0 %v8237
        %11626 = vmatpush1.bf16.msra.mxu0 %v8236
        %11627 = vmatprep.subr.bf16.mxu0 %v8239
        %11628 = vmatpush1.bf16.msra.mxu0 %v8238
        %11629 = vmatprep.subr.bf16.mxu0 %v8241
        %11630 = vmatpush1.bf16.msra.mxu0 %v8240
        %11631 = vmatprep.subr.bf16.mxu0 %v8243
        %11632 = vmatpush1.bf16.msra.mxu0 %v8242
        %11633 = vmatprep.subr.bf16.mxu0 %v8245
        %11634 = vmatpush1.bf16.msra.mxu0 %v8244
        %11635 = vmatprep.subr.bf16.mxu0 %v8247
        %11636 = vmatpush1.bf16.msra.mxu0 %v8246
        %11637 = vmatprep.subr.bf16.mxu0 %v8249
        %11638 = vmatpush1.bf16.msra.mxu0 %v8248
        %11639 = vmatprep.subr.bf16.mxu0 %v8251
        %11640 = vmatpush1.bf16.msra.mxu0 %v8250
        %11641 = vmatprep.subr.bf16.mxu0 %v8253
        %11642 = vmatpush1.bf16.msra.mxu0 %v8252
        %11643 = vmatprep.subr.bf16.mxu0 %v8255
        %11644 = vmatpush1.bf16.msra.mxu0 %v8254
        %11645 = vmatprep.subr.bf16.mxu0 %v8257
        %11646 = vmatpush1.bf16.msra.mxu0 %v8256
        %11647 = vmatprep.mubr.bf16.mxu0 %v2334
        %11648 = vmatmul.mubr.bf16.gmra.mrb[0].mxu0 %v2332
        %v11649 = vpop.f32.mrb[0].mxu0
        %v11650 = vadd.f32 %v11609, %v11649
        %v11651 = vpop.f32.mrb[0].mxu0
        %v11652 = vadd.f32 %v11611, %v11651
        %v11653 = vpop.f32.mrb[0].mxu0
        %v11654 = vpop.f32.mrb[0].mxu0
        %11655 = vdwg.mxu0
        %11656 = vmatprep.subr.bf16.mxu0 %v8259
        %11657 = vmatpush1.bf16.msra.mxu0 %v8258
        %11658 = vmatprep.subr.bf16.mxu0 %v8261
        %11659 = vmatpush1.bf16.msra.mxu0 %v8260
        %11660 = vmatprep.subr.bf16.mxu0 %v8263
        %11661 = vmatpush1.bf16.msra.mxu0 %v8262
        %11662 = vmatprep.subr.bf16.mxu0 %v8265
        %11663 = vmatpush1.bf16.msra.mxu0 %v8264
        %11664 = vmatprep.subr.bf16.mxu0 %v8267
        %11665 = vmatpush1.bf16.msra.mxu0 %v8266
        %11666 = vmatprep.subr.bf16.mxu0 %v8269
        %11667 = vmatpush1.bf16.msra.mxu0 %v8268
        %11668 = vmatprep.subr.bf16.mxu0 %v8271
        %11669 = vmatpush1.bf16.msra.mxu0 %v8270
        %11670 = vmatprep.subr.bf16.mxu0 %v8273
        %11671 = vmatpush1.bf16.msra.mxu0 %v8272
        %11672 = vmatprep.subr.bf16.mxu0 %v8275
        %11673 = vmatpush1.bf16.msra.mxu0 %v8274
        %11674 = vmatprep.subr.bf16.mxu0 %v8277
        %11675 = vmatpush1.bf16.msra.mxu0 %v8276
        %11676 = vmatprep.subr.bf16.mxu0 %v8279
        %11677 = vmatpush1.bf16.msra.mxu0 %v8278
        %11678 = vmatprep.subr.bf16.mxu0 %v8281
        %11679 = vmatpush1.bf16.msra.mxu0 %v8280
        %11680 = vmatprep.subr.bf16.mxu0 %v8283
        %11681 = vmatpush1.bf16.msra.mxu0 %v8282
        %11682 = vmatprep.subr.bf16.mxu0 %v8285
        %11683 = vmatpush1.bf16.msra.mxu0 %v8284
        %11684 = vmatprep.subr.bf16.mxu0 %v8287
        %11685 = vmatpush1.bf16.msra.mxu0 %v8286
        %11686 = vmatprep.subr.bf16.mxu0 %v8289
        %11687 = vmatpush1.bf16.msra.mxu0 %v8288
        %11688 = vmatprep.mubr.bf16.mxu0 %v2331
        %11689 = vmatmul.mubr.bf16.gmra.mrb[0].mxu0 %v2317
        %v11690 = vpop.f32.mrb[0].mxu0
        %v11691 = vadd.f32 %v11650, %v11690
        %v11692 = vpop.f32.mrb[0].mxu0
        %v11693 = vadd.f32 %v11652, %v11692
        %v11694 = vpop.f32.mrb[0].mxu0
        %v11695 = vpop.f32.mrb[0].mxu0
        %11696 = vdwg.mxu0
        %11697 = vmatprep.subr.bf16.mxu0 %v8291
        %11698 = vmatpush1.bf16.msra.mxu0 %v8290
        %11699 = vmatprep.subr.bf16.mxu0 %v8293
        %11700 = vmatpush1.bf16.msra.mxu0 %v8292
        %11701 = vmatprep.subr.bf16.mxu0 %v8295
        %11702 = vmatpush1.bf16.msra.mxu0 %v8294
        %11703 = vmatprep.subr.bf16.mxu0 %v8297
        %11704 = vmatpush1.bf16.msra.mxu0 %v8296
        %11705 = vmatprep.subr.bf16.mxu0 %v8299
        %11706 = vmatpush1.bf16.msra.mxu0 %v8298
        %11707 = vmatprep.subr.bf16.mxu0 %v8301
        %11708 = vmatpush1.bf16.msra.mxu0 %v8300
        %11709 = vmatprep.subr.bf16.mxu0 %v8303
        %11710 = vmatpush1.bf16.msra.mxu0 %v8302
        %11711 = vmatprep.subr.bf16.mxu0 %v8305
        %11712 = vmatpush1.bf16.msra.mxu0 %v8304
        %11713 = vmatprep.subr.bf16.mxu0 %v8307
        %11714 = vmatpush1.bf16.msra.mxu0 %v8306
        %11715 = vmatprep.subr.bf16.mxu0 %v8309
        %11716 = vmatpush1.bf16.msra.mxu0 %v8308
        %11717 = vmatprep.subr.bf16.mxu0 %v8311
        %11718 = vmatpush1.bf16.msra.mxu0 %v8310
        %11719 = vmatprep.subr.bf16.mxu0 %v8313
        %11720 = vmatpush1.bf16.msra.mxu0 %v8312
        %11721 = vmatprep.subr.bf16.mxu0 %v8315
        %11722 = vmatpush1.bf16.msra.mxu0 %v8314
        %11723 = vmatprep.subr.bf16.mxu0 %v8317
        %11724 = vmatpush1.bf16.msra.mxu0 %v8316
        %11725 = vmatprep.subr.bf16.mxu0 %v8319
        %11726 = vmatpush1.bf16.msra.mxu0 %v8318
        %11727 = vmatprep.subr.bf16.mxu0 %v8321
        %11728 = vmatpush1.bf16.msra.mxu0 %v8320
        %11729 = vmatprep.mubr.bf16.mxu0 %v2335
        %11730 = vmatmul.mubr.bf16.gmra.mrb[0].mxu0 %v2333
        %v11731 = vpop.f32.mrb[0].mxu0
        %v11732 = vadd.f32 %v11691, %v11731
        %v11733 = vpop.f32.mrb[0].mxu0
        %v11734 = vadd.f32 %v11693, %v11733
        %v11735 = vpop.f32.mrb[0].mxu0
        %v11736 = vpop.f32.mrb[0].mxu0
        %11737 = vdwg.mxu0
        %11738 = vmatprep.subr.bf16.mxu0 %v8323
        %11739 = vmatpush1.bf16.msra.mxu0 %v8322
        %11740 = vmatprep.subr.bf16.mxu0 %v8325
        %11741 = vmatpush1.bf16.msra.mxu0 %v8324
        %11742 = vmatprep.subr.bf16.mxu0 %v8327
        %11743 = vmatpush1.bf16.msra.mxu0 %v8326
        %11744 = vmatprep.subr.bf16.mxu0 %v8329
        %11745 = vmatpush1.bf16.msra.mxu0 %v8328
        %11746 = vmatprep.subr.bf16.mxu0 %v8331
        %11747 = vmatpush1.bf16.msra.mxu0 %v8330
        %11748 = vmatprep.subr.bf16.mxu0 %v8333
        %11749 = vmatpush1.bf16.msra.mxu0 %v8332
        %11750 = vmatprep.subr.bf16.mxu0 %v8335
        %11751 = vmatpush1.bf16.msra.mxu0 %v8334
        %11752 = vmatprep.subr.bf16.mxu0 %v8337
        %11753 = vmatpush1.bf16.msra.mxu0 %v8336
        %11754 = vmatprep.subr.bf16.mxu0 %v8339
        %11755 = vmatpush1.bf16.msra.mxu0 %v8338
        %11756 = vmatprep.subr.bf16.mxu0 %v8341
        %11757 = vmatpush1.bf16.msra.mxu0 %v8340
        %11758 = vmatprep.subr.bf16.mxu0 %v8343
        %11759 = vmatpush1.bf16.msra.mxu0 %v8342
        %11760 = vmatprep.subr.bf16.mxu0 %v8345
        %11761 = vmatpush1.bf16.msra.mxu0 %v8344
        %11762 = vmatprep.subr.bf16.mxu0 %v8347
        %11763 = vmatpush1.bf16.msra.mxu0 %v8346
        %11764 = vmatprep.subr.bf16.mxu0 %v8349
        %11765 = vmatpush1.bf16.msra.mxu0 %v8348
        %11766 = vmatprep.subr.bf16.mxu0 %v8351
        %11767 = vmatpush1.bf16.msra.mxu0 %v8350
        %11768 = vmatprep.subr.bf16.mxu0 %v8353
        %11769 = vmatpush1.bf16.msra.mxu0 %v8352
        %11770 = vmatprep.mubr.bf16.mxu0 %v2373
        %11771 = vmatmul.mubr.bf16.gmra.mrb[0].mxu0 %v2359
        %v11772 = vpop.f32.mrb[0].mxu0
        %v11773 = vadd.f32 %v11732, %v11772
        %v11774 = vpop.f32.mrb[0].mxu0
        %v11775 = vadd.f32 %v11734, %v11774
        %v11776 = vpop.f32.mrb[0].mxu0
        %v11777 = vpop.f32.mrb[0].mxu0
        %11778 = vdwg.mxu0
        %11779 = vmatprep.subr.bf16.mxu0 %v8355
        %11780 = vmatpush1.bf16.msra.mxu0 %v8354
        %11781 = vmatprep.subr.bf16.mxu0 %v8357
        %11782 = vmatpush1.bf16.msra.mxu0 %v8356
        %11783 = vmatprep.subr.bf16.mxu0 %v8359
        %11784 = vmatpush1.bf16.msra.mxu0 %v8358
        %11785 = vmatprep.subr.bf16.mxu0 %v8361
        %11786 = vmatpush1.bf16.msra.mxu0 %v8360
        %11787 = vmatprep.subr.bf16.mxu0 %v8363
        %11788 = vmatpush1.bf16.msra.mxu0 %v8362
        %11789 = vmatprep.subr.bf16.mxu0 %v8365
        %11790 = vmatpush1.bf16.msra.mxu0 %v8364
        %11791 = vmatprep.subr.bf16.mxu0 %v8367
        %11792 = vmatpush1.bf16.msra.mxu0 %v8366
        %11793 = vmatprep.subr.bf16.mxu0 %v8369
        %11794 = vmatpush1.bf16.msra.mxu0 %v8368
        %11795 = vmatprep.subr.bf16.mxu0 %v8371
        %11796 = vmatpush1.bf16.msra.mxu0 %v8370
        %11797 = vmatprep.subr.bf16.mxu0 %v8373
        %11798 = vmatpush1.bf16.msra.mxu0 %v8372
        %11799 = vmatprep.subr.bf16.mxu0 %v8375
        %11800 = vmatpush1.bf16.msra.mxu0 %v8374
        %11801 = vmatprep.subr.bf16.mxu0 %v8377
        %11802 = vmatpush1.bf16.msra.mxu0 %v8376
        %11803 = vmatprep.subr.bf16.mxu0 %v8379
        %11804 = vmatpush1.bf16.msra.mxu0 %v8378
        %11805 = vmatprep.subr.bf16.mxu0 %v8381
        %11806 = vmatpush1.bf16.msra.mxu0 %v8380
        %11807 = vmatprep.subr.bf16.mxu0 %v8383
        %11808 = vmatpush1.bf16.msra.mxu0 %v8382
        %11809 = vmatprep.subr.bf16.mxu0 %v8385
        %11810 = vmatpush1.bf16.msra.mxu0 %v8384
        %11811 = vmatprep.mubr.bf16.mxu0 %v2383
        %11812 = vmatmul.mubr.bf16.gmra.mrb[0].mxu0 %v2381
        %v11813 = vpop.f32.mrb[0].mxu0
        %v11814 = vadd.f32 %v11773, %v11813
        %v11815 = vpop.f32.mrb[0].mxu0
        %v11816 = vadd.f32 %v11775, %v11815
        %v11817 = vpop.f32.mrb[0].mxu0
        %v11818 = vpop.f32.mrb[0].mxu0
        %11819 = vdwg.mxu0
        %11820 = vmatprep.subr.bf16.mxu0 %v8387
        %11821 = vmatpush1.bf16.msra.mxu0 %v8386
        %11822 = vmatprep.subr.bf16.mxu0 %v8389
        %11823 = vmatpush1.bf16.msra.mxu0 %v8388
        %11824 = vmatprep.subr.bf16.mxu0 %v8391
        %11825 = vmatpush1.bf16.msra.mxu0 %v8390
        %11826 = vmatprep.subr.bf16.mxu0 %v8393
        %11827 = vmatpush1.bf16.msra.mxu0 %v8392
        %11828 = vmatprep.subr.bf16.mxu0 %v8395
        %11829 = vmatpush1.bf16.msra.mxu0 %v8394
        %11830 = vmatprep.subr.bf16.mxu0 %v8397
        %11831 = vmatpush1.bf16.msra.mxu0 %v8396
        %11832 = vmatprep.subr.bf16.mxu0 %v8399
        %11833 = vmatpush1.bf16.msra.mxu0 %v8398
        %11834 = vmatprep.subr.bf16.mxu0 %v8401
        %11835 = vmatpush1.bf16.msra.mxu0 %v8400
        %11836 = vmatprep.subr.bf16.mxu0 %v8403
        %11837 = vmatpush1.bf16.msra.mxu0 %v8402
        %11838 = vmatprep.subr.bf16.mxu0 %v8405
        %11839 = vmatpush1.bf16.msra.mxu0 %v8404
        %11840 = vmatprep.subr.bf16.mxu0 %v8407
        %11841 = vmatpush1.bf16.msra.mxu0 %v8406
        %11842 = vmatprep.subr.bf16.mxu0 %v8409
        %11843 = vmatpush1.bf16.msra.mxu0 %v8408
        %11844 = vmatprep.subr.bf16.mxu0 %v8411
        %11845 = vmatpush1.bf16.msra.mxu0 %v8410
        %11846 = vmatprep.subr.bf16.mxu0 %v8413
        %11847 = vmatpush1.bf16.msra.mxu0 %v8412
        %11848 = vmatprep.subr.bf16.mxu0 %v8415
        %11849 = vmatpush1.bf16.msra.mxu0 %v8414
        %11850 = vmatprep.subr.bf16.mxu0 %v8417
        %11851 = vmatpush1.bf16.msra.mxu0 %v8416
        %11852 = vmatprep.mubr.bf16.mxu0 %v2380
        %11853 = vmatmul.mubr.bf16.gmra.mrb[0].mxu0 %v2366
        %v11854 = vpop.f32.mrb[0].mxu0
        %v11855 = vadd.f32 %v11814, %v11854
        %v11856 = vpop.f32.mrb[0].mxu0
        %v11857 = vadd.f32 %v11816, %v11856
        %v11858 = vpop.f32.mrb[0].mxu0
        %v11859 = vpop.f32.mrb[0].mxu0
        %11860 = vdwg.mxu0
        %11861 = vmatprep.subr.bf16.mxu0 %v8419
        %11862 = vmatpush1.bf16.msra.mxu0 %v8418
        %11863 = vmatprep.subr.bf16.mxu0 %v8421
        %11864 = vmatpush1.bf16.msra.mxu0 %v8420
        %11865 = vmatprep.subr.bf16.mxu0 %v8423
        %11866 = vmatpush1.bf16.msra.mxu0 %v8422
        %11867 = vmatprep.subr.bf16.mxu0 %v8425
        %11868 = vmatpush1.bf16.msra.mxu0 %v8424
        %11869 = vmatprep.subr.bf16.mxu0 %v8427
        %11870 = vmatpush1.bf16.msra.mxu0 %v8426
        %11871 = vmatprep.subr.bf16.mxu0 %v8429
        %11872 = vmatpush1.bf16.msra.mxu0 %v8428
        %11873 = vmatprep.subr.bf16.mxu0 %v8431
        %11874 = vmatpush1.bf16.msra.mxu0 %v8430
        %11875 = vmatprep.subr.bf16.mxu0 %v8433
        %11876 = vmatpush1.bf16.msra.mxu0 %v8432
        %11877 = vmatprep.subr.bf16.mxu0 %v8435
        %11878 = vmatpush1.bf16.msra.mxu0 %v8434
        %11879 = vmatprep.subr.bf16.mxu0 %v8437
        %11880 = vmatpush1.bf16.msra.mxu0 %v8436
        %11881 = vmatprep.subr.bf16.mxu0 %v8439
        %11882 = vmatpush1.bf16.msra.mxu0 %v8438
        %11883 = vmatprep.subr.bf16.mxu0 %v8441
        %11884 = vmatpush1.bf16.msra.mxu0 %v8440
        %11885 = vmatprep.subr.bf16.mxu0 %v8443
        %11886 = vmatpush1.bf16.msra.mxu0 %v8442
        %11887 = vmatprep.subr.bf16.mxu0 %v8445
        %11888 = vmatpush1.bf16.msra.mxu0 %v8444
        %11889 = vmatprep.subr.bf16.mxu0 %v8447
        %11890 = vmatpush1.bf16.msra.mxu0 %v8446
        %11891 = vmatprep.subr.bf16.mxu0 %v8449
        %11892 = vmatpush1.bf16.msra.mxu0 %v8448
        %11893 = vmatprep.mubr.bf16.mxu0 %v2384
        %11894 = vmatmul.mubr.bf16.gmra.mrb[0].mxu0 %v2382
        %v11895 = vpop.f32.mrb[0].mxu0
        %v11896 = vadd.f32 %v11855, %v11895
        %v11897 = vpop.f32.mrb[0].mxu0
        %v11898 = vadd.f32 %v11857, %v11897
        %v11899 = vpop.f32.mrb[0].mxu0
        %v11900 = vpop.f32.mrb[0].mxu0
        %11901 = vdwg.mxu0
        %11902 = vmatprep.subr.bf16.mxu0 %v8451
        %11903 = vmatpush1.bf16.msra.mxu0 %v8450
        %11904 = vmatprep.subr.bf16.mxu0 %v8453
        %11905 = vmatpush1.bf16.msra.mxu0 %v8452
        %11906 = vmatprep.subr.bf16.mxu0 %v8455
        %11907 = vmatpush1.bf16.msra.mxu0 %v8454
        %11908 = vmatprep.subr.bf16.mxu0 %v8457
        %11909 = vmatpush1.bf16.msra.mxu0 %v8456
        %11910 = vmatprep.subr.bf16.mxu0 %v8459
        %11911 = vmatpush1.bf16.msra.mxu0 %v8458
        %11912 = vmatprep.subr.bf16.mxu0 %v8461
        %11913 = vmatpush1.bf16.msra.mxu0 %v8460
        %11914 = vmatprep.subr.bf16.mxu0 %v8463
        %11915 = vmatpush1.bf16.msra.mxu0 %v8462
        %11916 = vmatprep.subr.bf16.mxu0 %v8465
        %11917 = vmatpush1.bf16.msra.mxu0 %v8464
        %11918 = vmatprep.subr.bf16.mxu0 %v8467
        %11919 = vmatpush1.bf16.msra.mxu0 %v8466
        %11920 = vmatprep.subr.bf16.mxu0 %v8469
        %11921 = vmatpush1.bf16.msra.mxu0 %v8468
        %11922 = vmatprep.subr.bf16.mxu0 %v8471
        %11923 = vmatpush1.bf16.msra.mxu0 %v8470
        %11924 = vmatprep.subr.bf16.mxu0 %v8473
        %11925 = vmatpush1.bf16.msra.mxu0 %v8472
        %11926 = vmatprep.subr.bf16.mxu0 %v8475
        %11927 = vmatpush1.bf16.msra.mxu0 %v8474
        %11928 = vmatprep.subr.bf16.mxu0 %v8477
        %11929 = vmatpush1.bf16.msra.mxu0 %v8476
        %11930 = vmatprep.subr.bf16.mxu0 %v8479
        %11931 = vmatpush1.bf16.msra.mxu0 %v8478
        %11932 = vmatprep.subr.bf16.mxu0 %v8481
        %11933 = vmatpush1.bf16.msra.mxu0 %v8480
        %11934 = vmatprep.mubr.bf16.mxu0 %v2422
        %11935 = vmatmul.mubr.bf16.gmra.mrb[0].mxu0 %v2408
        %v11936 = vpop.f32.mrb[0].mxu0
        %v11937 = vadd.f32 %v11896, %v11936
        %v11938 = vpop.f32.mrb[0].mxu0
        %v11939 = vadd.f32 %v11898, %v11938
        %v11940 = vpop.f32.mrb[0].mxu0
        %v11941 = vpop.f32.mrb[0].mxu0
        %11942 = vdwg.mxu0
        %11943 = vmatprep.subr.bf16.mxu0 %v8483
        %11944 = vmatpush1.bf16.msra.mxu0 %v8482
        %11945 = vmatprep.subr.bf16.mxu0 %v8485
        %11946 = vmatpush1.bf16.msra.mxu0 %v8484
        %11947 = vmatprep.subr.bf16.mxu0 %v8487
        %11948 = vmatpush1.bf16.msra.mxu0 %v8486
        %11949 = vmatprep.subr.bf16.mxu0 %v8489
        %11950 = vmatpush1.bf16.msra.mxu0 %v8488
        %11951 = vmatprep.subr.bf16.mxu0 %v8491
        %11952 = vmatpush1.bf16.msra.mxu0 %v8490
        %11953 = vmatprep.subr.bf16.mxu0 %v8493
        %11954 = vmatpush1.bf16.msra.mxu0 %v8492
        %11955 = vmatprep.subr.bf16.mxu0 %v8495
        %11956 = vmatpush1.bf16.msra.mxu0 %v8494
        %11957 = vmatprep.subr.bf16.mxu0 %v8497
        %11958 = vmatpush1.bf16.msra.mxu0 %v8496
        %11959 = vmatprep.subr.bf16.mxu0 %v8499
        %11960 = vmatpush1.bf16.msra.mxu0 %v8498
        %11961 = vmatprep.subr.bf16.mxu0 %v8501
        %11962 = vmatpush1.bf16.msra.mxu0 %v8500
        %11963 = vmatprep.subr.bf16.mxu0 %v8503
        %11964 = vmatpush1.bf16.msra.mxu0 %v8502
        %11965 = vmatprep.subr.bf16.mxu0 %v8505
        %11966 = vmatpush1.bf16.msra.mxu0 %v8504
        %11967 = vmatprep.subr.bf16.mxu0 %v8507
        %11968 = vmatpush1.bf16.msra.mxu0 %v8506
        %11969 = vmatprep.subr.bf16.mxu0 %v8509
        %11970 = vmatpush1.bf16.msra.mxu0 %v8508
        %11971 = vmatprep.subr.bf16.mxu0 %v8511
        %11972 = vmatpush1.bf16.msra.mxu0 %v8510
        %11973 = vmatprep.subr.bf16.mxu0 %v8513
        %11974 = vmatpush1.bf16.msra.mxu0 %v8512
        %11975 = vmatprep.mubr.bf16.mxu0 %v2432
        %11976 = vmatmul.mubr.bf16.gmra.mrb[0].mxu0 %v2430
        %v11977 = vpop.f32.mrb[0].mxu0
        %v11978 = vadd.f32 %v11937, %v11977
        %v11979 = vpop.f32.mrb[0].mxu0
        %v11980 = vadd.f32 %v11939, %v11979
        %v11981 = vpop.f32.mrb[0].mxu0
        %v11982 = vpop.f32.mrb[0].mxu0
        %11983 = vdwg.mxu0
        %11984 = vmatprep.subr.bf16.mxu0 %v8515
        %11985 = vmatpush1.bf16.msra.mxu0 %v8514
        %11986 = vmatprep.subr.bf16.mxu0 %v8517
        %11987 = vmatpush1.bf16.msra.mxu0 %v8516
        %11988 = vmatprep.subr.bf16.mxu0 %v8519
        %11989 = vmatpush1.bf16.msra.mxu0 %v8518
        %11990 = vmatprep.subr.bf16.mxu0 %v8521
        %11991 = vmatpush1.bf16.msra.mxu0 %v8520
        %11992 = vmatprep.subr.bf16.mxu0 %v8523
        %11993 = vmatpush1.bf16.msra.mxu0 %v8522
        %11994 = vmatprep.subr.bf16.mxu0 %v8525
        %11995 = vmatpush1.bf16.msra.mxu0 %v8524
        %11996 = vmatprep.subr.bf16.mxu0 %v8527
        %11997 = vmatpush1.bf16.msra.mxu0 %v8526
        %11998 = vmatprep.subr.bf16.mxu0 %v8529
        %11999 = vmatpush1.bf16.msra.mxu0 %v8528
        %12000 = vmatprep.subr.bf16.mxu0 %v8531
        %12001 = vmatpush1.bf16.msra.mxu0 %v8530
        %12002 = vmatprep.subr.bf16.mxu0 %v8533
        %12003 = vmatpush1.bf16.msra.mxu0 %v8532
        %12004 = vmatprep.subr.bf16.mxu0 %v8535
        %12005 = vmatpush1.bf16.msra.mxu0 %v8534
        %12006 = vmatprep.subr.bf16.mxu0 %v8537
        %12007 = vmatpush1.bf16.msra.mxu0 %v8536
        %12008 = vmatprep.subr.bf16.mxu0 %v8539
        %12009 = vmatpush1.bf16.msra.mxu0 %v8538
        %12010 = vmatprep.subr.bf16.mxu0 %v8541
        %12011 = vmatpush1.bf16.msra.mxu0 %v8540
        %12012 = vmatprep.subr.bf16.mxu0 %v8543
        %12013 = vmatpush1.bf16.msra.mxu0 %v8542
        %12014 = vmatprep.subr.bf16.mxu0 %v8545
        %12015 = vmatpush1.bf16.msra.mxu0 %v8544
        %12016 = vmatprep.mubr.bf16.mxu0 %v2429
        %12017 = vmatmul.mubr.bf16.gmra.mrb[0].mxu0 %v2415
        %v12018 = vpop.f32.mrb[0].mxu0
        %v12019 = vadd.f32 %v11978, %v12018
        %v12020 = vpop.f32.mrb[0].mxu0
        %v12021 = vadd.f32 %v11980, %v12020
        %v12022 = vpop.f32.mrb[0].mxu0
        %v12023 = vpop.f32.mrb[0].mxu0
        %12024 = vdwg.mxu0
        %12025 = vmatprep.subr.bf16.mxu0 %v8547
        %12026 = vmatpush1.bf16.msra.mxu0 %v8546
        %12027 = vmatprep.subr.bf16.mxu0 %v8549
        %12028 = vmatpush1.bf16.msra.mxu0 %v8548
        %12029 = vmatprep.subr.bf16.mxu0 %v8551
        %12030 = vmatpush1.bf16.msra.mxu0 %v8550
        %12031 = vmatprep.subr.bf16.mxu0 %v8553
        %12032 = vmatpush1.bf16.msra.mxu0 %v8552
        %12033 = vmatprep.subr.bf16.mxu0 %v8555
        %12034 = vmatpush1.bf16.msra.mxu0 %v8554
        %12035 = vmatprep.subr.bf16.mxu0 %v8557
        %12036 = vmatpush1.bf16.msra.mxu0 %v8556
        %12037 = vmatprep.subr.bf16.mxu0 %v8559
        %12038 = vmatpush1.bf16.msra.mxu0 %v8558
        %12039 = vmatprep.subr.bf16.mxu0 %v8561
        %12040 = vmatpush1.bf16.msra.mxu0 %v8560
        %12041 = vmatprep.subr.bf16.mxu0 %v8563
        %12042 = vmatpush1.bf16.msra.mxu0 %v8562
        %12043 = vmatprep.subr.bf16.mxu0 %v8565
        %12044 = vmatpush1.bf16.msra.mxu0 %v8564
        %12045 = vmatprep.subr.bf16.mxu0 %v8567
        %12046 = vmatpush1.bf16.msra.mxu0 %v8566
        %12047 = vmatprep.subr.bf16.mxu0 %v8569
        %12048 = vmatpush1.bf16.msra.mxu0 %v8568
        %12049 = vmatprep.subr.bf16.mxu0 %v8571
        %12050 = vmatpush1.bf16.msra.mxu0 %v8570
        %12051 = vmatprep.subr.bf16.mxu0 %v8573
        %12052 = vmatpush1.bf16.msra.mxu0 %v8572
        %12053 = vmatprep.subr.bf16.mxu0 %v8575
        %12054 = vmatpush1.bf16.msra.mxu0 %v8574
        %12055 = vmatprep.subr.bf16.mxu0 %v8577
        %12056 = vmatpush1.bf16.msra.mxu0 %v8576
        %12057 = vmatprep.mubr.bf16.mxu0 %v2433
        %12058 = vmatmul.mubr.bf16.gmra.mrb[0].mxu0 %v2431
        %v12059 = vpop.f32.mrb[0].mxu0
        %v12060 = vadd.f32 %v12019, %v12059
        %v12061 = vpop.f32.mrb[0].mxu0
        %v12062 = vadd.f32 %v12021, %v12061
        %v12063 = vpop.f32.mrb[0].mxu0
        %v12064 = vpop.f32.mrb[0].mxu0
        %12065 = vdwg.mxu0
        %12066 = vmatprep.subr.bf16.mxu0 %v8579
        %12067 = vmatpush1.bf16.msra.mxu0 %v8578
        %12068 = vmatprep.subr.bf16.mxu0 %v8581
        %12069 = vmatpush1.bf16.msra.mxu0 %v8580
        %12070 = vmatprep.subr.bf16.mxu0 %v8583
        %12071 = vmatpush1.bf16.msra.mxu0 %v8582
        %12072 = vmatprep.subr.bf16.mxu0 %v8585
        %12073 = vmatpush1.bf16.msra.mxu0 %v8584
        %12074 = vmatprep.subr.bf16.mxu0 %v8587
        %12075 = vmatpush1.bf16.msra.mxu0 %v8586
        %12076 = vmatprep.subr.bf16.mxu0 %v8589
        %12077 = vmatpush1.bf16.msra.mxu0 %v8588
        %12078 = vmatprep.subr.bf16.mxu0 %v8591
        %12079 = vmatpush1.bf16.msra.mxu0 %v8590
        %12080 = vmatprep.subr.bf16.mxu0 %v8593
        %12081 = vmatpush1.bf16.msra.mxu0 %v8592
        %12082 = vmatprep.subr.bf16.mxu0 %v8595
        %12083 = vmatpush1.bf16.msra.mxu0 %v8594
        %12084 = vmatprep.subr.bf16.mxu0 %v8597
        %12085 = vmatpush1.bf16.msra.mxu0 %v8596
        %12086 = vmatprep.subr.bf16.mxu0 %v8599
        %12087 = vmatpush1.bf16.msra.mxu0 %v8598
        %12088 = vmatprep.subr.bf16.mxu0 %v8601
        %12089 = vmatpush1.bf16.msra.mxu0 %v8600
        %12090 = vmatprep.subr.bf16.mxu0 %v8603
        %12091 = vmatpush1.bf16.msra.mxu0 %v8602
        %12092 = vmatprep.subr.bf16.mxu0 %v8605
        %12093 = vmatpush1.bf16.msra.mxu0 %v8604
        %12094 = vmatprep.subr.bf16.mxu0 %v8607
        %12095 = vmatpush1.bf16.msra.mxu0 %v8606
        %12096 = vmatprep.subr.bf16.mxu0 %v8609
        %12097 = vmatpush1.bf16.msra.mxu0 %v8608
        %12098 = vmatprep.mubr.bf16.mxu0 %v2471
        %12099 = vmatmul.mubr.bf16.gmra.mrb[0].mxu0 %v2457
        %v12100 = vpop.f32.mrb[0].mxu0
        %v12101 = vadd.f32 %v12060, %v12100
        %v12102 = vpop.f32.mrb[0].mxu0
        %v12103 = vadd.f32 %v12062, %v12102
        %v12104 = vpop.f32.mrb[0].mxu0
        %v12105 = vpop.f32.mrb[0].mxu0
        %12106 = vdwg.mxu0
        %12107 = vmatprep.subr.bf16.mxu0 %v8611
        %12108 = vmatpush1.bf16.msra.mxu0 %v8610
        %12109 = vmatprep.subr.bf16.mxu0 %v8613
        %12110 = vmatpush1.bf16.msra.mxu0 %v8612
        %12111 = vmatprep.subr.bf16.mxu0 %v8615
        %12112 = vmatpush1.bf16.msra.mxu0 %v8614
        %12113 = vmatprep.subr.bf16.mxu0 %v8617
        %12114 = vmatpush1.bf16.msra.mxu0 %v8616
        %12115 = vmatprep.subr.bf16.mxu0 %v8619
        %12116 = vmatpush1.bf16.msra.mxu0 %v8618
        %12117 = vmatprep.subr.bf16.mxu0 %v8621
        %12118 = vmatpush1.bf16.msra.mxu0 %v8620
        %12119 = vmatprep.subr.bf16.mxu0 %v8623
        %12120 = vmatpush1.bf16.msra.mxu0 %v8622
        %12121 = vmatprep.subr.bf16.mxu0 %v8625
        %12122 = vmatpush1.bf16.msra.mxu0 %v8624
        %12123 = vmatprep.subr.bf16.mxu0 %v8627
        %12124 = vmatpush1.bf16.msra.mxu0 %v8626
        %12125 = vmatprep.subr.bf16.mxu0 %v8629
        %12126 = vmatpush1.bf16.msra.mxu0 %v8628
        %12127 = vmatprep.subr.bf16.mxu0 %v8631
        %12128 = vmatpush1.bf16.msra.mxu0 %v8630
        %12129 = vmatprep.subr.bf16.mxu0 %v8633
        %12130 = vmatpush1.bf16.msra.mxu0 %v8632
        %12131 = vmatprep.subr.bf16.mxu0 %v8635
        %12132 = vmatpush1.bf16.msra.mxu0 %v8634
        %12133 = vmatprep.subr.bf16.mxu0 %v8637
        %12134 = vmatpush1.bf16.msra.mxu0 %v8636
        %12135 = vmatprep.subr.bf16.mxu0 %v8639
        %12136 = vmatpush1.bf16.msra.mxu0 %v8638
        %12137 = vmatprep.subr.bf16.mxu0 %v8641
        %12138 = vmatpush1.bf16.msra.mxu0 %v8640
        %12139 = vmatprep.mubr.bf16.mxu0 %v2481
        %12140 = vmatmul.mubr.bf16.gmra.mrb[0].mxu0 %v2479
        %v12141 = vpop.f32.mrb[0].mxu0
        %v12142 = vadd.f32 %v12101, %v12141
        %v12143 = vpop.f32.mrb[0].mxu0
        %v12144 = vadd.f32 %v12103, %v12143
        %v12145 = vpop.f32.mrb[0].mxu0
        %v12146 = vpop.f32.mrb[0].mxu0
        %12147 = vdwg.mxu0
        %12148 = vmatprep.subr.bf16.mxu0 %v8643
        %12149 = vmatpush1.bf16.msra.mxu0 %v8642
        %12150 = vmatprep.subr.bf16.mxu0 %v8645
        %12151 = vmatpush1.bf16.msra.mxu0 %v8644
        %12152 = vmatprep.subr.bf16.mxu0 %v8647
        %12153 = vmatpush1.bf16.msra.mxu0 %v8646
        %12154 = vmatprep.subr.bf16.mxu0 %v8649
        %12155 = vmatpush1.bf16.msra.mxu0 %v8648
        %12156 = vmatprep.subr.bf16.mxu0 %v8651
        %12157 = vmatpush1.bf16.msra.mxu0 %v8650
        %12158 = vmatprep.subr.bf16.mxu0 %v8653
        %12159 = vmatpush1.bf16.msra.mxu0 %v8652
        %12160 = vmatprep.subr.bf16.mxu0 %v8655
        %12161 = vmatpush1.bf16.msra.mxu0 %v8654
        %12162 = vmatprep.subr.bf16.mxu0 %v8657
        %12163 = vmatpush1.bf16.msra.mxu0 %v8656
        %12164 = vmatprep.subr.bf16.mxu0 %v8659
        %12165 = vmatpush1.bf16.msra.mxu0 %v8658
        %12166 = vmatprep.subr.bf16.mxu0 %v8661
        %12167 = vmatpush1.bf16.msra.mxu0 %v8660
        %12168 = vmatprep.subr.bf16.mxu0 %v8663
        %12169 = vmatpush1.bf16.msra.mxu0 %v8662
        %12170 = vmatprep.subr.bf16.mxu0 %v8665
        %12171 = vmatpush1.bf16.msra.mxu0 %v8664
        %12172 = vmatprep.subr.bf16.mxu0 %v8667
        %12173 = vmatpush1.bf16.msra.mxu0 %v8666
        %12174 = vmatprep.subr.bf16.mxu0 %v8669
        %12175 = vmatpush1.bf16.msra.mxu0 %v8668
        %12176 = vmatprep.subr.bf16.mxu0 %v8671
        %12177 = vmatpush1.bf16.msra.mxu0 %v8670
        %12178 = vmatprep.subr.bf16.mxu0 %v8673
        %12179 = vmatpush1.bf16.msra.mxu0 %v8672
        %12180 = vmatprep.mubr.bf16.mxu0 %v2478
        %12181 = vmatmul.mubr.bf16.gmra.mrb[0].mxu0 %v2464
        %v12182 = vpop.f32.mrb[0].mxu0
        %v12183 = vadd.f32 %v12142, %v12182
        %v12184 = vpop.f32.mrb[0].mxu0
        %v12185 = vadd.f32 %v12144, %v12184
        %v12186 = vpop.f32.mrb[0].mxu0
        %v12187 = vpop.f32.mrb[0].mxu0
        %12188 = vdwg.mxu0
        %12189 = vmatprep.subr.bf16.mxu0 %v8675
        %12190 = vmatpush1.bf16.msra.mxu0 %v8674
        %12191 = vmatprep.subr.bf16.mxu0 %v8677
        %12192 = vmatpush1.bf16.msra.mxu0 %v8676
        %12193 = vmatprep.subr.bf16.mxu0 %v8679
        %12194 = vmatpush1.bf16.msra.mxu0 %v8678
        %12195 = vmatprep.subr.bf16.mxu0 %v8681
        %12196 = vmatpush1.bf16.msra.mxu0 %v8680
        %12197 = vmatprep.subr.bf16.mxu0 %v8683
        %12198 = vmatpush1.bf16.msra.mxu0 %v8682
        %12199 = vmatprep.subr.bf16.mxu0 %v8685
        %12200 = vmatpush1.bf16.msra.mxu0 %v8684
        %12201 = vmatprep.subr.bf16.mxu0 %v8687
        %12202 = vmatpush1.bf16.msra.mxu0 %v8686
        %12203 = vmatprep.subr.bf16.mxu0 %v8689
        %12204 = vmatpush1.bf16.msra.mxu0 %v8688
        %12205 = vmatprep.subr.bf16.mxu0 %v8691
        %12206 = vmatpush1.bf16.msra.mxu0 %v8690
        %12207 = vmatprep.subr.bf16.mxu0 %v8693
        %12208 = vmatpush1.bf16.msra.mxu0 %v8692
        %12209 = vmatprep.subr.bf16.mxu0 %v8695
        %12210 = vmatpush1.bf16.msra.mxu0 %v8694
        %12211 = vmatprep.subr.bf16.mxu0 %v8697
        %12212 = vmatpush1.bf16.msra.mxu0 %v8696
        %12213 = vmatprep.subr.bf16.mxu0 %v8699
        %12214 = vmatpush1.bf16.msra.mxu0 %v8698
        %12215 = vmatprep.subr.bf16.mxu0 %v8701
        %12216 = vmatpush1.bf16.msra.mxu0 %v8700
        %12217 = vmatprep.subr.bf16.mxu0 %v8703
        %12218 = vmatpush1.bf16.msra.mxu0 %v8702
        %12219 = vmatprep.subr.bf16.mxu0 %v8705
        %12220 = vmatpush1.bf16.msra.mxu0 %v8704
        %12221 = vmatprep.mubr.bf16.mxu0 %v2482
        %12222 = vmatmul.mubr.bf16.gmra.mrb[0].mxu0 %v2480
        %v12223 = vpop.f32.mrb[0].mxu0
        %v12224 = vadd.f32 %v12183, %v12223
        %v12225 = vpop.f32.mrb[0].mxu0
        %v12226 = vadd.f32 %v12185, %v12225
        %v12227 = vpop.f32.mrb[0].mxu0
        %v12228 = vpop.f32.mrb[0].mxu0
        %12229 = vdwg.mxu0
        %12230 = vmatprep.subr.bf16.mxu0 %v8707
        %12231 = vmatpush1.bf16.msra.mxu0 %v8706
        %12232 = vmatprep.subr.bf16.mxu0 %v8709
        %12233 = vmatpush1.bf16.msra.mxu0 %v8708
        %12234 = vmatprep.subr.bf16.mxu0 %v8711
        %12235 = vmatpush1.bf16.msra.mxu0 %v8710
        %12236 = vmatprep.subr.bf16.mxu0 %v8713
        %12237 = vmatpush1.bf16.msra.mxu0 %v8712
        %12238 = vmatprep.subr.bf16.mxu0 %v8715
        %12239 = vmatpush1.bf16.msra.mxu0 %v8714
        %12240 = vmatprep.subr.bf16.mxu0 %v8717
        %12241 = vmatpush1.bf16.msra.mxu0 %v8716
        %12242 = vmatprep.subr.bf16.mxu0 %v8719
        %12243 = vmatpush1.bf16.msra.mxu0 %v8718
        %12244 = vmatprep.subr.bf16.mxu0 %v8721
        %12245 = vmatpush1.bf16.msra.mxu0 %v8720
        %12246 = vmatprep.subr.bf16.mxu0 %v8723
        %12247 = vmatpush1.bf16.msra.mxu0 %v8722
        %12248 = vmatprep.subr.bf16.mxu0 %v8725
        %12249 = vmatpush1.bf16.msra.mxu0 %v8724
        %12250 = vmatprep.subr.bf16.mxu0 %v8727
        %12251 = vmatpush1.bf16.msra.mxu0 %v8726
        %12252 = vmatprep.subr.bf16.mxu0 %v8729
        %12253 = vmatpush1.bf16.msra.mxu0 %v8728
        %12254 = vmatprep.subr.bf16.mxu0 %v8731
        %12255 = vmatpush1.bf16.msra.mxu0 %v8730
        %12256 = vmatprep.subr.bf16.mxu0 %v8733
        %12257 = vmatpush1.bf16.msra.mxu0 %v8732
        %12258 = vmatprep.subr.bf16.mxu0 %v8735
        %12259 = vmatpush1.bf16.msra.mxu0 %v8734
        %12260 = vmatprep.subr.bf16.mxu0 %v8737
        %12261 = vmatpush1.bf16.msra.mxu0 %v8736
        %12262 = vmatprep.mubr.bf16.mxu0 %v2520
        %12263 = vmatmul.mubr.bf16.gmra.mrb[0].mxu0 %v2506
        %v12264 = vpop.f32.mrb[0].mxu0
        %v12265 = vadd.f32 %v12224, %v12264
        %v12266 = vpop.f32.mrb[0].mxu0
        %v12267 = vadd.f32 %v12226, %v12266
        %v12268 = vpop.f32.mrb[0].mxu0
        %v12269 = vpop.f32.mrb[0].mxu0
        %12270 = vdwg.mxu0
        %12271 = vmatprep.subr.bf16.mxu0 %v8739
        %12272 = vmatpush1.bf16.msra.mxu0 %v8738
        %12273 = vmatprep.subr.bf16.mxu0 %v8741
        %12274 = vmatpush1.bf16.msra.mxu0 %v8740
        %12275 = vmatprep.subr.bf16.mxu0 %v8743
        %12276 = vmatpush1.bf16.msra.mxu0 %v8742
        %12277 = vmatprep.subr.bf16.mxu0 %v8745
        %12278 = vmatpush1.bf16.msra.mxu0 %v8744
        %12279 = vmatprep.subr.bf16.mxu0 %v8747
        %12280 = vmatpush1.bf16.msra.mxu0 %v8746
        %12281 = vmatprep.subr.bf16.mxu0 %v8749
        %12282 = vmatpush1.bf16.msra.mxu0 %v8748
        %12283 = vmatprep.subr.bf16.mxu0 %v8751
        %12284 = vmatpush1.bf16.msra.mxu0 %v8750
        %12285 = vmatprep.subr.bf16.mxu0 %v8753
        %12286 = vmatpush1.bf16.msra.mxu0 %v8752
        %12287 = vmatprep.subr.bf16.mxu0 %v8755
        %12288 = vmatpush1.bf16.msra.mxu0 %v8754
        %12289 = vmatprep.subr.bf16.mxu0 %v8757
        %12290 = vmatpush1.bf16.msra.mxu0 %v8756
        %12291 = vmatprep.subr.bf16.mxu0 %v8759
        %12292 = vmatpush1.bf16.msra.mxu0 %v8758
        %12293 = vmatprep.subr.bf16.mxu0 %v8761
        %12294 = vmatpush1.bf16.msra.mxu0 %v8760
        %12295 = vmatprep.subr.bf16.mxu0 %v8763
        %12296 = vmatpush1.bf16.msra.mxu0 %v8762
        %12297 = vmatprep.subr.bf16.mxu0 %v8765
        %12298 = vmatpush1.bf16.msra.mxu0 %v8764
        %12299 = vmatprep.subr.bf16.mxu0 %v8767
        %12300 = vmatpush1.bf16.msra.mxu0 %v8766
        %12301 = vmatprep.subr.bf16.mxu0 %v8769
        %12302 = vmatpush1.bf16.msra.mxu0 %v8768
        %12303 = vmatprep.mubr.bf16.mxu0 %v2530
        %12304 = vmatmul.mubr.bf16.gmra.mrb[0].mxu0 %v2528
        %v12305 = vpop.f32.mrb[0].mxu0
        %v12306 = vadd.f32 %v12265, %v12305
        %v12307 = vpop.f32.mrb[0].mxu0
        %v12308 = vadd.f32 %v12267, %v12307
        %v12309 = vpop.f32.mrb[0].mxu0
        %v12310 = vpop.f32.mrb[0].mxu0
        %12311 = vdwg.mxu0
        %12312 = vmatprep.subr.bf16.mxu0 %v8771
        %12313 = vmatpush1.bf16.msra.mxu0 %v8770
        %12314 = vmatprep.subr.bf16.mxu0 %v8773
        %12315 = vmatpush1.bf16.msra.mxu0 %v8772
        %12316 = vmatprep.subr.bf16.mxu0 %v8775
        %12317 = vmatpush1.bf16.msra.mxu0 %v8774
        %12318 = vmatprep.subr.bf16.mxu0 %v8777
        %12319 = vmatpush1.bf16.msra.mxu0 %v8776
        %12320 = vmatprep.subr.bf16.mxu0 %v8779
        %12321 = vmatpush1.bf16.msra.mxu0 %v8778
        %12322 = vmatprep.subr.bf16.mxu0 %v8781
        %12323 = vmatpush1.bf16.msra.mxu0 %v8780
        %12324 = vmatprep.subr.bf16.mxu0 %v8783
        %12325 = vmatpush1.bf16.msra.mxu0 %v8782
        %12326 = vmatprep.subr.bf16.mxu0 %v8785
        %12327 = vmatpush1.bf16.msra.mxu0 %v8784
        %12328 = vmatprep.subr.bf16.mxu0 %v8787
        %12329 = vmatpush1.bf16.msra.mxu0 %v8786
        %12330 = vmatprep.subr.bf16.mxu0 %v8789
        %12331 = vmatpush1.bf16.msra.mxu0 %v8788
        %12332 = vmatprep.subr.bf16.mxu0 %v8791
        %12333 = vmatpush1.bf16.msra.mxu0 %v8790
        %12334 = vmatprep.subr.bf16.mxu0 %v8793
        %12335 = vmatpush1.bf16.msra.mxu0 %v8792
        %12336 = vmatprep.subr.bf16.mxu0 %v8795
        %12337 = vmatpush1.bf16.msra.mxu0 %v8794
        %12338 = vmatprep.subr.bf16.mxu0 %v8797
        %12339 = vmatpush1.bf16.msra.mxu0 %v8796
        %12340 = vmatprep.subr.bf16.mxu0 %v8799
        %12341 = vmatpush1.bf16.msra.mxu0 %v8798
        %12342 = vmatprep.subr.bf16.mxu0 %v8801
        %12343 = vmatpush1.bf16.msra.mxu0 %v8800
        %12344 = vmatprep.mubr.bf16.mxu0 %v2527
        %12345 = vmatmul.mubr.bf16.gmra.mrb[0].mxu0 %v2513
        %v12346 = vpop.f32.mrb[0].mxu0
        %v12347 = vadd.f32 %v12306, %v12346
        %v12348 = vpop.f32.mrb[0].mxu0
        %v12349 = vadd.f32 %v12308, %v12348
        %v12350 = vpop.f32.mrb[0].mxu0
        %v12351 = vpop.f32.mrb[0].mxu0
        %12352 = vdwg.mxu0
        %12353 = vmatprep.subr.bf16.mxu0 %v8803
        %12354 = vmatpush1.bf16.msra.mxu0 %v8802
        %12355 = vmatprep.subr.bf16.mxu0 %v8805
        %12356 = vmatpush1.bf16.msra.mxu0 %v8804
        %12357 = vmatprep.subr.bf16.mxu0 %v8807
        %12358 = vmatpush1.bf16.msra.mxu0 %v8806
        %12359 = vmatprep.subr.bf16.mxu0 %v8809
        %12360 = vmatpush1.bf16.msra.mxu0 %v8808
        %12361 = vmatprep.subr.bf16.mxu0 %v8811
        %12362 = vmatpush1.bf16.msra.mxu0 %v8810
        %12363 = vmatprep.subr.bf16.mxu0 %v8813
        %12364 = vmatpush1.bf16.msra.mxu0 %v8812
        %12365 = vmatprep.subr.bf16.mxu0 %v8815
        %12366 = vmatpush1.bf16.msra.mxu0 %v8814
        %12367 = vmatprep.subr.bf16.mxu0 %v8817
        %12368 = vmatpush1.bf16.msra.mxu0 %v8816
        %12369 = vmatprep.subr.bf16.mxu0 %v8819
        %12370 = vmatpush1.bf16.msra.mxu0 %v8818
        %12371 = vmatprep.subr.bf16.mxu0 %v8821
        %12372 = vmatpush1.bf16.msra.mxu0 %v8820
        %12373 = vmatprep.subr.bf16.mxu0 %v8823
        %12374 = vmatpush1.bf16.msra.mxu0 %v8822
        %12375 = vmatprep.subr.bf16.mxu0 %v8825
        %12376 = vmatpush1.bf16.msra.mxu0 %v8824
        %12377 = vmatprep.subr.bf16.mxu0 %v8827
        %12378 = vmatpush1.bf16.msra.mxu0 %v8826
        %12379 = vmatprep.subr.bf16.mxu0 %v8829
        %12380 = vmatpush1.bf16.msra.mxu0 %v8828
        %12381 = vmatprep.subr.bf16.mxu0 %v8831
        %12382 = vmatpush1.bf16.msra.mxu0 %v8830
        %12383 = vmatprep.subr.bf16.mxu0 %v8833
        %12384 = vmatpush1.bf16.msra.mxu0 %v8832
        %12385 = vmatprep.mubr.bf16.mxu0 %v2531
        %12386 = vmatmul.mubr.bf16.gmra.mrb[0].mxu0 %v2529
        %v12387 = vpop.f32.mrb[0].mxu0
        %v12388 = vadd.f32 %v12347, %v12387
        %v12389 = vpop.f32.mrb[0].mxu0
        %v12390 = vadd.f32 %v12349, %v12389
        %v12391 = vpop.f32.mrb[0].mxu0
        %v12392 = vpop.f32.mrb[0].mxu0
        %12393 = vdwg.mxu0
        %12394 = vmatprep.subr.bf16.mxu0 %v8835
        %12395 = vmatpush1.bf16.msra.mxu0 %v8834
        %12396 = vmatprep.subr.bf16.mxu0 %v8837
        %12397 = vmatpush1.bf16.msra.mxu0 %v8836
        %12398 = vmatprep.subr.bf16.mxu0 %v8839
        %12399 = vmatpush1.bf16.msra.mxu0 %v8838
        %12400 = vmatprep.subr.bf16.mxu0 %v8841
        %12401 = vmatpush1.bf16.msra.mxu0 %v8840
        %12402 = vmatprep.subr.bf16.mxu0 %v8843
        %12403 = vmatpush1.bf16.msra.mxu0 %v8842
        %12404 = vmatprep.subr.bf16.mxu0 %v8845
        %12405 = vmatpush1.bf16.msra.mxu0 %v8844
        %12406 = vmatprep.subr.bf16.mxu0 %v8847
        %12407 = vmatpush1.bf16.msra.mxu0 %v8846
        %12408 = vmatprep.subr.bf16.mxu0 %v8849
        %12409 = vmatpush1.bf16.msra.mxu0 %v8848
        %12410 = vmatprep.subr.bf16.mxu0 %v8851
        %12411 = vmatpush1.bf16.msra.mxu0 %v8850
        %12412 = vmatprep.subr.bf16.mxu0 %v8853
        %12413 = vmatpush1.bf16.msra.mxu0 %v8852
        %12414 = vmatprep.subr.bf16.mxu0 %v8855
        %12415 = vmatpush1.bf16.msra.mxu0 %v8854
        %12416 = vmatprep.subr.bf16.mxu0 %v8857
        %12417 = vmatpush1.bf16.msra.mxu0 %v8856
        %12418 = vmatprep.subr.bf16.mxu0 %v8859
        %12419 = vmatpush1.bf16.msra.mxu0 %v8858
        %12420 = vmatprep.subr.bf16.mxu0 %v8861
        %12421 = vmatpush1.bf16.msra.mxu0 %v8860
        %12422 = vmatprep.subr.bf16.mxu0 %v8863
        %12423 = vmatpush1.bf16.msra.mxu0 %v8862
        %12424 = vmatprep.subr.bf16.mxu0 %v8865
        %12425 = vmatpush1.bf16.msra.mxu0 %v8864
        %12426 = vmatprep.mubr.bf16.mxu0 %v2569
        %12427 = vmatmul.mubr.bf16.gmra.mrb[0].mxu0 %v2555
        %v12428 = vpop.f32.mrb[0].mxu0
        %v12429 = vadd.f32 %v12388, %v12428
        %v12430 = vpop.f32.mrb[0].mxu0
        %v12431 = vadd.f32 %v12390, %v12430
        %v12432 = vpop.f32.mrb[0].mxu0
        %v12433 = vpop.f32.mrb[0].mxu0
        %12434 = vdwg.mxu0
        %12435 = vmatprep.subr.bf16.mxu0 %v8867
        %12436 = vmatpush1.bf16.msra.mxu0 %v8866
        %12437 = vmatprep.subr.bf16.mxu0 %v8869
        %12438 = vmatpush1.bf16.msra.mxu0 %v8868
        %12439 = vmatprep.subr.bf16.mxu0 %v8871
        %12440 = vmatpush1.bf16.msra.mxu0 %v8870
        %12441 = vmatprep.subr.bf16.mxu0 %v8873
        %12442 = vmatpush1.bf16.msra.mxu0 %v8872
        %12443 = vmatprep.subr.bf16.mxu0 %v8875
        %12444 = vmatpush1.bf16.msra.mxu0 %v8874
        %12445 = vmatprep.subr.bf16.mxu0 %v8877
        %12446 = vmatpush1.bf16.msra.mxu0 %v8876
        %12447 = vmatprep.subr.bf16.mxu0 %v8879
        %12448 = vmatpush1.bf16.msra.mxu0 %v8878
        %12449 = vmatprep.subr.bf16.mxu0 %v8881
        %12450 = vmatpush1.bf16.msra.mxu0 %v8880
        %12451 = vmatprep.subr.bf16.mxu0 %v8883
        %12452 = vmatpush1.bf16.msra.mxu0 %v8882
        %12453 = vmatprep.subr.bf16.mxu0 %v8885
        %12454 = vmatpush1.bf16.msra.mxu0 %v8884
        %12455 = vmatprep.subr.bf16.mxu0 %v8887
        %12456 = vmatpush1.bf16.msra.mxu0 %v8886
        %12457 = vmatprep.subr.bf16.mxu0 %v8889
        %12458 = vmatpush1.bf16.msra.mxu0 %v8888
        %12459 = vmatprep.subr.bf16.mxu0 %v8891
        %12460 = vmatpush1.bf16.msra.mxu0 %v8890
        %12461 = vmatprep.subr.bf16.mxu0 %v8893
        %12462 = vmatpush1.bf16.msra.mxu0 %v8892
        %12463 = vmatprep.subr.bf16.mxu0 %v8895
        %12464 = vmatpush1.bf16.msra.mxu0 %v8894
        %12465 = vmatprep.subr.bf16.mxu0 %v8897
        %12466 = vmatpush1.bf16.msra.mxu0 %v8896
        %12467 = vmatprep.mubr.bf16.mxu0 %v2579
        %12468 = vmatmul.mubr.bf16.gmra.mrb[0].mxu0 %v2577
        %v12469 = vpop.f32.mrb[0].mxu0
        %v12470 = vadd.f32 %v12429, %v12469
        %v12471 = vpop.f32.mrb[0].mxu0
        %v12472 = vadd.f32 %v12431, %v12471
        %v12473 = vpop.f32.mrb[0].mxu0
        %v12474 = vpop.f32.mrb[0].mxu0
        %12475 = vdwg.mxu0
        %12476 = vmatprep.subr.bf16.mxu0 %v8899
        %12477 = vmatpush1.bf16.msra.mxu0 %v8898
        %12478 = vmatprep.subr.bf16.mxu0 %v8901
        %12479 = vmatpush1.bf16.msra.mxu0 %v8900
        %12480 = vmatprep.subr.bf16.mxu0 %v8903
        %12481 = vmatpush1.bf16.msra.mxu0 %v8902
        %12482 = vmatprep.subr.bf16.mxu0 %v8905
        %12483 = vmatpush1.bf16.msra.mxu0 %v8904
        %12484 = vmatprep.subr.bf16.mxu0 %v8907
        %12485 = vmatpush1.bf16.msra.mxu0 %v8906
        %12486 = vmatprep.subr.bf16.mxu0 %v8909
        %12487 = vmatpush1.bf16.msra.mxu0 %v8908
        %12488 = vmatprep.subr.bf16.mxu0 %v8911
        %12489 = vmatpush1.bf16.msra.mxu0 %v8910
        %12490 = vmatprep.subr.bf16.mxu0 %v8913
        %12491 = vmatpush1.bf16.msra.mxu0 %v8912
        %12492 = vmatprep.subr.bf16.mxu0 %v8915
        %12493 = vmatpush1.bf16.msra.mxu0 %v8914
        %12494 = vmatprep.subr.bf16.mxu0 %v8917
        %12495 = vmatpush1.bf16.msra.mxu0 %v8916
        %12496 = vmatprep.subr.bf16.mxu0 %v8919
        %12497 = vmatpush1.bf16.msra.mxu0 %v8918
        %12498 = vmatprep.subr.bf16.mxu0 %v8921
        %12499 = vmatpush1.bf16.msra.mxu0 %v8920
        %12500 = vmatprep.subr.bf16.mxu0 %v8923
        %12501 = vmatpush1.bf16.msra.mxu0 %v8922
        %12502 = vmatprep.subr.bf16.mxu0 %v8925
        %12503 = vmatpush1.bf16.msra.mxu0 %v8924
        %12504 = vmatprep.subr.bf16.mxu0 %v8927
        %12505 = vmatpush1.bf16.msra.mxu0 %v8926
        %12506 = vmatprep.subr.bf16.mxu0 %v8929
        %12507 = vmatpush1.bf16.msra.mxu0 %v8928
        %12508 = vmatprep.mubr.bf16.mxu0 %v2576
        %12509 = vmatmul.mubr.bf16.gmra.mrb[0].mxu0 %v2562
        %v12510 = vpop.f32.mrb[0].mxu0
        %v12511 = vadd.f32 %v12470, %v12510
        %v12512 = vpop.f32.mrb[0].mxu0
        %v12513 = vadd.f32 %v12472, %v12512
        %v12514 = vpop.f32.mrb[0].mxu0
        %v12515 = vpop.f32.mrb[0].mxu0
        %12516 = vdwg.mxu0
        %12517 = vmatprep.subr.bf16.mxu0 %v8931
        %12518 = vmatpush1.bf16.msra.mxu0 %v8930
        %12519 = vmatprep.subr.bf16.mxu0 %v8933
        %12520 = vmatpush1.bf16.msra.mxu0 %v8932
        %12521 = vmatprep.subr.bf16.mxu0 %v8935
        %12522 = vmatpush1.bf16.msra.mxu0 %v8934
        %12523 = vmatprep.subr.bf16.mxu0 %v8937
        %12524 = vmatpush1.bf16.msra.mxu0 %v8936
        %12525 = vmatprep.subr.bf16.mxu0 %v8939
        %12526 = vmatpush1.bf16.msra.mxu0 %v8938
        %12527 = vmatprep.subr.bf16.mxu0 %v8941
        %12528 = vmatpush1.bf16.msra.mxu0 %v8940
        %12529 = vmatprep.subr.bf16.mxu0 %v8943
        %12530 = vmatpush1.bf16.msra.mxu0 %v8942
        %12531 = vmatprep.subr.bf16.mxu0 %v8945
        %12532 = vmatpush1.bf16.msra.mxu0 %v8944
        %12533 = vmatprep.subr.bf16.mxu0 %v8947
        %12534 = vmatpush1.bf16.msra.mxu0 %v8946
        %12535 = vmatprep.subr.bf16.mxu0 %v8949
        %12536 = vmatpush1.bf16.msra.mxu0 %v8948
        %12537 = vmatprep.subr.bf16.mxu0 %v8951
        %12538 = vmatpush1.bf16.msra.mxu0 %v8950
        %12539 = vmatprep.subr.bf16.mxu0 %v8953
        %12540 = vmatpush1.bf16.msra.mxu0 %v8952
        %12541 = vmatprep.subr.bf16.mxu0 %v8955
        %12542 = vmatpush1.bf16.msra.mxu0 %v8954
        %12543 = vmatprep.subr.bf16.mxu0 %v8957
        %12544 = vmatpush1.bf16.msra.mxu0 %v8956
        %12545 = vmatprep.subr.bf16.mxu0 %v8959
        %12546 = vmatpush1.bf16.msra.mxu0 %v8958
        %12547 = vmatprep.subr.bf16.mxu0 %v8961
        %12548 = vmatpush1.bf16.msra.mxu0 %v8960
        %12549 = vmatprep.mubr.bf16.mxu0 %v2580
        %12550 = vmatmul.mubr.bf16.gmra.mrb[0].mxu0 %v2578
        %v12551 = vpop.f32.mrb[0].mxu0
        %v12552 = vadd.f32 %v12511, %v12551
        %v12553 = vpop.f32.mrb[0].mxu0
        %v12554 = vadd.f32 %v12513, %v12553
        %v12555 = vpop.f32.mrb[0].mxu0
        %v12556 = vpop.f32.mrb[0].mxu0
        %12557 = vdwg.mxu0
        %12558 = vmatprep.subr.bf16.mxu0 %v8963
        %12559 = vmatpush1.bf16.msra.mxu0 %v8962
        %12560 = vmatprep.subr.bf16.mxu0 %v8965
        %12561 = vmatpush1.bf16.msra.mxu0 %v8964
        %12562 = vmatprep.subr.bf16.mxu0 %v8967
        %12563 = vmatpush1.bf16.msra.mxu0 %v8966
        %12564 = vmatprep.subr.bf16.mxu0 %v8969
        %12565 = vmatpush1.bf16.msra.mxu0 %v8968
        %12566 = vmatprep.subr.bf16.mxu0 %v8971
        %12567 = vmatpush1.bf16.msra.mxu0 %v8970
        %12568 = vmatprep.subr.bf16.mxu0 %v8973
        %12569 = vmatpush1.bf16.msra.mxu0 %v8972
        %12570 = vmatprep.subr.bf16.mxu0 %v8975
        %12571 = vmatpush1.bf16.msra.mxu0 %v8974
        %12572 = vmatprep.subr.bf16.mxu0 %v8977
        %12573 = vmatpush1.bf16.msra.mxu0 %v8976
        %12574 = vmatprep.subr.bf16.mxu0 %v8979
        %12575 = vmatpush1.bf16.msra.mxu0 %v8978
        %12576 = vmatprep.subr.bf16.mxu0 %v8981
        %12577 = vmatpush1.bf16.msra.mxu0 %v8980
        %12578 = vmatprep.subr.bf16.mxu0 %v8983
        %12579 = vmatpush1.bf16.msra.mxu0 %v8982
        %12580 = vmatprep.subr.bf16.mxu0 %v8985
        %12581 = vmatpush1.bf16.msra.mxu0 %v8984
        %12582 = vmatprep.subr.bf16.mxu0 %v8987
        %12583 = vmatpush1.bf16.msra.mxu0 %v8986
        %12584 = vmatprep.subr.bf16.mxu0 %v8989
        %12585 = vmatpush1.bf16.msra.mxu0 %v8988
        %12586 = vmatprep.subr.bf16.mxu0 %v8991
        %12587 = vmatpush1.bf16.msra.mxu0 %v8990
        %12588 = vmatprep.subr.bf16.mxu0 %v8993
        %12589 = vmatpush1.bf16.msra.mxu0 %v8992
        %12590 = vmatprep.mubr.bf16.mxu0 %v2618
        %12591 = vmatmul.mubr.bf16.gmra.mrb[0].mxu0 %v2604
        %v12592 = vpop.f32.mrb[0].mxu0
        %v12593 = vadd.f32 %v12552, %v12592
        %v12594 = vpop.f32.mrb[0].mxu0
        %v12595 = vadd.f32 %v12554, %v12594
        %v12596 = vpop.f32.mrb[0].mxu0
        %v12597 = vpop.f32.mrb[0].mxu0
        %12598 = vdwg.mxu0
        %12599 = vmatprep.subr.bf16.mxu0 %v8995
        %12600 = vmatpush1.bf16.msra.mxu0 %v8994
        %12601 = vmatprep.subr.bf16.mxu0 %v8997
        %12602 = vmatpush1.bf16.msra.mxu0 %v8996
        %12603 = vmatprep.subr.bf16.mxu0 %v8999
        %12604 = vmatpush1.bf16.msra.mxu0 %v8998
        %12605 = vmatprep.subr.bf16.mxu0 %v9001
        %12606 = vmatpush1.bf16.msra.mxu0 %v9000
        %12607 = vmatprep.subr.bf16.mxu0 %v9003
        %12608 = vmatpush1.bf16.msra.mxu0 %v9002
        %12609 = vmatprep.subr.bf16.mxu0 %v9005
        %12610 = vmatpush1.bf16.msra.mxu0 %v9004
        %12611 = vmatprep.subr.bf16.mxu0 %v9007
        %12612 = vmatpush1.bf16.msra.mxu0 %v9006
        %12613 = vmatprep.subr.bf16.mxu0 %v9009
        %12614 = vmatpush1.bf16.msra.mxu0 %v9008
        %12615 = vmatprep.subr.bf16.mxu0 %v9011
        %12616 = vmatpush1.bf16.msra.mxu0 %v9010
        %12617 = vmatprep.subr.bf16.mxu0 %v9013
        %12618 = vmatpush1.bf16.msra.mxu0 %v9012
        %12619 = vmatprep.subr.bf16.mxu0 %v9015
        %12620 = vmatpush1.bf16.msra.mxu0 %v9014
        %12621 = vmatprep.subr.bf16.mxu0 %v9017
        %12622 = vmatpush1.bf16.msra.mxu0 %v9016
        %12623 = vmatprep.subr.bf16.mxu0 %v9019
        %12624 = vmatpush1.bf16.msra.mxu0 %v9018
        %12625 = vmatprep.subr.bf16.mxu0 %v9021
        %12626 = vmatpush1.bf16.msra.mxu0 %v9020
        %12627 = vmatprep.subr.bf16.mxu0 %v9023
        %12628 = vmatpush1.bf16.msra.mxu0 %v9022
        %12629 = vmatprep.subr.bf16.mxu0 %v9025
        %12630 = vmatpush1.bf16.msra.mxu0 %v9024
        %12631 = vmatprep.mubr.bf16.mxu0 %v2628
        %12632 = vmatmul.mubr.bf16.gmra.mrb[0].mxu0 %v2626
        %v12633 = vpop.f32.mrb[0].mxu0
        %v12634 = vadd.f32 %v12593, %v12633
        %v12635 = vpop.f32.mrb[0].mxu0
        %v12636 = vadd.f32 %v12595, %v12635
        %v12637 = vpop.f32.mrb[0].mxu0
        %v12638 = vpop.f32.mrb[0].mxu0
        %12639 = vdwg.mxu0
        %12640 = vmatprep.subr.bf16.mxu0 %v9027
        %12641 = vmatpush1.bf16.msra.mxu0 %v9026
        %12642 = vmatprep.subr.bf16.mxu0 %v9029
        %12643 = vmatpush1.bf16.msra.mxu0 %v9028
        %12644 = vmatprep.subr.bf16.mxu0 %v9031
        %12645 = vmatpush1.bf16.msra.mxu0 %v9030
        %12646 = vmatprep.subr.bf16.mxu0 %v9033
        %12647 = vmatpush1.bf16.msra.mxu0 %v9032
        %12648 = vmatprep.subr.bf16.mxu0 %v9035
        %12649 = vmatpush1.bf16.msra.mxu0 %v9034
        %12650 = vmatprep.subr.bf16.mxu0 %v9037
        %12651 = vmatpush1.bf16.msra.mxu0 %v9036
        %12652 = vmatprep.subr.bf16.mxu0 %v9039
        %12653 = vmatpush1.bf16.msra.mxu0 %v9038
        %12654 = vmatprep.subr.bf16.mxu0 %v9041
        %12655 = vmatpush1.bf16.msra.mxu0 %v9040
        %12656 = vmatprep.subr.bf16.mxu0 %v9043
        %12657 = vmatpush1.bf16.msra.mxu0 %v9042
        %12658 = vmatprep.subr.bf16.mxu0 %v9045
        %12659 = vmatpush1.bf16.msra.mxu0 %v9044
        %12660 = vmatprep.subr.bf16.mxu0 %v9047
        %12661 = vmatpush1.bf16.msra.mxu0 %v9046
        %12662 = vmatprep.subr.bf16.mxu0 %v9049
        %12663 = vmatpush1.bf16.msra.mxu0 %v9048
        %12664 = vmatprep.subr.bf16.mxu0 %v9051
        %12665 = vmatpush1.bf16.msra.mxu0 %v9050
        %12666 = vmatprep.subr.bf16.mxu0 %v9053
        %12667 = vmatpush1.bf16.msra.mxu0 %v9052
        %12668 = vmatprep.subr.bf16.mxu0 %v9055
        %12669 = vmatpush1.bf16.msra.mxu0 %v9054
        %12670 = vmatprep.subr.bf16.mxu0 %v9057
        %12671 = vmatpush1.bf16.msra.mxu0 %v9056
        %12672 = vmatprep.mubr.bf16.mxu0 %v2625
        %12673 = vmatmul.mubr.bf16.gmra.mrb[0].mxu0 %v2611
        %v12674 = vpop.f32.mrb[0].mxu0
        %v12675 = vadd.f32 %v12634, %v12674
        %v12676 = vpop.f32.mrb[0].mxu0
        %v12677 = vadd.f32 %v12636, %v12676
        %v12678 = vpop.f32.mrb[0].mxu0
        %v12679 = vpop.f32.mrb[0].mxu0
        %12680 = vdwg.mxu0
        %12681 = vmatprep.subr.bf16.mxu0 %v9059
        %12682 = vmatpush1.bf16.msra.mxu0 %v9058
        %12683 = vmatprep.subr.bf16.mxu0 %v9061
        %12684 = vmatpush1.bf16.msra.mxu0 %v9060
        %12685 = vmatprep.subr.bf16.mxu0 %v9063
        %12686 = vmatpush1.bf16.msra.mxu0 %v9062
        %12687 = vmatprep.subr.bf16.mxu0 %v9065
        %12688 = vmatpush1.bf16.msra.mxu0 %v9064
        %12689 = vmatprep.subr.bf16.mxu0 %v9067
        %12690 = vmatpush1.bf16.msra.mxu0 %v9066
        %12691 = vmatprep.subr.bf16.mxu0 %v9069
        %12692 = vmatpush1.bf16.msra.mxu0 %v9068
        %12693 = vmatprep.subr.bf16.mxu0 %v9071
        %12694 = vmatpush1.bf16.msra.mxu0 %v9070
        %12695 = vmatprep.subr.bf16.mxu0 %v9073
        %12696 = vmatpush1.bf16.msra.mxu0 %v9072
        %12697 = vmatprep.subr.bf16.mxu0 %v9075
        %12698 = vmatpush1.bf16.msra.mxu0 %v9074
        %12699 = vmatprep.subr.bf16.mxu0 %v9077
        %12700 = vmatpush1.bf16.msra.mxu0 %v9076
        %12701 = vmatprep.subr.bf16.mxu0 %v9079
        %12702 = vmatpush1.bf16.msra.mxu0 %v9078
        %12703 = vmatprep.subr.bf16.mxu0 %v9081
        %12704 = vmatpush1.bf16.msra.mxu0 %v9080
        %12705 = vmatprep.subr.bf16.mxu0 %v9083
        %12706 = vmatpush1.bf16.msra.mxu0 %v9082
        %12707 = vmatprep.subr.bf16.mxu0 %v9085
        %12708 = vmatpush1.bf16.msra.mxu0 %v9084
        %12709 = vmatprep.subr.bf16.mxu0 %v9087
        %12710 = vmatpush1.bf16.msra.mxu0 %v9086
        %12711 = vmatprep.subr.bf16.mxu0 %v9089
        %12712 = vmatpush1.bf16.msra.mxu0 %v9088
        %12713 = vmatprep.mubr.bf16.mxu0 %v2629
        %12714 = vmatmul.mubr.bf16.gmra.mrb[0].mxu0 %v2627
        %v12715 = vpop.f32.mrb[0].mxu0
        %v12716 = vadd.f32 %v12675, %v12715
        %v12717 = vpop.f32.mrb[0].mxu0
        %v12718 = vadd.f32 %v12677, %v12717
        %v12719 = vpop.f32.mrb[0].mxu0
        %v12720 = vpop.f32.mrb[0].mxu0
        %12721 = vdwg.mxu0
        %12722 = vmatprep.subr.bf16.mxu0 %v9091
        %12723 = vmatpush1.bf16.msra.mxu0 %v9090
        %12724 = vmatprep.subr.bf16.mxu0 %v9093
        %12725 = vmatpush1.bf16.msra.mxu0 %v9092
        %12726 = vmatprep.subr.bf16.mxu0 %v9095
        %12727 = vmatpush1.bf16.msra.mxu0 %v9094
        %12728 = vmatprep.subr.bf16.mxu0 %v9097
        %12729 = vmatpush1.bf16.msra.mxu0 %v9096
        %12730 = vmatprep.subr.bf16.mxu0 %v9099
        %12731 = vmatpush1.bf16.msra.mxu0 %v9098
        %12732 = vmatprep.subr.bf16.mxu0 %v9101
        %12733 = vmatpush1.bf16.msra.mxu0 %v9100
        %12734 = vmatprep.subr.bf16.mxu0 %v9103
        %12735 = vmatpush1.bf16.msra.mxu0 %v9102
        %12736 = vmatprep.subr.bf16.mxu0 %v9105
        %12737 = vmatpush1.bf16.msra.mxu0 %v9104
        %12738 = vmatprep.subr.bf16.mxu0 %v9107
        %12739 = vmatpush1.bf16.msra.mxu0 %v9106
        %12740 = vmatprep.subr.bf16.mxu0 %v9109
        %12741 = vmatpush1.bf16.msra.mxu0 %v9108
        %12742 = vmatprep.subr.bf16.mxu0 %v9111
        %12743 = vmatpush1.bf16.msra.mxu0 %v9110
        %12744 = vmatprep.subr.bf16.mxu0 %v9113
        %12745 = vmatpush1.bf16.msra.mxu0 %v9112
        %12746 = vmatprep.subr.bf16.mxu0 %v9115
        %12747 = vmatpush1.bf16.msra.mxu0 %v9114
        %12748 = vmatprep.subr.bf16.mxu0 %v9117
        %12749 = vmatpush1.bf16.msra.mxu0 %v9116
        %12750 = vmatprep.subr.bf16.mxu0 %v9119
        %12751 = vmatpush1.bf16.msra.mxu0 %v9118
        %12752 = vmatprep.subr.bf16.mxu0 %v9121
        %12753 = vmatpush1.bf16.msra.mxu0 %v9120
        %12754 = vmatprep.mubr.bf16.mxu0 %v2651
        %12755 = vmatmul.mubr.bf16.gmra.mrb[0].mxu0 %v2644
        %v12756 = vpop.f32.mrb[0].mxu0
        %v12757 = vadd.f32 %v12716, %v12756
        %v12758 = vpop.f32.mrb[0].mxu0
        %v12759 = vadd.f32 %v12718, %v12758
        %v12760 = vpop.f32.mrb[0].mxu0
        %v12761 = vpop.f32.mrb[0].mxu0
        %12762 = vdwg.mxu0
        %12763 = vmatprep.subr.bf16.mxu0 %v9123
        %12764 = vmatpush1.bf16.msra.mxu0 %v9122
        %12765 = vmatprep.subr.bf16.mxu0 %v9125
        %12766 = vmatpush1.bf16.msra.mxu0 %v9124
        %12767 = vmatprep.subr.bf16.mxu0 %v9127
        %12768 = vmatpush1.bf16.msra.mxu0 %v9126
        %12769 = vmatprep.subr.bf16.mxu0 %v9129
        %12770 = vmatpush1.bf16.msra.mxu0 %v9128
        %12771 = vmatprep.subr.bf16.mxu0 %v9131
        %12772 = vmatpush1.bf16.msra.mxu0 %v9130
        %12773 = vmatprep.subr.bf16.mxu0 %v9133
        %12774 = vmatpush1.bf16.msra.mxu0 %v9132
        %12775 = vmatprep.subr.bf16.mxu0 %v9135
        %12776 = vmatpush1.bf16.msra.mxu0 %v9134
        %12777 = vmatprep.subr.bf16.mxu0 %v9137
        %12778 = vmatpush1.bf16.msra.mxu0 %v9136
        %12779 = vmatprep.subr.bf16.mxu0 %v9139
        %12780 = vmatpush1.bf16.msra.mxu0 %v9138
        %12781 = vmatprep.subr.bf16.mxu0 %v9141
        %12782 = vmatpush1.bf16.msra.mxu0 %v9140
        %12783 = vmatprep.subr.bf16.mxu0 %v9143
        %12784 = vmatpush1.bf16.msra.mxu0 %v9142
        %12785 = vmatprep.subr.bf16.mxu0 %v9145
        %12786 = vmatpush1.bf16.msra.mxu0 %v9144
        %12787 = vmatprep.subr.bf16.mxu0 %v9147
        %12788 = vmatpush1.bf16.msra.mxu0 %v9146
        %12789 = vmatprep.subr.bf16.mxu0 %v9149
        %12790 = vmatpush1.bf16.msra.mxu0 %v9148
        %12791 = vmatprep.subr.bf16.mxu0 %v9151
        %12792 = vmatpush1.bf16.msra.mxu0 %v9150
        %12793 = vmatprep.subr.bf16.mxu0 %v9153
        %12794 = vmatpush1.bf16.msra.mxu0 %v9152
        %12795 = vmatprep.mubr.bf16.mxu0 %v2653
        %12796 = vmatmul.mubr.bf16.gmra.mrb[0].mxu0 %v2652
        %v12797 = vpop.f32.mrb[0].mxu0
        %v12798 = vadd.f32 %v12757, %v12797
        %v12799 = vpop.f32.mrb[0].mxu0
        %v12800 = vadd.f32 %v12759, %v12799
        %v12801 = vpop.f32.mrb[0].mxu0
        %v12802 = vpop.f32.mrb[0].mxu0
        %12803 = vdwg.mxu0
        %v12806 = vcombine.low %v12798, %v12800
        %v12808 = vunpack.c.l.s4 1983009808
        %v12809 = vunpack.c.0.s8 %v12808
        %v12810 = vlaneseq
        %v12811 = vshrl.u32 %v12810, 7
        %v12812 = vsub.s32 %v12809, %v12811
        %v12813 = vrot.slane %v12806, %v12812
        %v12815 = vadd.f32 %v412, %v12813
        %12816 = vst [vmem:[#allocation2] sm:$0xf] %v12815
        %p12817 = scmp.eq.s32.totalorder %s27, 3
        // Predicated region
        $region85: #{forward_fused.1} parent=55 // pred_check
          %p12818 = pneg %p12817
        $region86: #{forward_fused.1} parent=55 // pred_check_branch
          %12820 = sbr.rel (%p12818) target = $region88
        $region87: #{forward_fused.1} parent=55 // pred_region
          %v12821 = vld [vmem:[#allocation2] sm:$0xf]
          %v12822 = vld [vmem:[#allocation6] sm:$0x3]
          %v12824 = vlaneseq
          %v12825 = vshrl.u32 %v12824, 7
          %v12826 = vsub.s32 0, %v12825
          %v12827 = vrot.slane %v12822, %v12826
          %v12828 = vlaneseq
          %v12829 = vshrl.u32 %v12828, 7
          %v12830 = vsub.s32 1, %v12829
          %v12831 = vrot.slane %v12822, %v12830
          %v12832 = vcombine.low %v12827, %v12831
          %v12834 = vunpack.c.l.s4 1983009808
          %v12835 = vunpack.c.0.s8 %v12834
          %v12836 = vlaneseq
          %v12837 = vshrl.u32 %v12836, 7
          %v12838 = vsub.s32 %v12835, %v12837
          %v12839 = vrot.slane %v12832, %v12838
          %v12841 = vadd.f32 %v12821, %v12839
          %v12842 = vmax.f32 %v12841, 0.0
          %v12843 = vld [vmem:[#allocation8] sm:$0xff]
          %v12844 = vld [vmem:[#allocation8 + $0x8] sm:$0xff]
          %v12845 = vld [vmem:[#allocation8 + $0x10] sm:$0xff]
          %v12846 = vld [vmem:[#allocation8 + $0x18] sm:$0xff]
          %v12847 = vld [vmem:[#allocation8 + $0x20] sm:$0xff]
          %v12848 = vld [vmem:[#allocation8 + $0x28] sm:$0xff]
          %v12849 = vld [vmem:[#allocation8 + $0x30] sm:$0xff]
          %v12850 = vld [vmem:[#allocation8 + $0x38] sm:$0xff]
          %v12851 = vld [vmem:[#allocation8 + $0x40] sm:$0xff]
          %v12852 = vld [vmem:[#allocation8 + $0x48] sm:$0xff]
          %v12853 = vld [vmem:[#allocation8 + $0x50] sm:$0xff]
          %v12854 = vld [vmem:[#allocation8 + $0x58] sm:$0xff]
          %v12855 = vld [vmem:[#allocation8 + $0x60] sm:$0xff]
          %v12856 = vld [vmem:[#allocation8 + $0x68] sm:$0xff]
          %v12857 = vld [vmem:[#allocation8 + $0x70] sm:$0xff]
          %v12858 = vld [vmem:[#allocation8 + $0x78] sm:$0xff]
          %v12859 = vld [vmem:[#allocation8 + $0x80] sm:$0xff]
          %v12860 = vld [vmem:[#allocation8 + $0x88] sm:$0xff]
          %v12861 = vld [vmem:[#allocation8 + $0x90] sm:$0xff]
          %v12862 = vld [vmem:[#allocation8 + $0x98] sm:$0xff]
          %v12863 = vld [vmem:[#allocation8 + $0xa0] sm:$0xff]
          %v12864 = vld [vmem:[#allocation8 + $0xa8] sm:$0xff]
          %v12865 = vld [vmem:[#allocation8 + $0xb0] sm:$0xff]
          %v12866 = vld [vmem:[#allocation8 + $0xb8] sm:$0xff]
          %v12867 = vld [vmem:[#allocation8 + $0xc0] sm:$0xff]
          %v12868 = vld [vmem:[#allocation8 + $0xc8] sm:$0xff]
          %v12869 = vld [vmem:[#allocation8 + $0xd0] sm:$0xff]
          %v12870 = vld [vmem:[#allocation8 + $0xd8] sm:$0xff]
          %v12871 = vld [vmem:[#allocation8 + $0xe0] sm:$0xff]
          %v12872 = vld [vmem:[#allocation8 + $0xe8] sm:$0xff]
          %v12873 = vld [vmem:[#allocation8 + $0xf0] sm:$0xff]
          %v12874 = vld [vmem:[#allocation8 + $0xf8] sm:$0xff]
          %v12875 = vld [vmem:[#allocation9] sm:$0x1]
          %v12877 = vlaneseq
          %v12878 = vshrl.u32 %v12877, 7
          %v12879 = vsub.s32 0, %v12878
          %v12880 = vrot.slane %v12875, %v12879
          %v12884 = vunpack.c.l.s4 1983009808
          %v12885 = vunpack.c.0.s8 %v12884
          %v12886 = vlaneseq
          %v12887 = vshrl.u32 %v12886, 7
          %v12888 = vsub.s32 %v12885, %v12887
          %v12889 = vrot.slane %v12842, %v12888
          %v12890 = vcombine.high %v12889, %v12889
          %12893 = vmatprep.subr.mxu0 0.0
          %12894 = vmatpush1.msra.mxu0 %v12843
          %12895 = vmatprep.subr.mxu0 0.0
          %12896 = vmatpush1.msra.mxu0 %v12844
          %12897 = vmatprep.subr.mxu0 0.0
          %12898 = vmatpush1.msra.mxu0 %v12845
          %12899 = vmatprep.subr.mxu0 0.0
          %12900 = vmatpush1.msra.mxu0 %v12846
          %12901 = vmatprep.subr.mxu0 0.0
          %12902 = vmatpush1.msra.mxu0 %v12847
          %12903 = vmatprep.subr.mxu0 0.0
          %12904 = vmatpush1.msra.mxu0 %v12848
          %12905 = vmatprep.subr.mxu0 0.0
          %12906 = vmatpush1.msra.mxu0 %v12849
          %12907 = vmatprep.subr.mxu0 0.0
          %12908 = vmatpush1.msra.mxu0 %v12850
          %12909 = vmatprep.subr.mxu0 0.0
          %12910 = vmatpush1.msra.mxu0 %v12851
          %12911 = vmatprep.subr.mxu0 0.0
          %12912 = vmatpush1.msra.mxu0 %v12852
          %12913 = vmatprep.subr.mxu0 0.0
          %12914 = vmatpush1.msra.mxu0 %v12853
          %12915 = vmatprep.subr.mxu0 0.0
          %12916 = vmatpush1.msra.mxu0 %v12854
          %12917 = vmatprep.subr.mxu0 0.0
          %12918 = vmatpush1.msra.mxu0 %v12855
          %12919 = vmatprep.subr.mxu0 0.0
          %12920 = vmatpush1.msra.mxu0 %v12856
          %12921 = vmatprep.subr.mxu0 0.0
          %12922 = vmatpush1.msra.mxu0 %v12857
          %12923 = vmatprep.subr.mxu0 0.0
          %12924 = vmatpush1.msra.mxu0 %v12858
          %12925 = vmatprep.subr.mxu0 0.0
          %12926 = vmatpush1.msra.mxu0 %v12859
          %12927 = vmatprep.subr.mxu0 0.0
          %12928 = vmatpush1.msra.mxu0 %v12860
          %12929 = vmatprep.subr.mxu0 0.0
          %12930 = vmatpush1.msra.mxu0 %v12861
          %12931 = vmatprep.subr.mxu0 0.0
          %12932 = vmatpush1.msra.mxu0 %v12862
          %12933 = vmatprep.subr.mxu0 0.0
          %12934 = vmatpush1.msra.mxu0 %v12863
          %12935 = vmatprep.subr.mxu0 0.0
          %12936 = vmatpush1.msra.mxu0 %v12864
          %12937 = vmatprep.subr.mxu0 0.0
          %12938 = vmatpush1.msra.mxu0 %v12865
          %12939 = vmatprep.subr.mxu0 0.0
          %12940 = vmatpush1.msra.mxu0 %v12866
          %12941 = vmatprep.subr.mxu0 0.0
          %12942 = vmatpush1.msra.mxu0 %v12867
          %12943 = vmatprep.subr.mxu0 0.0
          %12944 = vmatpush1.msra.mxu0 %v12868
          %12945 = vmatprep.subr.mxu0 0.0
          %12946 = vmatpush1.msra.mxu0 %v12869
          %12947 = vmatprep.subr.mxu0 0.0
          %12948 = vmatpush1.msra.mxu0 %v12870
          %12949 = vmatprep.subr.mxu0 0.0
          %12950 = vmatpush1.msra.mxu0 %v12871
          %12951 = vmatprep.subr.mxu0 0.0
          %12952 = vmatpush1.msra.mxu0 %v12872
          %12953 = vmatprep.subr.mxu0 0.0
          %12954 = vmatpush1.msra.mxu0 %v12873
          %12955 = vmatprep.subr.mxu0 0.0
          %12956 = vmatpush1.msra.mxu0 %v12874
          %12957 = vmatprep.mubr.f32.mxu0 %v12890
          %12958 = vmatmul.mubr.f32.gmra.mrb[0].mxu0 %v12889
          %v12959 = vpop.f32.mrb[0].mxu0
          %v12960 = vadd.f32 %v12880, %v12959
          %v12961 = vpop.f32.mrb[0].mxu0
          %12962 = vdwg.mxu0
          %v12963 = vmax.f32 %v12960, 0.0
          %v12964 = vld [vmem:[%s5] sm:$0xff]
          %v12965 = vld [vmem:[%s5 + $0x8] sm:$0xff]
          %v12966 = vld [vmem:[%s5 + $0x10] sm:$0xff]
          %v12967 = vld [vmem:[%s5 + $0x18] sm:$0xff]
          %v12968 = vld [vmem:[%s5 + $0x20] sm:$0xff]
          %v12969 = vld [vmem:[%s5 + $0x28] sm:$0xff]
          %v12970 = vld [vmem:[%s5 + $0x30] sm:$0xff]
          %v12971 = vld [vmem:[%s5 + $0x38] sm:$0xff]
          %v12972 = vld [vmem:[%s5 + $0x40] sm:$0xff]
          %v12973 = vld [vmem:[%s5 + $0x48] sm:$0xff]
          %v12974 = vld [vmem:[%s5 + $0x50] sm:$0xff]
          %v12975 = vld [vmem:[%s5 + $0x58] sm:$0xff]
          %v12976 = vld [vmem:[%s5 + $0x60] sm:$0xff]
          %v12977 = vld [vmem:[%s5 + $0x68] sm:$0xff]
          %v12978 = vld [vmem:[%s5 + $0x70] sm:$0xff]
          %v12979 = vld [vmem:[%s5 + $0x78] sm:$0xff]
          %v12980 = vld [vmem:[#allocation11] sm:$0x1]
          %v12982 = vlaneseq
          %v12983 = vshrl.u32 %v12982, 7
          %v12984 = vsub.s32 0, %v12983
          %v12985 = vrot.slane %v12980, %v12984
          %12987 = vmatprep.subr.mxu0 0.0
          %12988 = vmatpush1.msra.mxu0 %v12964
          %12989 = vmatprep.subr.mxu0 0.0
          %12990 = vmatpush1.msra.mxu0 %v12965
          %12991 = vmatprep.subr.mxu0 0.0
          %12992 = vmatpush1.msra.mxu0 %v12966
          %12993 = vmatprep.subr.mxu0 0.0
          %12994 = vmatpush1.msra.mxu0 %v12967
          %12995 = vmatprep.subr.mxu0 0.0
          %12996 = vmatpush1.msra.mxu0 %v12968
          %12997 = vmatprep.subr.mxu0 0.0
          %12998 = vmatpush1.msra.mxu0 %v12969
          %12999 = vmatprep.subr.mxu0 0.0
          %13000 = vmatpush1.msra.mxu0 %v12970
          %13001 = vmatprep.subr.mxu0 0.0
          %13002 = vmatpush1.msra.mxu0 %v12971
          %13003 = vmatprep.subr.mxu0 0.0
          %13004 = vmatpush1.msra.mxu0 %v12972
          %13005 = vmatprep.subr.mxu0 0.0
          %13006 = vmatpush1.msra.mxu0 %v12973
          %13007 = vmatprep.subr.mxu0 0.0
          %13008 = vmatpush1.msra.mxu0 %v12974
          %13009 = vmatprep.subr.mxu0 0.0
          %13010 = vmatpush1.msra.mxu0 %v12975
          %13011 = vmatprep.subr.mxu0 0.0
          %13012 = vmatpush1.msra.mxu0 %v12976
          %13013 = vmatprep.subr.mxu0 0.0
          %13014 = vmatpush1.msra.mxu0 %v12977
          %13015 = vmatprep.subr.mxu0 0.0
          %13016 = vmatpush1.msra.mxu0 %v12978
          %13017 = vmatprep.subr.mxu0 0.0
          %13018 = vmatpush1.msra.mxu0 %v12979
          %13019 = vmatprep.subr.mxu0 0.0
          %13020 = vmatpush1.msra.mxu0 0.0
          %13021 = vmatprep.subr.mxu0 0.0
          %13022 = vmatpush1.msra.mxu0 0.0
          %13023 = vmatprep.subr.mxu0 0.0
          %13024 = vmatpush1.msra.mxu0 0.0
          %13025 = vmatprep.subr.mxu0 0.0
          %13026 = vmatpush1.msra.mxu0 0.0
          %13027 = vmatprep.subr.mxu0 0.0
          %13028 = vmatpush1.msra.mxu0 0.0
          %13029 = vmatprep.subr.mxu0 0.0
          %13030 = vmatpush1.msra.mxu0 0.0
          %13031 = vmatprep.subr.mxu0 0.0
          %13032 = vmatpush1.msra.mxu0 0.0
          %13033 = vmatprep.subr.mxu0 0.0
          %13034 = vmatpush1.msra.mxu0 0.0
          %13035 = vmatprep.subr.mxu0 0.0
          %13036 = vmatpush1.msra.mxu0 0.0
          %13037 = vmatprep.subr.mxu0 0.0
          %13038 = vmatpush1.msra.mxu0 0.0
          %13039 = vmatprep.subr.mxu0 0.0
          %13040 = vmatpush1.msra.mxu0 0.0
          %13041 = vmatprep.subr.mxu0 0.0
          %13042 = vmatpush1.msra.mxu0 0.0
          %13043 = vmatprep.subr.mxu0 0.0
          %13044 = vmatpush1.msra.mxu0 0.0
          %13045 = vmatprep.subr.mxu0 0.0
          %13046 = vmatpush1.msra.mxu0 0.0
          %13047 = vmatprep.subr.mxu0 0.0
          %13048 = vmatpush1.msra.mxu0 0.0
          %13049 = vmatprep.subr.mxu0 0.0
          %13050 = vmatpush1.msra.mxu0 0.0
          %13051 = vmatprep.mubr.f32.mxu0 0.0
          %13052 = vmatmul.mubr.f32.gmra.mrb[0].mxu0 %v12963
          %v13053 = vpop.f32.mrb[0].mxu0
          %v13054 = vadd.f32 %v12985, %v13053
          %v13055 = vpop.f32.mrb[0].mxu0
          %13056 = vdwg.mxu0
          %v13057 = vmax.f32 %v13054, 0.0
          %v13058 = vld [vmem:[%s7] sm:$0xff]
          %v13059 = vld [vmem:[%s7 + $0x8] sm:$0xff]
          %v13060 = vld [vmem:[%s7 + $0x10] sm:$0xff]
          %v13061 = vld [vmem:[%s7 + $0x18] sm:$0xff]
          %v13062 = vld [vmem:[%s7 + $0x20] sm:$0xff]
          %v13063 = vld [vmem:[%s7 + $0x28] sm:$0xff]
          %v13064 = vld [vmem:[%s7 + $0x30] sm:$0xff]
          %v13065 = vld [vmem:[%s7 + $0x38] sm:$0xff]
          %v13066 = vld [vmem:[#allocation12] sm:$0x1]
          %v13068 = vlaneseq
          %v13069 = vshrl.u32 %v13068, 7
          %v13070 = vsub.s32 0, %v13069
          %v13071 = vrot.slane %v13066, %v13070
          %vm13073 = vcmask 523264
          %v13075 = vsel %vm13073, %v13057, 0
          %13077 = vmatprep.subr.mxu0 0.0
          %13078 = vmatpush1.msra.mxu0 %v13058
          %13079 = vmatprep.subr.mxu0 0.0
          %13080 = vmatpush1.msra.mxu0 %v13059
          %13081 = vmatprep.subr.mxu0 0.0
          %13082 = vmatpush1.msra.mxu0 %v13060
          %13083 = vmatprep.subr.mxu0 0.0
          %13084 = vmatpush1.msra.mxu0 %v13061
          %13085 = vmatprep.subr.mxu0 0.0
          %13086 = vmatpush1.msra.mxu0 %v13062
          %13087 = vmatprep.subr.mxu0 0.0
          %13088 = vmatpush1.msra.mxu0 %v13063
          %13089 = vmatprep.subr.mxu0 0.0
          %13090 = vmatpush1.msra.mxu0 %v13064
          %13091 = vmatprep.subr.mxu0 0.0
          %13092 = vmatpush1.msra.mxu0 %v13065
          %13093 = vmatprep.subr.mxu0 0.0
          %13094 = vmatpush1.msra.mxu0 0.0
          %13095 = vmatprep.subr.mxu0 0.0
          %13096 = vmatpush1.msra.mxu0 0.0
          %13097 = vmatprep.subr.mxu0 0.0
          %13098 = vmatpush1.msra.mxu0 0.0
          %13099 = vmatprep.subr.mxu0 0.0
          %13100 = vmatpush1.msra.mxu0 0.0
          %13101 = vmatprep.subr.mxu0 0.0
          %13102 = vmatpush1.msra.mxu0 0.0
          %13103 = vmatprep.subr.mxu0 0.0
          %13104 = vmatpush1.msra.mxu0 0.0
          %13105 = vmatprep.subr.mxu0 0.0
          %13106 = vmatpush1.msra.mxu0 0.0
          %13107 = vmatprep.subr.mxu0 0.0
          %13108 = vmatpush1.msra.mxu0 0.0
          %13109 = vmatprep.subr.mxu0 0.0
          %13110 = vmatpush1.msra.mxu0 0.0
          %13111 = vmatprep.subr.mxu0 0.0
          %13112 = vmatpush1.msra.mxu0 0.0
          %13113 = vmatprep.subr.mxu0 0.0
          %13114 = vmatpush1.msra.mxu0 0.0
          %13115 = vmatprep.subr.mxu0 0.0
          %13116 = vmatpush1.msra.mxu0 0.0
          %13117 = vmatprep.subr.mxu0 0.0
          %13118 = vmatpush1.msra.mxu0 0.0
          %13119 = vmatprep.subr.mxu0 0.0
          %13120 = vmatpush1.msra.mxu0 0.0
          %13121 = vmatprep.subr.mxu0 0.0
          %13122 = vmatpush1.msra.mxu0 0.0
          %13123 = vmatprep.subr.mxu0 0.0
          %13124 = vmatpush1.msra.mxu0 0.0
          %13125 = vmatprep.subr.mxu0 0.0
          %13126 = vmatpush1.msra.mxu0 0.0
          %13127 = vmatprep.subr.mxu0 0.0
          %13128 = vmatpush1.msra.mxu0 0.0
          %13129 = vmatprep.subr.mxu0 0.0
          %13130 = vmatpush1.msra.mxu0 0.0
          %13131 = vmatprep.subr.mxu0 0.0
          %13132 = vmatpush1.msra.mxu0 0.0
          %13133 = vmatprep.subr.mxu0 0.0
          %13134 = vmatpush1.msra.mxu0 0.0
          %13135 = vmatprep.subr.mxu0 0.0
          %13136 = vmatpush1.msra.mxu0 0.0
          %13137 = vmatprep.subr.mxu0 0.0
          %13138 = vmatpush1.msra.mxu0 0.0
          %13139 = vmatprep.subr.mxu0 0.0
          %13140 = vmatpush1.msra.mxu0 0.0
          %13141 = vmatprep.mubr.f32.mxu0 0.0
          %13142 = vmatmul.mubr.f32.gmra.mrb[0].mxu0 %v13075
          %v13143 = vpop.f32.mrb[0].mxu0
          %v13144 = vadd.f32 %v13071, %v13143
          %v13145 = vpop.f32.mrb[0].mxu0
          %13146 = vdwg.mxu0
          %vm13147 = vcmask 33792
          %v13148 = vsel %vm13147, %v13144, -inf
          %13149 = vmax.xlane.f32.xlu0 %v13148
          %v13150 = vpop.xlane.xlu0 %13149
          %v13151 = vsub.f32 %v13144, %v13150
          %v13152 = vmul.f32 %v13151, 1.442695
          %v13153 = vpow.pop %v13152
          %v13154 = vsel %vm13147, %v13153, 0.0
          %13155 = vadd.xlane.f32.xlu0 %v13154
          %v13156 = vpop.xlane.xlu0 %13155
          %v13157 = vlog2.pop %v13156
          %v13158 = vmul.f32 %v13157, 0.6931472
          %v13159 = vadd.f32 %v13150, %v13158
          %v13160 = vsub.f32 %v13144, %v13159
          %13161 = vst.msk [vmem:[#allocation14] sm:$0x3] %vm13147, %v13160
        $region88: #{forward_fused.1} parent=55 // pred_fallthru
          _
        // Predicated region
        $region89: #{forward_fused.1} parent=55 // pred_check
          %p13162 = pneg %p234
        $region90: #{forward_fused.1} parent=55 // pred_check_branch
          %13164 = sbr.rel (%p13162) target = $region92
        $region91: #{forward_fused.1} parent=55 // pred_region
          %s13166 = ssub.s32 32, 32
          %13167 = vsyncadd [#allocation5], %s13166
          %s13169 = sshll.u32 [#allocation14], 4
          %s13170 = int_to_ptr.vmem [resolvable:$true] %s13169
          %13172 = dma.vmem_to_hbm [thread:$0]  %s13170, 32, %s9, [#allocation5]
        $region92: #{forward_fused.1} parent=55 // pred_fallthru
          _
        // Predicated region
        $region93: #{forward_fused.1} parent=55 // pred_check
          %p13173 = pneg %p234
        $region94: #{forward_fused.1} parent=55 // pred_check_branch
          %13175 = sbr.rel (%p13173) target = $region96
        $region95: #{forward_fused.1} parent=55 // pred_region
          %13176 = dma.done [#allocation5], 32
        $region96: #{forward_fused.1} parent=55 // pred_fallthru
          _
      $region56: #{forward_fused.1} parent=5 // pred_fallthru
        _
      %p13177 = scmp.le.s32.totalorder 2, %s22
      // Predicated region
      $region97: #{forward_fused.1} parent=5 // pred_check
        %p13178 = pneg %p13177
      $region98: #{forward_fused.1} parent=5 // pred_check_branch
        %13180 = sbr.rel (%p13178) target = $region100
      $region99: #{forward_fused.1} parent=5 // pred_region
        %s13181 = ssub.s32 %s22, 2
      $region100: #{forward_fused.1} parent=5 // pred_fallthru
        _
    $region6: #{forward_fused.1} parent=1 // loop_footer
      %s26 = sadd.s32 1, %s22
    $region7: #{forward_fused.1} parent=1 // loop_footer_branch
      %21 = sbr.rel target = $region3
    $region8: #{forward_fused.1} parent=1 // loop_exit
      _
    %13182 = vsyncpa [#allocation4], 1
    %s13183 = scalar_lea.sflag [#allocation4], 1
    %13184 = vsyncpa %s13183, 1
    %13185 = vsyncpa [#allocation7], 1
    %13186 = vsyncpa [#allocation10], 1
    %13187 = vsyncpa [#allocation13], 1
    %13188 = vsyncpa [#allocation5], 1
    %s13189 = scalar_lea.sflag [#allocation5], 1
    %13190 = vsyncpa %s13189, 1

</llo_original>
